<compile_context>
chip_gen: v7x
topology: tpu7x:2x2x1
jax: 0.10.0
libtpu: 0.0.40
codegen_flags: <defaults>
</compile_context>

<pallas_src>
import math

import jax
import jax.numpy as jnp
from jax import lax
from jax.experimental import pallas as pl
from jax.experimental.pallas import tpu as pltpu

# ----------------------------- configuration ------------------------------
VOCAB = 64      # vocab_size
EMB = 16        # emb_size
HID = 32        # hidden_size (per LSTM direction); enc_size = 2 * HID
OUT = 5         # output_size (SST: 5 classes), LogSoftmax head
B = 2           # batch
T = 8           # sequence length
PAD = 1         # padding_idx

LOWER, UPPER = -0.1, 1.1   # HardKuma stretched support

_VMEM = pl.BlockSpec(memory_space=pltpu.MemorySpace.VMEM)


# ----------------------------- in-kernel math ------------------------------
def _softplus(x):
    # matches torch.nn.Softplus(beta=1, threshold=20)
    return jnp.where(x > 20.0, x, jnp.log(1.0 + jnp.exp(jnp.minimum(x, 20.0))))


def _lgamma_pos(x):
    # lgamma(x) for x > 0: shift argument by +4, then Stirling series.
    # Branch-free, only log / reciprocal (Mosaic-lowerable); the 1/y correction
    # series uses the EUP approximate reciprocal (free slot, error << f32 eps
    # relative to the lgamma value).
    shift = jnp.zeros_like(x)
    y = x
    for _ in range(4):
        shift = shift + jnp.log(y)
        y = y + 1.0
    inv = pl.reciprocal(y, approx=True)
    inv2 = inv * inv
    series = inv * (1.0 / 12.0 - inv2 * (1.0 / 360.0 - inv2 * (1.0 / 1260.0)))
    return ((y - 0.5) * jnp.log(y) - y + 0.5 * math.log(2.0 * math.pi) + series) - shift


def _bidir_lstm(gx, m, whh_f, whh_b, hsf_ref, hsb_ref):
    """Fused forward+backward LSTM recurrence with packed-sequence mask gating.

    gx: [T*B, 8H] precomputed input-gate projections (cols [:4H] fwd, [4H:] bwd),
        time-major flat (row = t*B + b).
    m : [T*B, 1] float mask, same ordering.
    hsf_ref / hsb_ref: optional [T*B, H] VMEM refs for per-step outputs (masked to
        zero at padded steps, matching pad_packed_sequence); pass None to skip the
        stores (classifier path needs finals only).
    Returns (h_f_final, h_b_final): packed-sequence final hidden states, [B, H] each.
    """
    h4 = 4 * HID
    hf = jnp.zeros((B, HID), jnp.float32)
    cf = jnp.zeros((B, HID), jnp.float32)
    hb = jnp.zeros((B, HID), jnp.float32)
    cb = jnp.zeros((B, HID), jnp.float32)

    def cell(gates, c):
        # PyTorch LSTM gate order: i, f, g, o
        i = jax.nn.sigmoid(gates[:, 0 * HID:1 * HID])
        f = jax.nn.sigmoid(gates[:, 1 * HID:2 * HID])
        g = jnp.tanh(gates[:, 2 * HID:3 * HID])
        o = jax.nn.sigmoid(gates[:, 3 * HID:4 * HID])
        c_new = f * c + i * g
        return o * jnp.tanh(c_new), c_new

    # Static (fully unrolled) time loop; both directions per iteration for ILP.
    for s in range(T):
        rf = s * B               # forward processes t = s
        rb = (T - 1 - s) * B     # backward processes t = T-1-s
        mf = m[rf:rf + B]        # [B, 1]
        mb = m[rb:rb + B]
        gf = gx[rf:rf + B, :h4] + jnp.dot(hf, whh_f, preferred_element_type=jnp.float32)
        gb = gx[rb:rb + B, h4:] + jnp.dot(hb, whh_b, preferred_element_type=jnp.float32)
        hf_new, cf_new = cell(gf, cf)
        hb_new, cb_new = cell(gb, cb)
        # packed-seq semantics: freeze state at padded steps
        hf = mf * hf_new + (1.0 - mf) * hf
        cf = mf * cf_new + (1.0 - mf) * cf
        hb = mb * hb_new + (1.0 - mb) * hb
        cb = mb * cb_new + (1.0 - mb) * cb
        if hsf_ref is not None:
            hsf_ref[pl.ds(rf, B)] = hf * mf     # zero outputs at padded steps
            hsb_ref[pl.ds(rb, B)] = hb * mb
    return hf, hb


# ----------------------------- fused Pallas kernel ------------------------------
def fused_forward_kernel(
    x_ref,          # [N, 1] int32 time-major flattened token ids (row = t*B + b)
    emb_ref,        # [VOCAB, EMB]
    lat_wih_ref,    # [EMB, 8H]   cols [:4H] fwd (i,f,g,o) | [4H:] bwd
    lat_b_ref,      # [1, 8H]
    lat_whh_f_ref,  # [HID, 4H]
    lat_whh_b_ref,  # [HID, 4H]
    wab_ref,        # [2H, 2]     rows [:H] fwd-hidden, [H:] bwd-hidden; col0->a, col1->b
    bab_ref,        # [1, 2]
    clf_wih_ref,    # [EMB, 8H]
    clf_b_ref,      # [1, 8H]
    clf_whh_f_ref,  # [HID, 4H]
    clf_whh_b_ref,  # [HID, 4H]
    wo_ref,         # [2H, OUT]
    bo_ref,         # [1, OUT]
    y_ref,          # out: [B, OUT] log-probs
    z_ref,          # out: [N, 1] rationale gate (time-major flat)
    hsf_scr,        # scratch: [N, HID] latent fwd hidden states
    hsb_scr,        # scratch: [N, HID] latent bwd hidden states
):
    n = T * B
    h = HID

    # ---------- embedding lookup (one-hot MXU matmul, stays in VMEM) ----------
    x = x_ref[...]                                               # [N, 1] int32
    vocab_ids = lax.broadcasted_iota(jnp.int32, (n, VOCAB), 1)
    onehot = (x == vocab_ids).astype(jnp.float32)                # [N, VOCAB]
    e = jnp.dot(onehot, emb_ref[...], preferred_element_type=jnp.float32)  # [N, E]
    m = (x != PAD).astype(jnp.float32)                           # [N, 1]

    # ---------- latent BiLSTM: hoisted input projection + fused fwd/bwd loop ----------
    gx = jnp.dot(e, lat_wih_ref[...], preferred_element_type=jnp.float32) + lat_b_ref[...]
    _bidir_lstm(gx, m, lat_whh_f_ref[...], lat_whh_b_ref[...], hsf_scr, hsb_scr)

    # ---------- KumaGate + deterministic HardKuma selection ----------
    ab = (jnp.dot(hsf_scr[...], wab_ref[:h, :], preferred_element_type=jnp.float32)
          + jnp.dot(hsb_scr[...], wab_ref[h:, :], preferred_element_type=jnp.float32)
          + bab_ref[...])                                        # [N, 2]
    a = jnp.clip(_softplus(ab[:, 0:1]), 1e-6, 100.0)
    b = jnp.clip(_softplus(ab[:, 1:2]), 1e-6, 100.0)

    t0 = (0.0 - LOWER) / (UPPER - LOWER)   # stretched coordinate of 0
    t1 = (1.0 - LOWER) / (UPPER - LOWER)   # stretched coordinate of 1

    def kuma_cdf(t_const):
        # CDF(t) = 1 - (1 - t^a)^b, exp/log form
        ta = jnp.exp(a * math.log(t_const))
        return 1.0 - jnp.exp(b * jnp.log(jnp.maximum(1.0 - ta, 1e-30)))

    p0 = kuma_cdf(t0)          # P(z = 0)
    p1 = 1.0 - kuma_cdf(t1)    # P(z = 1)
    pc = 1.0 - p0 - p1         # P(0 < z < 1)

    # Kumaraswamy mean: b * Beta(1 + 1/a, b)
    ap = 1.0 + 1.0 / a
    lg_b = _lgamma_pos(b)
    lg_diff = jnp.where(
        ap > 1e4,
        # asymptotic lgamma(ap) - lgamma(ap + b) for huge ap (avoids f32 cancellation)
        -b * jnp.log(ap) - b * (b - 1.0) * 0.5 / ap,
        _lgamma_pos(ap) - _lgamma_pos(ap + b))
    mean = b * jnp.exp(lg_diff + lg_b)

    zero_one = jnp.where(p0 > p1, 0.0, 1.0)
    z = jnp.where((pc > p0) & (pc > p1), mean, zero_one)
    z = jnp.where(m > 0.0, z, 0.0)
    z_ref[...] = z

    # ---------- classifier BiLSTM on emb * (mask * z); final states only ----------
    e_clf = e * (m * z)
    gx_c = jnp.dot(e_clf, clf_wih_ref[...], preferred_element_type=jnp.float32) + clf_b_ref[...]
    hf_fin, hb_fin = _bidir_lstm(gx_c, m, clf_whh_f_ref[...], clf_whh_b_ref[...], None, None)

    # ---------- output head: Linear + LogSoftmax ----------
    logits = (jnp.dot(hf_fin, wo_ref[:h, :], preferred_element_type=jnp.float32)
              + jnp.dot(hb_fin, wo_ref[h:, :], preferred_element_type=jnp.float32)
              + bo_ref[...])
    mx = jnp.max(logits, axis=-1, keepdims=True)
    lse = jnp.log(jnp.sum(jnp.exp(logits - mx), axis=-1, keepdims=True)) + mx
    y_ref[...] = logits - lse


# ----------------------------- wrapper ------------------------------
def latent_rationale_forward(x, params):
    """x: [B, T] int32 token ids -> (log-probs [B, OUT], z [B, T])."""
    # Tiny XLA glue only: time-major flatten of 16 token ids.
    x_tm = jnp.transpose(x).reshape(T * B, 1)
    y, z_flat = pl.pallas_call(
        fused_forward_kernel,
        out_shape=(jax.ShapeDtypeStruct((B, OUT), jnp.float32),
                   jax.ShapeDtypeStruct((T * B, 1), jnp.float32)),
        in_specs=[_VMEM] * 14,
        out_specs=(_VMEM, _VMEM),
        scratch_shapes=[pltpu.VMEM((T * B, HID), jnp.float32),
                        pltpu.VMEM((T * B, HID), jnp.float32)],
    )(x_tm, params["embedding"],
      params["lat_wih"], params["lat_b"], params["lat_whh_f"], params["lat_whh_b"],
      params["w_ab"], params["b_ab"],
      params["clf_wih"], params["clf_b"], params["clf_whh_f"], params["clf_whh_b"],
      params["wo"], params["bo"])
    z = jnp.transpose(z_flat.reshape(T, B))   # [B, T] (16 floats of glue)
    return y, z


# ----------------------------- parameter init ------------------------------
def _uniform(key, shape, bound):
    return jax.random.uniform(key, shape, jnp.float32, -bound, bound)


def _init_bilstm(key, prefix):
    ks = jax.random.split(key, 8)
    bnd = 1.0 / math.sqrt(HID)
    wih_f = _uniform(ks[0], (EMB, 4 * HID), bnd)
    whh_f = _uniform(ks[1], (HID, 4 * HID), bnd)
    b_f = _uniform(ks[2], (1, 4 * HID), bnd) + _uniform(ks[3], (1, 4 * HID), bnd)
    wih_b = _uniform(ks[4], (EMB, 4 * HID), bnd)
    whh_b = _uniform(ks[5], (HID, 4 * HID), bnd)
    b_b = _uniform(ks[6], (1, 4 * HID), bnd) + _uniform(ks[7], (1, 4 * HID), bnd)
    return {
        prefix + "_wih": jnp.concatenate([wih_f, wih_b], axis=1),   # [E, 8H]
        prefix + "_b":   jnp.concatenate([b_f, b_b], axis=1),       # [1, 8H]
        prefix + "_whh_f": whh_f,                                   # [H, 4H]
        prefix + "_whh_b": whh_b,                                   # [H, 4H]
    }


def init_params(key):
    k_emb, k_lat, k_clf, k_a, k_ab, k_b, k_bb, k_o, k_ob = jax.random.split(key, 9)
    emb = jax.random.normal(k_emb, (VOCAB, EMB), jnp.float32)
    emb = emb.at[PAD].set(0.0)                 # padding_idx row = 0
    bnd = 1.0 / math.sqrt(2 * HID)
    params = {
        "embedding": emb,
        "w_ab": jnp.concatenate([_uniform(k_a, (2 * HID, 1), bnd),
                                 _uniform(k_b, (2 * HID, 1), bnd)], axis=1),   # [2H, 2]
        "b_ab": jnp.concatenate([_uniform(k_ab, (1, 1), bnd),
                                 _uniform(k_bb, (1, 1), bnd)], axis=1),        # [1, 2]
        "wo": _uniform(k_o, (2 * HID, OUT), bnd),
        "bo": _uniform(k_ob, (1, OUT), bnd),
    }
    params.update(_init_bilstm(k_lat, "lat"))
    params.update(_init_bilstm(k_clf, "clf"))
    return params


# ----------------------------- main ------------------------------
if __name__ == "__main__":
    key = jax.random.PRNGKey(0)
    pkey, xkey = jax.random.split(key)
    params = init_params(pkey)

    # tokens in [2, VOCAB), padded with PAD=1; lengths sorted descending
    lengths = jnp.array([T, 5])
    tok = jax.random.randint(xkey, (B, T), 2, VOCAB)
    x = jnp.where(jnp.arange(T)[None, :] < lengths[:, None], tok, PAD).astype(jnp.int32)

    fwd = jax.jit(lambda xx: latent_rationale_forward(xx, params))
    y, z = fwd(x)
    jax.block_until_ready((y, z))

    assert y.shape == (B, OUT) and z.shape == (B, T)
    assert bool(jnp.all(jnp.isfinite(y))) and bool(jnp.all(jnp.isfinite(z)))
    # log-softmax rows should (exp-)sum to ~1
    assert bool(jnp.all(jnp.abs(jnp.sum(jnp.exp(y), axis=-1) - 1.0) < 1e-4))
    # z must be zero at padded positions and lie in [0, 1]
    assert bool(jnp.all(jnp.where(x == PAD, z == 0.0, True)))
    assert bool(jnp.all((z >= -1e-5) & (z <= 1.0 + 1e-5)))
    print("KERNEL_OK")
</pallas_src>

<mosaic_0001>
module attributes {stable_mosaic.version = 11 : i64} {
  func.func @fused_forward_kernel(%arg0: memref<16x1xi32, #tpu.memory_space<vmem>>, %arg1: memref<64x16xf32, #tpu.memory_space<vmem>>, %arg2: memref<16x256xf32, #tpu.memory_space<vmem>>, %arg3: memref<1x256xf32, #tpu.memory_space<vmem>>, %arg4: memref<32x128xf32, #tpu.memory_space<vmem>>, %arg5: memref<32x128xf32, #tpu.memory_space<vmem>>, %arg6: memref<64x2xf32, #tpu.memory_space<vmem>>, %arg7: memref<1x2xf32, #tpu.memory_space<vmem>>, %arg8: memref<16x256xf32, #tpu.memory_space<vmem>>, %arg9: memref<1x256xf32, #tpu.memory_space<vmem>>, %arg10: memref<32x128xf32, #tpu.memory_space<vmem>>, %arg11: memref<32x128xf32, #tpu.memory_space<vmem>>, %arg12: memref<64x5xf32, #tpu.memory_space<vmem>>, %arg13: memref<1x5xf32, #tpu.memory_space<vmem>>, %arg14: memref<2x5xf32, #tpu.memory_space<vmem>>, %arg15: memref<16x1xf32, #tpu.memory_space<vmem>>, %arg16: memref<16x32xf32, #tpu.memory_space<vmem>>, %arg17: memref<16x32xf32, #tpu.memory_space<vmem>>) attributes {dimension_semantics = [], scalar_prefetch = 0 : i64, scratch_operands = 2 : i64, tpu.core_type = #tpu.core_type<tc>} {
    %c0 = arith.constant 0 : index
    %c0_0 = arith.constant 0 : index
    %0 = vector.load %arg0[%c0, %c0_0] : memref<16x1xi32, #tpu.memory_space<vmem>>, vector<16x1xi32>
    %1 = tpu.iota {dimensions = array<i32: 1>} : vector<16x64xi32>
    %2 = vector.broadcast %0 : vector<16x1xi32> to vector<16x64xi32>
    %3 = arith.cmpi eq, %2, %1 : vector<16x64xi32>
    %4 = arith.extui %3 : vector<16x64xi1> to vector<16x64xi32>
    %5 = arith.sitofp %4 : vector<16x64xi32> to vector<16x64xf32>
    %c0_1 = arith.constant 0 : index
    %c0_2 = arith.constant 0 : index
    %6 = vector.load %arg1[%c0_1, %c0_2] : memref<64x16xf32, #tpu.memory_space<vmem>>, vector<64x16xf32>
    %cst = arith.constant dense<0.000000e+00> : vector<16x16xf32>
    %7 = tpu.matmul %5, %6, %cst {dimension_numbers = #tpu.dot_dimension_numbers<[1], [0], [0], [1], [0, 0, 1, 1], [], []>} : vector<16x64xf32>, vector<64x16xf32>, vector<16x16xf32> -> vector<16x16xf32>
    %c1_i32 = arith.constant 1 : i32
    %8 = vector.broadcast %c1_i32 : i32 to vector<16x1xi32>
    %9 = arith.cmpi ne, %0, %8 : vector<16x1xi32>
    %10 = arith.extui %9 : vector<16x1xi1> to vector<16x1xi32>
    %11 = arith.sitofp %10 : vector<16x1xi32> to vector<16x1xf32>
    %c0_3 = arith.constant 0 : index
    %c0_4 = arith.constant 0 : index
    %12 = vector.load %arg2[%c0_3, %c0_4] : memref<16x256xf32, #tpu.memory_space<vmem>>, vector<16x256xf32>
    %cst_5 = arith.constant dense<0.000000e+00> : vector<16x256xf32>
    %13 = tpu.matmul %7, %12, %cst_5 {dimension_numbers = #tpu.dot_dimension_numbers<[1], [0], [0], [1], [0, 0, 1, 1], [], []>} : vector<16x16xf32>, vector<16x256xf32>, vector<16x256xf32> -> vector<16x256xf32>
    %c0_6 = arith.constant 0 : index
    %c0_7 = arith.constant 0 : index
    %14 = vector.load %arg3[%c0_6, %c0_7] : memref<1x256xf32, #tpu.memory_space<vmem>>, vector<1x256xf32>
    %15 = vector.broadcast %14 : vector<1x256xf32> to vector<16x256xf32>
    %16 = arith.addf %13, %15 : vector<16x256xf32>
    %c0_8 = arith.constant 0 : index
    %c0_9 = arith.constant 0 : index
    %17 = vector.load %arg4[%c0_8, %c0_9] : memref<32x128xf32, #tpu.memory_space<vmem>>, vector<32x128xf32>
    %c0_10 = arith.constant 0 : index
    %c0_11 = arith.constant 0 : index
    %18 = vector.load %arg5[%c0_10, %c0_11] : memref<32x128xf32, #tpu.memory_space<vmem>>, vector<32x128xf32>
    %cst_12 = arith.constant 0.000000e+00 : f32
    %19 = vector.broadcast %cst_12 : f32 to vector<2x32xf32>
    %cst_13 = arith.constant 0.000000e+00 : f32
    %20 = vector.broadcast %cst_13 : f32 to vector<2x32xf32>
    %cst_14 = arith.constant 0.000000e+00 : f32
    %21 = vector.broadcast %cst_14 : f32 to vector<2x32xf32>
    %cst_15 = arith.constant 0.000000e+00 : f32
    %22 = vector.broadcast %cst_15 : f32 to vector<2x32xf32>
    %23 = vector.extract_strided_slice %11 {offsets = [0, 0], sizes = [2, 1], strides = [1, 1]} : vector<16x1xf32> to vector<2x1xf32>
    %24 = vector.extract_strided_slice %11 {offsets = [14, 0], sizes = [2, 1], strides = [1, 1]} : vector<16x1xf32> to vector<2x1xf32>
    %25 = vector.extract_strided_slice %16 {offsets = [0, 0], sizes = [2, 128], strides = [1, 1]} : vector<16x256xf32> to vector<2x128xf32>
    %cst_16 = arith.constant dense<0.000000e+00> : vector<2x128xf32>
    %26 = tpu.matmul %19, %17, %cst_16 {dimension_numbers = #tpu.dot_dimension_numbers<[1], [0], [0], [1], [0, 0, 1, 1], [], []>} : vector<2x32xf32>, vector<32x128xf32>, vector<2x128xf32> -> vector<2x128xf32>
    %27 = arith.addf %25, %26 : vector<2x128xf32>
    %28 = vector.extract_strided_slice %16 {offsets = [14, 128], sizes = [2, 128], strides = [1, 1]} : vector<16x256xf32> to vector<2x128xf32>
    %cst_17 = arith.constant dense<0.000000e+00> : vector<2x128xf32>
    %29 = tpu.matmul %21, %18, %cst_17 {dimension_numbers = #tpu.dot_dimension_numbers<[1], [0], [0], [1], [0, 0, 1, 1], [], []>} : vector<2x32xf32>, vector<32x128xf32>, vector<2x128xf32> -> vector<2x128xf32>
    %30 = arith.addf %28, %29 : vector<2x128xf32>
    %31 = vector.extract_strided_slice %27 {offsets = [0, 0], sizes = [2, 32], strides = [1, 1]} : vector<2x128xf32> to vector<2x32xf32>
    %32 = arith.negf %31 : vector<2x32xf32>
    %33 = math.exp %32 : vector<2x32xf32>
    %cst_18 = arith.constant 1.000000e+00 : f32
    %34 = vector.broadcast %cst_18 : f32 to vector<2x32xf32>
    %35 = arith.addf %34, %33 : vector<2x32xf32>
    %36 = arith.divf %34, %35 : vector<2x32xf32>
    %37 = vector.extract_strided_slice %27 {offsets = [0, 32], sizes = [2, 32], strides = [1, 1]} : vector<2x128xf32> to vector<2x32xf32>
    %38 = arith.negf %37 : vector<2x32xf32>
    %39 = math.exp %38 : vector<2x32xf32>
    %cst_19 = arith.constant 1.000000e+00 : f32
    %40 = vector.broadcast %cst_19 : f32 to vector<2x32xf32>
    %41 = arith.addf %40, %39 : vector<2x32xf32>
    %42 = arith.divf %40, %41 : vector<2x32xf32>
    %43 = vector.extract_strided_slice %27 {offsets = [0, 64], sizes = [2, 32], strides = [1, 1]} : vector<2x128xf32> to vector<2x32xf32>
    %44 = math.tanh %43 : vector<2x32xf32>
    %45 = vector.extract_strided_slice %27 {offsets = [0, 96], sizes = [2, 32], strides = [1, 1]} : vector<2x128xf32> to vector<2x32xf32>
    %46 = arith.negf %45 : vector<2x32xf32>
    %47 = math.exp %46 : vector<2x32xf32>
    %cst_20 = arith.constant 1.000000e+00 : f32
    %48 = vector.broadcast %cst_20 : f32 to vector<2x32xf32>
    %49 = arith.addf %48, %47 : vector<2x32xf32>
    %50 = arith.divf %48, %49 : vector<2x32xf32>
    %51 = arith.mulf %42, %20 : vector<2x32xf32>
    %52 = arith.mulf %36, %44 : vector<2x32xf32>
    %53 = arith.addf %51, %52 : vector<2x32xf32>
    %54 = math.tanh %53 : vector<2x32xf32>
    %55 = arith.mulf %50, %54 : vector<2x32xf32>
    %56 = vector.extract_strided_slice %30 {offsets = [0, 0], sizes = [2, 32], strides = [1, 1]} : vector<2x128xf32> to vector<2x32xf32>
    %57 = arith.negf %56 : vector<2x32xf32>
    %58 = math.exp %57 : vector<2x32xf32>
    %cst_21 = arith.constant 1.000000e+00 : f32
    %59 = vector.broadcast %cst_21 : f32 to vector<2x32xf32>
    %60 = arith.addf %59, %58 : vector<2x32xf32>
    %61 = arith.divf %59, %60 : vector<2x32xf32>
    %62 = vector.extract_strided_slice %30 {offsets = [0, 32], sizes = [2, 32], strides = [1, 1]} : vector<2x128xf32> to vector<2x32xf32>
    %63 = arith.negf %62 : vector<2x32xf32>
    %64 = math.exp %63 : vector<2x32xf32>
    %cst_22 = arith.constant 1.000000e+00 : f32
    %65 = vector.broadcast %cst_22 : f32 to vector<2x32xf32>
    %66 = arith.addf %65, %64 : vector<2x32xf32>
    %67 = arith.divf %65, %66 : vector<2x32xf32>
    %68 = vector.extract_strided_slice %30 {offsets = [0, 64], sizes = [2, 32], strides = [1, 1]} : vector<2x128xf32> to vector<2x32xf32>
    %69 = math.tanh %68 : vector<2x32xf32>
    %70 = vector.extract_strided_slice %30 {offsets = [0, 96], sizes = [2, 32], strides = [1, 1]} : vector<2x128xf32> to vector<2x32xf32>
    %71 = arith.negf %70 : vector<2x32xf32>
    %72 = math.exp %71 : vector<2x32xf32>
    %cst_23 = arith.constant 1.000000e+00 : f32
    %73 = vector.broadcast %cst_23 : f32 to vector<2x32xf32>
    %74 = arith.addf %73, %72 : vector<2x32xf32>
    %75 = arith.divf %73, %74 : vector<2x32xf32>
    %76 = arith.mulf %67, %22 : vector<2x32xf32>
    %77 = arith.mulf %61, %69 : vector<2x32xf32>
    %78 = arith.addf %76, %77 : vector<2x32xf32>
    %79 = math.tanh %78 : vector<2x32xf32>
    %80 = arith.mulf %75, %79 : vector<2x32xf32>
    %81 = vector.broadcast %23 : vector<2x1xf32> to vector<2x32xf32>
    %82 = arith.mulf %81, %55 : vector<2x32xf32>
    %cst_24 = arith.constant 1.000000e+00 : f32
    %83 = vector.broadcast %cst_24 : f32 to vector<2x1xf32>
    %84 = arith.subf %83, %23 : vector<2x1xf32>
    %85 = vector.broadcast %84 : vector<2x1xf32> to vector<2x32xf32>
    %86 = arith.mulf %85, %19 : vector<2x32xf32>
    %87 = arith.addf %82, %86 : vector<2x32xf32>
    %88 = vector.broadcast %23 : vector<2x1xf32> to vector<2x32xf32>
    %89 = arith.mulf %88, %53 : vector<2x32xf32>
    %cst_25 = arith.constant 1.000000e+00 : f32
    %90 = vector.broadcast %cst_25 : f32 to vector<2x1xf32>
    %91 = arith.subf %90, %23 : vector<2x1xf32>
    %92 = vector.broadcast %91 : vector<2x1xf32> to vector<2x32xf32>
    %93 = arith.mulf %92, %20 : vector<2x32xf32>
    %94 = arith.addf %89, %93 : vector<2x32xf32>
    %95 = vector.broadcast %24 : vector<2x1xf32> to vector<2x32xf32>
    %96 = arith.mulf %95, %80 : vector<2x32xf32>
    %cst_26 = arith.constant 1.000000e+00 : f32
    %97 = vector.broadcast %cst_26 : f32 to vector<2x1xf32>
    %98 = arith.subf %97, %24 : vector<2x1xf32>
    %99 = vector.broadcast %98 : vector<2x1xf32> to vector<2x32xf32>
    %100 = arith.mulf %99, %21 : vector<2x32xf32>
    %101 = arith.addf %96, %100 : vector<2x32xf32>
    %102 = vector.broadcast %24 : vector<2x1xf32> to vector<2x32xf32>
    %103 = arith.mulf %102, %78 : vector<2x32xf32>
    %cst_27 = arith.constant 1.000000e+00 : f32
    %104 = vector.broadcast %cst_27 : f32 to vector<2x1xf32>
    %105 = arith.subf %104, %24 : vector<2x1xf32>
    %106 = vector.broadcast %105 : vector<2x1xf32> to vector<2x32xf32>
    %107 = arith.mulf %106, %22 : vector<2x32xf32>
    %108 = arith.addf %103, %107 : vector<2x32xf32>
    %109 = vector.broadcast %23 : vector<2x1xf32> to vector<2x32xf32>
    %110 = arith.mulf %87, %109 : vector<2x32xf32>
    %c0_28 = arith.constant 0 : index
    %c0_29 = arith.constant 0 : index
    %111 = vector.load %arg16[%c0_28, %c0_29] : memref<16x32xf32, #tpu.memory_space<vmem>>, vector<2x32xf32>
    tpu.vector_store %arg16[%c0_28, %c0_29], %110 {strides = array<i32>} : memref<16x32xf32, #tpu.memory_space<vmem>>, vector<2x32xf32>,
    %112 = vector.broadcast %24 : vector<2x1xf32> to vector<2x32xf32>
    %113 = arith.mulf %101, %112 : vector<2x32xf32>
    %c14 = arith.constant 14 : index
    %c0_30 = arith.constant 0 : index
    %114 = vector.load %arg17[%c14, %c0_30] : memref<16x32xf32, #tpu.memory_space<vmem>>, vector<2x32xf32>
    tpu.vector_store %arg17[%c14, %c0_30], %113 {strides = array<i32>} : memref<16x32xf32, #tpu.memory_space<vmem>>, vector<2x32xf32>,
    %115 = vector.extract_strided_slice %11 {offsets = [2, 0], sizes = [2, 1], strides = [1, 1]} : vector<16x1xf32> to vector<2x1xf32>
    %116 = vector.extract_strided_slice %11 {offsets = [12, 0], sizes = [2, 1], strides = [1, 1]} : vector<16x1xf32> to vector<2x1xf32>
    %117 = vector.extract_strided_slice %16 {offsets = [2, 0], sizes = [2, 128], strides = [1, 1]} : vector<16x256xf32> to vector<2x128xf32>
    %cst_31 = arith.constant dense<0.000000e+00> : vector<2x128xf32>
    %118 = tpu.matmul %87, %17, %cst_31 {dimension_numbers = #tpu.dot_dimension_numbers<[1], [0], [0], [1], [0, 0, 1, 1], [], []>} : vector<2x32xf32>, vector<32x128xf32>, vector<2x128xf32> -> vector<2x128xf32>
    %119 = arith.addf %117, %118 : vector<2x128xf32>
    %120 = vector.extract_strided_slice %16 {offsets = [12, 128], sizes = [2, 128], strides = [1, 1]} : vector<16x256xf32> to vector<2x128xf32>
    %cst_32 = arith.constant dense<0.000000e+00> : vector<2x128xf32>
    %121 = tpu.matmul %101, %18, %cst_32 {dimension_numbers = #tpu.dot_dimension_numbers<[1], [0], [0], [1], [0, 0, 1, 1], [], []>} : vector<2x32xf32>, vector<32x128xf32>, vector<2x128xf32> -> vector<2x128xf32>
    %122 = arith.addf %120, %121 : vector<2x128xf32>
    %123 = vector.extract_strided_slice %119 {offsets = [0, 0], sizes = [2, 32], strides = [1, 1]} : vector<2x128xf32> to vector<2x32xf32>
    %124 = arith.negf %123 : vector<2x32xf32>
    %125 = math.exp %124 : vector<2x32xf32>
    %cst_33 = arith.constant 1.000000e+00 : f32
    %126 = vector.broadcast %cst_33 : f32 to vector<2x32xf32>
    %127 = arith.addf %126, %125 : vector<2x32xf32>
    %128 = arith.divf %126, %127 : vector<2x32xf32>
    %129 = vector.extract_strided_slice %119 {offsets = [0, 32], sizes = [2, 32], strides = [1, 1]} : vector<2x128xf32> to vector<2x32xf32>
    %130 = arith.negf %129 : vector<2x32xf32>
    %131 = math.exp %130 : vector<2x32xf32>
    %cst_34 = arith.constant 1.000000e+00 : f32
    %132 = vector.broadcast %cst_34 : f32 to vector<2x32xf32>
    %133 = arith.addf %132, %131 : vector<2x32xf32>
    %134 = arith.divf %132, %133 : vector<2x32xf32>
    %135 = vector.extract_strided_slice %119 {offsets = [0, 64], sizes = [2, 32], strides = [1, 1]} : vector<2x128xf32> to vector<2x32xf32>
    %136 = math.tanh %135 : vector<2x32xf32>
    %137 = vector.extract_strided_slice %119 {offsets = [0, 96], sizes = [2, 32], strides = [1, 1]} : vector<2x128xf32> to vector<2x32xf32>
    %138 = arith.negf %137 : vector<2x32xf32>
    %139 = math.exp %138 : vector<2x32xf32>
    %cst_35 = arith.constant 1.000000e+00 : f32
    %140 = vector.broadcast %cst_35 : f32 to vector<2x32xf32>
    %141 = arith.addf %140, %139 : vector<2x32xf32>
    %142 = arith.divf %140, %141 : vector<2x32xf32>
    %143 = arith.mulf %134, %94 : vector<2x32xf32>
    %144 = arith.mulf %128, %136 : vector<2x32xf32>
    %145 = arith.addf %143, %144 : vector<2x32xf32>
    %146 = math.tanh %145 : vector<2x32xf32>
    %147 = arith.mulf %142, %146 : vector<2x32xf32>
    %148 = vector.extract_strided_slice %122 {offsets = [0, 0], sizes = [2, 32], strides = [1, 1]} : vector<2x128xf32> to vector<2x32xf32>
    %149 = arith.negf %148 : vector<2x32xf32>
    %150 = math.exp %149 : vector<2x32xf32>
    %cst_36 = arith.constant 1.000000e+00 : f32
    %151 = vector.broadcast %cst_36 : f32 to vector<2x32xf32>
    %152 = arith.addf %151, %150 : vector<2x32xf32>
    %153 = arith.divf %151, %152 : vector<2x32xf32>
    %154 = vector.extract_strided_slice %122 {offsets = [0, 32], sizes = [2, 32], strides = [1, 1]} : vector<2x128xf32> to vector<2x32xf32>
    %155 = arith.negf %154 : vector<2x32xf32>
    %156 = math.exp %155 : vector<2x32xf32>
    %cst_37 = arith.constant 1.000000e+00 : f32
    %157 = vector.broadcast %cst_37 : f32 to vector<2x32xf32>
    %158 = arith.addf %157, %156 : vector<2x32xf32>
    %159 = arith.divf %157, %158 : vector<2x32xf32>
    %160 = vector.extract_strided_slice %122 {offsets = [0, 64], sizes = [2, 32], strides = [1, 1]} : vector<2x128xf32> to vector<2x32xf32>
    %161 = math.tanh %160 : vector<2x32xf32>
    %162 = vector.extract_strided_slice %122 {offsets = [0, 96], sizes = [2, 32], strides = [1, 1]} : vector<2x128xf32> to vector<2x32xf32>
    %163 = arith.negf %162 : vector<2x32xf32>
    %164 = math.exp %163 : vector<2x32xf32>
    %cst_38 = arith.constant 1.000000e+00 : f32
    %165 = vector.broadcast %cst_38 : f32 to vector<2x32xf32>
    %166 = arith.addf %165, %164 : vector<2x32xf32>
    %167 = arith.divf %165, %166 : vector<2x32xf32>
    %168 = arith.mulf %159, %108 : vector<2x32xf32>
    %169 = arith.mulf %153, %161 : vector<2x32xf32>
    %170 = arith.addf %168, %169 : vector<2x32xf32>
    %171 = math.tanh %170 : vector<2x32xf32>
    %172 = arith.mulf %167, %171 : vector<2x32xf32>
    %173 = vector.broadcast %115 : vector<2x1xf32> to vector<2x32xf32>
    %174 = arith.mulf %173, %147 : vector<2x32xf32>
    %cst_39 = arith.constant 1.000000e+00 : f32
    %175 = vector.broadcast %cst_39 : f32 to vector<2x1xf32>
    %176 = arith.subf %175, %115 : vector<2x1xf32>
    %177 = vector.broadcast %176 : vector<2x1xf32> to vector<2x32xf32>
    %178 = arith.mulf %177, %87 : vector<2x32xf32>
    %179 = arith.addf %174, %178 : vector<2x32xf32>
    %180 = vector.broadcast %115 : vector<2x1xf32> to vector<2x32xf32>
    %181 = arith.mulf %180, %145 : vector<2x32xf32>
    %cst_40 = arith.constant 1.000000e+00 : f32
    %182 = vector.broadcast %cst_40 : f32 to vector<2x1xf32>
    %183 = arith.subf %182, %115 : vector<2x1xf32>
    %184 = vector.broadcast %183 : vector<2x1xf32> to vector<2x32xf32>
    %185 = arith.mulf %184, %94 : vector<2x32xf32>
    %186 = arith.addf %181, %185 : vector<2x32xf32>
    %187 = vector.broadcast %116 : vector<2x1xf32> to vector<2x32xf32>
    %188 = arith.mulf %187, %172 : vector<2x32xf32>
    %cst_41 = arith.constant 1.000000e+00 : f32
    %189 = vector.broadcast %cst_41 : f32 to vector<2x1xf32>
    %190 = arith.subf %189, %116 : vector<2x1xf32>
    %191 = vector.broadcast %190 : vector<2x1xf32> to vector<2x32xf32>
    %192 = arith.mulf %191, %101 : vector<2x32xf32>
    %193 = arith.addf %188, %192 : vector<2x32xf32>
    %194 = vector.broadcast %116 : vector<2x1xf32> to vector<2x32xf32>
    %195 = arith.mulf %194, %170 : vector<2x32xf32>
    %cst_42 = arith.constant 1.000000e+00 : f32
    %196 = vector.broadcast %cst_42 : f32 to vector<2x1xf32>
    %197 = arith.subf %196, %116 : vector<2x1xf32>
    %198 = vector.broadcast %197 : vector<2x1xf32> to vector<2x32xf32>
    %199 = arith.mulf %198, %108 : vector<2x32xf32>
    %200 = arith.addf %195, %199 : vector<2x32xf32>
    %201 = vector.broadcast %115 : vector<2x1xf32> to vector<2x32xf32>
    %202 = arith.mulf %179, %201 : vector<2x32xf32>
    %c2 = arith.constant 2 : index
    %c0_43 = arith.constant 0 : index
    %203 = vector.load %arg16[%c2, %c0_43] : memref<16x32xf32, #tpu.memory_space<vmem>>, vector<2x32xf32>
    tpu.vector_store %arg16[%c2, %c0_43], %202 {strides = array<i32>} : memref<16x32xf32, #tpu.memory_space<vmem>>, vector<2x32xf32>,
    %204 = vector.broadcast %116 : vector<2x1xf32> to vector<2x32xf32>
    %205 = arith.mulf %193, %204 : vector<2x32xf32>
    %c12 = arith.constant 12 : index
    %c0_44 = arith.constant 0 : index
    %206 = vector.load %arg17[%c12, %c0_44] : memref<16x32xf32, #tpu.memory_space<vmem>>, vector<2x32xf32>
    tpu.vector_store %arg17[%c12, %c0_44], %205 {strides = array<i32>} : memref<16x32xf32, #tpu.memory_space<vmem>>, vector<2x32xf32>,
    %207 = vector.extract_strided_slice %11 {offsets = [4, 0], sizes = [2, 1], strides = [1, 1]} : vector<16x1xf32> to vector<2x1xf32>
    %208 = vector.extract_strided_slice %11 {offsets = [10, 0], sizes = [2, 1], strides = [1, 1]} : vector<16x1xf32> to vector<2x1xf32>
    %209 = vector.extract_strided_slice %16 {offsets = [4, 0], sizes = [2, 128], strides = [1, 1]} : vector<16x256xf32> to vector<2x128xf32>
    %cst_45 = arith.constant dense<0.000000e+00> : vector<2x128xf32>
    %210 = tpu.matmul %179, %17, %cst_45 {dimension_numbers = #tpu.dot_dimension_numbers<[1], [0], [0], [1], [0, 0, 1, 1], [], []>} : vector<2x32xf32>, vector<32x128xf32>, vector<2x128xf32> -> vector<2x128xf32>
    %211 = arith.addf %209, %210 : vector<2x128xf32>
    %212 = vector.extract_strided_slice %16 {offsets = [10, 128], sizes = [2, 128], strides = [1, 1]} : vector<16x256xf32> to vector<2x128xf32>
    %cst_46 = arith.constant dense<0.000000e+00> : vector<2x128xf32>
    %213 = tpu.matmul %193, %18, %cst_46 {dimension_numbers = #tpu.dot_dimension_numbers<[1], [0], [0], [1], [0, 0, 1, 1], [], []>} : vector<2x32xf32>, vector<32x128xf32>, vector<2x128xf32> -> vector<2x128xf32>
    %214 = arith.addf %212, %213 : vector<2x128xf32>
    %215 = vector.extract_strided_slice %211 {offsets = [0, 0], sizes = [2, 32], strides = [1, 1]} : vector<2x128xf32> to vector<2x32xf32>
    %216 = arith.negf %215 : vector<2x32xf32>
    %217 = math.exp %216 : vector<2x32xf32>
    %cst_47 = arith.constant 1.000000e+00 : f32
    %218 = vector.broadcast %cst_47 : f32 to vector<2x32xf32>
    %219 = arith.addf %218, %217 : vector<2x32xf32>
    %220 = arith.divf %218, %219 : vector<2x32xf32>
    %221 = vector.extract_strided_slice %211 {offsets = [0, 32], sizes = [2, 32], strides = [1, 1]} : vector<2x128xf32> to vector<2x32xf32>
    %222 = arith.negf %221 : vector<2x32xf32>
    %223 = math.exp %222 : vector<2x32xf32>
    %cst_48 = arith.constant 1.000000e+00 : f32
    %224 = vector.broadcast %cst_48 : f32 to vector<2x32xf32>
    %225 = arith.addf %224, %223 : vector<2x32xf32>
    %226 = arith.divf %224, %225 : vector<2x32xf32>
    %227 = vector.extract_strided_slice %211 {offsets = [0, 64], sizes = [2, 32], strides = [1, 1]} : vector<2x128xf32> to vector<2x32xf32>
    %228 = math.tanh %227 : vector<2x32xf32>
    %229 = vector.extract_strided_slice %211 {offsets = [0, 96], sizes = [2, 32], strides = [1, 1]} : vector<2x128xf32> to vector<2x32xf32>
    %230 = arith.negf %229 : vector<2x32xf32>
    %231 = math.exp %230 : vector<2x32xf32>
    %cst_49 = arith.constant 1.000000e+00 : f32
    %232 = vector.broadcast %cst_49 : f32 to vector<2x32xf32>
    %233 = arith.addf %232, %231 : vector<2x32xf32>
    %234 = arith.divf %232, %233 : vector<2x32xf32>
    %235 = arith.mulf %226, %186 : vector<2x32xf32>
    %236 = arith.mulf %220, %228 : vector<2x32xf32>
    %237 = arith.addf %235, %236 : vector<2x32xf32>
    %238 = math.tanh %237 : vector<2x32xf32>
    %239 = arith.mulf %234, %238 : vector<2x32xf32>
    %240 = vector.extract_strided_slice %214 {offsets = [0, 0], sizes = [2, 32], strides = [1, 1]} : vector<2x128xf32> to vector<2x32xf32>
    %241 = arith.negf %240 : vector<2x32xf32>
    %242 = math.exp %241 : vector<2x32xf32>
    %cst_50 = arith.constant 1.000000e+00 : f32
    %243 = vector.broadcast %cst_50 : f32 to vector<2x32xf32>
    %244 = arith.addf %243, %242 : vector<2x32xf32>
    %245 = arith.divf %243, %244 : vector<2x32xf32>
    %246 = vector.extract_strided_slice %214 {offsets = [0, 32], sizes = [2, 32], strides = [1, 1]} : vector<2x128xf32> to vector<2x32xf32>
    %247 = arith.negf %246 : vector<2x32xf32>
    %248 = math.exp %247 : vector<2x32xf32>
    %cst_51 = arith.constant 1.000000e+00 : f32
    %249 = vector.broadcast %cst_51 : f32 to vector<2x32xf32>
    %250 = arith.addf %249, %248 : vector<2x32xf32>
    %251 = arith.divf %249, %250 : vector<2x32xf32>
    %252 = vector.extract_strided_slice %214 {offsets = [0, 64], sizes = [2, 32], strides = [1, 1]} : vector<2x128xf32> to vector<2x32xf32>
    %253 = math.tanh %252 : vector<2x32xf32>
    %254 = vector.extract_strided_slice %214 {offsets = [0, 96], sizes = [2, 32], strides = [1, 1]} : vector<2x128xf32> to vector<2x32xf32>
    %255 = arith.negf %254 : vector<2x32xf32>
    %256 = math.exp %255 : vector<2x32xf32>
    %cst_52 = arith.constant 1.000000e+00 : f32
    %257 = vector.broadcast %cst_52 : f32 to vector<2x32xf32>
    %258 = arith.addf %257, %256 : vector<2x32xf32>
    %259 = arith.divf %257, %258 : vector<2x32xf32>
    %260 = arith.mulf %251, %200 : vector<2x32xf32>
    %261 = arith.mulf %245, %253 : vector<2x32xf32>
    %262 = arith.addf %260, %261 : vector<2x32xf32>
    %263 = math.tanh %262 : vector<2x32xf32>
    %264 = arith.mulf %259, %263 : vector<2x32xf32>
    %265 = vector.broadcast %207 : vector<2x1xf32> to vector<2x32xf32>
    %266 = arith.mulf %265, %239 : vector<2x32xf32>
    %cst_53 = arith.constant 1.000000e+00 : f32
    %267 = vector.broadcast %cst_53 : f32 to vector<2x1xf32>
    %268 = arith.subf %267, %207 : vector<2x1xf32>
    %269 = vector.broadcast %268 : vector<2x1xf32> to vector<2x32xf32>
    %270 = arith.mulf %269, %179 : vector<2x32xf32>
    %271 = arith.addf %266, %270 : vector<2x32xf32>
    %272 = vector.broadcast %207 : vector<2x1xf32> to vector<2x32xf32>
    %273 = arith.mulf %272, %237 : vector<2x32xf32>
    %cst_54 = arith.constant 1.000000e+00 : f32
    %274 = vector.broadcast %cst_54 : f32 to vector<2x1xf32>
    %275 = arith.subf %274, %207 : vector<2x1xf32>
    %276 = vector.broadcast %275 : vector<2x1xf32> to vector<2x32xf32>
    %277 = arith.mulf %276, %186 : vector<2x32xf32>
    %278 = arith.addf %273, %277 : vector<2x32xf32>
    %279 = vector.broadcast %208 : vector<2x1xf32> to vector<2x32xf32>
    %280 = arith.mulf %279, %264 : vector<2x32xf32>
    %cst_55 = arith.constant 1.000000e+00 : f32
    %281 = vector.broadcast %cst_55 : f32 to vector<2x1xf32>
    %282 = arith.subf %281, %208 : vector<2x1xf32>
    %283 = vector.broadcast %282 : vector<2x1xf32> to vector<2x32xf32>
    %284 = arith.mulf %283, %193 : vector<2x32xf32>
    %285 = arith.addf %280, %284 : vector<2x32xf32>
    %286 = vector.broadcast %208 : vector<2x1xf32> to vector<2x32xf32>
    %287 = arith.mulf %286, %262 : vector<2x32xf32>
    %cst_56 = arith.constant 1.000000e+00 : f32
    %288 = vector.broadcast %cst_56 : f32 to vector<2x1xf32>
    %289 = arith.subf %288, %208 : vector<2x1xf32>
    %290 = vector.broadcast %289 : vector<2x1xf32> to vector<2x32xf32>
    %291 = arith.mulf %290, %200 : vector<2x32xf32>
    %292 = arith.addf %287, %291 : vector<2x32xf32>
    %293 = vector.broadcast %207 : vector<2x1xf32> to vector<2x32xf32>
    %294 = arith.mulf %271, %293 : vector<2x32xf32>
    %c4 = arith.constant 4 : index
    %c0_57 = arith.constant 0 : index
    %295 = vector.load %arg16[%c4, %c0_57] : memref<16x32xf32, #tpu.memory_space<vmem>>, vector<2x32xf32>
    tpu.vector_store %arg16[%c4, %c0_57], %294 {strides = array<i32>} : memref<16x32xf32, #tpu.memory_space<vmem>>, vector<2x32xf32>,
    %296 = vector.broadcast %208 : vector<2x1xf32> to vector<2x32xf32>
    %297 = arith.mulf %285, %296 : vector<2x32xf32>
    %c10 = arith.constant 10 : index
    %c0_58 = arith.constant 0 : index
    %298 = vector.load %arg17[%c10, %c0_58] : memref<16x32xf32, #tpu.memory_space<vmem>>, vector<2x32xf32>
    tpu.vector_store %arg17[%c10, %c0_58], %297 {strides = array<i32>} : memref<16x32xf32, #tpu.memory_space<vmem>>, vector<2x32xf32>,
    %299 = vector.extract_strided_slice %11 {offsets = [6, 0], sizes = [2, 1], strides = [1, 1]} : vector<16x1xf32> to vector<2x1xf32>
    %300 = vector.extract_strided_slice %11 {offsets = [8, 0], sizes = [2, 1], strides = [1, 1]} : vector<16x1xf32> to vector<2x1xf32>
    %301 = vector.extract_strided_slice %16 {offsets = [6, 0], sizes = [2, 128], strides = [1, 1]} : vector<16x256xf32> to vector<2x128xf32>
    %cst_59 = arith.constant dense<0.000000e+00> : vector<2x128xf32>
    %302 = tpu.matmul %271, %17, %cst_59 {dimension_numbers = #tpu.dot_dimension_numbers<[1], [0], [0], [1], [0, 0, 1, 1], [], []>} : vector<2x32xf32>, vector<32x128xf32>, vector<2x128xf32> -> vector<2x128xf32>
    %303 = arith.addf %301, %302 : vector<2x128xf32>
    %304 = vector.extract_strided_slice %16 {offsets = [8, 128], sizes = [2, 128], strides = [1, 1]} : vector<16x256xf32> to vector<2x128xf32>
    %cst_60 = arith.constant dense<0.000000e+00> : vector<2x128xf32>
    %305 = tpu.matmul %285, %18, %cst_60 {dimension_numbers = #tpu.dot_dimension_numbers<[1], [0], [0], [1], [0, 0, 1, 1], [], []>} : vector<2x32xf32>, vector<32x128xf32>, vector<2x128xf32> -> vector<2x128xf32>
    %306 = arith.addf %304, %305 : vector<2x128xf32>
    %307 = vector.extract_strided_slice %303 {offsets = [0, 0], sizes = [2, 32], strides = [1, 1]} : vector<2x128xf32> to vector<2x32xf32>
    %308 = arith.negf %307 : vector<2x32xf32>
    %309 = math.exp %308 : vector<2x32xf32>
    %cst_61 = arith.constant 1.000000e+00 : f32
    %310 = vector.broadcast %cst_61 : f32 to vector<2x32xf32>
    %311 = arith.addf %310, %309 : vector<2x32xf32>
    %312 = arith.divf %310, %311 : vector<2x32xf32>
    %313 = vector.extract_strided_slice %303 {offsets = [0, 32], sizes = [2, 32], strides = [1, 1]} : vector<2x128xf32> to vector<2x32xf32>
    %314 = arith.negf %313 : vector<2x32xf32>
    %315 = math.exp %314 : vector<2x32xf32>
    %cst_62 = arith.constant 1.000000e+00 : f32
    %316 = vector.broadcast %cst_62 : f32 to vector<2x32xf32>
    %317 = arith.addf %316, %315 : vector<2x32xf32>
    %318 = arith.divf %316, %317 : vector<2x32xf32>
    %319 = vector.extract_strided_slice %303 {offsets = [0, 64], sizes = [2, 32], strides = [1, 1]} : vector<2x128xf32> to vector<2x32xf32>
    %320 = math.tanh %319 : vector<2x32xf32>
    %321 = vector.extract_strided_slice %303 {offsets = [0, 96], sizes = [2, 32], strides = [1, 1]} : vector<2x128xf32> to vector<2x32xf32>
    %322 = arith.negf %321 : vector<2x32xf32>
    %323 = math.exp %322 : vector<2x32xf32>
    %cst_63 = arith.constant 1.000000e+00 : f32
    %324 = vector.broadcast %cst_63 : f32 to vector<2x32xf32>
    %325 = arith.addf %324, %323 : vector<2x32xf32>
    %326 = arith.divf %324, %325 : vector<2x32xf32>
    %327 = arith.mulf %318, %278 : vector<2x32xf32>
    %328 = arith.mulf %312, %320 : vector<2x32xf32>
    %329 = arith.addf %327, %328 : vector<2x32xf32>
    %330 = math.tanh %329 : vector<2x32xf32>
    %331 = arith.mulf %326, %330 : vector<2x32xf32>
    %332 = vector.extract_strided_slice %306 {offsets = [0, 0], sizes = [2, 32], strides = [1, 1]} : vector<2x128xf32> to vector<2x32xf32>
    %333 = arith.negf %332 : vector<2x32xf32>
    %334 = math.exp %333 : vector<2x32xf32>
    %cst_64 = arith.constant 1.000000e+00 : f32
    %335 = vector.broadcast %cst_64 : f32 to vector<2x32xf32>
    %336 = arith.addf %335, %334 : vector<2x32xf32>
    %337 = arith.divf %335, %336 : vector<2x32xf32>
    %338 = vector.extract_strided_slice %306 {offsets = [0, 32], sizes = [2, 32], strides = [1, 1]} : vector<2x128xf32> to vector<2x32xf32>
    %339 = arith.negf %338 : vector<2x32xf32>
    %340 = math.exp %339 : vector<2x32xf32>
    %cst_65 = arith.constant 1.000000e+00 : f32
    %341 = vector.broadcast %cst_65 : f32 to vector<2x32xf32>
    %342 = arith.addf %341, %340 : vector<2x32xf32>
    %343 = arith.divf %341, %342 : vector<2x32xf32>
    %344 = vector.extract_strided_slice %306 {offsets = [0, 64], sizes = [2, 32], strides = [1, 1]} : vector<2x128xf32> to vector<2x32xf32>
    %345 = math.tanh %344 : vector<2x32xf32>
    %346 = vector.extract_strided_slice %306 {offsets = [0, 96], sizes = [2, 32], strides = [1, 1]} : vector<2x128xf32> to vector<2x32xf32>
    %347 = arith.negf %346 : vector<2x32xf32>
    %348 = math.exp %347 : vector<2x32xf32>
    %cst_66 = arith.constant 1.000000e+00 : f32
    %349 = vector.broadcast %cst_66 : f32 to vector<2x32xf32>
    %350 = arith.addf %349, %348 : vector<2x32xf32>
    %351 = arith.divf %349, %350 : vector<2x32xf32>
    %352 = arith.mulf %343, %292 : vector<2x32xf32>
    %353 = arith.mulf %337, %345 : vector<2x32xf32>
    %354 = arith.addf %352, %353 : vector<2x32xf32>
    %355 = math.tanh %354 : vector<2x32xf32>
    %356 = arith.mulf %351, %355 : vector<2x32xf32>
    %357 = vector.broadcast %299 : vector<2x1xf32> to vector<2x32xf32>
    %358 = arith.mulf %357, %331 : vector<2x32xf32>
    %cst_67 = arith.constant 1.000000e+00 : f32
    %359 = vector.broadcast %cst_67 : f32 to vector<2x1xf32>
    %360 = arith.subf %359, %299 : vector<2x1xf32>
    %361 = vector.broadcast %360 : vector<2x1xf32> to vector<2x32xf32>
    %362 = arith.mulf %361, %271 : vector<2x32xf32>
    %363 = arith.addf %358, %362 : vector<2x32xf32>
    %364 = vector.broadcast %299 : vector<2x1xf32> to vector<2x32xf32>
    %365 = arith.mulf %364, %329 : vector<2x32xf32>
    %cst_68 = arith.constant 1.000000e+00 : f32
    %366 = vector.broadcast %cst_68 : f32 to vector<2x1xf32>
    %367 = arith.subf %366, %299 : vector<2x1xf32>
    %368 = vector.broadcast %367 : vector<2x1xf32> to vector<2x32xf32>
    %369 = arith.mulf %368, %278 : vector<2x32xf32>
    %370 = arith.addf %365, %369 : vector<2x32xf32>
    %371 = vector.broadcast %300 : vector<2x1xf32> to vector<2x32xf32>
    %372 = arith.mulf %371, %356 : vector<2x32xf32>
    %cst_69 = arith.constant 1.000000e+00 : f32
    %373 = vector.broadcast %cst_69 : f32 to vector<2x1xf32>
    %374 = arith.subf %373, %300 : vector<2x1xf32>
    %375 = vector.broadcast %374 : vector<2x1xf32> to vector<2x32xf32>
    %376 = arith.mulf %375, %285 : vector<2x32xf32>
    %377 = arith.addf %372, %376 : vector<2x32xf32>
    %378 = vector.broadcast %300 : vector<2x1xf32> to vector<2x32xf32>
    %379 = arith.mulf %378, %354 : vector<2x32xf32>
    %cst_70 = arith.constant 1.000000e+00 : f32
    %380 = vector.broadcast %cst_70 : f32 to vector<2x1xf32>
    %381 = arith.subf %380, %300 : vector<2x1xf32>
    %382 = vector.broadcast %381 : vector<2x1xf32> to vector<2x32xf32>
    %383 = arith.mulf %382, %292 : vector<2x32xf32>
    %384 = arith.addf %379, %383 : vector<2x32xf32>
    %385 = vector.broadcast %299 : vector<2x1xf32> to vector<2x32xf32>
    %386 = arith.mulf %363, %385 : vector<2x32xf32>
    %c6 = arith.constant 6 : index
    %c0_71 = arith.constant 0 : index
    %387 = vector.load %arg16[%c6, %c0_71] : memref<16x32xf32, #tpu.memory_space<vmem>>, vector<2x32xf32>
    tpu.vector_store %arg16[%c6, %c0_71], %386 {strides = array<i32>} : memref<16x32xf32, #tpu.memory_space<vmem>>, vector<2x32xf32>,
    %388 = vector.broadcast %300 : vector<2x1xf32> to vector<2x32xf32>
    %389 = arith.mulf %377, %388 : vector<2x32xf32>
    %c8 = arith.constant 8 : index
    %c0_72 = arith.constant 0 : index
    %390 = vector.load %arg17[%c8, %c0_72] : memref<16x32xf32, #tpu.memory_space<vmem>>, vector<2x32xf32>
    tpu.vector_store %arg17[%c8, %c0_72], %389 {strides = array<i32>} : memref<16x32xf32, #tpu.memory_space<vmem>>, vector<2x32xf32>,
    %391 = vector.extract_strided_slice %11 {offsets = [8, 0], sizes = [2, 1], strides = [1, 1]} : vector<16x1xf32> to vector<2x1xf32>
    %392 = vector.extract_strided_slice %11 {offsets = [6, 0], sizes = [2, 1], strides = [1, 1]} : vector<16x1xf32> to vector<2x1xf32>
    %393 = vector.extract_strided_slice %16 {offsets = [8, 0], sizes = [2, 128], strides = [1, 1]} : vector<16x256xf32> to vector<2x128xf32>
    %cst_73 = arith.constant dense<0.000000e+00> : vector<2x128xf32>
    %394 = tpu.matmul %363, %17, %cst_73 {dimension_numbers = #tpu.dot_dimension_numbers<[1], [0], [0], [1], [0, 0, 1, 1], [], []>} : vector<2x32xf32>, vector<32x128xf32>, vector<2x128xf32> -> vector<2x128xf32>
    %395 = arith.addf %393, %394 : vector<2x128xf32>
    %396 = vector.extract_strided_slice %16 {offsets = [6, 128], sizes = [2, 128], strides = [1, 1]} : vector<16x256xf32> to vector<2x128xf32>
    %cst_74 = arith.constant dense<0.000000e+00> : vector<2x128xf32>
    %397 = tpu.matmul %377, %18, %cst_74 {dimension_numbers = #tpu.dot_dimension_numbers<[1], [0], [0], [1], [0, 0, 1, 1], [], []>} : vector<2x32xf32>, vector<32x128xf32>, vector<2x128xf32> -> vector<2x128xf32>
    %398 = arith.addf %396, %397 : vector<2x128xf32>
    %399 = vector.extract_strided_slice %395 {offsets = [0, 0], sizes = [2, 32], strides = [1, 1]} : vector<2x128xf32> to vector<2x32xf32>
    %400 = arith.negf %399 : vector<2x32xf32>
    %401 = math.exp %400 : vector<2x32xf32>
    %cst_75 = arith.constant 1.000000e+00 : f32
    %402 = vector.broadcast %cst_75 : f32 to vector<2x32xf32>
    %403 = arith.addf %402, %401 : vector<2x32xf32>
    %404 = arith.divf %402, %403 : vector<2x32xf32>
    %405 = vector.extract_strided_slice %395 {offsets = [0, 32], sizes = [2, 32], strides = [1, 1]} : vector<2x128xf32> to vector<2x32xf32>
    %406 = arith.negf %405 : vector<2x32xf32>
    %407 = math.exp %406 : vector<2x32xf32>
    %cst_76 = arith.constant 1.000000e+00 : f32
    %408 = vector.broadcast %cst_76 : f32 to vector<2x32xf32>
    %409 = arith.addf %408, %407 : vector<2x32xf32>
    %410 = arith.divf %408, %409 : vector<2x32xf32>
    %411 = vector.extract_strided_slice %395 {offsets = [0, 64], sizes = [2, 32], strides = [1, 1]} : vector<2x128xf32> to vector<2x32xf32>
    %412 = math.tanh %411 : vector<2x32xf32>
    %413 = vector.extract_strided_slice %395 {offsets = [0, 96], sizes = [2, 32], strides = [1, 1]} : vector<2x128xf32> to vector<2x32xf32>
    %414 = arith.negf %413 : vector<2x32xf32>
    %415 = math.exp %414 : vector<2x32xf32>
    %cst_77 = arith.constant 1.000000e+00 : f32
    %416 = vector.broadcast %cst_77 : f32 to vector<2x32xf32>
    %417 = arith.addf %416, %415 : vector<2x32xf32>
    %418 = arith.divf %416, %417 : vector<2x32xf32>
    %419 = arith.mulf %410, %370 : vector<2x32xf32>
    %420 = arith.mulf %404, %412 : vector<2x32xf32>
    %421 = arith.addf %419, %420 : vector<2x32xf32>
    %422 = math.tanh %421 : vector<2x32xf32>
    %423 = arith.mulf %418, %422 : vector<2x32xf32>
    %424 = vector.extract_strided_slice %398 {offsets = [0, 0], sizes = [2, 32], strides = [1, 1]} : vector<2x128xf32> to vector<2x32xf32>
    %425 = arith.negf %424 : vector<2x32xf32>
    %426 = math.exp %425 : vector<2x32xf32>
    %cst_78 = arith.constant 1.000000e+00 : f32
    %427 = vector.broadcast %cst_78 : f32 to vector<2x32xf32>
    %428 = arith.addf %427, %426 : vector<2x32xf32>
    %429 = arith.divf %427, %428 : vector<2x32xf32>
    %430 = vector.extract_strided_slice %398 {offsets = [0, 32], sizes = [2, 32], strides = [1, 1]} : vector<2x128xf32> to vector<2x32xf32>
    %431 = arith.negf %430 : vector<2x32xf32>
    %432 = math.exp %431 : vector<2x32xf32>
    %cst_79 = arith.constant 1.000000e+00 : f32
    %433 = vector.broadcast %cst_79 : f32 to vector<2x32xf32>
    %434 = arith.addf %433, %432 : vector<2x32xf32>
    %435 = arith.divf %433, %434 : vector<2x32xf32>
    %436 = vector.extract_strided_slice %398 {offsets = [0, 64], sizes = [2, 32], strides = [1, 1]} : vector<2x128xf32> to vector<2x32xf32>
    %437 = math.tanh %436 : vector<2x32xf32>
    %438 = vector.extract_strided_slice %398 {offsets = [0, 96], sizes = [2, 32], strides = [1, 1]} : vector<2x128xf32> to vector<2x32xf32>
    %439 = arith.negf %438 : vector<2x32xf32>
    %440 = math.exp %439 : vector<2x32xf32>
    %cst_80 = arith.constant 1.000000e+00 : f32
    %441 = vector.broadcast %cst_80 : f32 to vector<2x32xf32>
    %442 = arith.addf %441, %440 : vector<2x32xf32>
    %443 = arith.divf %441, %442 : vector<2x32xf32>
    %444 = arith.mulf %435, %384 : vector<2x32xf32>
    %445 = arith.mulf %429, %437 : vector<2x32xf32>
    %446 = arith.addf %444, %445 : vector<2x32xf32>
    %447 = math.tanh %446 : vector<2x32xf32>
    %448 = arith.mulf %443, %447 : vector<2x32xf32>
    %449 = vector.broadcast %391 : vector<2x1xf32> to vector<2x32xf32>
    %450 = arith.mulf %449, %423 : vector<2x32xf32>
    %cst_81 = arith.constant 1.000000e+00 : f32
    %451 = vector.broadcast %cst_81 : f32 to vector<2x1xf32>
    %452 = arith.subf %451, %391 : vector<2x1xf32>
    %453 = vector.broadcast %452 : vector<2x1xf32> to vector<2x32xf32>
    %454 = arith.mulf %453, %363 : vector<2x32xf32>
    %455 = arith.addf %450, %454 : vector<2x32xf32>
    %456 = vector.broadcast %391 : vector<2x1xf32> to vector<2x32xf32>
    %457 = arith.mulf %456, %421 : vector<2x32xf32>
    %cst_82 = arith.constant 1.000000e+00 : f32
    %458 = vector.broadcast %cst_82 : f32 to vector<2x1xf32>
    %459 = arith.subf %458, %391 : vector<2x1xf32>
    %460 = vector.broadcast %459 : vector<2x1xf32> to vector<2x32xf32>
    %461 = arith.mulf %460, %370 : vector<2x32xf32>
    %462 = arith.addf %457, %461 : vector<2x32xf32>
    %463 = vector.broadcast %392 : vector<2x1xf32> to vector<2x32xf32>
    %464 = arith.mulf %463, %448 : vector<2x32xf32>
    %cst_83 = arith.constant 1.000000e+00 : f32
    %465 = vector.broadcast %cst_83 : f32 to vector<2x1xf32>
    %466 = arith.subf %465, %392 : vector<2x1xf32>
    %467 = vector.broadcast %466 : vector<2x1xf32> to vector<2x32xf32>
    %468 = arith.mulf %467, %377 : vector<2x32xf32>
    %469 = arith.addf %464, %468 : vector<2x32xf32>
    %470 = vector.broadcast %392 : vector<2x1xf32> to vector<2x32xf32>
    %471 = arith.mulf %470, %446 : vector<2x32xf32>
    %cst_84 = arith.constant 1.000000e+00 : f32
    %472 = vector.broadcast %cst_84 : f32 to vector<2x1xf32>
    %473 = arith.subf %472, %392 : vector<2x1xf32>
    %474 = vector.broadcast %473 : vector<2x1xf32> to vector<2x32xf32>
    %475 = arith.mulf %474, %384 : vector<2x32xf32>
    %476 = arith.addf %471, %475 : vector<2x32xf32>
    %477 = vector.broadcast %391 : vector<2x1xf32> to vector<2x32xf32>
    %478 = arith.mulf %455, %477 : vector<2x32xf32>
    %c8_85 = arith.constant 8 : index
    %c0_86 = arith.constant 0 : index
    %479 = vector.load %arg16[%c8_85, %c0_86] : memref<16x32xf32, #tpu.memory_space<vmem>>, vector<2x32xf32>
    tpu.vector_store %arg16[%c8_85, %c0_86], %478 {strides = array<i32>} : memref<16x32xf32, #tpu.memory_space<vmem>>, vector<2x32xf32>,
    %480 = vector.broadcast %392 : vector<2x1xf32> to vector<2x32xf32>
    %481 = arith.mulf %469, %480 : vector<2x32xf32>
    %c6_87 = arith.constant 6 : index
    %c0_88 = arith.constant 0 : index
    %482 = vector.load %arg17[%c6_87, %c0_88] : memref<16x32xf32, #tpu.memory_space<vmem>>, vector<2x32xf32>
    tpu.vector_store %arg17[%c6_87, %c0_88], %481 {strides = array<i32>} : memref<16x32xf32, #tpu.memory_space<vmem>>, vector<2x32xf32>,
    %483 = vector.extract_strided_slice %11 {offsets = [10, 0], sizes = [2, 1], strides = [1, 1]} : vector<16x1xf32> to vector<2x1xf32>
    %484 = vector.extract_strided_slice %11 {offsets = [4, 0], sizes = [2, 1], strides = [1, 1]} : vector<16x1xf32> to vector<2x1xf32>
    %485 = vector.extract_strided_slice %16 {offsets = [10, 0], sizes = [2, 128], strides = [1, 1]} : vector<16x256xf32> to vector<2x128xf32>
    %cst_89 = arith.constant dense<0.000000e+00> : vector<2x128xf32>
    %486 = tpu.matmul %455, %17, %cst_89 {dimension_numbers = #tpu.dot_dimension_numbers<[1], [0], [0], [1], [0, 0, 1, 1], [], []>} : vector<2x32xf32>, vector<32x128xf32>, vector<2x128xf32> -> vector<2x128xf32>
    %487 = arith.addf %485, %486 : vector<2x128xf32>
    %488 = vector.extract_strided_slice %16 {offsets = [4, 128], sizes = [2, 128], strides = [1, 1]} : vector<16x256xf32> to vector<2x128xf32>
    %cst_90 = arith.constant dense<0.000000e+00> : vector<2x128xf32>
    %489 = tpu.matmul %469, %18, %cst_90 {dimension_numbers = #tpu.dot_dimension_numbers<[1], [0], [0], [1], [0, 0, 1, 1], [], []>} : vector<2x32xf32>, vector<32x128xf32>, vector<2x128xf32> -> vector<2x128xf32>
    %490 = arith.addf %488, %489 : vector<2x128xf32>
    %491 = vector.extract_strided_slice %487 {offsets = [0, 0], sizes = [2, 32], strides = [1, 1]} : vector<2x128xf32> to vector<2x32xf32>
    %492 = arith.negf %491 : vector<2x32xf32>
    %493 = math.exp %492 : vector<2x32xf32>
    %cst_91 = arith.constant 1.000000e+00 : f32
    %494 = vector.broadcast %cst_91 : f32 to vector<2x32xf32>
    %495 = arith.addf %494, %493 : vector<2x32xf32>
    %496 = arith.divf %494, %495 : vector<2x32xf32>
    %497 = vector.extract_strided_slice %487 {offsets = [0, 32], sizes = [2, 32], strides = [1, 1]} : vector<2x128xf32> to vector<2x32xf32>
    %498 = arith.negf %497 : vector<2x32xf32>
    %499 = math.exp %498 : vector<2x32xf32>
    %cst_92 = arith.constant 1.000000e+00 : f32
    %500 = vector.broadcast %cst_92 : f32 to vector<2x32xf32>
    %501 = arith.addf %500, %499 : vector<2x32xf32>
    %502 = arith.divf %500, %501 : vector<2x32xf32>
    %503 = vector.extract_strided_slice %487 {offsets = [0, 64], sizes = [2, 32], strides = [1, 1]} : vector<2x128xf32> to vector<2x32xf32>
    %504 = math.tanh %503 : vector<2x32xf32>
    %505 = vector.extract_strided_slice %487 {offsets = [0, 96], sizes = [2, 32], strides = [1, 1]} : vector<2x128xf32> to vector<2x32xf32>
    %506 = arith.negf %505 : vector<2x32xf32>
    %507 = math.exp %506 : vector<2x32xf32>
    %cst_93 = arith.constant 1.000000e+00 : f32
    %508 = vector.broadcast %cst_93 : f32 to vector<2x32xf32>
    %509 = arith.addf %508, %507 : vector<2x32xf32>
    %510 = arith.divf %508, %509 : vector<2x32xf32>
    %511 = arith.mulf %502, %462 : vector<2x32xf32>
    %512 = arith.mulf %496, %504 : vector<2x32xf32>
    %513 = arith.addf %511, %512 : vector<2x32xf32>
    %514 = math.tanh %513 : vector<2x32xf32>
    %515 = arith.mulf %510, %514 : vector<2x32xf32>
    %516 = vector.extract_strided_slice %490 {offsets = [0, 0], sizes = [2, 32], strides = [1, 1]} : vector<2x128xf32> to vector<2x32xf32>
    %517 = arith.negf %516 : vector<2x32xf32>
    %518 = math.exp %517 : vector<2x32xf32>
    %cst_94 = arith.constant 1.000000e+00 : f32
    %519 = vector.broadcast %cst_94 : f32 to vector<2x32xf32>
    %520 = arith.addf %519, %518 : vector<2x32xf32>
    %521 = arith.divf %519, %520 : vector<2x32xf32>
    %522 = vector.extract_strided_slice %490 {offsets = [0, 32], sizes = [2, 32], strides = [1, 1]} : vector<2x128xf32> to vector<2x32xf32>
    %523 = arith.negf %522 : vector<2x32xf32>
    %524 = math.exp %523 : vector<2x32xf32>
    %cst_95 = arith.constant 1.000000e+00 : f32
    %525 = vector.broadcast %cst_95 : f32 to vector<2x32xf32>
    %526 = arith.addf %525, %524 : vector<2x32xf32>
    %527 = arith.divf %525, %526 : vector<2x32xf32>
    %528 = vector.extract_strided_slice %490 {offsets = [0, 64], sizes = [2, 32], strides = [1, 1]} : vector<2x128xf32> to vector<2x32xf32>
    %529 = math.tanh %528 : vector<2x32xf32>
    %530 = vector.extract_strided_slice %490 {offsets = [0, 96], sizes = [2, 32], strides = [1, 1]} : vector<2x128xf32> to vector<2x32xf32>
    %531 = arith.negf %530 : vector<2x32xf32>
    %532 = math.exp %531 : vector<2x32xf32>
    %cst_96 = arith.constant 1.000000e+00 : f32
    %533 = vector.broadcast %cst_96 : f32 to vector<2x32xf32>
    %534 = arith.addf %533, %532 : vector<2x32xf32>
    %535 = arith.divf %533, %534 : vector<2x32xf32>
    %536 = arith.mulf %527, %476 : vector<2x32xf32>
    %537 = arith.mulf %521, %529 : vector<2x32xf32>
    %538 = arith.addf %536, %537 : vector<2x32xf32>
    %539 = math.tanh %538 : vector<2x32xf32>
    %540 = arith.mulf %535, %539 : vector<2x32xf32>
    %541 = vector.broadcast %483 : vector<2x1xf32> to vector<2x32xf32>
    %542 = arith.mulf %541, %515 : vector<2x32xf32>
    %cst_97 = arith.constant 1.000000e+00 : f32
    %543 = vector.broadcast %cst_97 : f32 to vector<2x1xf32>
    %544 = arith.subf %543, %483 : vector<2x1xf32>
    %545 = vector.broadcast %544 : vector<2x1xf32> to vector<2x32xf32>
    %546 = arith.mulf %545, %455 : vector<2x32xf32>
    %547 = arith.addf %542, %546 : vector<2x32xf32>
    %548 = vector.broadcast %483 : vector<2x1xf32> to vector<2x32xf32>
    %549 = arith.mulf %548, %513 : vector<2x32xf32>
    %cst_98 = arith.constant 1.000000e+00 : f32
    %550 = vector.broadcast %cst_98 : f32 to vector<2x1xf32>
    %551 = arith.subf %550, %483 : vector<2x1xf32>
    %552 = vector.broadcast %551 : vector<2x1xf32> to vector<2x32xf32>
    %553 = arith.mulf %552, %462 : vector<2x32xf32>
    %554 = arith.addf %549, %553 : vector<2x32xf32>
    %555 = vector.broadcast %484 : vector<2x1xf32> to vector<2x32xf32>
    %556 = arith.mulf %555, %540 : vector<2x32xf32>
    %cst_99 = arith.constant 1.000000e+00 : f32
    %557 = vector.broadcast %cst_99 : f32 to vector<2x1xf32>
    %558 = arith.subf %557, %484 : vector<2x1xf32>
    %559 = vector.broadcast %558 : vector<2x1xf32> to vector<2x32xf32>
    %560 = arith.mulf %559, %469 : vector<2x32xf32>
    %561 = arith.addf %556, %560 : vector<2x32xf32>
    %562 = vector.broadcast %484 : vector<2x1xf32> to vector<2x32xf32>
    %563 = arith.mulf %562, %538 : vector<2x32xf32>
    %cst_100 = arith.constant 1.000000e+00 : f32
    %564 = vector.broadcast %cst_100 : f32 to vector<2x1xf32>
    %565 = arith.subf %564, %484 : vector<2x1xf32>
    %566 = vector.broadcast %565 : vector<2x1xf32> to vector<2x32xf32>
    %567 = arith.mulf %566, %476 : vector<2x32xf32>
    %568 = arith.addf %563, %567 : vector<2x32xf32>
    %569 = vector.broadcast %483 : vector<2x1xf32> to vector<2x32xf32>
    %570 = arith.mulf %547, %569 : vector<2x32xf32>
    %c10_101 = arith.constant 10 : index
    %c0_102 = arith.constant 0 : index
    %571 = vector.load %arg16[%c10_101, %c0_102] : memref<16x32xf32, #tpu.memory_space<vmem>>, vector<2x32xf32>
    tpu.vector_store %arg16[%c10_101, %c0_102], %570 {strides = array<i32>} : memref<16x32xf32, #tpu.memory_space<vmem>>, vector<2x32xf32>,
    %572 = vector.broadcast %484 : vector<2x1xf32> to vector<2x32xf32>
    %573 = arith.mulf %561, %572 : vector<2x32xf32>
    %c4_103 = arith.constant 4 : index
    %c0_104 = arith.constant 0 : index
    %574 = vector.load %arg17[%c4_103, %c0_104] : memref<16x32xf32, #tpu.memory_space<vmem>>, vector<2x32xf32>
    tpu.vector_store %arg17[%c4_103, %c0_104], %573 {strides = array<i32>} : memref<16x32xf32, #tpu.memory_space<vmem>>, vector<2x32xf32>,
    %575 = vector.extract_strided_slice %11 {offsets = [12, 0], sizes = [2, 1], strides = [1, 1]} : vector<16x1xf32> to vector<2x1xf32>
    %576 = vector.extract_strided_slice %11 {offsets = [2, 0], sizes = [2, 1], strides = [1, 1]} : vector<16x1xf32> to vector<2x1xf32>
    %577 = vector.extract_strided_slice %16 {offsets = [12, 0], sizes = [2, 128], strides = [1, 1]} : vector<16x256xf32> to vector<2x128xf32>
    %cst_105 = arith.constant dense<0.000000e+00> : vector<2x128xf32>
    %578 = tpu.matmul %547, %17, %cst_105 {dimension_numbers = #tpu.dot_dimension_numbers<[1], [0], [0], [1], [0, 0, 1, 1], [], []>} : vector<2x32xf32>, vector<32x128xf32>, vector<2x128xf32> -> vector<2x128xf32>
    %579 = arith.addf %577, %578 : vector<2x128xf32>
    %580 = vector.extract_strided_slice %16 {offsets = [2, 128], sizes = [2, 128], strides = [1, 1]} : vector<16x256xf32> to vector<2x128xf32>
    %cst_106 = arith.constant dense<0.000000e+00> : vector<2x128xf32>
    %581 = tpu.matmul %561, %18, %cst_106 {dimension_numbers = #tpu.dot_dimension_numbers<[1], [0], [0], [1], [0, 0, 1, 1], [], []>} : vector<2x32xf32>, vector<32x128xf32>, vector<2x128xf32> -> vector<2x128xf32>
    %582 = arith.addf %580, %581 : vector<2x128xf32>
    %583 = vector.extract_strided_slice %579 {offsets = [0, 0], sizes = [2, 32], strides = [1, 1]} : vector<2x128xf32> to vector<2x32xf32>
    %584 = arith.negf %583 : vector<2x32xf32>
    %585 = math.exp %584 : vector<2x32xf32>
    %cst_107 = arith.constant 1.000000e+00 : f32
    %586 = vector.broadcast %cst_107 : f32 to vector<2x32xf32>
    %587 = arith.addf %586, %585 : vector<2x32xf32>
    %588 = arith.divf %586, %587 : vector<2x32xf32>
    %589 = vector.extract_strided_slice %579 {offsets = [0, 32], sizes = [2, 32], strides = [1, 1]} : vector<2x128xf32> to vector<2x32xf32>
    %590 = arith.negf %589 : vector<2x32xf32>
    %591 = math.exp %590 : vector<2x32xf32>
    %cst_108 = arith.constant 1.000000e+00 : f32
    %592 = vector.broadcast %cst_108 : f32 to vector<2x32xf32>
    %593 = arith.addf %592, %591 : vector<2x32xf32>
    %594 = arith.divf %592, %593 : vector<2x32xf32>
    %595 = vector.extract_strided_slice %579 {offsets = [0, 64], sizes = [2, 32], strides = [1, 1]} : vector<2x128xf32> to vector<2x32xf32>
    %596 = math.tanh %595 : vector<2x32xf32>
    %597 = vector.extract_strided_slice %579 {offsets = [0, 96], sizes = [2, 32], strides = [1, 1]} : vector<2x128xf32> to vector<2x32xf32>
    %598 = arith.negf %597 : vector<2x32xf32>
    %599 = math.exp %598 : vector<2x32xf32>
    %cst_109 = arith.constant 1.000000e+00 : f32
    %600 = vector.broadcast %cst_109 : f32 to vector<2x32xf32>
    %601 = arith.addf %600, %599 : vector<2x32xf32>
    %602 = arith.divf %600, %601 : vector<2x32xf32>
    %603 = arith.mulf %594, %554 : vector<2x32xf32>
    %604 = arith.mulf %588, %596 : vector<2x32xf32>
    %605 = arith.addf %603, %604 : vector<2x32xf32>
    %606 = math.tanh %605 : vector<2x32xf32>
    %607 = arith.mulf %602, %606 : vector<2x32xf32>
    %608 = vector.extract_strided_slice %582 {offsets = [0, 0], sizes = [2, 32], strides = [1, 1]} : vector<2x128xf32> to vector<2x32xf32>
    %609 = arith.negf %608 : vector<2x32xf32>
    %610 = math.exp %609 : vector<2x32xf32>
    %cst_110 = arith.constant 1.000000e+00 : f32
    %611 = vector.broadcast %cst_110 : f32 to vector<2x32xf32>
    %612 = arith.addf %611, %610 : vector<2x32xf32>
    %613 = arith.divf %611, %612 : vector<2x32xf32>
    %614 = vector.extract_strided_slice %582 {offsets = [0, 32], sizes = [2, 32], strides = [1, 1]} : vector<2x128xf32> to vector<2x32xf32>
    %615 = arith.negf %614 : vector<2x32xf32>
    %616 = math.exp %615 : vector<2x32xf32>
    %cst_111 = arith.constant 1.000000e+00 : f32
    %617 = vector.broadcast %cst_111 : f32 to vector<2x32xf32>
    %618 = arith.addf %617, %616 : vector<2x32xf32>
    %619 = arith.divf %617, %618 : vector<2x32xf32>
    %620 = vector.extract_strided_slice %582 {offsets = [0, 64], sizes = [2, 32], strides = [1, 1]} : vector<2x128xf32> to vector<2x32xf32>
    %621 = math.tanh %620 : vector<2x32xf32>
    %622 = vector.extract_strided_slice %582 {offsets = [0, 96], sizes = [2, 32], strides = [1, 1]} : vector<2x128xf32> to vector<2x32xf32>
    %623 = arith.negf %622 : vector<2x32xf32>
    %624 = math.exp %623 : vector<2x32xf32>
    %cst_112 = arith.constant 1.000000e+00 : f32
    %625 = vector.broadcast %cst_112 : f32 to vector<2x32xf32>
    %626 = arith.addf %625, %624 : vector<2x32xf32>
    %627 = arith.divf %625, %626 : vector<2x32xf32>
    %628 = arith.mulf %619, %568 : vector<2x32xf32>
    %629 = arith.mulf %613, %621 : vector<2x32xf32>
    %630 = arith.addf %628, %629 : vector<2x32xf32>
    %631 = math.tanh %630 : vector<2x32xf32>
    %632 = arith.mulf %627, %631 : vector<2x32xf32>
    %633 = vector.broadcast %575 : vector<2x1xf32> to vector<2x32xf32>
    %634 = arith.mulf %633, %607 : vector<2x32xf32>
    %cst_113 = arith.constant 1.000000e+00 : f32
    %635 = vector.broadcast %cst_113 : f32 to vector<2x1xf32>
    %636 = arith.subf %635, %575 : vector<2x1xf32>
    %637 = vector.broadcast %636 : vector<2x1xf32> to vector<2x32xf32>
    %638 = arith.mulf %637, %547 : vector<2x32xf32>
    %639 = arith.addf %634, %638 : vector<2x32xf32>
    %640 = vector.broadcast %575 : vector<2x1xf32> to vector<2x32xf32>
    %641 = arith.mulf %640, %605 : vector<2x32xf32>
    %cst_114 = arith.constant 1.000000e+00 : f32
    %642 = vector.broadcast %cst_114 : f32 to vector<2x1xf32>
    %643 = arith.subf %642, %575 : vector<2x1xf32>
    %644 = vector.broadcast %643 : vector<2x1xf32> to vector<2x32xf32>
    %645 = arith.mulf %644, %554 : vector<2x32xf32>
    %646 = arith.addf %641, %645 : vector<2x32xf32>
    %647 = vector.broadcast %576 : vector<2x1xf32> to vector<2x32xf32>
    %648 = arith.mulf %647, %632 : vector<2x32xf32>
    %cst_115 = arith.constant 1.000000e+00 : f32
    %649 = vector.broadcast %cst_115 : f32 to vector<2x1xf32>
    %650 = arith.subf %649, %576 : vector<2x1xf32>
    %651 = vector.broadcast %650 : vector<2x1xf32> to vector<2x32xf32>
    %652 = arith.mulf %651, %561 : vector<2x32xf32>
    %653 = arith.addf %648, %652 : vector<2x32xf32>
    %654 = vector.broadcast %576 : vector<2x1xf32> to vector<2x32xf32>
    %655 = arith.mulf %654, %630 : vector<2x32xf32>
    %cst_116 = arith.constant 1.000000e+00 : f32
    %656 = vector.broadcast %cst_116 : f32 to vector<2x1xf32>
    %657 = arith.subf %656, %576 : vector<2x1xf32>
    %658 = vector.broadcast %657 : vector<2x1xf32> to vector<2x32xf32>
    %659 = arith.mulf %658, %568 : vector<2x32xf32>
    %660 = arith.addf %655, %659 : vector<2x32xf32>
    %661 = vector.broadcast %575 : vector<2x1xf32> to vector<2x32xf32>
    %662 = arith.mulf %639, %661 : vector<2x32xf32>
    %c12_117 = arith.constant 12 : index
    %c0_118 = arith.constant 0 : index
    %663 = vector.load %arg16[%c12_117, %c0_118] : memref<16x32xf32, #tpu.memory_space<vmem>>, vector<2x32xf32>
    tpu.vector_store %arg16[%c12_117, %c0_118], %662 {strides = array<i32>} : memref<16x32xf32, #tpu.memory_space<vmem>>, vector<2x32xf32>,
    %664 = vector.broadcast %576 : vector<2x1xf32> to vector<2x32xf32>
    %665 = arith.mulf %653, %664 : vector<2x32xf32>
    %c2_119 = arith.constant 2 : index
    %c0_120 = arith.constant 0 : index
    %666 = vector.load %arg17[%c2_119, %c0_120] : memref<16x32xf32, #tpu.memory_space<vmem>>, vector<2x32xf32>
    tpu.vector_store %arg17[%c2_119, %c0_120], %665 {strides = array<i32>} : memref<16x32xf32, #tpu.memory_space<vmem>>, vector<2x32xf32>,
    %667 = vector.extract_strided_slice %11 {offsets = [14, 0], sizes = [2, 1], strides = [1, 1]} : vector<16x1xf32> to vector<2x1xf32>
    %668 = vector.extract_strided_slice %11 {offsets = [0, 0], sizes = [2, 1], strides = [1, 1]} : vector<16x1xf32> to vector<2x1xf32>
    %669 = vector.extract_strided_slice %16 {offsets = [14, 0], sizes = [2, 128], strides = [1, 1]} : vector<16x256xf32> to vector<2x128xf32>
    %cst_121 = arith.constant dense<0.000000e+00> : vector<2x128xf32>
    %670 = tpu.matmul %639, %17, %cst_121 {dimension_numbers = #tpu.dot_dimension_numbers<[1], [0], [0], [1], [0, 0, 1, 1], [], []>} : vector<2x32xf32>, vector<32x128xf32>, vector<2x128xf32> -> vector<2x128xf32>
    %671 = arith.addf %669, %670 : vector<2x128xf32>
    %672 = vector.extract_strided_slice %16 {offsets = [0, 128], sizes = [2, 128], strides = [1, 1]} : vector<16x256xf32> to vector<2x128xf32>
    %cst_122 = arith.constant dense<0.000000e+00> : vector<2x128xf32>
    %673 = tpu.matmul %653, %18, %cst_122 {dimension_numbers = #tpu.dot_dimension_numbers<[1], [0], [0], [1], [0, 0, 1, 1], [], []>} : vector<2x32xf32>, vector<32x128xf32>, vector<2x128xf32> -> vector<2x128xf32>
    %674 = arith.addf %672, %673 : vector<2x128xf32>
    %675 = vector.extract_strided_slice %671 {offsets = [0, 0], sizes = [2, 32], strides = [1, 1]} : vector<2x128xf32> to vector<2x32xf32>
    %676 = arith.negf %675 : vector<2x32xf32>
    %677 = math.exp %676 : vector<2x32xf32>
    %cst_123 = arith.constant 1.000000e+00 : f32
    %678 = vector.broadcast %cst_123 : f32 to vector<2x32xf32>
    %679 = arith.addf %678, %677 : vector<2x32xf32>
    %680 = arith.divf %678, %679 : vector<2x32xf32>
    %681 = vector.extract_strided_slice %671 {offsets = [0, 32], sizes = [2, 32], strides = [1, 1]} : vector<2x128xf32> to vector<2x32xf32>
    %682 = arith.negf %681 : vector<2x32xf32>
    %683 = math.exp %682 : vector<2x32xf32>
    %cst_124 = arith.constant 1.000000e+00 : f32
    %684 = vector.broadcast %cst_124 : f32 to vector<2x32xf32>
    %685 = arith.addf %684, %683 : vector<2x32xf32>
    %686 = arith.divf %684, %685 : vector<2x32xf32>
    %687 = vector.extract_strided_slice %671 {offsets = [0, 64], sizes = [2, 32], strides = [1, 1]} : vector<2x128xf32> to vector<2x32xf32>
    %688 = math.tanh %687 : vector<2x32xf32>
    %689 = vector.extract_strided_slice %671 {offsets = [0, 96], sizes = [2, 32], strides = [1, 1]} : vector<2x128xf32> to vector<2x32xf32>
    %690 = arith.negf %689 : vector<2x32xf32>
    %691 = math.exp %690 : vector<2x32xf32>
    %cst_125 = arith.constant 1.000000e+00 : f32
    %692 = vector.broadcast %cst_125 : f32 to vector<2x32xf32>
    %693 = arith.addf %692, %691 : vector<2x32xf32>
    %694 = arith.divf %692, %693 : vector<2x32xf32>
    %695 = arith.mulf %686, %646 : vector<2x32xf32>
    %696 = arith.mulf %680, %688 : vector<2x32xf32>
    %697 = arith.addf %695, %696 : vector<2x32xf32>
    %698 = math.tanh %697 : vector<2x32xf32>
    %699 = arith.mulf %694, %698 : vector<2x32xf32>
    %700 = vector.extract_strided_slice %674 {offsets = [0, 0], sizes = [2, 32], strides = [1, 1]} : vector<2x128xf32> to vector<2x32xf32>
    %701 = arith.negf %700 : vector<2x32xf32>
    %702 = math.exp %701 : vector<2x32xf32>
    %cst_126 = arith.constant 1.000000e+00 : f32
    %703 = vector.broadcast %cst_126 : f32 to vector<2x32xf32>
    %704 = arith.addf %703, %702 : vector<2x32xf32>
    %705 = arith.divf %703, %704 : vector<2x32xf32>
    %706 = vector.extract_strided_slice %674 {offsets = [0, 32], sizes = [2, 32], strides = [1, 1]} : vector<2x128xf32> to vector<2x32xf32>
    %707 = arith.negf %706 : vector<2x32xf32>
    %708 = math.exp %707 : vector<2x32xf32>
    %cst_127 = arith.constant 1.000000e+00 : f32
    %709 = vector.broadcast %cst_127 : f32 to vector<2x32xf32>
    %710 = arith.addf %709, %708 : vector<2x32xf32>
    %711 = arith.divf %709, %710 : vector<2x32xf32>
    %712 = vector.extract_strided_slice %674 {offsets = [0, 64], sizes = [2, 32], strides = [1, 1]} : vector<2x128xf32> to vector<2x32xf32>
    %713 = math.tanh %712 : vector<2x32xf32>
    %714 = vector.extract_strided_slice %674 {offsets = [0, 96], sizes = [2, 32], strides = [1, 1]} : vector<2x128xf32> to vector<2x32xf32>
    %715 = arith.negf %714 : vector<2x32xf32>
    %716 = math.exp %715 : vector<2x32xf32>
    %cst_128 = arith.constant 1.000000e+00 : f32
    %717 = vector.broadcast %cst_128 : f32 to vector<2x32xf32>
    %718 = arith.addf %717, %716 : vector<2x32xf32>
    %719 = arith.divf %717, %718 : vector<2x32xf32>
    %720 = arith.mulf %711, %660 : vector<2x32xf32>
    %721 = arith.mulf %705, %713 : vector<2x32xf32>
    %722 = arith.addf %720, %721 : vector<2x32xf32>
    %723 = math.tanh %722 : vector<2x32xf32>
    %724 = arith.mulf %719, %723 : vector<2x32xf32>
    %725 = vector.broadcast %667 : vector<2x1xf32> to vector<2x32xf32>
    %726 = arith.mulf %725, %699 : vector<2x32xf32>
    %cst_129 = arith.constant 1.000000e+00 : f32
    %727 = vector.broadcast %cst_129 : f32 to vector<2x1xf32>
    %728 = arith.subf %727, %667 : vector<2x1xf32>
    %729 = vector.broadcast %728 : vector<2x1xf32> to vector<2x32xf32>
    %730 = arith.mulf %729, %639 : vector<2x32xf32>
    %731 = arith.addf %726, %730 : vector<2x32xf32>
    %732 = vector.broadcast %668 : vector<2x1xf32> to vector<2x32xf32>
    %733 = arith.mulf %732, %724 : vector<2x32xf32>
    %cst_130 = arith.constant 1.000000e+00 : f32
    %734 = vector.broadcast %cst_130 : f32 to vector<2x1xf32>
    %735 = arith.subf %734, %668 : vector<2x1xf32>
    %736 = vector.broadcast %735 : vector<2x1xf32> to vector<2x32xf32>
    %737 = arith.mulf %736, %653 : vector<2x32xf32>
    %738 = arith.addf %733, %737 : vector<2x32xf32>
    %739 = vector.broadcast %667 : vector<2x1xf32> to vector<2x32xf32>
    %740 = arith.mulf %731, %739 : vector<2x32xf32>
    %c14_131 = arith.constant 14 : index
    %c0_132 = arith.constant 0 : index
    %741 = vector.load %arg16[%c14_131, %c0_132] : memref<16x32xf32, #tpu.memory_space<vmem>>, vector<2x32xf32>
    tpu.vector_store %arg16[%c14_131, %c0_132], %740 {strides = array<i32>} : memref<16x32xf32, #tpu.memory_space<vmem>>, vector<2x32xf32>,
    %742 = vector.broadcast %668 : vector<2x1xf32> to vector<2x32xf32>
    %743 = arith.mulf %738, %742 : vector<2x32xf32>
    %c0_133 = arith.constant 0 : index
    %c0_134 = arith.constant 0 : index
    %744 = vector.load %arg17[%c0_133, %c0_134] : memref<16x32xf32, #tpu.memory_space<vmem>>, vector<2x32xf32>
    tpu.vector_store %arg17[%c0_133, %c0_134], %743 {strides = array<i32>} : memref<16x32xf32, #tpu.memory_space<vmem>>, vector<2x32xf32>,
    %c0_135 = arith.constant 0 : index
    %c0_136 = arith.constant 0 : index
    %745 = vector.load %arg16[%c0_135, %c0_136] : memref<16x32xf32, #tpu.memory_space<vmem>>, vector<16x32xf32>
    %c0_137 = arith.constant 0 : index
    %c0_138 = arith.constant 0 : index
    %746 = vector.load %arg6[%c0_137, %c0_138] : memref<64x2xf32, #tpu.memory_space<vmem>>, vector<32x2xf32>
    %cst_139 = arith.constant dense<0.000000e+00> : vector<16x2xf32>
    %747 = tpu.matmul %745, %746, %cst_139 {dimension_numbers = #tpu.dot_dimension_numbers<[1], [0], [0], [1], [0, 0, 1, 1], [], []>} : vector<16x32xf32>, vector<32x2xf32>, vector<16x2xf32> -> vector<16x2xf32>
    %c0_140 = arith.constant 0 : index
    %c0_141 = arith.constant 0 : index
    %748 = vector.load %arg17[%c0_140, %c0_141] : memref<16x32xf32, #tpu.memory_space<vmem>>, vector<16x32xf32>
    %c32 = arith.constant 32 : index
    %c0_142 = arith.constant 0 : index
    %749 = vector.load %arg6[%c32, %c0_142] : memref<64x2xf32, #tpu.memory_space<vmem>>, vector<32x2xf32>
    %cst_143 = arith.constant dense<0.000000e+00> : vector<16x2xf32>
    %750 = tpu.matmul %748, %749, %cst_143 {dimension_numbers = #tpu.dot_dimension_numbers<[1], [0], [0], [1], [0, 0, 1, 1], [], []>} : vector<16x32xf32>, vector<32x2xf32>, vector<16x2xf32> -> vector<16x2xf32>
    %751 = arith.addf %747, %750 : vector<16x2xf32>
    %c0_144 = arith.constant 0 : index
    %c0_145 = arith.constant 0 : index
    %752 = vector.load %arg7[%c0_144, %c0_145] : memref<1x2xf32, #tpu.memory_space<vmem>>, vector<1x2xf32>
    %753 = vector.broadcast %752 : vector<1x2xf32> to vector<16x2xf32>
    %754 = arith.addf %751, %753 : vector<16x2xf32>
    %755 = vector.extract_strided_slice %754 {offsets = [0, 0], sizes = [16, 1], strides = [1, 1]} : vector<16x2xf32> to vector<16x1xf32>
    %cst_146 = arith.constant 2.000000e+01 : f32
    %756 = vector.broadcast %cst_146 : f32 to vector<16x1xf32>
    %757 = arith.cmpf ogt, %755, %756 : vector<16x1xf32>
    %cst_147 = arith.constant 2.000000e+01 : f32
    %758 = vector.broadcast %cst_147 : f32 to vector<16x1xf32>
    %759 = arith.minimumf %755, %758 : vector<16x1xf32>
    %760 = math.exp %759 : vector<16x1xf32>
    %cst_148 = arith.constant 1.000000e+00 : f32
    %761 = vector.broadcast %cst_148 : f32 to vector<16x1xf32>
    %762 = arith.addf %761, %760 : vector<16x1xf32>
    %763 = math.log %762 : vector<16x1xf32>
    %764 = arith.select %757, %755, %763 : vector<16x1xi1>, vector<16x1xf32>
    %cst_149 = arith.constant 9.99999997E-7 : f32
    %cst_150 = arith.constant 1.000000e+02 : f32
    %765 = vector.broadcast %cst_149 : f32 to vector<16x1xf32>
    %766 = arith.maximumf %765, %764 : vector<16x1xf32>
    %767 = vector.broadcast %cst_150 : f32 to vector<16x1xf32>
    %768 = arith.minimumf %767, %766 : vector<16x1xf32>
    %769 = vector.extract_strided_slice %754 {offsets = [0, 1], sizes = [16, 1], strides = [1, 1]} : vector<16x2xf32> to vector<16x1xf32>
    %cst_151 = arith.constant 2.000000e+01 : f32
    %770 = vector.broadcast %cst_151 : f32 to vector<16x1xf32>
    %771 = arith.cmpf ogt, %769, %770 : vector<16x1xf32>
    %cst_152 = arith.constant 2.000000e+01 : f32
    %772 = vector.broadcast %cst_152 : f32 to vector<16x1xf32>
    %773 = arith.minimumf %769, %772 : vector<16x1xf32>
    %774 = math.exp %773 : vector<16x1xf32>
    %cst_153 = arith.constant 1.000000e+00 : f32
    %775 = vector.broadcast %cst_153 : f32 to vector<16x1xf32>
    %776 = arith.addf %775, %774 : vector<16x1xf32>
    %777 = math.log %776 : vector<16x1xf32>
    %778 = arith.select %771, %769, %777 : vector<16x1xi1>, vector<16x1xf32>
    %cst_154 = arith.constant 9.99999997E-7 : f32
    %cst_155 = arith.constant 1.000000e+02 : f32
    %779 = vector.broadcast %cst_154 : f32 to vector<16x1xf32>
    %780 = arith.maximumf %779, %778 : vector<16x1xf32>
    %781 = vector.broadcast %cst_155 : f32 to vector<16x1xf32>
    %782 = arith.minimumf %781, %780 : vector<16x1xf32>
    %cst_156 = arith.constant -2.48490667 : f32
    %783 = vector.broadcast %cst_156 : f32 to vector<16x1xf32>
    %784 = arith.mulf %768, %783 : vector<16x1xf32>
    %785 = math.exp %784 : vector<16x1xf32>
    %cst_157 = arith.constant 1.000000e+00 : f32
    %786 = vector.broadcast %cst_157 : f32 to vector<16x1xf32>
    %787 = arith.subf %786, %785 : vector<16x1xf32>
    %cst_158 = arith.constant 1.000000e-30 : f32
    %788 = vector.broadcast %cst_158 : f32 to vector<16x1xf32>
    %789 = arith.maximumf %787, %788 : vector<16x1xf32>
    %790 = math.log %789 : vector<16x1xf32>
    %791 = arith.mulf %782, %790 : vector<16x1xf32>
    %792 = math.exp %791 : vector<16x1xf32>
    %cst_159 = arith.constant 1.000000e+00 : f32
    %793 = vector.broadcast %cst_159 : f32 to vector<16x1xf32>
    %794 = arith.subf %793, %792 : vector<16x1xf32>
    %cst_160 = arith.constant -0.0870113745 : f32
    %795 = vector.broadcast %cst_160 : f32 to vector<16x1xf32>
    %796 = arith.mulf %768, %795 : vector<16x1xf32>
    %797 = math.exp %796 : vector<16x1xf32>
    %cst_161 = arith.constant 1.000000e+00 : f32
    %798 = vector.broadcast %cst_161 : f32 to vector<16x1xf32>
    %799 = arith.subf %798, %797 : vector<16x1xf32>
    %cst_162 = arith.constant 1.000000e-30 : f32
    %800 = vector.broadcast %cst_162 : f32 to vector<16x1xf32>
    %801 = arith.maximumf %799, %800 : vector<16x1xf32>
    %802 = math.log %801 : vector<16x1xf32>
    %803 = arith.mulf %782, %802 : vector<16x1xf32>
    %804 = math.exp %803 : vector<16x1xf32>
    %cst_163 = arith.constant 1.000000e+00 : f32
    %805 = vector.broadcast %cst_163 : f32 to vector<16x1xf32>
    %806 = arith.subf %805, %804 : vector<16x1xf32>
    %cst_164 = arith.constant 1.000000e+00 : f32
    %807 = vector.broadcast %cst_164 : f32 to vector<16x1xf32>
    %808 = arith.subf %807, %806 : vector<16x1xf32>
    %cst_165 = arith.constant 1.000000e+00 : f32
    %809 = vector.broadcast %cst_165 : f32 to vector<16x1xf32>
    %810 = arith.subf %809, %794 : vector<16x1xf32>
    %811 = arith.subf %810, %808 : vector<16x1xf32>
    %cst_166 = arith.constant 1.000000e+00 : f32
    %812 = vector.broadcast %cst_166 : f32 to vector<16x1xf32>
    %813 = arith.divf %812, %768 : vector<16x1xf32>
    %cst_167 = arith.constant 1.000000e+00 : f32
    %814 = vector.broadcast %cst_167 : f32 to vector<16x1xf32>
    %815 = arith.addf %814, %813 : vector<16x1xf32>
    %cst_168 = arith.constant 0.000000e+00 : f32
    %816 = vector.broadcast %cst_168 : f32 to vector<16x1xf32>
    %817 = math.log %782 : vector<16x1xf32>
    %818 = arith.addf %816, %817 : vector<16x1xf32>
    %cst_169 = arith.constant 1.000000e+00 : f32
    %819 = vector.broadcast %cst_169 : f32 to vector<16x1xf32>
    %820 = arith.addf %782, %819 : vector<16x1xf32>
    %821 = math.log %820 : vector<16x1xf32>
    %822 = arith.addf %818, %821 : vector<16x1xf32>
    %cst_170 = arith.constant 1.000000e+00 : f32
    %823 = vector.broadcast %cst_170 : f32 to vector<16x1xf32>
    %824 = arith.addf %820, %823 : vector<16x1xf32>
    %825 = math.log %824 : vector<16x1xf32>
    %826 = arith.addf %822, %825 : vector<16x1xf32>
    %cst_171 = arith.constant 1.000000e+00 : f32
    %827 = vector.broadcast %cst_171 : f32 to vector<16x1xf32>
    %828 = arith.addf %824, %827 : vector<16x1xf32>
    %829 = math.log %828 : vector<16x1xf32>
    %830 = arith.addf %826, %829 : vector<16x1xf32>
    %cst_172 = arith.constant 1.000000e+00 : f32
    %831 = vector.broadcast %cst_172 : f32 to vector<16x1xf32>
    %832 = arith.addf %828, %831 : vector<16x1xf32>
    %833 = tpu.reciprocal %832 {approx = true} : vector<16x1xf32> -> vector<16x1xf32>
    %834 = arith.mulf %833, %833 : vector<16x1xf32>
    %cst_173 = arith.constant 7.93650805E-4 : f32
    %835 = vector.broadcast %cst_173 : f32 to vector<16x1xf32>
    %836 = arith.mulf %834, %835 : vector<16x1xf32>
    %cst_174 = arith.constant 0.00277777785 : f32
    %837 = vector.broadcast %cst_174 : f32 to vector<16x1xf32>
    %838 = arith.subf %837, %836 : vector<16x1xf32>
    %839 = arith.mulf %834, %838 : vector<16x1xf32>
    %cst_175 = arith.constant 0.0833333358 : f32
    %840 = vector.broadcast %cst_175 : f32 to vector<16x1xf32>
    %841 = arith.subf %840, %839 : vector<16x1xf32>
    %842 = arith.mulf %833, %841 : vector<16x1xf32>
    %cst_176 = arith.constant 5.000000e-01 : f32
    %843 = vector.broadcast %cst_176 : f32 to vector<16x1xf32>
    %844 = arith.subf %832, %843 : vector<16x1xf32>
    %845 = math.log %832 : vector<16x1xf32>
    %846 = arith.mulf %844, %845 : vector<16x1xf32>
    %847 = arith.subf %846, %832 : vector<16x1xf32>
    %cst_177 = arith.constant 0.918938517 : f32
    %848 = vector.broadcast %cst_177 : f32 to vector<16x1xf32>
    %849 = arith.addf %847, %848 : vector<16x1xf32>
    %850 = arith.addf %849, %842 : vector<16x1xf32>
    %851 = arith.subf %850, %830 : vector<16x1xf32>
    %cst_178 = arith.constant 1.000000e+04 : f32
    %852 = vector.broadcast %cst_178 : f32 to vector<16x1xf32>
    %853 = arith.cmpf ogt, %815, %852 : vector<16x1xf32>
    %cst_179 = arith.constant 0.000000e+00 : f32
    %854 = vector.broadcast %cst_179 : f32 to vector<16x1xf32>
    %855 = arith.subf %854, %782 : vector<16x1xf32>
    %856 = math.log %815 : vector<16x1xf32>
    %857 = arith.mulf %855, %856 : vector<16x1xf32>
    %cst_180 = arith.constant 1.000000e+00 : f32
    %858 = vector.broadcast %cst_180 : f32 to vector<16x1xf32>
    %859 = arith.subf %782, %858 : vector<16x1xf32>
    %860 = arith.mulf %782, %859 : vector<16x1xf32>
    %cst_181 = arith.constant 5.000000e-01 : f32
    %861 = vector.broadcast %cst_181 : f32 to vector<16x1xf32>
    %862 = arith.mulf %860, %861 : vector<16x1xf32>
    %863 = arith.divf %862, %815 : vector<16x1xf32>
    %864 = arith.subf %857, %863 : vector<16x1xf32>
    %cst_182 = arith.constant 0.000000e+00 : f32
    %865 = vector.broadcast %cst_182 : f32 to vector<16x1xf32>
    %866 = math.log %815 : vector<16x1xf32>
    %867 = arith.addf %865, %866 : vector<16x1xf32>
    %cst_183 = arith.constant 1.000000e+00 : f32
    %868 = vector.broadcast %cst_183 : f32 to vector<16x1xf32>
    %869 = arith.addf %815, %868 : vector<16x1xf32>
    %870 = math.log %869 : vector<16x1xf32>
    %871 = arith.addf %867, %870 : vector<16x1xf32>
    %cst_184 = arith.constant 1.000000e+00 : f32
    %872 = vector.broadcast %cst_184 : f32 to vector<16x1xf32>
    %873 = arith.addf %869, %872 : vector<16x1xf32>
    %874 = math.log %873 : vector<16x1xf32>
    %875 = arith.addf %871, %874 : vector<16x1xf32>
    %cst_185 = arith.constant 1.000000e+00 : f32
    %876 = vector.broadcast %cst_185 : f32 to vector<16x1xf32>
    %877 = arith.addf %873, %876 : vector<16x1xf32>
    %878 = math.log %877 : vector<16x1xf32>
    %879 = arith.addf %875, %878 : vector<16x1xf32>
    %cst_186 = arith.constant 1.000000e+00 : f32
    %880 = vector.broadcast %cst_186 : f32 to vector<16x1xf32>
    %881 = arith.addf %877, %880 : vector<16x1xf32>
    %882 = tpu.reciprocal %881 {approx = true} : vector<16x1xf32> -> vector<16x1xf32>
    %883 = arith.mulf %882, %882 : vector<16x1xf32>
    %cst_187 = arith.constant 7.93650805E-4 : f32
    %884 = vector.broadcast %cst_187 : f32 to vector<16x1xf32>
    %885 = arith.mulf %883, %884 : vector<16x1xf32>
    %cst_188 = arith.constant 0.00277777785 : f32
    %886 = vector.broadcast %cst_188 : f32 to vector<16x1xf32>
    %887 = arith.subf %886, %885 : vector<16x1xf32>
    %888 = arith.mulf %883, %887 : vector<16x1xf32>
    %cst_189 = arith.constant 0.0833333358 : f32
    %889 = vector.broadcast %cst_189 : f32 to vector<16x1xf32>
    %890 = arith.subf %889, %888 : vector<16x1xf32>
    %891 = arith.mulf %882, %890 : vector<16x1xf32>
    %cst_190 = arith.constant 5.000000e-01 : f32
    %892 = vector.broadcast %cst_190 : f32 to vector<16x1xf32>
    %893 = arith.subf %881, %892 : vector<16x1xf32>
    %894 = math.log %881 : vector<16x1xf32>
    %895 = arith.mulf %893, %894 : vector<16x1xf32>
    %896 = arith.subf %895, %881 : vector<16x1xf32>
    %cst_191 = arith.constant 0.918938517 : f32
    %897 = vector.broadcast %cst_191 : f32 to vector<16x1xf32>
    %898 = arith.addf %896, %897 : vector<16x1xf32>
    %899 = arith.addf %898, %891 : vector<16x1xf32>
    %900 = arith.subf %899, %879 : vector<16x1xf32>
    %901 = arith.addf %815, %782 : vector<16x1xf32>
    %cst_192 = arith.constant 0.000000e+00 : f32
    %902 = vector.broadcast %cst_192 : f32 to vector<16x1xf32>
    %903 = math.log %901 : vector<16x1xf32>
    %904 = arith.addf %902, %903 : vector<16x1xf32>
    %cst_193 = arith.constant 1.000000e+00 : f32
    %905 = vector.broadcast %cst_193 : f32 to vector<16x1xf32>
    %906 = arith.addf %901, %905 : vector<16x1xf32>
    %907 = math.log %906 : vector<16x1xf32>
    %908 = arith.addf %904, %907 : vector<16x1xf32>
    %cst_194 = arith.constant 1.000000e+00 : f32
    %909 = vector.broadcast %cst_194 : f32 to vector<16x1xf32>
    %910 = arith.addf %906, %909 : vector<16x1xf32>
    %911 = math.log %910 : vector<16x1xf32>
    %912 = arith.addf %908, %911 : vector<16x1xf32>
    %cst_195 = arith.constant 1.000000e+00 : f32
    %913 = vector.broadcast %cst_195 : f32 to vector<16x1xf32>
    %914 = arith.addf %910, %913 : vector<16x1xf32>
    %915 = math.log %914 : vector<16x1xf32>
    %916 = arith.addf %912, %915 : vector<16x1xf32>
    %cst_196 = arith.constant 1.000000e+00 : f32
    %917 = vector.broadcast %cst_196 : f32 to vector<16x1xf32>
    %918 = arith.addf %914, %917 : vector<16x1xf32>
    %919 = tpu.reciprocal %918 {approx = true} : vector<16x1xf32> -> vector<16x1xf32>
    %920 = arith.mulf %919, %919 : vector<16x1xf32>
    %cst_197 = arith.constant 7.93650805E-4 : f32
    %921 = vector.broadcast %cst_197 : f32 to vector<16x1xf32>
    %922 = arith.mulf %920, %921 : vector<16x1xf32>
    %cst_198 = arith.constant 0.00277777785 : f32
    %923 = vector.broadcast %cst_198 : f32 to vector<16x1xf32>
    %924 = arith.subf %923, %922 : vector<16x1xf32>
    %925 = arith.mulf %920, %924 : vector<16x1xf32>
    %cst_199 = arith.constant 0.0833333358 : f32
    %926 = vector.broadcast %cst_199 : f32 to vector<16x1xf32>
    %927 = arith.subf %926, %925 : vector<16x1xf32>
    %928 = arith.mulf %919, %927 : vector<16x1xf32>
    %cst_200 = arith.constant 5.000000e-01 : f32
    %929 = vector.broadcast %cst_200 : f32 to vector<16x1xf32>
    %930 = arith.subf %918, %929 : vector<16x1xf32>
    %931 = math.log %918 : vector<16x1xf32>
    %932 = arith.mulf %930, %931 : vector<16x1xf32>
    %933 = arith.subf %932, %918 : vector<16x1xf32>
    %cst_201 = arith.constant 0.918938517 : f32
    %934 = vector.broadcast %cst_201 : f32 to vector<16x1xf32>
    %935 = arith.addf %933, %934 : vector<16x1xf32>
    %936 = arith.addf %935, %928 : vector<16x1xf32>
    %937 = arith.subf %936, %916 : vector<16x1xf32>
    %938 = arith.subf %900, %937 : vector<16x1xf32>
    %939 = arith.select %853, %864, %938 : vector<16x1xi1>, vector<16x1xf32>
    %940 = arith.addf %939, %851 : vector<16x1xf32>
    %941 = math.exp %940 : vector<16x1xf32>
    %942 = arith.mulf %782, %941 : vector<16x1xf32>
    %943 = arith.cmpf ogt, %794, %808 : vector<16x1xf32>
    %cst_202 = arith.constant 0.000000e+00 : f32
    %cst_203 = arith.constant 1.000000e+00 : f32
    %944 = vector.broadcast %cst_202 : f32 to vector<16x1xf32>
    %945 = vector.broadcast %cst_203 : f32 to vector<16x1xf32>
    %946 = arith.select %943, %944, %945 : vector<16x1xi1>, vector<16x1xf32>
    %947 = arith.cmpf ogt, %811, %794 : vector<16x1xf32>
    %948 = arith.cmpf ogt, %811, %808 : vector<16x1xf32>
    %949 = arith.andi %947, %948 : vector<16x1xi1>
    %950 = arith.select %949, %942, %946 : vector<16x1xi1>, vector<16x1xf32>
    %cst_204 = arith.constant 0.000000e+00 : f32
    %951 = vector.broadcast %cst_204 : f32 to vector<16x1xf32>
    %952 = arith.cmpf ogt, %11, %951 : vector<16x1xf32>
    %cst_205 = arith.constant 0.000000e+00 : f32
    %953 = vector.broadcast %cst_205 : f32 to vector<16x1xf32>
    %954 = arith.select %952, %950, %953 : vector<16x1xi1>, vector<16x1xf32>
    %c0_206 = arith.constant 0 : index
    %c0_207 = arith.constant 0 : index
    %955 = vector.load %arg15[%c0_206, %c0_207] : memref<16x1xf32, #tpu.memory_space<vmem>>, vector<16x1xf32>
    tpu.vector_store %arg15[%c0_206, %c0_207], %954 {strides = array<i32>} : memref<16x1xf32, #tpu.memory_space<vmem>>, vector<16x1xf32>,
    %956 = arith.mulf %11, %954 : vector<16x1xf32>
    %957 = vector.broadcast %956 : vector<16x1xf32> to vector<16x16xf32>
    %958 = arith.mulf %7, %957 : vector<16x16xf32>
    %c0_208 = arith.constant 0 : index
    %c0_209 = arith.constant 0 : index
    %959 = vector.load %arg8[%c0_208, %c0_209] : memref<16x256xf32, #tpu.memory_space<vmem>>, vector<16x256xf32>
    %cst_210 = arith.constant dense<0.000000e+00> : vector<16x256xf32>
    %960 = tpu.matmul %958, %959, %cst_210 {dimension_numbers = #tpu.dot_dimension_numbers<[1], [0], [0], [1], [0, 0, 1, 1], [], []>} : vector<16x16xf32>, vector<16x256xf32>, vector<16x256xf32> -> vector<16x256xf32>
    %c0_211 = arith.constant 0 : index
    %c0_212 = arith.constant 0 : index
    %961 = vector.load %arg9[%c0_211, %c0_212] : memref<1x256xf32, #tpu.memory_space<vmem>>, vector<1x256xf32>
    %962 = vector.broadcast %961 : vector<1x256xf32> to vector<16x256xf32>
    %963 = arith.addf %960, %962 : vector<16x256xf32>
    %c0_213 = arith.constant 0 : index
    %c0_214 = arith.constant 0 : index
    %964 = vector.load %arg10[%c0_213, %c0_214] : memref<32x128xf32, #tpu.memory_space<vmem>>, vector<32x128xf32>
    %c0_215 = arith.constant 0 : index
    %c0_216 = arith.constant 0 : index
    %965 = vector.load %arg11[%c0_215, %c0_216] : memref<32x128xf32, #tpu.memory_space<vmem>>, vector<32x128xf32>
    %cst_217 = arith.constant 0.000000e+00 : f32
    %966 = vector.broadcast %cst_217 : f32 to vector<2x32xf32>
    %cst_218 = arith.constant 0.000000e+00 : f32
    %967 = vector.broadcast %cst_218 : f32 to vector<2x32xf32>
    %cst_219 = arith.constant 0.000000e+00 : f32
    %968 = vector.broadcast %cst_219 : f32 to vector<2x32xf32>
    %cst_220 = arith.constant 0.000000e+00 : f32
    %969 = vector.broadcast %cst_220 : f32 to vector<2x32xf32>
    %970 = vector.extract_strided_slice %11 {offsets = [0, 0], sizes = [2, 1], strides = [1, 1]} : vector<16x1xf32> to vector<2x1xf32>
    %971 = vector.extract_strided_slice %11 {offsets = [14, 0], sizes = [2, 1], strides = [1, 1]} : vector<16x1xf32> to vector<2x1xf32>
    %972 = vector.extract_strided_slice %963 {offsets = [0, 0], sizes = [2, 128], strides = [1, 1]} : vector<16x256xf32> to vector<2x128xf32>
    %cst_221 = arith.constant dense<0.000000e+00> : vector<2x128xf32>
    %973 = tpu.matmul %966, %964, %cst_221 {dimension_numbers = #tpu.dot_dimension_numbers<[1], [0], [0], [1], [0, 0, 1, 1], [], []>} : vector<2x32xf32>, vector<32x128xf32>, vector<2x128xf32> -> vector<2x128xf32>
    %974 = arith.addf %972, %973 : vector<2x128xf32>
    %975 = vector.extract_strided_slice %963 {offsets = [14, 128], sizes = [2, 128], strides = [1, 1]} : vector<16x256xf32> to vector<2x128xf32>
    %cst_222 = arith.constant dense<0.000000e+00> : vector<2x128xf32>
    %976 = tpu.matmul %968, %965, %cst_222 {dimension_numbers = #tpu.dot_dimension_numbers<[1], [0], [0], [1], [0, 0, 1, 1], [], []>} : vector<2x32xf32>, vector<32x128xf32>, vector<2x128xf32> -> vector<2x128xf32>
    %977 = arith.addf %975, %976 : vector<2x128xf32>
    %978 = vector.extract_strided_slice %974 {offsets = [0, 0], sizes = [2, 32], strides = [1, 1]} : vector<2x128xf32> to vector<2x32xf32>
    %979 = arith.negf %978 : vector<2x32xf32>
    %980 = math.exp %979 : vector<2x32xf32>
    %cst_223 = arith.constant 1.000000e+00 : f32
    %981 = vector.broadcast %cst_223 : f32 to vector<2x32xf32>
    %982 = arith.addf %981, %980 : vector<2x32xf32>
    %983 = arith.divf %981, %982 : vector<2x32xf32>
    %984 = vector.extract_strided_slice %974 {offsets = [0, 32], sizes = [2, 32], strides = [1, 1]} : vector<2x128xf32> to vector<2x32xf32>
    %985 = arith.negf %984 : vector<2x32xf32>
    %986 = math.exp %985 : vector<2x32xf32>
    %cst_224 = arith.constant 1.000000e+00 : f32
    %987 = vector.broadcast %cst_224 : f32 to vector<2x32xf32>
    %988 = arith.addf %987, %986 : vector<2x32xf32>
    %989 = arith.divf %987, %988 : vector<2x32xf32>
    %990 = vector.extract_strided_slice %974 {offsets = [0, 64], sizes = [2, 32], strides = [1, 1]} : vector<2x128xf32> to vector<2x32xf32>
    %991 = math.tanh %990 : vector<2x32xf32>
    %992 = vector.extract_strided_slice %974 {offsets = [0, 96], sizes = [2, 32], strides = [1, 1]} : vector<2x128xf32> to vector<2x32xf32>
    %993 = arith.negf %992 : vector<2x32xf32>
    %994 = math.exp %993 : vector<2x32xf32>
    %cst_225 = arith.constant 1.000000e+00 : f32
    %995 = vector.broadcast %cst_225 : f32 to vector<2x32xf32>
    %996 = arith.addf %995, %994 : vector<2x32xf32>
    %997 = arith.divf %995, %996 : vector<2x32xf32>
    %998 = arith.mulf %989, %967 : vector<2x32xf32>
    %999 = arith.mulf %983, %991 : vector<2x32xf32>
    %1000 = arith.addf %998, %999 : vector<2x32xf32>
    %1001 = math.tanh %1000 : vector<2x32xf32>
    %1002 = arith.mulf %997, %1001 : vector<2x32xf32>
    %1003 = vector.extract_strided_slice %977 {offsets = [0, 0], sizes = [2, 32], strides = [1, 1]} : vector<2x128xf32> to vector<2x32xf32>
    %1004 = arith.negf %1003 : vector<2x32xf32>
    %1005 = math.exp %1004 : vector<2x32xf32>
    %cst_226 = arith.constant 1.000000e+00 : f32
    %1006 = vector.broadcast %cst_226 : f32 to vector<2x32xf32>
    %1007 = arith.addf %1006, %1005 : vector<2x32xf32>
    %1008 = arith.divf %1006, %1007 : vector<2x32xf32>
    %1009 = vector.extract_strided_slice %977 {offsets = [0, 32], sizes = [2, 32], strides = [1, 1]} : vector<2x128xf32> to vector<2x32xf32>
    %1010 = arith.negf %1009 : vector<2x32xf32>
    %1011 = math.exp %1010 : vector<2x32xf32>
    %cst_227 = arith.constant 1.000000e+00 : f32
    %1012 = vector.broadcast %cst_227 : f32 to vector<2x32xf32>
    %1013 = arith.addf %1012, %1011 : vector<2x32xf32>
    %1014 = arith.divf %1012, %1013 : vector<2x32xf32>
    %1015 = vector.extract_strided_slice %977 {offsets = [0, 64], sizes = [2, 32], strides = [1, 1]} : vector<2x128xf32> to vector<2x32xf32>
    %1016 = math.tanh %1015 : vector<2x32xf32>
    %1017 = vector.extract_strided_slice %977 {offsets = [0, 96], sizes = [2, 32], strides = [1, 1]} : vector<2x128xf32> to vector<2x32xf32>
    %1018 = arith.negf %1017 : vector<2x32xf32>
    %1019 = math.exp %1018 : vector<2x32xf32>
    %cst_228 = arith.constant 1.000000e+00 : f32
    %1020 = vector.broadcast %cst_228 : f32 to vector<2x32xf32>
    %1021 = arith.addf %1020, %1019 : vector<2x32xf32>
    %1022 = arith.divf %1020, %1021 : vector<2x32xf32>
    %1023 = arith.mulf %1014, %969 : vector<2x32xf32>
    %1024 = arith.mulf %1008, %1016 : vector<2x32xf32>
    %1025 = arith.addf %1023, %1024 : vector<2x32xf32>
    %1026 = math.tanh %1025 : vector<2x32xf32>
    %1027 = arith.mulf %1022, %1026 : vector<2x32xf32>
    %1028 = vector.broadcast %970 : vector<2x1xf32> to vector<2x32xf32>
    %1029 = arith.mulf %1028, %1002 : vector<2x32xf32>
    %cst_229 = arith.constant 1.000000e+00 : f32
    %1030 = vector.broadcast %cst_229 : f32 to vector<2x1xf32>
    %1031 = arith.subf %1030, %970 : vector<2x1xf32>
    %1032 = vector.broadcast %1031 : vector<2x1xf32> to vector<2x32xf32>
    %1033 = arith.mulf %1032, %966 : vector<2x32xf32>
    %1034 = arith.addf %1029, %1033 : vector<2x32xf32>
    %1035 = vector.broadcast %970 : vector<2x1xf32> to vector<2x32xf32>
    %1036 = arith.mulf %1035, %1000 : vector<2x32xf32>
    %cst_230 = arith.constant 1.000000e+00 : f32
    %1037 = vector.broadcast %cst_230 : f32 to vector<2x1xf32>
    %1038 = arith.subf %1037, %970 : vector<2x1xf32>
    %1039 = vector.broadcast %1038 : vector<2x1xf32> to vector<2x32xf32>
    %1040 = arith.mulf %1039, %967 : vector<2x32xf32>
    %1041 = arith.addf %1036, %1040 : vector<2x32xf32>
    %1042 = vector.broadcast %971 : vector<2x1xf32> to vector<2x32xf32>
    %1043 = arith.mulf %1042, %1027 : vector<2x32xf32>
    %cst_231 = arith.constant 1.000000e+00 : f32
    %1044 = vector.broadcast %cst_231 : f32 to vector<2x1xf32>
    %1045 = arith.subf %1044, %971 : vector<2x1xf32>
    %1046 = vector.broadcast %1045 : vector<2x1xf32> to vector<2x32xf32>
    %1047 = arith.mulf %1046, %968 : vector<2x32xf32>
    %1048 = arith.addf %1043, %1047 : vector<2x32xf32>
    %1049 = vector.broadcast %971 : vector<2x1xf32> to vector<2x32xf32>
    %1050 = arith.mulf %1049, %1025 : vector<2x32xf32>
    %cst_232 = arith.constant 1.000000e+00 : f32
    %1051 = vector.broadcast %cst_232 : f32 to vector<2x1xf32>
    %1052 = arith.subf %1051, %971 : vector<2x1xf32>
    %1053 = vector.broadcast %1052 : vector<2x1xf32> to vector<2x32xf32>
    %1054 = arith.mulf %1053, %969 : vector<2x32xf32>
    %1055 = arith.addf %1050, %1054 : vector<2x32xf32>
    %1056 = vector.extract_strided_slice %11 {offsets = [2, 0], sizes = [2, 1], strides = [1, 1]} : vector<16x1xf32> to vector<2x1xf32>
    %1057 = vector.extract_strided_slice %11 {offsets = [12, 0], sizes = [2, 1], strides = [1, 1]} : vector<16x1xf32> to vector<2x1xf32>
    %1058 = vector.extract_strided_slice %963 {offsets = [2, 0], sizes = [2, 128], strides = [1, 1]} : vector<16x256xf32> to vector<2x128xf32>
    %cst_233 = arith.constant dense<0.000000e+00> : vector<2x128xf32>
    %1059 = tpu.matmul %1034, %964, %cst_233 {dimension_numbers = #tpu.dot_dimension_numbers<[1], [0], [0], [1], [0, 0, 1, 1], [], []>} : vector<2x32xf32>, vector<32x128xf32>, vector<2x128xf32> -> vector<2x128xf32>
    %1060 = arith.addf %1058, %1059 : vector<2x128xf32>
    %1061 = vector.extract_strided_slice %963 {offsets = [12, 128], sizes = [2, 128], strides = [1, 1]} : vector<16x256xf32> to vector<2x128xf32>
    %cst_234 = arith.constant dense<0.000000e+00> : vector<2x128xf32>
    %1062 = tpu.matmul %1048, %965, %cst_234 {dimension_numbers = #tpu.dot_dimension_numbers<[1], [0], [0], [1], [0, 0, 1, 1], [], []>} : vector<2x32xf32>, vector<32x128xf32>, vector<2x128xf32> -> vector<2x128xf32>
    %1063 = arith.addf %1061, %1062 : vector<2x128xf32>
    %1064 = vector.extract_strided_slice %1060 {offsets = [0, 0], sizes = [2, 32], strides = [1, 1]} : vector<2x128xf32> to vector<2x32xf32>
    %1065 = arith.negf %1064 : vector<2x32xf32>
    %1066 = math.exp %1065 : vector<2x32xf32>
    %cst_235 = arith.constant 1.000000e+00 : f32
    %1067 = vector.broadcast %cst_235 : f32 to vector<2x32xf32>
    %1068 = arith.addf %1067, %1066 : vector<2x32xf32>
    %1069 = arith.divf %1067, %1068 : vector<2x32xf32>
    %1070 = vector.extract_strided_slice %1060 {offsets = [0, 32], sizes = [2, 32], strides = [1, 1]} : vector<2x128xf32> to vector<2x32xf32>
    %1071 = arith.negf %1070 : vector<2x32xf32>
    %1072 = math.exp %1071 : vector<2x32xf32>
    %cst_236 = arith.constant 1.000000e+00 : f32
    %1073 = vector.broadcast %cst_236 : f32 to vector<2x32xf32>
    %1074 = arith.addf %1073, %1072 : vector<2x32xf32>
    %1075 = arith.divf %1073, %1074 : vector<2x32xf32>
    %1076 = vector.extract_strided_slice %1060 {offsets = [0, 64], sizes = [2, 32], strides = [1, 1]} : vector<2x128xf32> to vector<2x32xf32>
    %1077 = math.tanh %1076 : vector<2x32xf32>
    %1078 = vector.extract_strided_slice %1060 {offsets = [0, 96], sizes = [2, 32], strides = [1, 1]} : vector<2x128xf32> to vector<2x32xf32>
    %1079 = arith.negf %1078 : vector<2x32xf32>
    %1080 = math.exp %1079 : vector<2x32xf32>
    %cst_237 = arith.constant 1.000000e+00 : f32
    %1081 = vector.broadcast %cst_237 : f32 to vector<2x32xf32>
    %1082 = arith.addf %1081, %1080 : vector<2x32xf32>
    %1083 = arith.divf %1081, %1082 : vector<2x32xf32>
    %1084 = arith.mulf %1075, %1041 : vector<2x32xf32>
    %1085 = arith.mulf %1069, %1077 : vector<2x32xf32>
    %1086 = arith.addf %1084, %1085 : vector<2x32xf32>
    %1087 = math.tanh %1086 : vector<2x32xf32>
    %1088 = arith.mulf %1083, %1087 : vector<2x32xf32>
    %1089 = vector.extract_strided_slice %1063 {offsets = [0, 0], sizes = [2, 32], strides = [1, 1]} : vector<2x128xf32> to vector<2x32xf32>
    %1090 = arith.negf %1089 : vector<2x32xf32>
    %1091 = math.exp %1090 : vector<2x32xf32>
    %cst_238 = arith.constant 1.000000e+00 : f32
    %1092 = vector.broadcast %cst_238 : f32 to vector<2x32xf32>
    %1093 = arith.addf %1092, %1091 : vector<2x32xf32>
    %1094 = arith.divf %1092, %1093 : vector<2x32xf32>
    %1095 = vector.extract_strided_slice %1063 {offsets = [0, 32], sizes = [2, 32], strides = [1, 1]} : vector<2x128xf32> to vector<2x32xf32>
    %1096 = arith.negf %1095 : vector<2x32xf32>
    %1097 = math.exp %1096 : vector<2x32xf32>
    %cst_239 = arith.constant 1.000000e+00 : f32
    %1098 = vector.broadcast %cst_239 : f32 to vector<2x32xf32>
    %1099 = arith.addf %1098, %1097 : vector<2x32xf32>
    %1100 = arith.divf %1098, %1099 : vector<2x32xf32>
    %1101 = vector.extract_strided_slice %1063 {offsets = [0, 64], sizes = [2, 32], strides = [1, 1]} : vector<2x128xf32> to vector<2x32xf32>
    %1102 = math.tanh %1101 : vector<2x32xf32>
    %1103 = vector.extract_strided_slice %1063 {offsets = [0, 96], sizes = [2, 32], strides = [1, 1]} : vector<2x128xf32> to vector<2x32xf32>
    %1104 = arith.negf %1103 : vector<2x32xf32>
    %1105 = math.exp %1104 : vector<2x32xf32>
    %cst_240 = arith.constant 1.000000e+00 : f32
    %1106 = vector.broadcast %cst_240 : f32 to vector<2x32xf32>
    %1107 = arith.addf %1106, %1105 : vector<2x32xf32>
    %1108 = arith.divf %1106, %1107 : vector<2x32xf32>
    %1109 = arith.mulf %1100, %1055 : vector<2x32xf32>
    %1110 = arith.mulf %1094, %1102 : vector<2x32xf32>
    %1111 = arith.addf %1109, %1110 : vector<2x32xf32>
    %1112 = math.tanh %1111 : vector<2x32xf32>
    %1113 = arith.mulf %1108, %1112 : vector<2x32xf32>
    %1114 = vector.broadcast %1056 : vector<2x1xf32> to vector<2x32xf32>
    %1115 = arith.mulf %1114, %1088 : vector<2x32xf32>
    %cst_241 = arith.constant 1.000000e+00 : f32
    %1116 = vector.broadcast %cst_241 : f32 to vector<2x1xf32>
    %1117 = arith.subf %1116, %1056 : vector<2x1xf32>
    %1118 = vector.broadcast %1117 : vector<2x1xf32> to vector<2x32xf32>
    %1119 = arith.mulf %1118, %1034 : vector<2x32xf32>
    %1120 = arith.addf %1115, %1119 : vector<2x32xf32>
    %1121 = vector.broadcast %1056 : vector<2x1xf32> to vector<2x32xf32>
    %1122 = arith.mulf %1121, %1086 : vector<2x32xf32>
    %cst_242 = arith.constant 1.000000e+00 : f32
    %1123 = vector.broadcast %cst_242 : f32 to vector<2x1xf32>
    %1124 = arith.subf %1123, %1056 : vector<2x1xf32>
    %1125 = vector.broadcast %1124 : vector<2x1xf32> to vector<2x32xf32>
    %1126 = arith.mulf %1125, %1041 : vector<2x32xf32>
    %1127 = arith.addf %1122, %1126 : vector<2x32xf32>
    %1128 = vector.broadcast %1057 : vector<2x1xf32> to vector<2x32xf32>
    %1129 = arith.mulf %1128, %1113 : vector<2x32xf32>
    %cst_243 = arith.constant 1.000000e+00 : f32
    %1130 = vector.broadcast %cst_243 : f32 to vector<2x1xf32>
    %1131 = arith.subf %1130, %1057 : vector<2x1xf32>
    %1132 = vector.broadcast %1131 : vector<2x1xf32> to vector<2x32xf32>
    %1133 = arith.mulf %1132, %1048 : vector<2x32xf32>
    %1134 = arith.addf %1129, %1133 : vector<2x32xf32>
    %1135 = vector.broadcast %1057 : vector<2x1xf32> to vector<2x32xf32>
    %1136 = arith.mulf %1135, %1111 : vector<2x32xf32>
    %cst_244 = arith.constant 1.000000e+00 : f32
    %1137 = vector.broadcast %cst_244 : f32 to vector<2x1xf32>
    %1138 = arith.subf %1137, %1057 : vector<2x1xf32>
    %1139 = vector.broadcast %1138 : vector<2x1xf32> to vector<2x32xf32>
    %1140 = arith.mulf %1139, %1055 : vector<2x32xf32>
    %1141 = arith.addf %1136, %1140 : vector<2x32xf32>
    %1142 = vector.extract_strided_slice %11 {offsets = [4, 0], sizes = [2, 1], strides = [1, 1]} : vector<16x1xf32> to vector<2x1xf32>
    %1143 = vector.extract_strided_slice %11 {offsets = [10, 0], sizes = [2, 1], strides = [1, 1]} : vector<16x1xf32> to vector<2x1xf32>
    %1144 = vector.extract_strided_slice %963 {offsets = [4, 0], sizes = [2, 128], strides = [1, 1]} : vector<16x256xf32> to vector<2x128xf32>
    %cst_245 = arith.constant dense<0.000000e+00> : vector<2x128xf32>
    %1145 = tpu.matmul %1120, %964, %cst_245 {dimension_numbers = #tpu.dot_dimension_numbers<[1], [0], [0], [1], [0, 0, 1, 1], [], []>} : vector<2x32xf32>, vector<32x128xf32>, vector<2x128xf32> -> vector<2x128xf32>
    %1146 = arith.addf %1144, %1145 : vector<2x128xf32>
    %1147 = vector.extract_strided_slice %963 {offsets = [10, 128], sizes = [2, 128], strides = [1, 1]} : vector<16x256xf32> to vector<2x128xf32>
    %cst_246 = arith.constant dense<0.000000e+00> : vector<2x128xf32>
    %1148 = tpu.matmul %1134, %965, %cst_246 {dimension_numbers = #tpu.dot_dimension_numbers<[1], [0], [0], [1], [0, 0, 1, 1], [], []>} : vector<2x32xf32>, vector<32x128xf32>, vector<2x128xf32> -> vector<2x128xf32>
    %1149 = arith.addf %1147, %1148 : vector<2x128xf32>
    %1150 = vector.extract_strided_slice %1146 {offsets = [0, 0], sizes = [2, 32], strides = [1, 1]} : vector<2x128xf32> to vector<2x32xf32>
    %1151 = arith.negf %1150 : vector<2x32xf32>
    %1152 = math.exp %1151 : vector<2x32xf32>
    %cst_247 = arith.constant 1.000000e+00 : f32
    %1153 = vector.broadcast %cst_247 : f32 to vector<2x32xf32>
    %1154 = arith.addf %1153, %1152 : vector<2x32xf32>
    %1155 = arith.divf %1153, %1154 : vector<2x32xf32>
    %1156 = vector.extract_strided_slice %1146 {offsets = [0, 32], sizes = [2, 32], strides = [1, 1]} : vector<2x128xf32> to vector<2x32xf32>
    %1157 = arith.negf %1156 : vector<2x32xf32>
    %1158 = math.exp %1157 : vector<2x32xf32>
    %cst_248 = arith.constant 1.000000e+00 : f32
    %1159 = vector.broadcast %cst_248 : f32 to vector<2x32xf32>
    %1160 = arith.addf %1159, %1158 : vector<2x32xf32>
    %1161 = arith.divf %1159, %1160 : vector<2x32xf32>
    %1162 = vector.extract_strided_slice %1146 {offsets = [0, 64], sizes = [2, 32], strides = [1, 1]} : vector<2x128xf32> to vector<2x32xf32>
    %1163 = math.tanh %1162 : vector<2x32xf32>
    %1164 = vector.extract_strided_slice %1146 {offsets = [0, 96], sizes = [2, 32], strides = [1, 1]} : vector<2x128xf32> to vector<2x32xf32>
    %1165 = arith.negf %1164 : vector<2x32xf32>
    %1166 = math.exp %1165 : vector<2x32xf32>
    %cst_249 = arith.constant 1.000000e+00 : f32
    %1167 = vector.broadcast %cst_249 : f32 to vector<2x32xf32>
    %1168 = arith.addf %1167, %1166 : vector<2x32xf32>
    %1169 = arith.divf %1167, %1168 : vector<2x32xf32>
    %1170 = arith.mulf %1161, %1127 : vector<2x32xf32>
    %1171 = arith.mulf %1155, %1163 : vector<2x32xf32>
    %1172 = arith.addf %1170, %1171 : vector<2x32xf32>
    %1173 = math.tanh %1172 : vector<2x32xf32>
    %1174 = arith.mulf %1169, %1173 : vector<2x32xf32>
    %1175 = vector.extract_strided_slice %1149 {offsets = [0, 0], sizes = [2, 32], strides = [1, 1]} : vector<2x128xf32> to vector<2x32xf32>
    %1176 = arith.negf %1175 : vector<2x32xf32>
    %1177 = math.exp %1176 : vector<2x32xf32>
    %cst_250 = arith.constant 1.000000e+00 : f32
    %1178 = vector.broadcast %cst_250 : f32 to vector<2x32xf32>
    %1179 = arith.addf %1178, %1177 : vector<2x32xf32>
    %1180 = arith.divf %1178, %1179 : vector<2x32xf32>
    %1181 = vector.extract_strided_slice %1149 {offsets = [0, 32], sizes = [2, 32], strides = [1, 1]} : vector<2x128xf32> to vector<2x32xf32>
    %1182 = arith.negf %1181 : vector<2x32xf32>
    %1183 = math.exp %1182 : vector<2x32xf32>
    %cst_251 = arith.constant 1.000000e+00 : f32
    %1184 = vector.broadcast %cst_251 : f32 to vector<2x32xf32>
    %1185 = arith.addf %1184, %1183 : vector<2x32xf32>
    %1186 = arith.divf %1184, %1185 : vector<2x32xf32>
    %1187 = vector.extract_strided_slice %1149 {offsets = [0, 64], sizes = [2, 32], strides = [1, 1]} : vector<2x128xf32> to vector<2x32xf32>
    %1188 = math.tanh %1187 : vector<2x32xf32>
    %1189 = vector.extract_strided_slice %1149 {offsets = [0, 96], sizes = [2, 32], strides = [1, 1]} : vector<2x128xf32> to vector<2x32xf32>
    %1190 = arith.negf %1189 : vector<2x32xf32>
    %1191 = math.exp %1190 : vector<2x32xf32>
    %cst_252 = arith.constant 1.000000e+00 : f32
    %1192 = vector.broadcast %cst_252 : f32 to vector<2x32xf32>
    %1193 = arith.addf %1192, %1191 : vector<2x32xf32>
    %1194 = arith.divf %1192, %1193 : vector<2x32xf32>
    %1195 = arith.mulf %1186, %1141 : vector<2x32xf32>
    %1196 = arith.mulf %1180, %1188 : vector<2x32xf32>
    %1197 = arith.addf %1195, %1196 : vector<2x32xf32>
    %1198 = math.tanh %1197 : vector<2x32xf32>
    %1199 = arith.mulf %1194, %1198 : vector<2x32xf32>
    %1200 = vector.broadcast %1142 : vector<2x1xf32> to vector<2x32xf32>
    %1201 = arith.mulf %1200, %1174 : vector<2x32xf32>
    %cst_253 = arith.constant 1.000000e+00 : f32
    %1202 = vector.broadcast %cst_253 : f32 to vector<2x1xf32>
    %1203 = arith.subf %1202, %1142 : vector<2x1xf32>
    %1204 = vector.broadcast %1203 : vector<2x1xf32> to vector<2x32xf32>
    %1205 = arith.mulf %1204, %1120 : vector<2x32xf32>
    %1206 = arith.addf %1201, %1205 : vector<2x32xf32>
    %1207 = vector.broadcast %1142 : vector<2x1xf32> to vector<2x32xf32>
    %1208 = arith.mulf %1207, %1172 : vector<2x32xf32>
    %cst_254 = arith.constant 1.000000e+00 : f32
    %1209 = vector.broadcast %cst_254 : f32 to vector<2x1xf32>
    %1210 = arith.subf %1209, %1142 : vector<2x1xf32>
    %1211 = vector.broadcast %1210 : vector<2x1xf32> to vector<2x32xf32>
    %1212 = arith.mulf %1211, %1127 : vector<2x32xf32>
    %1213 = arith.addf %1208, %1212 : vector<2x32xf32>
    %1214 = vector.broadcast %1143 : vector<2x1xf32> to vector<2x32xf32>
    %1215 = arith.mulf %1214, %1199 : vector<2x32xf32>
    %cst_255 = arith.constant 1.000000e+00 : f32
    %1216 = vector.broadcast %cst_255 : f32 to vector<2x1xf32>
    %1217 = arith.subf %1216, %1143 : vector<2x1xf32>
    %1218 = vector.broadcast %1217 : vector<2x1xf32> to vector<2x32xf32>
    %1219 = arith.mulf %1218, %1134 : vector<2x32xf32>
    %1220 = arith.addf %1215, %1219 : vector<2x32xf32>
    %1221 = vector.broadcast %1143 : vector<2x1xf32> to vector<2x32xf32>
    %1222 = arith.mulf %1221, %1197 : vector<2x32xf32>
    %cst_256 = arith.constant 1.000000e+00 : f32
    %1223 = vector.broadcast %cst_256 : f32 to vector<2x1xf32>
    %1224 = arith.subf %1223, %1143 : vector<2x1xf32>
    %1225 = vector.broadcast %1224 : vector<2x1xf32> to vector<2x32xf32>
    %1226 = arith.mulf %1225, %1141 : vector<2x32xf32>
    %1227 = arith.addf %1222, %1226 : vector<2x32xf32>
    %1228 = vector.extract_strided_slice %11 {offsets = [6, 0], sizes = [2, 1], strides = [1, 1]} : vector<16x1xf32> to vector<2x1xf32>
    %1229 = vector.extract_strided_slice %11 {offsets = [8, 0], sizes = [2, 1], strides = [1, 1]} : vector<16x1xf32> to vector<2x1xf32>
    %1230 = vector.extract_strided_slice %963 {offsets = [6, 0], sizes = [2, 128], strides = [1, 1]} : vector<16x256xf32> to vector<2x128xf32>
    %cst_257 = arith.constant dense<0.000000e+00> : vector<2x128xf32>
    %1231 = tpu.matmul %1206, %964, %cst_257 {dimension_numbers = #tpu.dot_dimension_numbers<[1], [0], [0], [1], [0, 0, 1, 1], [], []>} : vector<2x32xf32>, vector<32x128xf32>, vector<2x128xf32> -> vector<2x128xf32>
    %1232 = arith.addf %1230, %1231 : vector<2x128xf32>
    %1233 = vector.extract_strided_slice %963 {offsets = [8, 128], sizes = [2, 128], strides = [1, 1]} : vector<16x256xf32> to vector<2x128xf32>
    %cst_258 = arith.constant dense<0.000000e+00> : vector<2x128xf32>
    %1234 = tpu.matmul %1220, %965, %cst_258 {dimension_numbers = #tpu.dot_dimension_numbers<[1], [0], [0], [1], [0, 0, 1, 1], [], []>} : vector<2x32xf32>, vector<32x128xf32>, vector<2x128xf32> -> vector<2x128xf32>
    %1235 = arith.addf %1233, %1234 : vector<2x128xf32>
    %1236 = vector.extract_strided_slice %1232 {offsets = [0, 0], sizes = [2, 32], strides = [1, 1]} : vector<2x128xf32> to vector<2x32xf32>
    %1237 = arith.negf %1236 : vector<2x32xf32>
    %1238 = math.exp %1237 : vector<2x32xf32>
    %cst_259 = arith.constant 1.000000e+00 : f32
    %1239 = vector.broadcast %cst_259 : f32 to vector<2x32xf32>
    %1240 = arith.addf %1239, %1238 : vector<2x32xf32>
    %1241 = arith.divf %1239, %1240 : vector<2x32xf32>
    %1242 = vector.extract_strided_slice %1232 {offsets = [0, 32], sizes = [2, 32], strides = [1, 1]} : vector<2x128xf32> to vector<2x32xf32>
    %1243 = arith.negf %1242 : vector<2x32xf32>
    %1244 = math.exp %1243 : vector<2x32xf32>
    %cst_260 = arith.constant 1.000000e+00 : f32
    %1245 = vector.broadcast %cst_260 : f32 to vector<2x32xf32>
    %1246 = arith.addf %1245, %1244 : vector<2x32xf32>
    %1247 = arith.divf %1245, %1246 : vector<2x32xf32>
    %1248 = vector.extract_strided_slice %1232 {offsets = [0, 64], sizes = [2, 32], strides = [1, 1]} : vector<2x128xf32> to vector<2x32xf32>
    %1249 = math.tanh %1248 : vector<2x32xf32>
    %1250 = vector.extract_strided_slice %1232 {offsets = [0, 96], sizes = [2, 32], strides = [1, 1]} : vector<2x128xf32> to vector<2x32xf32>
    %1251 = arith.negf %1250 : vector<2x32xf32>
    %1252 = math.exp %1251 : vector<2x32xf32>
    %cst_261 = arith.constant 1.000000e+00 : f32
    %1253 = vector.broadcast %cst_261 : f32 to vector<2x32xf32>
    %1254 = arith.addf %1253, %1252 : vector<2x32xf32>
    %1255 = arith.divf %1253, %1254 : vector<2x32xf32>
    %1256 = arith.mulf %1247, %1213 : vector<2x32xf32>
    %1257 = arith.mulf %1241, %1249 : vector<2x32xf32>
    %1258 = arith.addf %1256, %1257 : vector<2x32xf32>
    %1259 = math.tanh %1258 : vector<2x32xf32>
    %1260 = arith.mulf %1255, %1259 : vector<2x32xf32>
    %1261 = vector.extract_strided_slice %1235 {offsets = [0, 0], sizes = [2, 32], strides = [1, 1]} : vector<2x128xf32> to vector<2x32xf32>
    %1262 = arith.negf %1261 : vector<2x32xf32>
    %1263 = math.exp %1262 : vector<2x32xf32>
    %cst_262 = arith.constant 1.000000e+00 : f32
    %1264 = vector.broadcast %cst_262 : f32 to vector<2x32xf32>
    %1265 = arith.addf %1264, %1263 : vector<2x32xf32>
    %1266 = arith.divf %1264, %1265 : vector<2x32xf32>
    %1267 = vector.extract_strided_slice %1235 {offsets = [0, 32], sizes = [2, 32], strides = [1, 1]} : vector<2x128xf32> to vector<2x32xf32>
    %1268 = arith.negf %1267 : vector<2x32xf32>
    %1269 = math.exp %1268 : vector<2x32xf32>
    %cst_263 = arith.constant 1.000000e+00 : f32
    %1270 = vector.broadcast %cst_263 : f32 to vector<2x32xf32>
    %1271 = arith.addf %1270, %1269 : vector<2x32xf32>
    %1272 = arith.divf %1270, %1271 : vector<2x32xf32>
    %1273 = vector.extract_strided_slice %1235 {offsets = [0, 64], sizes = [2, 32], strides = [1, 1]} : vector<2x128xf32> to vector<2x32xf32>
    %1274 = math.tanh %1273 : vector<2x32xf32>
    %1275 = vector.extract_strided_slice %1235 {offsets = [0, 96], sizes = [2, 32], strides = [1, 1]} : vector<2x128xf32> to vector<2x32xf32>
    %1276 = arith.negf %1275 : vector<2x32xf32>
    %1277 = math.exp %1276 : vector<2x32xf32>
    %cst_264 = arith.constant 1.000000e+00 : f32
    %1278 = vector.broadcast %cst_264 : f32 to vector<2x32xf32>
    %1279 = arith.addf %1278, %1277 : vector<2x32xf32>
    %1280 = arith.divf %1278, %1279 : vector<2x32xf32>
    %1281 = arith.mulf %1272, %1227 : vector<2x32xf32>
    %1282 = arith.mulf %1266, %1274 : vector<2x32xf32>
    %1283 = arith.addf %1281, %1282 : vector<2x32xf32>
    %1284 = math.tanh %1283 : vector<2x32xf32>
    %1285 = arith.mulf %1280, %1284 : vector<2x32xf32>
    %1286 = vector.broadcast %1228 : vector<2x1xf32> to vector<2x32xf32>
    %1287 = arith.mulf %1286, %1260 : vector<2x32xf32>
    %cst_265 = arith.constant 1.000000e+00 : f32
    %1288 = vector.broadcast %cst_265 : f32 to vector<2x1xf32>
    %1289 = arith.subf %1288, %1228 : vector<2x1xf32>
    %1290 = vector.broadcast %1289 : vector<2x1xf32> to vector<2x32xf32>
    %1291 = arith.mulf %1290, %1206 : vector<2x32xf32>
    %1292 = arith.addf %1287, %1291 : vector<2x32xf32>
    %1293 = vector.broadcast %1228 : vector<2x1xf32> to vector<2x32xf32>
    %1294 = arith.mulf %1293, %1258 : vector<2x32xf32>
    %cst_266 = arith.constant 1.000000e+00 : f32
    %1295 = vector.broadcast %cst_266 : f32 to vector<2x1xf32>
    %1296 = arith.subf %1295, %1228 : vector<2x1xf32>
    %1297 = vector.broadcast %1296 : vector<2x1xf32> to vector<2x32xf32>
    %1298 = arith.mulf %1297, %1213 : vector<2x32xf32>
    %1299 = arith.addf %1294, %1298 : vector<2x32xf32>
    %1300 = vector.broadcast %1229 : vector<2x1xf32> to vector<2x32xf32>
    %1301 = arith.mulf %1300, %1285 : vector<2x32xf32>
    %cst_267 = arith.constant 1.000000e+00 : f32
    %1302 = vector.broadcast %cst_267 : f32 to vector<2x1xf32>
    %1303 = arith.subf %1302, %1229 : vector<2x1xf32>
    %1304 = vector.broadcast %1303 : vector<2x1xf32> to vector<2x32xf32>
    %1305 = arith.mulf %1304, %1220 : vector<2x32xf32>
    %1306 = arith.addf %1301, %1305 : vector<2x32xf32>
    %1307 = vector.broadcast %1229 : vector<2x1xf32> to vector<2x32xf32>
    %1308 = arith.mulf %1307, %1283 : vector<2x32xf32>
    %cst_268 = arith.constant 1.000000e+00 : f32
    %1309 = vector.broadcast %cst_268 : f32 to vector<2x1xf32>
    %1310 = arith.subf %1309, %1229 : vector<2x1xf32>
    %1311 = vector.broadcast %1310 : vector<2x1xf32> to vector<2x32xf32>
    %1312 = arith.mulf %1311, %1227 : vector<2x32xf32>
    %1313 = arith.addf %1308, %1312 : vector<2x32xf32>
    %1314 = vector.extract_strided_slice %11 {offsets = [8, 0], sizes = [2, 1], strides = [1, 1]} : vector<16x1xf32> to vector<2x1xf32>
    %1315 = vector.extract_strided_slice %11 {offsets = [6, 0], sizes = [2, 1], strides = [1, 1]} : vector<16x1xf32> to vector<2x1xf32>
    %1316 = vector.extract_strided_slice %963 {offsets = [8, 0], sizes = [2, 128], strides = [1, 1]} : vector<16x256xf32> to vector<2x128xf32>
    %cst_269 = arith.constant dense<0.000000e+00> : vector<2x128xf32>
    %1317 = tpu.matmul %1292, %964, %cst_269 {dimension_numbers = #tpu.dot_dimension_numbers<[1], [0], [0], [1], [0, 0, 1, 1], [], []>} : vector<2x32xf32>, vector<32x128xf32>, vector<2x128xf32> -> vector<2x128xf32>
    %1318 = arith.addf %1316, %1317 : vector<2x128xf32>
    %1319 = vector.extract_strided_slice %963 {offsets = [6, 128], sizes = [2, 128], strides = [1, 1]} : vector<16x256xf32> to vector<2x128xf32>
    %cst_270 = arith.constant dense<0.000000e+00> : vector<2x128xf32>
    %1320 = tpu.matmul %1306, %965, %cst_270 {dimension_numbers = #tpu.dot_dimension_numbers<[1], [0], [0], [1], [0, 0, 1, 1], [], []>} : vector<2x32xf32>, vector<32x128xf32>, vector<2x128xf32> -> vector<2x128xf32>
    %1321 = arith.addf %1319, %1320 : vector<2x128xf32>
    %1322 = vector.extract_strided_slice %1318 {offsets = [0, 0], sizes = [2, 32], strides = [1, 1]} : vector<2x128xf32> to vector<2x32xf32>
    %1323 = arith.negf %1322 : vector<2x32xf32>
    %1324 = math.exp %1323 : vector<2x32xf32>
    %cst_271 = arith.constant 1.000000e+00 : f32
    %1325 = vector.broadcast %cst_271 : f32 to vector<2x32xf32>
    %1326 = arith.addf %1325, %1324 : vector<2x32xf32>
    %1327 = arith.divf %1325, %1326 : vector<2x32xf32>
    %1328 = vector.extract_strided_slice %1318 {offsets = [0, 32], sizes = [2, 32], strides = [1, 1]} : vector<2x128xf32> to vector<2x32xf32>
    %1329 = arith.negf %1328 : vector<2x32xf32>
    %1330 = math.exp %1329 : vector<2x32xf32>
    %cst_272 = arith.constant 1.000000e+00 : f32
    %1331 = vector.broadcast %cst_272 : f32 to vector<2x32xf32>
    %1332 = arith.addf %1331, %1330 : vector<2x32xf32>
    %1333 = arith.divf %1331, %1332 : vector<2x32xf32>
    %1334 = vector.extract_strided_slice %1318 {offsets = [0, 64], sizes = [2, 32], strides = [1, 1]} : vector<2x128xf32> to vector<2x32xf32>
    %1335 = math.tanh %1334 : vector<2x32xf32>
    %1336 = vector.extract_strided_slice %1318 {offsets = [0, 96], sizes = [2, 32], strides = [1, 1]} : vector<2x128xf32> to vector<2x32xf32>
    %1337 = arith.negf %1336 : vector<2x32xf32>
    %1338 = math.exp %1337 : vector<2x32xf32>
    %cst_273 = arith.constant 1.000000e+00 : f32
    %1339 = vector.broadcast %cst_273 : f32 to vector<2x32xf32>
    %1340 = arith.addf %1339, %1338 : vector<2x32xf32>
    %1341 = arith.divf %1339, %1340 : vector<2x32xf32>
    %1342 = arith.mulf %1333, %1299 : vector<2x32xf32>
    %1343 = arith.mulf %1327, %1335 : vector<2x32xf32>
    %1344 = arith.addf %1342, %1343 : vector<2x32xf32>
    %1345 = math.tanh %1344 : vector<2x32xf32>
    %1346 = arith.mulf %1341, %1345 : vector<2x32xf32>
    %1347 = vector.extract_strided_slice %1321 {offsets = [0, 0], sizes = [2, 32], strides = [1, 1]} : vector<2x128xf32> to vector<2x32xf32>
    %1348 = arith.negf %1347 : vector<2x32xf32>
    %1349 = math.exp %1348 : vector<2x32xf32>
    %cst_274 = arith.constant 1.000000e+00 : f32
    %1350 = vector.broadcast %cst_274 : f32 to vector<2x32xf32>
    %1351 = arith.addf %1350, %1349 : vector<2x32xf32>
    %1352 = arith.divf %1350, %1351 : vector<2x32xf32>
    %1353 = vector.extract_strided_slice %1321 {offsets = [0, 32], sizes = [2, 32], strides = [1, 1]} : vector<2x128xf32> to vector<2x32xf32>
    %1354 = arith.negf %1353 : vector<2x32xf32>
    %1355 = math.exp %1354 : vector<2x32xf32>
    %cst_275 = arith.constant 1.000000e+00 : f32
    %1356 = vector.broadcast %cst_275 : f32 to vector<2x32xf32>
    %1357 = arith.addf %1356, %1355 : vector<2x32xf32>
    %1358 = arith.divf %1356, %1357 : vector<2x32xf32>
    %1359 = vector.extract_strided_slice %1321 {offsets = [0, 64], sizes = [2, 32], strides = [1, 1]} : vector<2x128xf32> to vector<2x32xf32>
    %1360 = math.tanh %1359 : vector<2x32xf32>
    %1361 = vector.extract_strided_slice %1321 {offsets = [0, 96], sizes = [2, 32], strides = [1, 1]} : vector<2x128xf32> to vector<2x32xf32>
    %1362 = arith.negf %1361 : vector<2x32xf32>
    %1363 = math.exp %1362 : vector<2x32xf32>
    %cst_276 = arith.constant 1.000000e+00 : f32
    %1364 = vector.broadcast %cst_276 : f32 to vector<2x32xf32>
    %1365 = arith.addf %1364, %1363 : vector<2x32xf32>
    %1366 = arith.divf %1364, %1365 : vector<2x32xf32>
    %1367 = arith.mulf %1358, %1313 : vector<2x32xf32>
    %1368 = arith.mulf %1352, %1360 : vector<2x32xf32>
    %1369 = arith.addf %1367, %1368 : vector<2x32xf32>
    %1370 = math.tanh %1369 : vector<2x32xf32>
    %1371 = arith.mulf %1366, %1370 : vector<2x32xf32>
    %1372 = vector.broadcast %1314 : vector<2x1xf32> to vector<2x32xf32>
    %1373 = arith.mulf %1372, %1346 : vector<2x32xf32>
    %cst_277 = arith.constant 1.000000e+00 : f32
    %1374 = vector.broadcast %cst_277 : f32 to vector<2x1xf32>
    %1375 = arith.subf %1374, %1314 : vector<2x1xf32>
    %1376 = vector.broadcast %1375 : vector<2x1xf32> to vector<2x32xf32>
    %1377 = arith.mulf %1376, %1292 : vector<2x32xf32>
    %1378 = arith.addf %1373, %1377 : vector<2x32xf32>
    %1379 = vector.broadcast %1314 : vector<2x1xf32> to vector<2x32xf32>
    %1380 = arith.mulf %1379, %1344 : vector<2x32xf32>
    %cst_278 = arith.constant 1.000000e+00 : f32
    %1381 = vector.broadcast %cst_278 : f32 to vector<2x1xf32>
    %1382 = arith.subf %1381, %1314 : vector<2x1xf32>
    %1383 = vector.broadcast %1382 : vector<2x1xf32> to vector<2x32xf32>
    %1384 = arith.mulf %1383, %1299 : vector<2x32xf32>
    %1385 = arith.addf %1380, %1384 : vector<2x32xf32>
    %1386 = vector.broadcast %1315 : vector<2x1xf32> to vector<2x32xf32>
    %1387 = arith.mulf %1386, %1371 : vector<2x32xf32>
    %cst_279 = arith.constant 1.000000e+00 : f32
    %1388 = vector.broadcast %cst_279 : f32 to vector<2x1xf32>
    %1389 = arith.subf %1388, %1315 : vector<2x1xf32>
    %1390 = vector.broadcast %1389 : vector<2x1xf32> to vector<2x32xf32>
    %1391 = arith.mulf %1390, %1306 : vector<2x32xf32>
    %1392 = arith.addf %1387, %1391 : vector<2x32xf32>
    %1393 = vector.broadcast %1315 : vector<2x1xf32> to vector<2x32xf32>
    %1394 = arith.mulf %1393, %1369 : vector<2x32xf32>
    %cst_280 = arith.constant 1.000000e+00 : f32
    %1395 = vector.broadcast %cst_280 : f32 to vector<2x1xf32>
    %1396 = arith.subf %1395, %1315 : vector<2x1xf32>
    %1397 = vector.broadcast %1396 : vector<2x1xf32> to vector<2x32xf32>
    %1398 = arith.mulf %1397, %1313 : vector<2x32xf32>
    %1399 = arith.addf %1394, %1398 : vector<2x32xf32>
    %1400 = vector.extract_strided_slice %11 {offsets = [10, 0], sizes = [2, 1], strides = [1, 1]} : vector<16x1xf32> to vector<2x1xf32>
    %1401 = vector.extract_strided_slice %11 {offsets = [4, 0], sizes = [2, 1], strides = [1, 1]} : vector<16x1xf32> to vector<2x1xf32>
    %1402 = vector.extract_strided_slice %963 {offsets = [10, 0], sizes = [2, 128], strides = [1, 1]} : vector<16x256xf32> to vector<2x128xf32>
    %cst_281 = arith.constant dense<0.000000e+00> : vector<2x128xf32>
    %1403 = tpu.matmul %1378, %964, %cst_281 {dimension_numbers = #tpu.dot_dimension_numbers<[1], [0], [0], [1], [0, 0, 1, 1], [], []>} : vector<2x32xf32>, vector<32x128xf32>, vector<2x128xf32> -> vector<2x128xf32>
    %1404 = arith.addf %1402, %1403 : vector<2x128xf32>
    %1405 = vector.extract_strided_slice %963 {offsets = [4, 128], sizes = [2, 128], strides = [1, 1]} : vector<16x256xf32> to vector<2x128xf32>
    %cst_282 = arith.constant dense<0.000000e+00> : vector<2x128xf32>
    %1406 = tpu.matmul %1392, %965, %cst_282 {dimension_numbers = #tpu.dot_dimension_numbers<[1], [0], [0], [1], [0, 0, 1, 1], [], []>} : vector<2x32xf32>, vector<32x128xf32>, vector<2x128xf32> -> vector<2x128xf32>
    %1407 = arith.addf %1405, %1406 : vector<2x128xf32>
    %1408 = vector.extract_strided_slice %1404 {offsets = [0, 0], sizes = [2, 32], strides = [1, 1]} : vector<2x128xf32> to vector<2x32xf32>
    %1409 = arith.negf %1408 : vector<2x32xf32>
    %1410 = math.exp %1409 : vector<2x32xf32>
    %cst_283 = arith.constant 1.000000e+00 : f32
    %1411 = vector.broadcast %cst_283 : f32 to vector<2x32xf32>
    %1412 = arith.addf %1411, %1410 : vector<2x32xf32>
    %1413 = arith.divf %1411, %1412 : vector<2x32xf32>
    %1414 = vector.extract_strided_slice %1404 {offsets = [0, 32], sizes = [2, 32], strides = [1, 1]} : vector<2x128xf32> to vector<2x32xf32>
    %1415 = arith.negf %1414 : vector<2x32xf32>
    %1416 = math.exp %1415 : vector<2x32xf32>
    %cst_284 = arith.constant 1.000000e+00 : f32
    %1417 = vector.broadcast %cst_284 : f32 to vector<2x32xf32>
    %1418 = arith.addf %1417, %1416 : vector<2x32xf32>
    %1419 = arith.divf %1417, %1418 : vector<2x32xf32>
    %1420 = vector.extract_strided_slice %1404 {offsets = [0, 64], sizes = [2, 32], strides = [1, 1]} : vector<2x128xf32> to vector<2x32xf32>
    %1421 = math.tanh %1420 : vector<2x32xf32>
    %1422 = vector.extract_strided_slice %1404 {offsets = [0, 96], sizes = [2, 32], strides = [1, 1]} : vector<2x128xf32> to vector<2x32xf32>
    %1423 = arith.negf %1422 : vector<2x32xf32>
    %1424 = math.exp %1423 : vector<2x32xf32>
    %cst_285 = arith.constant 1.000000e+00 : f32
    %1425 = vector.broadcast %cst_285 : f32 to vector<2x32xf32>
    %1426 = arith.addf %1425, %1424 : vector<2x32xf32>
    %1427 = arith.divf %1425, %1426 : vector<2x32xf32>
    %1428 = arith.mulf %1419, %1385 : vector<2x32xf32>
    %1429 = arith.mulf %1413, %1421 : vector<2x32xf32>
    %1430 = arith.addf %1428, %1429 : vector<2x32xf32>
    %1431 = math.tanh %1430 : vector<2x32xf32>
    %1432 = arith.mulf %1427, %1431 : vector<2x32xf32>
    %1433 = vector.extract_strided_slice %1407 {offsets = [0, 0], sizes = [2, 32], strides = [1, 1]} : vector<2x128xf32> to vector<2x32xf32>
    %1434 = arith.negf %1433 : vector<2x32xf32>
    %1435 = math.exp %1434 : vector<2x32xf32>
    %cst_286 = arith.constant 1.000000e+00 : f32
    %1436 = vector.broadcast %cst_286 : f32 to vector<2x32xf32>
    %1437 = arith.addf %1436, %1435 : vector<2x32xf32>
    %1438 = arith.divf %1436, %1437 : vector<2x32xf32>
    %1439 = vector.extract_strided_slice %1407 {offsets = [0, 32], sizes = [2, 32], strides = [1, 1]} : vector<2x128xf32> to vector<2x32xf32>
    %1440 = arith.negf %1439 : vector<2x32xf32>
    %1441 = math.exp %1440 : vector<2x32xf32>
    %cst_287 = arith.constant 1.000000e+00 : f32
    %1442 = vector.broadcast %cst_287 : f32 to vector<2x32xf32>
    %1443 = arith.addf %1442, %1441 : vector<2x32xf32>
    %1444 = arith.divf %1442, %1443 : vector<2x32xf32>
    %1445 = vector.extract_strided_slice %1407 {offsets = [0, 64], sizes = [2, 32], strides = [1, 1]} : vector<2x128xf32> to vector<2x32xf32>
    %1446 = math.tanh %1445 : vector<2x32xf32>
    %1447 = vector.extract_strided_slice %1407 {offsets = [0, 96], sizes = [2, 32], strides = [1, 1]} : vector<2x128xf32> to vector<2x32xf32>
    %1448 = arith.negf %1447 : vector<2x32xf32>
    %1449 = math.exp %1448 : vector<2x32xf32>
    %cst_288 = arith.constant 1.000000e+00 : f32
    %1450 = vector.broadcast %cst_288 : f32 to vector<2x32xf32>
    %1451 = arith.addf %1450, %1449 : vector<2x32xf32>
    %1452 = arith.divf %1450, %1451 : vector<2x32xf32>
    %1453 = arith.mulf %1444, %1399 : vector<2x32xf32>
    %1454 = arith.mulf %1438, %1446 : vector<2x32xf32>
    %1455 = arith.addf %1453, %1454 : vector<2x32xf32>
    %1456 = math.tanh %1455 : vector<2x32xf32>
    %1457 = arith.mulf %1452, %1456 : vector<2x32xf32>
    %1458 = vector.broadcast %1400 : vector<2x1xf32> to vector<2x32xf32>
    %1459 = arith.mulf %1458, %1432 : vector<2x32xf32>
    %cst_289 = arith.constant 1.000000e+00 : f32
    %1460 = vector.broadcast %cst_289 : f32 to vector<2x1xf32>
    %1461 = arith.subf %1460, %1400 : vector<2x1xf32>
    %1462 = vector.broadcast %1461 : vector<2x1xf32> to vector<2x32xf32>
    %1463 = arith.mulf %1462, %1378 : vector<2x32xf32>
    %1464 = arith.addf %1459, %1463 : vector<2x32xf32>
    %1465 = vector.broadcast %1400 : vector<2x1xf32> to vector<2x32xf32>
    %1466 = arith.mulf %1465, %1430 : vector<2x32xf32>
    %cst_290 = arith.constant 1.000000e+00 : f32
    %1467 = vector.broadcast %cst_290 : f32 to vector<2x1xf32>
    %1468 = arith.subf %1467, %1400 : vector<2x1xf32>
    %1469 = vector.broadcast %1468 : vector<2x1xf32> to vector<2x32xf32>
    %1470 = arith.mulf %1469, %1385 : vector<2x32xf32>
    %1471 = arith.addf %1466, %1470 : vector<2x32xf32>
    %1472 = vector.broadcast %1401 : vector<2x1xf32> to vector<2x32xf32>
    %1473 = arith.mulf %1472, %1457 : vector<2x32xf32>
    %cst_291 = arith.constant 1.000000e+00 : f32
    %1474 = vector.broadcast %cst_291 : f32 to vector<2x1xf32>
    %1475 = arith.subf %1474, %1401 : vector<2x1xf32>
    %1476 = vector.broadcast %1475 : vector<2x1xf32> to vector<2x32xf32>
    %1477 = arith.mulf %1476, %1392 : vector<2x32xf32>
    %1478 = arith.addf %1473, %1477 : vector<2x32xf32>
    %1479 = vector.broadcast %1401 : vector<2x1xf32> to vector<2x32xf32>
    %1480 = arith.mulf %1479, %1455 : vector<2x32xf32>
    %cst_292 = arith.constant 1.000000e+00 : f32
    %1481 = vector.broadcast %cst_292 : f32 to vector<2x1xf32>
    %1482 = arith.subf %1481, %1401 : vector<2x1xf32>
    %1483 = vector.broadcast %1482 : vector<2x1xf32> to vector<2x32xf32>
    %1484 = arith.mulf %1483, %1399 : vector<2x32xf32>
    %1485 = arith.addf %1480, %1484 : vector<2x32xf32>
    %1486 = vector.extract_strided_slice %11 {offsets = [12, 0], sizes = [2, 1], strides = [1, 1]} : vector<16x1xf32> to vector<2x1xf32>
    %1487 = vector.extract_strided_slice %11 {offsets = [2, 0], sizes = [2, 1], strides = [1, 1]} : vector<16x1xf32> to vector<2x1xf32>
    %1488 = vector.extract_strided_slice %963 {offsets = [12, 0], sizes = [2, 128], strides = [1, 1]} : vector<16x256xf32> to vector<2x128xf32>
    %cst_293 = arith.constant dense<0.000000e+00> : vector<2x128xf32>
    %1489 = tpu.matmul %1464, %964, %cst_293 {dimension_numbers = #tpu.dot_dimension_numbers<[1], [0], [0], [1], [0, 0, 1, 1], [], []>} : vector<2x32xf32>, vector<32x128xf32>, vector<2x128xf32> -> vector<2x128xf32>
    %1490 = arith.addf %1488, %1489 : vector<2x128xf32>
    %1491 = vector.extract_strided_slice %963 {offsets = [2, 128], sizes = [2, 128], strides = [1, 1]} : vector<16x256xf32> to vector<2x128xf32>
    %cst_294 = arith.constant dense<0.000000e+00> : vector<2x128xf32>
    %1492 = tpu.matmul %1478, %965, %cst_294 {dimension_numbers = #tpu.dot_dimension_numbers<[1], [0], [0], [1], [0, 0, 1, 1], [], []>} : vector<2x32xf32>, vector<32x128xf32>, vector<2x128xf32> -> vector<2x128xf32>
    %1493 = arith.addf %1491, %1492 : vector<2x128xf32>
    %1494 = vector.extract_strided_slice %1490 {offsets = [0, 0], sizes = [2, 32], strides = [1, 1]} : vector<2x128xf32> to vector<2x32xf32>
    %1495 = arith.negf %1494 : vector<2x32xf32>
    %1496 = math.exp %1495 : vector<2x32xf32>
    %cst_295 = arith.constant 1.000000e+00 : f32
    %1497 = vector.broadcast %cst_295 : f32 to vector<2x32xf32>
    %1498 = arith.addf %1497, %1496 : vector<2x32xf32>
    %1499 = arith.divf %1497, %1498 : vector<2x32xf32>
    %1500 = vector.extract_strided_slice %1490 {offsets = [0, 32], sizes = [2, 32], strides = [1, 1]} : vector<2x128xf32> to vector<2x32xf32>
    %1501 = arith.negf %1500 : vector<2x32xf32>
    %1502 = math.exp %1501 : vector<2x32xf32>
    %cst_296 = arith.constant 1.000000e+00 : f32
    %1503 = vector.broadcast %cst_296 : f32 to vector<2x32xf32>
    %1504 = arith.addf %1503, %1502 : vector<2x32xf32>
    %1505 = arith.divf %1503, %1504 : vector<2x32xf32>
    %1506 = vector.extract_strided_slice %1490 {offsets = [0, 64], sizes = [2, 32], strides = [1, 1]} : vector<2x128xf32> to vector<2x32xf32>
    %1507 = math.tanh %1506 : vector<2x32xf32>
    %1508 = vector.extract_strided_slice %1490 {offsets = [0, 96], sizes = [2, 32], strides = [1, 1]} : vector<2x128xf32> to vector<2x32xf32>
    %1509 = arith.negf %1508 : vector<2x32xf32>
    %1510 = math.exp %1509 : vector<2x32xf32>
    %cst_297 = arith.constant 1.000000e+00 : f32
    %1511 = vector.broadcast %cst_297 : f32 to vector<2x32xf32>
    %1512 = arith.addf %1511, %1510 : vector<2x32xf32>
    %1513 = arith.divf %1511, %1512 : vector<2x32xf32>
    %1514 = arith.mulf %1505, %1471 : vector<2x32xf32>
    %1515 = arith.mulf %1499, %1507 : vector<2x32xf32>
    %1516 = arith.addf %1514, %1515 : vector<2x32xf32>
    %1517 = math.tanh %1516 : vector<2x32xf32>
    %1518 = arith.mulf %1513, %1517 : vector<2x32xf32>
    %1519 = vector.extract_strided_slice %1493 {offsets = [0, 0], sizes = [2, 32], strides = [1, 1]} : vector<2x128xf32> to vector<2x32xf32>
    %1520 = arith.negf %1519 : vector<2x32xf32>
    %1521 = math.exp %1520 : vector<2x32xf32>
    %cst_298 = arith.constant 1.000000e+00 : f32
    %1522 = vector.broadcast %cst_298 : f32 to vector<2x32xf32>
    %1523 = arith.addf %1522, %1521 : vector<2x32xf32>
    %1524 = arith.divf %1522, %1523 : vector<2x32xf32>
    %1525 = vector.extract_strided_slice %1493 {offsets = [0, 32], sizes = [2, 32], strides = [1, 1]} : vector<2x128xf32> to vector<2x32xf32>
    %1526 = arith.negf %1525 : vector<2x32xf32>
    %1527 = math.exp %1526 : vector<2x32xf32>
    %cst_299 = arith.constant 1.000000e+00 : f32
    %1528 = vector.broadcast %cst_299 : f32 to vector<2x32xf32>
    %1529 = arith.addf %1528, %1527 : vector<2x32xf32>
    %1530 = arith.divf %1528, %1529 : vector<2x32xf32>
    %1531 = vector.extract_strided_slice %1493 {offsets = [0, 64], sizes = [2, 32], strides = [1, 1]} : vector<2x128xf32> to vector<2x32xf32>
    %1532 = math.tanh %1531 : vector<2x32xf32>
    %1533 = vector.extract_strided_slice %1493 {offsets = [0, 96], sizes = [2, 32], strides = [1, 1]} : vector<2x128xf32> to vector<2x32xf32>
    %1534 = arith.negf %1533 : vector<2x32xf32>
    %1535 = math.exp %1534 : vector<2x32xf32>
    %cst_300 = arith.constant 1.000000e+00 : f32
    %1536 = vector.broadcast %cst_300 : f32 to vector<2x32xf32>
    %1537 = arith.addf %1536, %1535 : vector<2x32xf32>
    %1538 = arith.divf %1536, %1537 : vector<2x32xf32>
    %1539 = arith.mulf %1530, %1485 : vector<2x32xf32>
    %1540 = arith.mulf %1524, %1532 : vector<2x32xf32>
    %1541 = arith.addf %1539, %1540 : vector<2x32xf32>
    %1542 = math.tanh %1541 : vector<2x32xf32>
    %1543 = arith.mulf %1538, %1542 : vector<2x32xf32>
    %1544 = vector.broadcast %1486 : vector<2x1xf32> to vector<2x32xf32>
    %1545 = arith.mulf %1544, %1518 : vector<2x32xf32>
    %cst_301 = arith.constant 1.000000e+00 : f32
    %1546 = vector.broadcast %cst_301 : f32 to vector<2x1xf32>
    %1547 = arith.subf %1546, %1486 : vector<2x1xf32>
    %1548 = vector.broadcast %1547 : vector<2x1xf32> to vector<2x32xf32>
    %1549 = arith.mulf %1548, %1464 : vector<2x32xf32>
    %1550 = arith.addf %1545, %1549 : vector<2x32xf32>
    %1551 = vector.broadcast %1486 : vector<2x1xf32> to vector<2x32xf32>
    %1552 = arith.mulf %1551, %1516 : vector<2x32xf32>
    %cst_302 = arith.constant 1.000000e+00 : f32
    %1553 = vector.broadcast %cst_302 : f32 to vector<2x1xf32>
    %1554 = arith.subf %1553, %1486 : vector<2x1xf32>
    %1555 = vector.broadcast %1554 : vector<2x1xf32> to vector<2x32xf32>
    %1556 = arith.mulf %1555, %1471 : vector<2x32xf32>
    %1557 = arith.addf %1552, %1556 : vector<2x32xf32>
    %1558 = vector.broadcast %1487 : vector<2x1xf32> to vector<2x32xf32>
    %1559 = arith.mulf %1558, %1543 : vector<2x32xf32>
    %cst_303 = arith.constant 1.000000e+00 : f32
    %1560 = vector.broadcast %cst_303 : f32 to vector<2x1xf32>
    %1561 = arith.subf %1560, %1487 : vector<2x1xf32>
    %1562 = vector.broadcast %1561 : vector<2x1xf32> to vector<2x32xf32>
    %1563 = arith.mulf %1562, %1478 : vector<2x32xf32>
    %1564 = arith.addf %1559, %1563 : vector<2x32xf32>
    %1565 = vector.broadcast %1487 : vector<2x1xf32> to vector<2x32xf32>
    %1566 = arith.mulf %1565, %1541 : vector<2x32xf32>
    %cst_304 = arith.constant 1.000000e+00 : f32
    %1567 = vector.broadcast %cst_304 : f32 to vector<2x1xf32>
    %1568 = arith.subf %1567, %1487 : vector<2x1xf32>
    %1569 = vector.broadcast %1568 : vector<2x1xf32> to vector<2x32xf32>
    %1570 = arith.mulf %1569, %1485 : vector<2x32xf32>
    %1571 = arith.addf %1566, %1570 : vector<2x32xf32>
    %1572 = vector.extract_strided_slice %11 {offsets = [14, 0], sizes = [2, 1], strides = [1, 1]} : vector<16x1xf32> to vector<2x1xf32>
    %1573 = vector.extract_strided_slice %11 {offsets = [0, 0], sizes = [2, 1], strides = [1, 1]} : vector<16x1xf32> to vector<2x1xf32>
    %1574 = vector.extract_strided_slice %963 {offsets = [14, 0], sizes = [2, 128], strides = [1, 1]} : vector<16x256xf32> to vector<2x128xf32>
    %cst_305 = arith.constant dense<0.000000e+00> : vector<2x128xf32>
    %1575 = tpu.matmul %1550, %964, %cst_305 {dimension_numbers = #tpu.dot_dimension_numbers<[1], [0], [0], [1], [0, 0, 1, 1], [], []>} : vector<2x32xf32>, vector<32x128xf32>, vector<2x128xf32> -> vector<2x128xf32>
    %1576 = arith.addf %1574, %1575 : vector<2x128xf32>
    %1577 = vector.extract_strided_slice %963 {offsets = [0, 128], sizes = [2, 128], strides = [1, 1]} : vector<16x256xf32> to vector<2x128xf32>
    %cst_306 = arith.constant dense<0.000000e+00> : vector<2x128xf32>
    %1578 = tpu.matmul %1564, %965, %cst_306 {dimension_numbers = #tpu.dot_dimension_numbers<[1], [0], [0], [1], [0, 0, 1, 1], [], []>} : vector<2x32xf32>, vector<32x128xf32>, vector<2x128xf32> -> vector<2x128xf32>
    %1579 = arith.addf %1577, %1578 : vector<2x128xf32>
    %1580 = vector.extract_strided_slice %1576 {offsets = [0, 0], sizes = [2, 32], strides = [1, 1]} : vector<2x128xf32> to vector<2x32xf32>
    %1581 = arith.negf %1580 : vector<2x32xf32>
    %1582 = math.exp %1581 : vector<2x32xf32>
    %cst_307 = arith.constant 1.000000e+00 : f32
    %1583 = vector.broadcast %cst_307 : f32 to vector<2x32xf32>
    %1584 = arith.addf %1583, %1582 : vector<2x32xf32>
    %1585 = arith.divf %1583, %1584 : vector<2x32xf32>
    %1586 = vector.extract_strided_slice %1576 {offsets = [0, 32], sizes = [2, 32], strides = [1, 1]} : vector<2x128xf32> to vector<2x32xf32>
    %1587 = arith.negf %1586 : vector<2x32xf32>
    %1588 = math.exp %1587 : vector<2x32xf32>
    %cst_308 = arith.constant 1.000000e+00 : f32
    %1589 = vector.broadcast %cst_308 : f32 to vector<2x32xf32>
    %1590 = arith.addf %1589, %1588 : vector<2x32xf32>
    %1591 = arith.divf %1589, %1590 : vector<2x32xf32>
    %1592 = vector.extract_strided_slice %1576 {offsets = [0, 64], sizes = [2, 32], strides = [1, 1]} : vector<2x128xf32> to vector<2x32xf32>
    %1593 = math.tanh %1592 : vector<2x32xf32>
    %1594 = vector.extract_strided_slice %1576 {offsets = [0, 96], sizes = [2, 32], strides = [1, 1]} : vector<2x128xf32> to vector<2x32xf32>
    %1595 = arith.negf %1594 : vector<2x32xf32>
    %1596 = math.exp %1595 : vector<2x32xf32>
    %cst_309 = arith.constant 1.000000e+00 : f32
    %1597 = vector.broadcast %cst_309 : f32 to vector<2x32xf32>
    %1598 = arith.addf %1597, %1596 : vector<2x32xf32>
    %1599 = arith.divf %1597, %1598 : vector<2x32xf32>
    %1600 = arith.mulf %1591, %1557 : vector<2x32xf32>
    %1601 = arith.mulf %1585, %1593 : vector<2x32xf32>
    %1602 = arith.addf %1600, %1601 : vector<2x32xf32>
    %1603 = math.tanh %1602 : vector<2x32xf32>
    %1604 = arith.mulf %1599, %1603 : vector<2x32xf32>
    %1605 = vector.extract_strided_slice %1579 {offsets = [0, 0], sizes = [2, 32], strides = [1, 1]} : vector<2x128xf32> to vector<2x32xf32>
    %1606 = arith.negf %1605 : vector<2x32xf32>
    %1607 = math.exp %1606 : vector<2x32xf32>
    %cst_310 = arith.constant 1.000000e+00 : f32
    %1608 = vector.broadcast %cst_310 : f32 to vector<2x32xf32>
    %1609 = arith.addf %1608, %1607 : vector<2x32xf32>
    %1610 = arith.divf %1608, %1609 : vector<2x32xf32>
    %1611 = vector.extract_strided_slice %1579 {offsets = [0, 32], sizes = [2, 32], strides = [1, 1]} : vector<2x128xf32> to vector<2x32xf32>
    %1612 = arith.negf %1611 : vector<2x32xf32>
    %1613 = math.exp %1612 : vector<2x32xf32>
    %cst_311 = arith.constant 1.000000e+00 : f32
    %1614 = vector.broadcast %cst_311 : f32 to vector<2x32xf32>
    %1615 = arith.addf %1614, %1613 : vector<2x32xf32>
    %1616 = arith.divf %1614, %1615 : vector<2x32xf32>
    %1617 = vector.extract_strided_slice %1579 {offsets = [0, 64], sizes = [2, 32], strides = [1, 1]} : vector<2x128xf32> to vector<2x32xf32>
    %1618 = math.tanh %1617 : vector<2x32xf32>
    %1619 = vector.extract_strided_slice %1579 {offsets = [0, 96], sizes = [2, 32], strides = [1, 1]} : vector<2x128xf32> to vector<2x32xf32>
    %1620 = arith.negf %1619 : vector<2x32xf32>
    %1621 = math.exp %1620 : vector<2x32xf32>
    %cst_312 = arith.constant 1.000000e+00 : f32
    %1622 = vector.broadcast %cst_312 : f32 to vector<2x32xf32>
    %1623 = arith.addf %1622, %1621 : vector<2x32xf32>
    %1624 = arith.divf %1622, %1623 : vector<2x32xf32>
    %1625 = arith.mulf %1616, %1571 : vector<2x32xf32>
    %1626 = arith.mulf %1610, %1618 : vector<2x32xf32>
    %1627 = arith.addf %1625, %1626 : vector<2x32xf32>
    %1628 = math.tanh %1627 : vector<2x32xf32>
    %1629 = arith.mulf %1624, %1628 : vector<2x32xf32>
    %1630 = vector.broadcast %1572 : vector<2x1xf32> to vector<2x32xf32>
    %1631 = arith.mulf %1630, %1604 : vector<2x32xf32>
    %cst_313 = arith.constant 1.000000e+00 : f32
    %1632 = vector.broadcast %cst_313 : f32 to vector<2x1xf32>
    %1633 = arith.subf %1632, %1572 : vector<2x1xf32>
    %1634 = vector.broadcast %1633 : vector<2x1xf32> to vector<2x32xf32>
    %1635 = arith.mulf %1634, %1550 : vector<2x32xf32>
    %1636 = arith.addf %1631, %1635 : vector<2x32xf32>
    %1637 = vector.broadcast %1573 : vector<2x1xf32> to vector<2x32xf32>
    %1638 = arith.mulf %1637, %1629 : vector<2x32xf32>
    %cst_314 = arith.constant 1.000000e+00 : f32
    %1639 = vector.broadcast %cst_314 : f32 to vector<2x1xf32>
    %1640 = arith.subf %1639, %1573 : vector<2x1xf32>
    %1641 = vector.broadcast %1640 : vector<2x1xf32> to vector<2x32xf32>
    %1642 = arith.mulf %1641, %1564 : vector<2x32xf32>
    %1643 = arith.addf %1638, %1642 : vector<2x32xf32>
    %c0_315 = arith.constant 0 : index
    %c0_316 = arith.constant 0 : index
    %1644 = vector.load %arg12[%c0_315, %c0_316] : memref<64x5xf32, #tpu.memory_space<vmem>>, vector<32x5xf32>
    %cst_317 = arith.constant dense<0.000000e+00> : vector<2x5xf32>
    %1645 = tpu.matmul %1636, %1644, %cst_317 {dimension_numbers = #tpu.dot_dimension_numbers<[1], [0], [0], [1], [0, 0, 1, 1], [], []>} : vector<2x32xf32>, vector<32x5xf32>, vector<2x5xf32> -> vector<2x5xf32>
    %c32_318 = arith.constant 32 : index
    %c0_319 = arith.constant 0 : index
    %1646 = vector.load %arg12[%c32_318, %c0_319] : memref<64x5xf32, #tpu.memory_space<vmem>>, vector<32x5xf32>
    %cst_320 = arith.constant dense<0.000000e+00> : vector<2x5xf32>
    %1647 = tpu.matmul %1643, %1646, %cst_320 {dimension_numbers = #tpu.dot_dimension_numbers<[1], [0], [0], [1], [0, 0, 1, 1], [], []>} : vector<2x32xf32>, vector<32x5xf32>, vector<2x5xf32> -> vector<2x5xf32>
    %1648 = arith.addf %1645, %1647 : vector<2x5xf32>
    %c0_321 = arith.constant 0 : index
    %c0_322 = arith.constant 0 : index
    %1649 = vector.load %arg13[%c0_321, %c0_322] : memref<1x5xf32, #tpu.memory_space<vmem>>, vector<1x5xf32>
    %1650 = vector.broadcast %1649 : vector<1x5xf32> to vector<2x5xf32>
    %1651 = arith.addf %1648, %1650 : vector<2x5xf32>
    %cst_323 = arith.constant dense<0xFF800000> : vector<2xf32>
    %1652 = vector.multi_reduction <maximumf>, %1651, %cst_323 [1] : vector<2x5xf32> to vector<2xf32>
    %1653 = vector.shape_cast %1652 : vector<2xf32> to vector<2x1xf32>
    %1654 = vector.broadcast %1653 : vector<2x1xf32> to vector<2x5xf32>
    %1655 = arith.subf %1651, %1654 : vector<2x5xf32>
    %1656 = math.exp %1655 : vector<2x5xf32>
    %cst_324 = arith.constant dense<0.000000e+00> : vector<2xf32>
    %1657 = vector.multi_reduction <add>, %1656, %cst_324 [1] : vector<2x5xf32> to vector<2xf32>
    %1658 = vector.shape_cast %1657 : vector<2xf32> to vector<2x1xf32>
    %1659 = math.log %1658 : vector<2x1xf32>
    %1660 = arith.addf %1659, %1653 : vector<2x1xf32>
    %1661 = vector.broadcast %1660 : vector<2x1xf32> to vector<2x5xf32>
    %1662 = arith.subf %1651, %1661 : vector<2x5xf32>
    %c0_325 = arith.constant 0 : index
    %c0_326 = arith.constant 0 : index
    %1663 = vector.load %arg14[%c0_325, %c0_326] : memref<2x5xf32, #tpu.memory_space<vmem>>, vector<2x5xf32>
    tpu.vector_store %arg14[%c0_325, %c0_326], %1662 {strides = array<i32>} : memref<2x5xf32, #tpu.memory_space<vmem>>, vector<2x5xf32>,
    return
  }
}

</mosaic_0001>

<llo_original>
// kernel: _lambda_.1
$region0: #{_lambda_.1}
  #allocation0 [shape = 'u32[]', space=smem, size = 0x4, offset = 0x4, fixed_abs, tag = 'smem constant byte address 0x4 - core index']
  #allocation1 [shape = 'u32[144,128]{1,0:T(1,128)}', space=vmem, size = 0x12000, scoped, tag = 'internal scratch']
  #allocation2 [shape = 'f32[16,32]{1,0:T(8,128)}', space=vmem, size = 0x2000, scoped, tag = 'scratch operand']
  #allocation3 [shape = 'f32[16,32]{1,0:T(8,128)}', space=vmem, size = 0x2000, scoped, tag = 'scratch operand']
  %s0 = inlined_call_operand.vmem [shape: s32[16,1], index: 0, kind: input, shape index: {}]
  %s1 = inlined_call_operand.hbm [shape: f32[64,16], index: 1, kind: input, shape index: {}]
  %s2 = inlined_call_operand.hbm [shape: f32[16,256], index: 2, kind: input, shape index: {}]
  %s3 = inlined_call_operand.vmem [shape: f32[1,256], index: 3, kind: input, shape index: {}]
  %s4 = inlined_call_operand.hbm [shape: f32[32,128], index: 4, kind: input, shape index: {}]
  %s5 = inlined_call_operand.hbm [shape: f32[32,128], index: 5, kind: input, shape index: {}]
  %s6 = inlined_call_operand.hbm [shape: f32[64,2], index: 6, kind: input, shape index: {}]
  %s7 = inlined_call_operand.vmem [shape: f32[1,2], index: 7, kind: input, shape index: {}]
  %s8 = inlined_call_operand.hbm [shape: f32[16,256], index: 8, kind: input, shape index: {}]
  %s9 = inlined_call_operand.vmem [shape: f32[1,256], index: 9, kind: input, shape index: {}]
  %s10 = inlined_call_operand.hbm [shape: f32[32,128], index: 10, kind: input, shape index: {}]
  %s11 = inlined_call_operand.hbm [shape: f32[32,128], index: 11, kind: input, shape index: {}]
  %s12 = inlined_call_operand.vmem [shape: f32[64,5], index: 12, kind: input, shape index: {}]
  %s13 = inlined_call_operand.vmem [shape: f32[1,5], index: 13, kind: input, shape index: {}]
  %s14 = inlined_call_operand.hbm [shape: f32[2,5], index: 14, kind: output, shape index: {0}]
  %s15 = inlined_call_operand.vmem [shape: f32[16,1], index: 15, kind: output, shape index: {1}]
  %16 = xla_tuple %s14, %s15
  %s17 = sld [smem:[#allocation0]]
  $region106: #{_lambda_.1} parent=0
    _
  %s19 = ssub.s32 1, %s17
  %s20 = scalar_select 0, %s19, %s17
  $region1: #{_lambda_.1} parent=0
    #allocation4 [shape = 'u8[32768]{0}', space=vmem, size = 0x8000, scoped, tag = 'input window, operand 1, single buffered']
    #allocation5 [shape = 's32[1]{0}', space=sflag, size = 0x4, scoped, tag = 'scoped memory for _lambda_.1']
    #allocation6 [shape = 's32[1]{0}', space=sflag, size = 0x4, scoped, tag = 'scoped memory for _lambda_.1']
    #allocation7 [shape = 'u8[16384]{0}', space=vmem, size = 0x4000, scoped, tag = 'input window, operand 2, single buffered']
    #allocation8 [shape = 's32[1]{0}', space=sflag, size = 0x4, scoped, tag = 'scoped memory for _lambda_.1']
    #allocation9 [shape = 'u8[16384]{0}', space=vmem, size = 0x4000, scoped, tag = 'input window, operand 4, single buffered']
    #allocation10 [shape = 'u8[16384]{0}', space=vmem, size = 0x4000, scoped, tag = 'input window, operand 5, single buffered']
    #allocation11 [shape = 's32[1]{0}', space=sflag, size = 0x4, scoped, tag = 'scoped memory for _lambda_.1']
    #allocation12 [shape = 'u8[32768]{0}', space=vmem, size = 0x8000, scoped, tag = 'input window, operand 6, single buffered']
    #allocation13 [shape = 'u8[16384]{0}', space=vmem, size = 0x4000, scoped, tag = 'input window, operand 8, single buffered']
    #allocation14 [shape = 's32[1]{0}', space=sflag, size = 0x4, scoped, tag = 'scoped memory for _lambda_.1']
    #allocation15 [shape = 'u8[16384]{0}', space=vmem, size = 0x4000, scoped, tag = 'input window, operand 10, single buffered']
    #allocation16 [shape = 'u8[16384]{0}', space=vmem, size = 0x4000, scoped, tag = 'input window, operand 11, single buffered']
    #allocation17 [shape = 's32[1]{0}', space=sflag, size = 0x4, scoped, tag = 'scoped memory for _lambda_.1']
    #allocation18 [shape = 'u8[1024]{0}', space=vmem, size = 0x400, scoped, tag = 'output window, operand 0, single buffered']
    %21 = vsyncpa [#allocation5], 0
    %22 = vsyncpa [#allocation8], 0
    %23 = vsyncpa [#allocation11], 0
    %24 = vsyncpa [#allocation14], 0
    %25 = vsyncpa [#allocation17], 0
    %26 = vsyncpa [#allocation6], 0
    // Predicated region
    $region2: #{_lambda_.1} parent=1 // pred_check
      _
    $region3: #{_lambda_.1} parent=1 // pred_check_branch
      %28 = sbr.rel (0) target = $region5
    $region4: #{_lambda_.1} parent=1 // pred_region
      _
    $region5: #{_lambda_.1} parent=1 // pred_fallthru
      _
    // Predicated region
    $region6: #{_lambda_.1} parent=1 // pred_check
      _
    $region7: #{_lambda_.1} parent=1 // pred_check_branch
      %30 = sbr.rel (0) target = $region9
    $region8: #{_lambda_.1} parent=1 // pred_region
      %s32 = ssub.s32 1024, 1024
      %33 = vsyncadd [#allocation5], %s32
      %s34 = sshll.u32 [#allocation4], 4
      %s35 = int_to_ptr.vmem [resolvable:$true] %s34
      %40 = dma.hbm_to_vmem [thread:$0]  %s1, 1024, %s35, [#allocation5], 128, 128, 8
    $region9: #{_lambda_.1} parent=1 // pred_fallthru
      _
    // Predicated region
    $region10: #{_lambda_.1} parent=1 // pred_check
      _
    $region11: #{_lambda_.1} parent=1 // pred_check_branch
      %42 = sbr.rel (0) target = $region13
    $region12: #{_lambda_.1} parent=1 // pred_region
      %s44 = ssub.s32 512, 512
      %45 = vsyncadd [#allocation8], %s44
      %s46 = sshll.u32 [#allocation7], 4
      %s47 = int_to_ptr.vmem [resolvable:$true] %s46
      %52 = dma.hbm_to_vmem [thread:$0]  %s2, 512, %s47, [#allocation8], 256, 256, 16
    $region13: #{_lambda_.1} parent=1 // pred_fallthru
      _
    // Predicated region
    $region14: #{_lambda_.1} parent=1 // pred_check
      _
    $region15: #{_lambda_.1} parent=1 // pred_check_branch
      %54 = sbr.rel (0) target = $region17
    $region16: #{_lambda_.1} parent=1 // pred_region
      _
    $region17: #{_lambda_.1} parent=1 // pred_fallthru
      _
    // Predicated region
    $region18: #{_lambda_.1} parent=1 // pred_check
      _
    $region19: #{_lambda_.1} parent=1 // pred_check_branch
      %56 = sbr.rel (0) target = $region21
    $region20: #{_lambda_.1} parent=1 // pred_region
      %s58 = ssub.s32 512, 512
      %59 = vsyncadd [#allocation8], %s58
      %s60 = sshll.u32 [#allocation9], 4
      %s61 = int_to_ptr.vmem [resolvable:$true] %s60
      %66 = dma.hbm_to_vmem [thread:$0]  %s4, 512, %s61, [#allocation8], 128, 128, 8
    $region21: #{_lambda_.1} parent=1 // pred_fallthru
      _
    // Predicated region
    $region22: #{_lambda_.1} parent=1 // pred_check
      _
    $region23: #{_lambda_.1} parent=1 // pred_check_branch
      %68 = sbr.rel (0) target = $region25
    $region24: #{_lambda_.1} parent=1 // pred_region
      %s70 = ssub.s32 512, 512
      %71 = vsyncadd [#allocation11], %s70
      %s72 = sshll.u32 [#allocation10], 4
      %s73 = int_to_ptr.vmem [resolvable:$true] %s72
      %78 = dma.hbm_to_vmem [thread:$0]  %s5, 512, %s73, [#allocation11], 128, 128, 8
    $region25: #{_lambda_.1} parent=1 // pred_fallthru
      _
    // Predicated region
    $region26: #{_lambda_.1} parent=1 // pred_check
      _
    $region27: #{_lambda_.1} parent=1 // pred_check_branch
      %80 = sbr.rel (0) target = $region29
    $region28: #{_lambda_.1} parent=1 // pred_region
      %s82 = ssub.s32 1024, 1024
      %83 = vsyncadd [#allocation11], %s82
      %s84 = sshll.u32 [#allocation12], 4
      %s85 = int_to_ptr.vmem [resolvable:$true] %s84
      %90 = dma.hbm_to_vmem [thread:$0]  %s6, 1024, %s85, [#allocation11], 128, 128, 8
    $region29: #{_lambda_.1} parent=1 // pred_fallthru
      _
    // Predicated region
    $region30: #{_lambda_.1} parent=1 // pred_check
      _
    $region31: #{_lambda_.1} parent=1 // pred_check_branch
      %92 = sbr.rel (0) target = $region33
    $region32: #{_lambda_.1} parent=1 // pred_region
      _
    $region33: #{_lambda_.1} parent=1 // pred_fallthru
      _
    // Predicated region
    $region34: #{_lambda_.1} parent=1 // pred_check
      _
    $region35: #{_lambda_.1} parent=1 // pred_check_branch
      %94 = sbr.rel (0) target = $region37
    $region36: #{_lambda_.1} parent=1 // pred_region
      %s96 = ssub.s32 512, 512
      %97 = vsyncadd [#allocation14], %s96
      %s98 = sshll.u32 [#allocation13], 4
      %s99 = int_to_ptr.vmem [resolvable:$true] %s98
      %104 = dma.hbm_to_vmem [thread:$0]  %s8, 512, %s99, [#allocation14], 256, 256, 16
    $region37: #{_lambda_.1} parent=1 // pred_fallthru
      _
    // Predicated region
    $region38: #{_lambda_.1} parent=1 // pred_check
      _
    $region39: #{_lambda_.1} parent=1 // pred_check_branch
      %106 = sbr.rel (0) target = $region41
    $region40: #{_lambda_.1} parent=1 // pred_region
      _
    $region41: #{_lambda_.1} parent=1 // pred_fallthru
      _
    // Predicated region
    $region42: #{_lambda_.1} parent=1 // pred_check
      _
    $region43: #{_lambda_.1} parent=1 // pred_check_branch
      %108 = sbr.rel (0) target = $region45
    $region44: #{_lambda_.1} parent=1 // pred_region
      %s110 = ssub.s32 512, 512
      %111 = vsyncadd [#allocation14], %s110
      %s112 = sshll.u32 [#allocation15], 4
      %s113 = int_to_ptr.vmem [resolvable:$true] %s112
      %118 = dma.hbm_to_vmem [thread:$0]  %s10, 512, %s113, [#allocation14], 128, 128, 8
    $region45: #{_lambda_.1} parent=1 // pred_fallthru
      _
    // Predicated region
    $region46: #{_lambda_.1} parent=1 // pred_check
      _
    $region47: #{_lambda_.1} parent=1 // pred_check_branch
      %120 = sbr.rel (0) target = $region49
    $region48: #{_lambda_.1} parent=1 // pred_region
      %s122 = ssub.s32 512, 512
      %123 = vsyncadd [#allocation17], %s122
      %s124 = sshll.u32 [#allocation16], 4
      %s125 = int_to_ptr.vmem [resolvable:$true] %s124
      %130 = dma.hbm_to_vmem [thread:$0]  %s11, 512, %s125, [#allocation17], 128, 128, 8
    $region49: #{_lambda_.1} parent=1 // pred_fallthru
      _
    // Predicated region
    $region50: #{_lambda_.1} parent=1 // pred_check
      _
    $region51: #{_lambda_.1} parent=1 // pred_check_branch
      %132 = sbr.rel (0) target = $region53
    $region52: #{_lambda_.1} parent=1 // pred_region
      _
    $region53: #{_lambda_.1} parent=1 // pred_fallthru
      _
    // Predicated region
    $region54: #{_lambda_.1} parent=1 // pred_check
      _
    $region55: #{_lambda_.1} parent=1 // pred_check_branch
      %134 = sbr.rel (0) target = $region57
    $region56: #{_lambda_.1} parent=1 // pred_region
      _
    $region57: #{_lambda_.1} parent=1 // pred_fallthru
      _
    // Predicated region
    $region58: #{_lambda_.1} parent=1 // pred_check
      _
    $region59: #{_lambda_.1} parent=1 // pred_check_branch
      %136 = sbr.rel (0) target = $region61
    $region60: #{_lambda_.1} parent=1 // pred_region
      %137 = dma.done [#allocation5], 1024
    $region61: #{_lambda_.1} parent=1 // pred_fallthru
      _
    // Predicated region
    $region62: #{_lambda_.1} parent=1 // pred_check
      _
    $region63: #{_lambda_.1} parent=1 // pred_check_branch
      %139 = sbr.rel (0) target = $region65
    $region64: #{_lambda_.1} parent=1 // pred_region
      %140 = dma.done [#allocation8], 512
    $region65: #{_lambda_.1} parent=1 // pred_fallthru
      _
    // Predicated region
    $region66: #{_lambda_.1} parent=1 // pred_check
      _
    $region67: #{_lambda_.1} parent=1 // pred_check_branch
      %142 = sbr.rel (0) target = $region69
    $region68: #{_lambda_.1} parent=1 // pred_region
      %143 = dma.done [#allocation8], 512
    $region69: #{_lambda_.1} parent=1 // pred_fallthru
      _
    // Predicated region
    $region70: #{_lambda_.1} parent=1 // pred_check
      _
    $region71: #{_lambda_.1} parent=1 // pred_check_branch
      %145 = sbr.rel (0) target = $region73
    $region72: #{_lambda_.1} parent=1 // pred_region
      %146 = dma.done [#allocation11], 512
    $region73: #{_lambda_.1} parent=1 // pred_fallthru
      _
    // Predicated region
    $region74: #{_lambda_.1} parent=1 // pred_check
      _
    $region75: #{_lambda_.1} parent=1 // pred_check_branch
      %148 = sbr.rel (0) target = $region77
    $region76: #{_lambda_.1} parent=1 // pred_region
      %149 = dma.done [#allocation11], 1024
    $region77: #{_lambda_.1} parent=1 // pred_fallthru
      _
    // Predicated region
    $region78: #{_lambda_.1} parent=1 // pred_check
      _
    $region79: #{_lambda_.1} parent=1 // pred_check_branch
      %151 = sbr.rel (0) target = $region81
    $region80: #{_lambda_.1} parent=1 // pred_region
      %152 = dma.done [#allocation14], 512
    $region81: #{_lambda_.1} parent=1 // pred_fallthru
      _
    // Predicated region
    $region82: #{_lambda_.1} parent=1 // pred_check
      _
    $region83: #{_lambda_.1} parent=1 // pred_check_branch
      %154 = sbr.rel (0) target = $region85
    $region84: #{_lambda_.1} parent=1 // pred_region
      %155 = dma.done [#allocation14], 512
    $region85: #{_lambda_.1} parent=1 // pred_fallthru
      _
    // Predicated region
    $region86: #{_lambda_.1} parent=1 // pred_check
      _
    $region87: #{_lambda_.1} parent=1 // pred_check_branch
      %157 = sbr.rel (0) target = $region89
    $region88: #{_lambda_.1} parent=1 // pred_region
      %158 = dma.done [#allocation17], 512
    $region89: #{_lambda_.1} parent=1 // pred_fallthru
      _
    %v159 = vld [vmem:[%s0] sm:$0xff]
    %v160 = vld [vmem:[%s0 + $0x8] sm:$0xff]
    %v161 = vlaneseq
    %v162 = vand.u32 %v161, 127
    %163 = vset.pattern.permute.xlu0 0
    %164 = vperm.xlu0 %163, %v159
    %v165 = vpop.permute.xlu0 %164
    %166 = vset.pattern.permute.xlu0 0
    %167 = vperm.xlu0 %166, %v160
    %v168 = vpop.permute.xlu0 %167
    %vm169 = vcmp.eq.s32.totalorder %v165, %v162
    %vm170 = vcmp.eq.s32.totalorder %v168, %v162
    %v171 = vsel %vm169, 1, 0
    %v172 = vsel %vm170, 1, 0
    %v173 = vcvt.s32.f32 %v171
    %v174 = vcvt.s32.f32 %v172
    %v175 = vld [vmem:[#allocation4] sm:$0xff]
    %v176 = vld [vmem:[#allocation4 + $0x8] sm:$0xff]
    %v177 = vld [vmem:[#allocation4 + $0x10] sm:$0xff]
    %v178 = vld [vmem:[#allocation4 + $0x18] sm:$0xff]
    %v179 = vld [vmem:[#allocation4 + $0x20] sm:$0xff]
    %v180 = vld [vmem:[#allocation4 + $0x28] sm:$0xff]
    %v181 = vld [vmem:[#allocation4 + $0x30] sm:$0xff]
    %v182 = vld [vmem:[#allocation4 + $0x38] sm:$0xff]
    %vm183 = vcmask 523264
    %v185 = vsel %vm183, %v173, 0
    %v188 = vsel %vm183, %v174, 0
    %190 = vmatprep.subr.mxu0 0.0
    %191 = vmatpush1.msra.mxu0 %v175
    %192 = vmatprep.subr.mxu0 0.0
    %193 = vmatpush1.msra.mxu0 %v176
    %194 = vmatprep.subr.mxu0 0.0
    %195 = vmatpush1.msra.mxu0 %v177
    %196 = vmatprep.subr.mxu0 0.0
    %197 = vmatpush1.msra.mxu0 %v178
    %198 = vmatprep.subr.mxu0 0.0
    %199 = vmatpush1.msra.mxu0 %v179
    %200 = vmatprep.subr.mxu0 0.0
    %201 = vmatpush1.msra.mxu0 %v180
    %202 = vmatprep.subr.mxu0 0.0
    %203 = vmatpush1.msra.mxu0 %v181
    %204 = vmatprep.subr.mxu0 0.0
    %205 = vmatpush1.msra.mxu0 %v182
    %206 = vmatprep.subr.mxu0 0.0
    %207 = vmatpush1.msra.mxu0 0.0
    %208 = vmatprep.subr.mxu0 0.0
    %209 = vmatpush1.msra.mxu0 0.0
    %210 = vmatprep.subr.mxu0 0.0
    %211 = vmatpush1.msra.mxu0 0.0
    %212 = vmatprep.subr.mxu0 0.0
    %213 = vmatpush1.msra.mxu0 0.0
    %214 = vmatprep.subr.mxu0 0.0
    %215 = vmatpush1.msra.mxu0 0.0
    %216 = vmatprep.subr.mxu0 0.0
    %217 = vmatpush1.msra.mxu0 0.0
    %218 = vmatprep.subr.mxu0 0.0
    %219 = vmatpush1.msra.mxu0 0.0
    %220 = vmatprep.subr.mxu0 0.0
    %221 = vmatpush1.msra.mxu0 0.0
    %222 = vmatprep.subr.mxu0 0.0
    %223 = vmatpush1.msra.mxu0 0.0
    %224 = vmatprep.subr.mxu0 0.0
    %225 = vmatpush1.msra.mxu0 0.0
    %226 = vmatprep.subr.mxu0 0.0
    %227 = vmatpush1.msra.mxu0 0.0
    %228 = vmatprep.subr.mxu0 0.0
    %229 = vmatpush1.msra.mxu0 0.0
    %230 = vmatprep.subr.mxu0 0.0
    %231 = vmatpush1.msra.mxu0 0.0
    %232 = vmatprep.subr.mxu0 0.0
    %233 = vmatpush1.msra.mxu0 0.0
    %234 = vmatprep.subr.mxu0 0.0
    %235 = vmatpush1.msra.mxu0 0.0
    %236 = vmatprep.subr.mxu0 0.0
    %237 = vmatpush1.msra.mxu0 0.0
    %238 = vmatprep.subr.mxu0 0.0
    %239 = vmatpush1.msra.mxu0 0.0
    %240 = vmatprep.subr.mxu0 0.0
    %241 = vmatpush1.msra.mxu0 0.0
    %242 = vmatprep.subr.mxu0 0.0
    %243 = vmatpush1.msra.mxu0 0.0
    %244 = vmatprep.subr.mxu0 0.0
    %245 = vmatpush1.msra.mxu0 0.0
    %246 = vmatprep.subr.mxu0 0.0
    %247 = vmatpush1.msra.mxu0 0.0
    %248 = vmatprep.subr.mxu0 0.0
    %249 = vmatpush1.msra.mxu0 0.0
    %250 = vmatprep.subr.mxu0 0.0
    %251 = vmatpush1.msra.mxu0 0.0
    %252 = vmatprep.subr.mxu0 0.0
    %253 = vmatpush1.msra.mxu0 0.0
    %254 = vmatprep.mubr.f32.mxu0 0.0
    %255 = vmatmul.mubr.f32.gmra.mrb[0].mxu0 %v185
    %v256 = vpop.f32.mrb[0].mxu0
    %v257 = vadd.f32 0.0, %v256
    %v258 = vpop.f32.mrb[0].mxu0
    %259 = vmatprep.mubr.f32.mxu0 0.0
    %260 = vmatmul.mubr.f32.gmra.mrb[0].mxu0 %v188
    %v261 = vpop.f32.mrb[0].mxu0
    %v262 = vadd.f32 0.0, %v261
    %v263 = vpop.f32.mrb[0].mxu0
    %264 = vdwg.mxu0
    %vm265 = vcmp.ne.s32.totalorder %v159, 1
    %vm266 = vcmp.ne.s32.totalorder %v160, 1
    %v267 = vsel %vm265, 1, 0
    %v268 = vsel %vm266, 1, 0
    %v269 = vcvt.s32.f32 %v267
    %v270 = vcvt.s32.f32 %v268
    %v271 = vld [vmem:[#allocation7] sm:$0xff]
    %v272 = vld [vmem:[#allocation7 + $0x8] sm:$0xff]
    %v273 = vld [vmem:[#allocation7 + $0x10] sm:$0xff]
    %v274 = vld [vmem:[#allocation7 + $0x18] sm:$0xff]
    %v275 = vld [vmem:[%s3] sm:$0x3]
    %v277 = vlaneseq
    %v278 = vshrl.u32 %v277, 7
    %v279 = vsub.s32 0, %v278
    %v280 = vrot.slane %v275, %v279
    %v281 = vlaneseq
    %v282 = vshrl.u32 %v281, 7
    %v283 = vsub.s32 1, %v282
    %v284 = vrot.slane %v275, %v283
    %vm287 = vcmask 130048
    %v289 = vsel %vm287, %v257, 0
    %v292 = vsel %vm287, %v262, 0
    %294 = vmatprep.subr.mxu0 %v272
    %295 = vmatpush1.msra.mxu0 %v271
    %296 = vmatprep.subr.mxu0 %v274
    %297 = vmatpush1.msra.mxu0 %v273
    %298 = vmatprep.subr.mxu0 0.0
    %299 = vmatpush1.msra.mxu0 0.0
    %300 = vmatprep.subr.mxu0 0.0
    %301 = vmatpush1.msra.mxu0 0.0
    %302 = vmatprep.subr.mxu0 0.0
    %303 = vmatpush1.msra.mxu0 0.0
    %304 = vmatprep.subr.mxu0 0.0
    %305 = vmatpush1.msra.mxu0 0.0
    %306 = vmatprep.subr.mxu0 0.0
    %307 = vmatpush1.msra.mxu0 0.0
    %308 = vmatprep.subr.mxu0 0.0
    %309 = vmatpush1.msra.mxu0 0.0
    %310 = vmatprep.subr.mxu0 0.0
    %311 = vmatpush1.msra.mxu0 0.0
    %312 = vmatprep.subr.mxu0 0.0
    %313 = vmatpush1.msra.mxu0 0.0
    %314 = vmatprep.subr.mxu0 0.0
    %315 = vmatpush1.msra.mxu0 0.0
    %316 = vmatprep.subr.mxu0 0.0
    %317 = vmatpush1.msra.mxu0 0.0
    %318 = vmatprep.subr.mxu0 0.0
    %319 = vmatpush1.msra.mxu0 0.0
    %320 = vmatprep.subr.mxu0 0.0
    %321 = vmatpush1.msra.mxu0 0.0
    %322 = vmatprep.subr.mxu0 0.0
    %323 = vmatpush1.msra.mxu0 0.0
    %324 = vmatprep.subr.mxu0 0.0
    %325 = vmatpush1.msra.mxu0 0.0
    %326 = vmatprep.subr.mxu0 0.0
    %327 = vmatpush1.msra.mxu0 0.0
    %328 = vmatprep.subr.mxu0 0.0
    %329 = vmatpush1.msra.mxu0 0.0
    %330 = vmatprep.subr.mxu0 0.0
    %331 = vmatpush1.msra.mxu0 0.0
    %332 = vmatprep.subr.mxu0 0.0
    %333 = vmatpush1.msra.mxu0 0.0
    %334 = vmatprep.subr.mxu0 0.0
    %335 = vmatpush1.msra.mxu0 0.0
    %336 = vmatprep.subr.mxu0 0.0
    %337 = vmatpush1.msra.mxu0 0.0
    %338 = vmatprep.subr.mxu0 0.0
    %339 = vmatpush1.msra.mxu0 0.0
    %340 = vmatprep.subr.mxu0 0.0
    %341 = vmatpush1.msra.mxu0 0.0
    %342 = vmatprep.subr.mxu0 0.0
    %343 = vmatpush1.msra.mxu0 0.0
    %344 = vmatprep.subr.mxu0 0.0
    %345 = vmatpush1.msra.mxu0 0.0
    %346 = vmatprep.subr.mxu0 0.0
    %347 = vmatpush1.msra.mxu0 0.0
    %348 = vmatprep.subr.mxu0 0.0
    %349 = vmatpush1.msra.mxu0 0.0
    %350 = vmatprep.subr.mxu0 0.0
    %351 = vmatpush1.msra.mxu0 0.0
    %352 = vmatprep.subr.mxu0 0.0
    %353 = vmatpush1.msra.mxu0 0.0
    %354 = vmatprep.subr.mxu0 0.0
    %355 = vmatpush1.msra.mxu0 0.0
    %356 = vmatprep.subr.mxu0 0.0
    %357 = vmatpush1.msra.mxu0 0.0
    %358 = vmatprep.mubr.f32.mxu0 0.0
    %359 = vmatmul.mubr.f32.gmra.mrb[0].mxu0 %v289
    %v360 = vpop.f32.mrb[0].mxu0
    %v361 = vadd.f32 %v280, %v360
    %v362 = vpop.f32.mrb[0].mxu0
    %v363 = vadd.f32 %v284, %v362
    %364 = vmatprep.mubr.f32.mxu0 0.0
    %365 = vmatmul.mubr.f32.gmra.mrb[0].mxu0 %v292
    %v366 = vpop.f32.mrb[0].mxu0
    %v367 = vadd.f32 %v280, %v366
    %v368 = vpop.f32.mrb[0].mxu0
    %v369 = vadd.f32 %v284, %v368
    %370 = vdwg.mxu0
    %v371 = vld [vmem:[#allocation9] sm:$0xff]
    %v372 = vld [vmem:[#allocation9 + $0x8] sm:$0xff]
    %v373 = vld [vmem:[#allocation9 + $0x10] sm:$0xff]
    %v374 = vld [vmem:[#allocation9 + $0x18] sm:$0xff]
    %v375 = vld [vmem:[#allocation10] sm:$0xff]
    %v376 = vld [vmem:[#allocation10 + $0x8] sm:$0xff]
    %v377 = vld [vmem:[#allocation10 + $0x10] sm:$0xff]
    %v378 = vld [vmem:[#allocation10 + $0x18] sm:$0xff]
    %vm379 = vcmask 261120
    %v381 = vsel %vm379, 0.0, 0
    %383 = vmatprep.subr.mxu0 0.0
    %384 = vmatpush1.msra.mxu0 %v371
    %385 = vmatprep.subr.mxu0 0.0
    %386 = vmatpush1.msra.mxu0 %v372
    %387 = vmatprep.subr.mxu0 0.0
    %388 = vmatpush1.msra.mxu0 %v373
    %389 = vmatprep.subr.mxu0 0.0
    %390 = vmatpush1.msra.mxu0 %v374
    %391 = vmatprep.subr.mxu0 0.0
    %392 = vmatpush1.msra.mxu0 0.0
    %393 = vmatprep.subr.mxu0 0.0
    %394 = vmatpush1.msra.mxu0 0.0
    %395 = vmatprep.subr.mxu0 0.0
    %396 = vmatpush1.msra.mxu0 0.0
    %397 = vmatprep.subr.mxu0 0.0
    %398 = vmatpush1.msra.mxu0 0.0
    %399 = vmatprep.subr.mxu0 0.0
    %400 = vmatpush1.msra.mxu0 0.0
    %401 = vmatprep.subr.mxu0 0.0
    %402 = vmatpush1.msra.mxu0 0.0
    %403 = vmatprep.subr.mxu0 0.0
    %404 = vmatpush1.msra.mxu0 0.0
    %405 = vmatprep.subr.mxu0 0.0
    %406 = vmatpush1.msra.mxu0 0.0
    %407 = vmatprep.subr.mxu0 0.0
    %408 = vmatpush1.msra.mxu0 0.0
    %409 = vmatprep.subr.mxu0 0.0
    %410 = vmatpush1.msra.mxu0 0.0
    %411 = vmatprep.subr.mxu0 0.0
    %412 = vmatpush1.msra.mxu0 0.0
    %413 = vmatprep.subr.mxu0 0.0
    %414 = vmatpush1.msra.mxu0 0.0
    %415 = vmatprep.subr.mxu0 0.0
    %416 = vmatpush1.msra.mxu0 0.0
    %417 = vmatprep.subr.mxu0 0.0
    %418 = vmatpush1.msra.mxu0 0.0
    %419 = vmatprep.subr.mxu0 0.0
    %420 = vmatpush1.msra.mxu0 0.0
    %421 = vmatprep.subr.mxu0 0.0
    %422 = vmatpush1.msra.mxu0 0.0
    %423 = vmatprep.subr.mxu0 0.0
    %424 = vmatpush1.msra.mxu0 0.0
    %425 = vmatprep.subr.mxu0 0.0
    %426 = vmatpush1.msra.mxu0 0.0
    %427 = vmatprep.subr.mxu0 0.0
    %428 = vmatpush1.msra.mxu0 0.0
    %429 = vmatprep.subr.mxu0 0.0
    %430 = vmatpush1.msra.mxu0 0.0
    %431 = vmatprep.subr.mxu0 0.0
    %432 = vmatpush1.msra.mxu0 0.0
    %433 = vmatprep.subr.mxu0 0.0
    %434 = vmatpush1.msra.mxu0 0.0
    %435 = vmatprep.subr.mxu0 0.0
    %436 = vmatpush1.msra.mxu0 0.0
    %437 = vmatprep.subr.mxu0 0.0
    %438 = vmatpush1.msra.mxu0 0.0
    %439 = vmatprep.subr.mxu0 0.0
    %440 = vmatpush1.msra.mxu0 0.0
    %441 = vmatprep.subr.mxu0 0.0
    %442 = vmatpush1.msra.mxu0 0.0
    %443 = vmatprep.subr.mxu0 0.0
    %444 = vmatpush1.msra.mxu0 0.0
    %445 = vmatprep.subr.mxu0 0.0
    %446 = vmatpush1.msra.mxu0 0.0
    %447 = vmatprep.mubr.f32.mxu0 0.0
    %448 = vmatmul.mubr.f32.gmra.mrb[0].mxu0 %v381
    %v449 = vpop.f32.mrb[0].mxu0
    %v450 = vadd.f32 0.0, %v449
    %v451 = vpop.f32.mrb[0].mxu0
    %452 = vdwg.mxu0
    %v453 = vadd.f32 %v361, %v450
    %454 = vmatprep.subr.mxu0 0.0
    %455 = vmatpush1.msra.mxu0 %v375
    %456 = vmatprep.subr.mxu0 0.0
    %457 = vmatpush1.msra.mxu0 %v376
    %458 = vmatprep.subr.mxu0 0.0
    %459 = vmatpush1.msra.mxu0 %v377
    %460 = vmatprep.subr.mxu0 0.0
    %461 = vmatpush1.msra.mxu0 %v378
    %462 = vmatprep.subr.mxu0 0.0
    %463 = vmatpush1.msra.mxu0 0.0
    %464 = vmatprep.subr.mxu0 0.0
    %465 = vmatpush1.msra.mxu0 0.0
    %466 = vmatprep.subr.mxu0 0.0
    %467 = vmatpush1.msra.mxu0 0.0
    %468 = vmatprep.subr.mxu0 0.0
    %469 = vmatpush1.msra.mxu0 0.0
    %470 = vmatprep.subr.mxu0 0.0
    %471 = vmatpush1.msra.mxu0 0.0
    %472 = vmatprep.subr.mxu0 0.0
    %473 = vmatpush1.msra.mxu0 0.0
    %474 = vmatprep.subr.mxu0 0.0
    %475 = vmatpush1.msra.mxu0 0.0
    %476 = vmatprep.subr.mxu0 0.0
    %477 = vmatpush1.msra.mxu0 0.0
    %478 = vmatprep.subr.mxu0 0.0
    %479 = vmatpush1.msra.mxu0 0.0
    %480 = vmatprep.subr.mxu0 0.0
    %481 = vmatpush1.msra.mxu0 0.0
    %482 = vmatprep.subr.mxu0 0.0
    %483 = vmatpush1.msra.mxu0 0.0
    %484 = vmatprep.subr.mxu0 0.0
    %485 = vmatpush1.msra.mxu0 0.0
    %486 = vmatprep.subr.mxu0 0.0
    %487 = vmatpush1.msra.mxu0 0.0
    %488 = vmatprep.subr.mxu0 0.0
    %489 = vmatpush1.msra.mxu0 0.0
    %490 = vmatprep.subr.mxu0 0.0
    %491 = vmatpush1.msra.mxu0 0.0
    %492 = vmatprep.subr.mxu0 0.0
    %493 = vmatpush1.msra.mxu0 0.0
    %494 = vmatprep.subr.mxu0 0.0
    %495 = vmatpush1.msra.mxu0 0.0
    %496 = vmatprep.subr.mxu0 0.0
    %497 = vmatpush1.msra.mxu0 0.0
    %498 = vmatprep.subr.mxu0 0.0
    %499 = vmatpush1.msra.mxu0 0.0
    %500 = vmatprep.subr.mxu0 0.0
    %501 = vmatpush1.msra.mxu0 0.0
    %502 = vmatprep.subr.mxu0 0.0
    %503 = vmatpush1.msra.mxu0 0.0
    %504 = vmatprep.subr.mxu0 0.0
    %505 = vmatpush1.msra.mxu0 0.0
    %506 = vmatprep.subr.mxu0 0.0
    %507 = vmatpush1.msra.mxu0 0.0
    %508 = vmatprep.subr.mxu0 0.0
    %509 = vmatpush1.msra.mxu0 0.0
    %510 = vmatprep.subr.mxu0 0.0
    %511 = vmatpush1.msra.mxu0 0.0
    %512 = vmatprep.subr.mxu0 0.0
    %513 = vmatpush1.msra.mxu0 0.0
    %514 = vmatprep.subr.mxu0 0.0
    %515 = vmatpush1.msra.mxu0 0.0
    %516 = vmatprep.subr.mxu0 0.0
    %517 = vmatpush1.msra.mxu0 0.0
    %518 = vmatprep.mubr.f32.mxu0 0.0
    %519 = vmatmul.mubr.f32.gmra.mrb[0].mxu0 %v381
    %v520 = vpop.f32.mrb[0].mxu0
    %v521 = vadd.f32 0.0, %v520
    %v522 = vpop.f32.mrb[0].mxu0
    %523 = vdwg.mxu0
    %v525 = vrot.slane %v521, 2
    %v527 = vadd.f32 %v369, %v525
    %v528 = vxor.u32 %v453, 2147483648
    %v529 = vmul.f32 %v528, 1.442695
    %v530 = vpow.pop %v529
    %v531 = vadd.f32 %v530, 1.0
    %v532 = vrcp.pop %v531
    %v533 = vmul.f32 1.0, %v532
    %v534 = vtanh.pop %v453
    %v535 = vmul.f32 %v533, 0.0
    %537 = vrot.lane.b32.xlu0 %v534, 64
    %v538 = vpop.permute.xlu0 %537
    %v540 = vmul.f32 %v533, %v538
    %542 = vrot.lane.b32.xlu0 %v540, 32
    %v543 = vpop.permute.xlu0 %542
    %v545 = vadd.f32 %v535, %v543
    %v546 = vtanh.pop %v545
    %548 = vrot.lane.b32.xlu0 %v546, 64
    %v549 = vpop.permute.xlu0 %548
    %v551 = vmul.f32 %v533, %v549
    %v552 = vxor.u32 %v527, 2147483648
    %v553 = vmul.f32 %v552, 1.442695
    %v554 = vpow.pop %v553
    %v555 = vadd.f32 %v554, 1.0
    %v556 = vrcp.pop %v555
    %v557 = vmul.f32 1.0, %v556
    %v558 = vtanh.pop %v527
    %v559 = vmul.f32 %v557, 0.0
    %561 = vrot.lane.b32.xlu0 %v558, 64
    %v562 = vpop.permute.xlu0 %561
    %v564 = vmul.f32 %v557, %v562
    %566 = vrot.lane.b32.xlu0 %v564, 32
    %v567 = vpop.permute.xlu0 %566
    %v569 = vadd.f32 %v559, %v567
    %v570 = vtanh.pop %v569
    %572 = vrot.lane.b32.xlu0 %v570, 64
    %v573 = vpop.permute.xlu0 %572
    %v575 = vmul.f32 %v557, %v573
    %577 = vset.pattern.permute.xlu0 0
    %578 = vperm.xlu0 %577, %v269
    %v579 = vpop.permute.xlu0 %578
    %v581 = vmul.f32 %v579, %v551
    %v582 = vsub.f32 1.0, %v269
    %584 = vset.pattern.permute.xlu0 0
    %585 = vperm.xlu0 %584, %v582
    %v586 = vpop.permute.xlu0 %585
    %v588 = vmul.f32 %v586, 0.0
    %v589 = vadd.f32 %v581, %v588
    %v590 = vmul.f32 %v579, %v545
    %v591 = vadd.f32 %v590, %v588
    %593 = vset.pattern.permute.xlu0 0
    %594 = vperm.xlu0 %593, %v270
    %v595 = vpop.permute.xlu0 %594
    %v597 = vmul.f32 %v595, %v575
    %v598 = vsub.f32 1.0, %v270
    %600 = vset.pattern.permute.xlu0 0
    %601 = vperm.xlu0 %600, %v598
    %v602 = vpop.permute.xlu0 %601
    %v604 = vmul.f32 %v602, 0.0
    %v605 = vadd.f32 %v597, %v604
    %v606 = vmul.f32 %v595, %v569
    %v607 = vadd.f32 %v606, %v604
    %v608 = vmul.f32 %v589, %v579
    %610 = vrot.lane.b32.xlu0 %v608, 32
    %v611 = vpop.permute.xlu0 %610
    %vm613 = vcmask 254976
    %614 = vst.msk [vmem:[#allocation2] sm:$0x3] %vm613, %v611
    %v615 = vmul.f32 %v605, %v595
    %617 = vrot.lane.b32.xlu0 %v615, 32
    %v618 = vpop.permute.xlu0 %617
    %vm620 = vcmask 261126
    %621 = vst.msk [vmem:[#allocation3 + $0x8] sm:$0xc0] %vm620, %v618
    %623 = vrot.lane.b32.xlu0 %v589, 32
    %v624 = vpop.permute.xlu0 %623
    %v625 = vsel %vm379, %v624, 0
    %627 = vmatprep.subr.mxu0 0.0
    %628 = vmatpush1.msra.mxu0 %v371
    %629 = vmatprep.subr.mxu0 0.0
    %630 = vmatpush1.msra.mxu0 %v372
    %631 = vmatprep.subr.mxu0 0.0
    %632 = vmatpush1.msra.mxu0 %v373
    %633 = vmatprep.subr.mxu0 0.0
    %634 = vmatpush1.msra.mxu0 %v374
    %635 = vmatprep.subr.mxu0 0.0
    %636 = vmatpush1.msra.mxu0 0.0
    %637 = vmatprep.subr.mxu0 0.0
    %638 = vmatpush1.msra.mxu0 0.0
    %639 = vmatprep.subr.mxu0 0.0
    %640 = vmatpush1.msra.mxu0 0.0
    %641 = vmatprep.subr.mxu0 0.0
    %642 = vmatpush1.msra.mxu0 0.0
    %643 = vmatprep.subr.mxu0 0.0
    %644 = vmatpush1.msra.mxu0 0.0
    %645 = vmatprep.subr.mxu0 0.0
    %646 = vmatpush1.msra.mxu0 0.0
    %647 = vmatprep.subr.mxu0 0.0
    %648 = vmatpush1.msra.mxu0 0.0
    %649 = vmatprep.subr.mxu0 0.0
    %650 = vmatpush1.msra.mxu0 0.0
    %651 = vmatprep.subr.mxu0 0.0
    %652 = vmatpush1.msra.mxu0 0.0
    %653 = vmatprep.subr.mxu0 0.0
    %654 = vmatpush1.msra.mxu0 0.0
    %655 = vmatprep.subr.mxu0 0.0
    %656 = vmatpush1.msra.mxu0 0.0
    %657 = vmatprep.subr.mxu0 0.0
    %658 = vmatpush1.msra.mxu0 0.0
    %659 = vmatprep.subr.mxu0 0.0
    %660 = vmatpush1.msra.mxu0 0.0
    %661 = vmatprep.subr.mxu0 0.0
    %662 = vmatpush1.msra.mxu0 0.0
    %663 = vmatprep.subr.mxu0 0.0
    %664 = vmatpush1.msra.mxu0 0.0
    %665 = vmatprep.subr.mxu0 0.0
    %666 = vmatpush1.msra.mxu0 0.0
    %667 = vmatprep.subr.mxu0 0.0
    %668 = vmatpush1.msra.mxu0 0.0
    %669 = vmatprep.subr.mxu0 0.0
    %670 = vmatpush1.msra.mxu0 0.0
    %671 = vmatprep.subr.mxu0 0.0
    %672 = vmatpush1.msra.mxu0 0.0
    %673 = vmatprep.subr.mxu0 0.0
    %674 = vmatpush1.msra.mxu0 0.0
    %675 = vmatprep.subr.mxu0 0.0
    %676 = vmatpush1.msra.mxu0 0.0
    %677 = vmatprep.subr.mxu0 0.0
    %678 = vmatpush1.msra.mxu0 0.0
    %679 = vmatprep.subr.mxu0 0.0
    %680 = vmatpush1.msra.mxu0 0.0
    %681 = vmatprep.subr.mxu0 0.0
    %682 = vmatpush1.msra.mxu0 0.0
    %683 = vmatprep.subr.mxu0 0.0
    %684 = vmatpush1.msra.mxu0 0.0
    %685 = vmatprep.subr.mxu0 0.0
    %686 = vmatpush1.msra.mxu0 0.0
    %687 = vmatprep.subr.mxu0 0.0
    %688 = vmatpush1.msra.mxu0 0.0
    %689 = vmatprep.subr.mxu0 0.0
    %690 = vmatpush1.msra.mxu0 0.0
    %691 = vmatprep.mubr.f32.mxu0 0.0
    %692 = vmatmul.mubr.f32.gmra.mrb[0].mxu0 %v625
    %v693 = vpop.f32.mrb[0].mxu0
    %v694 = vadd.f32 0.0, %v693
    %v695 = vpop.f32.mrb[0].mxu0
    %696 = vdwg.mxu0
    %v698 = vrot.slane %v694, 6
    %v700 = vadd.f32 %v361, %v698
    %v702 = vrot.slane %v605, 6
    %703 = vrot.lane.b32.xlu0 %v702, 32
    %v704 = vpop.permute.xlu0 %703
    %v705 = vsel %vm379, %v704, 0
    %707 = vmatprep.subr.mxu0 0.0
    %708 = vmatpush1.msra.mxu0 %v375
    %709 = vmatprep.subr.mxu0 0.0
    %710 = vmatpush1.msra.mxu0 %v376
    %711 = vmatprep.subr.mxu0 0.0
    %712 = vmatpush1.msra.mxu0 %v377
    %713 = vmatprep.subr.mxu0 0.0
    %714 = vmatpush1.msra.mxu0 %v378
    %715 = vmatprep.subr.mxu0 0.0
    %716 = vmatpush1.msra.mxu0 0.0
    %717 = vmatprep.subr.mxu0 0.0
    %718 = vmatpush1.msra.mxu0 0.0
    %719 = vmatprep.subr.mxu0 0.0
    %720 = vmatpush1.msra.mxu0 0.0
    %721 = vmatprep.subr.mxu0 0.0
    %722 = vmatpush1.msra.mxu0 0.0
    %723 = vmatprep.subr.mxu0 0.0
    %724 = vmatpush1.msra.mxu0 0.0
    %725 = vmatprep.subr.mxu0 0.0
    %726 = vmatpush1.msra.mxu0 0.0
    %727 = vmatprep.subr.mxu0 0.0
    %728 = vmatpush1.msra.mxu0 0.0
    %729 = vmatprep.subr.mxu0 0.0
    %730 = vmatpush1.msra.mxu0 0.0
    %731 = vmatprep.subr.mxu0 0.0
    %732 = vmatpush1.msra.mxu0 0.0
    %733 = vmatprep.subr.mxu0 0.0
    %734 = vmatpush1.msra.mxu0 0.0
    %735 = vmatprep.subr.mxu0 0.0
    %736 = vmatpush1.msra.mxu0 0.0
    %737 = vmatprep.subr.mxu0 0.0
    %738 = vmatpush1.msra.mxu0 0.0
    %739 = vmatprep.subr.mxu0 0.0
    %740 = vmatpush1.msra.mxu0 0.0
    %741 = vmatprep.subr.mxu0 0.0
    %742 = vmatpush1.msra.mxu0 0.0
    %743 = vmatprep.subr.mxu0 0.0
    %744 = vmatpush1.msra.mxu0 0.0
    %745 = vmatprep.subr.mxu0 0.0
    %746 = vmatpush1.msra.mxu0 0.0
    %747 = vmatprep.subr.mxu0 0.0
    %748 = vmatpush1.msra.mxu0 0.0
    %749 = vmatprep.subr.mxu0 0.0
    %750 = vmatpush1.msra.mxu0 0.0
    %751 = vmatprep.subr.mxu0 0.0
    %752 = vmatpush1.msra.mxu0 0.0
    %753 = vmatprep.subr.mxu0 0.0
    %754 = vmatpush1.msra.mxu0 0.0
    %755 = vmatprep.subr.mxu0 0.0
    %756 = vmatpush1.msra.mxu0 0.0
    %757 = vmatprep.subr.mxu0 0.0
    %758 = vmatpush1.msra.mxu0 0.0
    %759 = vmatprep.subr.mxu0 0.0
    %760 = vmatpush1.msra.mxu0 0.0
    %761 = vmatprep.subr.mxu0 0.0
    %762 = vmatpush1.msra.mxu0 0.0
    %763 = vmatprep.subr.mxu0 0.0
    %764 = vmatpush1.msra.mxu0 0.0
    %765 = vmatprep.subr.mxu0 0.0
    %766 = vmatpush1.msra.mxu0 0.0
    %767 = vmatprep.subr.mxu0 0.0
    %768 = vmatpush1.msra.mxu0 0.0
    %769 = vmatprep.subr.mxu0 0.0
    %770 = vmatpush1.msra.mxu0 0.0
    %771 = vmatprep.mubr.f32.mxu0 0.0
    %772 = vmatmul.mubr.f32.gmra.mrb[0].mxu0 %v705
    %v773 = vpop.f32.mrb[0].mxu0
    %v774 = vadd.f32 0.0, %v773
    %v775 = vpop.f32.mrb[0].mxu0
    %776 = vdwg.mxu0
    %v778 = vrot.slane %v774, 4
    %v780 = vadd.f32 %v369, %v778
    %v781 = vxor.u32 %v700, 2147483648
    %v782 = vmul.f32 %v781, 1.442695
    %v783 = vpow.pop %v782
    %v784 = vadd.f32 %v783, 1.0
    %v785 = vrcp.pop %v784
    %v786 = vmul.f32 1.0, %v785
    %v787 = vtanh.pop %v700
    %v789 = vrot.slane %v591, 6
    %v791 = vmul.f32 %v786, %v789
    %793 = vrot.lane.b32.xlu0 %v787, 64
    %v794 = vpop.permute.xlu0 %793
    %v796 = vmul.f32 %v786, %v794
    %798 = vrot.lane.b32.xlu0 %v796, 32
    %v799 = vpop.permute.xlu0 %798
    %v801 = vadd.f32 %v791, %v799
    %v802 = vtanh.pop %v801
    %804 = vrot.lane.b32.xlu0 %v802, 64
    %v805 = vpop.permute.xlu0 %804
    %v807 = vmul.f32 %v786, %v805
    %v808 = vxor.u32 %v780, 2147483648
    %v809 = vmul.f32 %v808, 1.442695
    %v810 = vpow.pop %v809
    %v811 = vadd.f32 %v810, 1.0
    %v812 = vrcp.pop %v811
    %v813 = vmul.f32 1.0, %v812
    %v814 = vtanh.pop %v780
    %v816 = vrot.slane %v607, 2
    %v818 = vmul.f32 %v813, %v816
    %820 = vrot.lane.b32.xlu0 %v814, 64
    %v821 = vpop.permute.xlu0 %820
    %v823 = vmul.f32 %v813, %v821
    %825 = vrot.lane.b32.xlu0 %v823, 32
    %v826 = vpop.permute.xlu0 %825
    %v828 = vadd.f32 %v818, %v826
    %v829 = vtanh.pop %v828
    %831 = vrot.lane.b32.xlu0 %v829, 64
    %v832 = vpop.permute.xlu0 %831
    %v834 = vmul.f32 %v813, %v832
    %v835 = vmul.f32 %v579, %v807
    %v836 = vrot.slane %v589, 6
    %837 = vrot.lane.b32.xlu0 %v836, 32
    %v838 = vpop.permute.xlu0 %837
    %v840 = vmul.f32 %v586, %v838
    %842 = vrot.lane.b32.xlu0 %v840, 96
    %v843 = vpop.permute.xlu0 %842
    %v845 = vadd.f32 %v835, %v843
    %v846 = vmul.f32 %v579, %v801
    %847 = vrot.lane.b32.xlu0 %v789, 96
    %v848 = vpop.permute.xlu0 %847
    %v850 = vmul.f32 %v586, %v848
    %852 = vrot.lane.b32.xlu0 %v850, 32
    %v853 = vpop.permute.xlu0 %852
    %v855 = vadd.f32 %v846, %v853
    %v856 = vmul.f32 %v595, %v834
    %v857 = vrot.slane %v605, 2
    %858 = vrot.lane.b32.xlu0 %v857, 32
    %v859 = vpop.permute.xlu0 %858
    %v861 = vmul.f32 %v602, %v859
    %863 = vrot.lane.b32.xlu0 %v861, 96
    %v864 = vpop.permute.xlu0 %863
    %v866 = vadd.f32 %v856, %v864
    %v867 = vmul.f32 %v595, %v828
    %868 = vrot.lane.b32.xlu0 %v816, 96
    %v869 = vpop.permute.xlu0 %868
    %v871 = vmul.f32 %v602, %v869
    %873 = vrot.lane.b32.xlu0 %v871, 32
    %v874 = vpop.permute.xlu0 %873
    %v876 = vadd.f32 %v867, %v874
    %v877 = vmul.f32 %v845, %v579
    %879 = vrot.lane.b32.xlu0 %v877, 32
    %v880 = vpop.permute.xlu0 %879
    %vm882 = vcmask 257026
    %883 = vst.msk [vmem:[#allocation2] sm:$0xc] %vm882, %v880
    %v884 = vmul.f32 %v866, %v595
    %886 = vrot.lane.b32.xlu0 %v884, 32
    %v887 = vpop.permute.xlu0 %886
    %vm889 = vcmask 259076
    %890 = vst.msk [vmem:[#allocation3 + $0x8] sm:$0x30] %vm889, %v887
    %v892 = vrot.slane %v845, 2
    %893 = vrot.lane.b32.xlu0 %v892, 32
    %v894 = vpop.permute.xlu0 %893
    %v895 = vsel %vm379, %v894, 0
    %897 = vmatprep.subr.mxu0 0.0
    %898 = vmatpush1.msra.mxu0 %v371
    %899 = vmatprep.subr.mxu0 0.0
    %900 = vmatpush1.msra.mxu0 %v372
    %901 = vmatprep.subr.mxu0 0.0
    %902 = vmatpush1.msra.mxu0 %v373
    %903 = vmatprep.subr.mxu0 0.0
    %904 = vmatpush1.msra.mxu0 %v374
    %905 = vmatprep.subr.mxu0 0.0
    %906 = vmatpush1.msra.mxu0 0.0
    %907 = vmatprep.subr.mxu0 0.0
    %908 = vmatpush1.msra.mxu0 0.0
    %909 = vmatprep.subr.mxu0 0.0
    %910 = vmatpush1.msra.mxu0 0.0
    %911 = vmatprep.subr.mxu0 0.0
    %912 = vmatpush1.msra.mxu0 0.0
    %913 = vmatprep.subr.mxu0 0.0
    %914 = vmatpush1.msra.mxu0 0.0
    %915 = vmatprep.subr.mxu0 0.0
    %916 = vmatpush1.msra.mxu0 0.0
    %917 = vmatprep.subr.mxu0 0.0
    %918 = vmatpush1.msra.mxu0 0.0
    %919 = vmatprep.subr.mxu0 0.0
    %920 = vmatpush1.msra.mxu0 0.0
    %921 = vmatprep.subr.mxu0 0.0
    %922 = vmatpush1.msra.mxu0 0.0
    %923 = vmatprep.subr.mxu0 0.0
    %924 = vmatpush1.msra.mxu0 0.0
    %925 = vmatprep.subr.mxu0 0.0
    %926 = vmatpush1.msra.mxu0 0.0
    %927 = vmatprep.subr.mxu0 0.0
    %928 = vmatpush1.msra.mxu0 0.0
    %929 = vmatprep.subr.mxu0 0.0
    %930 = vmatpush1.msra.mxu0 0.0
    %931 = vmatprep.subr.mxu0 0.0
    %932 = vmatpush1.msra.mxu0 0.0
    %933 = vmatprep.subr.mxu0 0.0
    %934 = vmatpush1.msra.mxu0 0.0
    %935 = vmatprep.subr.mxu0 0.0
    %936 = vmatpush1.msra.mxu0 0.0
    %937 = vmatprep.subr.mxu0 0.0
    %938 = vmatpush1.msra.mxu0 0.0
    %939 = vmatprep.subr.mxu0 0.0
    %940 = vmatpush1.msra.mxu0 0.0
    %941 = vmatprep.subr.mxu0 0.0
    %942 = vmatpush1.msra.mxu0 0.0
    %943 = vmatprep.subr.mxu0 0.0
    %944 = vmatpush1.msra.mxu0 0.0
    %945 = vmatprep.subr.mxu0 0.0
    %946 = vmatpush1.msra.mxu0 0.0
    %947 = vmatprep.subr.mxu0 0.0
    %948 = vmatpush1.msra.mxu0 0.0
    %949 = vmatprep.subr.mxu0 0.0
    %950 = vmatpush1.msra.mxu0 0.0
    %951 = vmatprep.subr.mxu0 0.0
    %952 = vmatpush1.msra.mxu0 0.0
    %953 = vmatprep.subr.mxu0 0.0
    %954 = vmatpush1.msra.mxu0 0.0
    %955 = vmatprep.subr.mxu0 0.0
    %956 = vmatpush1.msra.mxu0 0.0
    %957 = vmatprep.subr.mxu0 0.0
    %958 = vmatpush1.msra.mxu0 0.0
    %959 = vmatprep.subr.mxu0 0.0
    %960 = vmatpush1.msra.mxu0 0.0
    %961 = vmatprep.mubr.f32.mxu0 0.0
    %962 = vmatmul.mubr.f32.gmra.mrb[0].mxu0 %v895
    %v963 = vpop.f32.mrb[0].mxu0
    %v964 = vadd.f32 0.0, %v963
    %v965 = vpop.f32.mrb[0].mxu0
    %966 = vdwg.mxu0
    %v968 = vrot.slane %v964, 4
    %v970 = vadd.f32 %v361, %v968
    %v972 = vrot.slane %v866, 4
    %973 = vrot.lane.b32.xlu0 %v972, 32
    %v974 = vpop.permute.xlu0 %973
    %v975 = vsel %vm379, %v974, 0
    %977 = vmatprep.subr.mxu0 0.0
    %978 = vmatpush1.msra.mxu0 %v375
    %979 = vmatprep.subr.mxu0 0.0
    %980 = vmatpush1.msra.mxu0 %v376
    %981 = vmatprep.subr.mxu0 0.0
    %982 = vmatpush1.msra.mxu0 %v377
    %983 = vmatprep.subr.mxu0 0.0
    %984 = vmatpush1.msra.mxu0 %v378
    %985 = vmatprep.subr.mxu0 0.0
    %986 = vmatpush1.msra.mxu0 0.0
    %987 = vmatprep.subr.mxu0 0.0
    %988 = vmatpush1.msra.mxu0 0.0
    %989 = vmatprep.subr.mxu0 0.0
    %990 = vmatpush1.msra.mxu0 0.0
    %991 = vmatprep.subr.mxu0 0.0
    %992 = vmatpush1.msra.mxu0 0.0
    %993 = vmatprep.subr.mxu0 0.0
    %994 = vmatpush1.msra.mxu0 0.0
    %995 = vmatprep.subr.mxu0 0.0
    %996 = vmatpush1.msra.mxu0 0.0
    %997 = vmatprep.subr.mxu0 0.0
    %998 = vmatpush1.msra.mxu0 0.0
    %999 = vmatprep.subr.mxu0 0.0
    %1000 = vmatpush1.msra.mxu0 0.0
    %1001 = vmatprep.subr.mxu0 0.0
    %1002 = vmatpush1.msra.mxu0 0.0
    %1003 = vmatprep.subr.mxu0 0.0
    %1004 = vmatpush1.msra.mxu0 0.0
    %1005 = vmatprep.subr.mxu0 0.0
    %1006 = vmatpush1.msra.mxu0 0.0
    %1007 = vmatprep.subr.mxu0 0.0
    %1008 = vmatpush1.msra.mxu0 0.0
    %1009 = vmatprep.subr.mxu0 0.0
    %1010 = vmatpush1.msra.mxu0 0.0
    %1011 = vmatprep.subr.mxu0 0.0
    %1012 = vmatpush1.msra.mxu0 0.0
    %1013 = vmatprep.subr.mxu0 0.0
    %1014 = vmatpush1.msra.mxu0 0.0
    %1015 = vmatprep.subr.mxu0 0.0
    %1016 = vmatpush1.msra.mxu0 0.0
    %1017 = vmatprep.subr.mxu0 0.0
    %1018 = vmatpush1.msra.mxu0 0.0
    %1019 = vmatprep.subr.mxu0 0.0
    %1020 = vmatpush1.msra.mxu0 0.0
    %1021 = vmatprep.subr.mxu0 0.0
    %1022 = vmatpush1.msra.mxu0 0.0
    %1023 = vmatprep.subr.mxu0 0.0
    %1024 = vmatpush1.msra.mxu0 0.0
    %1025 = vmatprep.subr.mxu0 0.0
    %1026 = vmatpush1.msra.mxu0 0.0
    %1027 = vmatprep.subr.mxu0 0.0
    %1028 = vmatpush1.msra.mxu0 0.0
    %1029 = vmatprep.subr.mxu0 0.0
    %1030 = vmatpush1.msra.mxu0 0.0
    %1031 = vmatprep.subr.mxu0 0.0
    %1032 = vmatpush1.msra.mxu0 0.0
    %1033 = vmatprep.subr.mxu0 0.0
    %1034 = vmatpush1.msra.mxu0 0.0
    %1035 = vmatprep.subr.mxu0 0.0
    %1036 = vmatpush1.msra.mxu0 0.0
    %1037 = vmatprep.subr.mxu0 0.0
    %1038 = vmatpush1.msra.mxu0 0.0
    %1039 = vmatprep.subr.mxu0 0.0
    %1040 = vmatpush1.msra.mxu0 0.0
    %1041 = vmatprep.mubr.f32.mxu0 0.0
    %1042 = vmatmul.mubr.f32.gmra.mrb[0].mxu0 %v975
    %v1043 = vpop.f32.mrb[0].mxu0
    %v1044 = vadd.f32 0.0, %v1043
    %v1045 = vpop.f32.mrb[0].mxu0
    %1046 = vdwg.mxu0
    %v1048 = vrot.slane %v1044, 6
    %v1050 = vadd.f32 %v369, %v1048
    %v1051 = vxor.u32 %v970, 2147483648
    %v1052 = vmul.f32 %v1051, 1.442695
    %v1053 = vpow.pop %v1052
    %v1054 = vadd.f32 %v1053, 1.0
    %v1055 = vrcp.pop %v1054
    %v1056 = vmul.f32 1.0, %v1055
    %v1057 = vtanh.pop %v970
    %v1059 = vrot.slane %v855, 6
    %v1061 = vmul.f32 %v1056, %v1059
    %1063 = vrot.lane.b32.xlu0 %v1057, 64
    %v1064 = vpop.permute.xlu0 %1063
    %v1066 = vmul.f32 %v1056, %v1064
    %1068 = vrot.lane.b32.xlu0 %v1066, 32
    %v1069 = vpop.permute.xlu0 %1068
    %v1071 = vadd.f32 %v1061, %v1069
    %v1072 = vtanh.pop %v1071
    %1074 = vrot.lane.b32.xlu0 %v1072, 64
    %v1075 = vpop.permute.xlu0 %1074
    %v1077 = vmul.f32 %v1056, %v1075
    %v1078 = vxor.u32 %v1050, 2147483648
    %v1079 = vmul.f32 %v1078, 1.442695
    %v1080 = vpow.pop %v1079
    %v1081 = vadd.f32 %v1080, 1.0
    %v1082 = vrcp.pop %v1081
    %v1083 = vmul.f32 1.0, %v1082
    %v1084 = vtanh.pop %v1050
    %v1086 = vrot.slane %v876, 2
    %v1088 = vmul.f32 %v1083, %v1086
    %1090 = vrot.lane.b32.xlu0 %v1084, 64
    %v1091 = vpop.permute.xlu0 %1090
    %v1093 = vmul.f32 %v1083, %v1091
    %1095 = vrot.lane.b32.xlu0 %v1093, 32
    %v1096 = vpop.permute.xlu0 %1095
    %v1098 = vadd.f32 %v1088, %v1096
    %v1099 = vtanh.pop %v1098
    %1101 = vrot.lane.b32.xlu0 %v1099, 64
    %v1102 = vpop.permute.xlu0 %1101
    %v1104 = vmul.f32 %v1083, %v1102
    %v1105 = vmul.f32 %v579, %v1077
    %v1106 = vrot.slane %v845, 6
    %1107 = vrot.lane.b32.xlu0 %v1106, 32
    %v1108 = vpop.permute.xlu0 %1107
    %v1110 = vmul.f32 %v586, %v1108
    %1112 = vrot.lane.b32.xlu0 %v1110, 96
    %v1113 = vpop.permute.xlu0 %1112
    %v1115 = vadd.f32 %v1105, %v1113
    %v1116 = vmul.f32 %v579, %v1071
    %1117 = vrot.lane.b32.xlu0 %v1059, 96
    %v1118 = vpop.permute.xlu0 %1117
    %v1120 = vmul.f32 %v586, %v1118
    %1122 = vrot.lane.b32.xlu0 %v1120, 32
    %v1123 = vpop.permute.xlu0 %1122
    %v1125 = vadd.f32 %v1116, %v1123
    %v1126 = vmul.f32 %v595, %v1104
    %v1127 = vrot.slane %v866, 2
    %1128 = vrot.lane.b32.xlu0 %v1127, 32
    %v1129 = vpop.permute.xlu0 %1128
    %v1131 = vmul.f32 %v602, %v1129
    %1133 = vrot.lane.b32.xlu0 %v1131, 96
    %v1134 = vpop.permute.xlu0 %1133
    %v1136 = vadd.f32 %v1126, %v1134
    %v1137 = vmul.f32 %v595, %v1098
    %1138 = vrot.lane.b32.xlu0 %v1086, 96
    %v1139 = vpop.permute.xlu0 %1138
    %v1141 = vmul.f32 %v602, %v1139
    %1143 = vrot.lane.b32.xlu0 %v1141, 32
    %v1144 = vpop.permute.xlu0 %1143
    %v1146 = vadd.f32 %v1137, %v1144
    %v1147 = vmul.f32 %v1115, %v579
    %1149 = vrot.lane.b32.xlu0 %v1147, 32
    %v1150 = vpop.permute.xlu0 %1149
    %1152 = vst.msk [vmem:[#allocation2] sm:$0x30] %vm889, %v1150
    %v1153 = vmul.f32 %v1136, %v595
    %1155 = vrot.lane.b32.xlu0 %v1153, 32
    %v1156 = vpop.permute.xlu0 %1155
    %1158 = vst.msk [vmem:[#allocation3 + $0x8] sm:$0xc] %vm882, %v1156
    %v1160 = vrot.slane %v1115, 4
    %1161 = vrot.lane.b32.xlu0 %v1160, 32
    %v1162 = vpop.permute.xlu0 %1161
    %v1163 = vsel %vm379, %v1162, 0
    %1165 = vmatprep.subr.mxu0 0.0
    %1166 = vmatpush1.msra.mxu0 %v371
    %1167 = vmatprep.subr.mxu0 0.0
    %1168 = vmatpush1.msra.mxu0 %v372
    %1169 = vmatprep.subr.mxu0 0.0
    %1170 = vmatpush1.msra.mxu0 %v373
    %1171 = vmatprep.subr.mxu0 0.0
    %1172 = vmatpush1.msra.mxu0 %v374
    %1173 = vmatprep.subr.mxu0 0.0
    %1174 = vmatpush1.msra.mxu0 0.0
    %1175 = vmatprep.subr.mxu0 0.0
    %1176 = vmatpush1.msra.mxu0 0.0
    %1177 = vmatprep.subr.mxu0 0.0
    %1178 = vmatpush1.msra.mxu0 0.0
    %1179 = vmatprep.subr.mxu0 0.0
    %1180 = vmatpush1.msra.mxu0 0.0
    %1181 = vmatprep.subr.mxu0 0.0
    %1182 = vmatpush1.msra.mxu0 0.0
    %1183 = vmatprep.subr.mxu0 0.0
    %1184 = vmatpush1.msra.mxu0 0.0
    %1185 = vmatprep.subr.mxu0 0.0
    %1186 = vmatpush1.msra.mxu0 0.0
    %1187 = vmatprep.subr.mxu0 0.0
    %1188 = vmatpush1.msra.mxu0 0.0
    %1189 = vmatprep.subr.mxu0 0.0
    %1190 = vmatpush1.msra.mxu0 0.0
    %1191 = vmatprep.subr.mxu0 0.0
    %1192 = vmatpush1.msra.mxu0 0.0
    %1193 = vmatprep.subr.mxu0 0.0
    %1194 = vmatpush1.msra.mxu0 0.0
    %1195 = vmatprep.subr.mxu0 0.0
    %1196 = vmatpush1.msra.mxu0 0.0
    %1197 = vmatprep.subr.mxu0 0.0
    %1198 = vmatpush1.msra.mxu0 0.0
    %1199 = vmatprep.subr.mxu0 0.0
    %1200 = vmatpush1.msra.mxu0 0.0
    %1201 = vmatprep.subr.mxu0 0.0
    %1202 = vmatpush1.msra.mxu0 0.0
    %1203 = vmatprep.subr.mxu0 0.0
    %1204 = vmatpush1.msra.mxu0 0.0
    %1205 = vmatprep.subr.mxu0 0.0
    %1206 = vmatpush1.msra.mxu0 0.0
    %1207 = vmatprep.subr.mxu0 0.0
    %1208 = vmatpush1.msra.mxu0 0.0
    %1209 = vmatprep.subr.mxu0 0.0
    %1210 = vmatpush1.msra.mxu0 0.0
    %1211 = vmatprep.subr.mxu0 0.0
    %1212 = vmatpush1.msra.mxu0 0.0
    %1213 = vmatprep.subr.mxu0 0.0
    %1214 = vmatpush1.msra.mxu0 0.0
    %1215 = vmatprep.subr.mxu0 0.0
    %1216 = vmatpush1.msra.mxu0 0.0
    %1217 = vmatprep.subr.mxu0 0.0
    %1218 = vmatpush1.msra.mxu0 0.0
    %1219 = vmatprep.subr.mxu0 0.0
    %1220 = vmatpush1.msra.mxu0 0.0
    %1221 = vmatprep.subr.mxu0 0.0
    %1222 = vmatpush1.msra.mxu0 0.0
    %1223 = vmatprep.subr.mxu0 0.0
    %1224 = vmatpush1.msra.mxu0 0.0
    %1225 = vmatprep.subr.mxu0 0.0
    %1226 = vmatpush1.msra.mxu0 0.0
    %1227 = vmatprep.subr.mxu0 0.0
    %1228 = vmatpush1.msra.mxu0 0.0
    %1229 = vmatprep.mubr.f32.mxu0 0.0
    %1230 = vmatmul.mubr.f32.gmra.mrb[0].mxu0 %v1163
    %v1231 = vpop.f32.mrb[0].mxu0
    %v1232 = vadd.f32 0.0, %v1231
    %v1233 = vpop.f32.mrb[0].mxu0
    %1234 = vdwg.mxu0
    %v1236 = vrot.slane %v1232, 2
    %v1238 = vadd.f32 %v361, %v1236
    %v1240 = vrot.slane %v1136, 2
    %1241 = vrot.lane.b32.xlu0 %v1240, 32
    %v1242 = vpop.permute.xlu0 %1241
    %v1243 = vsel %vm379, %v1242, 0
    %1245 = vmatprep.subr.mxu0 0.0
    %1246 = vmatpush1.msra.mxu0 %v375
    %1247 = vmatprep.subr.mxu0 0.0
    %1248 = vmatpush1.msra.mxu0 %v376
    %1249 = vmatprep.subr.mxu0 0.0
    %1250 = vmatpush1.msra.mxu0 %v377
    %1251 = vmatprep.subr.mxu0 0.0
    %1252 = vmatpush1.msra.mxu0 %v378
    %1253 = vmatprep.subr.mxu0 0.0
    %1254 = vmatpush1.msra.mxu0 0.0
    %1255 = vmatprep.subr.mxu0 0.0
    %1256 = vmatpush1.msra.mxu0 0.0
    %1257 = vmatprep.subr.mxu0 0.0
    %1258 = vmatpush1.msra.mxu0 0.0
    %1259 = vmatprep.subr.mxu0 0.0
    %1260 = vmatpush1.msra.mxu0 0.0
    %1261 = vmatprep.subr.mxu0 0.0
    %1262 = vmatpush1.msra.mxu0 0.0
    %1263 = vmatprep.subr.mxu0 0.0
    %1264 = vmatpush1.msra.mxu0 0.0
    %1265 = vmatprep.subr.mxu0 0.0
    %1266 = vmatpush1.msra.mxu0 0.0
    %1267 = vmatprep.subr.mxu0 0.0
    %1268 = vmatpush1.msra.mxu0 0.0
    %1269 = vmatprep.subr.mxu0 0.0
    %1270 = vmatpush1.msra.mxu0 0.0
    %1271 = vmatprep.subr.mxu0 0.0
    %1272 = vmatpush1.msra.mxu0 0.0
    %1273 = vmatprep.subr.mxu0 0.0
    %1274 = vmatpush1.msra.mxu0 0.0
    %1275 = vmatprep.subr.mxu0 0.0
    %1276 = vmatpush1.msra.mxu0 0.0
    %1277 = vmatprep.subr.mxu0 0.0
    %1278 = vmatpush1.msra.mxu0 0.0
    %1279 = vmatprep.subr.mxu0 0.0
    %1280 = vmatpush1.msra.mxu0 0.0
    %1281 = vmatprep.subr.mxu0 0.0
    %1282 = vmatpush1.msra.mxu0 0.0
    %1283 = vmatprep.subr.mxu0 0.0
    %1284 = vmatpush1.msra.mxu0 0.0
    %1285 = vmatprep.subr.mxu0 0.0
    %1286 = vmatpush1.msra.mxu0 0.0
    %1287 = vmatprep.subr.mxu0 0.0
    %1288 = vmatpush1.msra.mxu0 0.0
    %1289 = vmatprep.subr.mxu0 0.0
    %1290 = vmatpush1.msra.mxu0 0.0
    %1291 = vmatprep.subr.mxu0 0.0
    %1292 = vmatpush1.msra.mxu0 0.0
    %1293 = vmatprep.subr.mxu0 0.0
    %1294 = vmatpush1.msra.mxu0 0.0
    %1295 = vmatprep.subr.mxu0 0.0
    %1296 = vmatpush1.msra.mxu0 0.0
    %1297 = vmatprep.subr.mxu0 0.0
    %1298 = vmatpush1.msra.mxu0 0.0
    %1299 = vmatprep.subr.mxu0 0.0
    %1300 = vmatpush1.msra.mxu0 0.0
    %1301 = vmatprep.subr.mxu0 0.0
    %1302 = vmatpush1.msra.mxu0 0.0
    %1303 = vmatprep.subr.mxu0 0.0
    %1304 = vmatpush1.msra.mxu0 0.0
    %1305 = vmatprep.subr.mxu0 0.0
    %1306 = vmatpush1.msra.mxu0 0.0
    %1307 = vmatprep.subr.mxu0 0.0
    %1308 = vmatpush1.msra.mxu0 0.0
    %1309 = vmatprep.mubr.f32.mxu0 0.0
    %1310 = vmatmul.mubr.f32.gmra.mrb[0].mxu0 %v1243
    %v1311 = vpop.f32.mrb[0].mxu0
    %v1312 = vadd.f32 0.0, %v1311
    %v1313 = vpop.f32.mrb[0].mxu0
    %1314 = vdwg.mxu0
    %v1315 = vadd.f32 %v369, %v1312
    %v1316 = vxor.u32 %v1238, 2147483648
    %v1317 = vmul.f32 %v1316, 1.442695
    %v1318 = vpow.pop %v1317
    %v1319 = vadd.f32 %v1318, 1.0
    %v1320 = vrcp.pop %v1319
    %v1321 = vmul.f32 1.0, %v1320
    %v1322 = vtanh.pop %v1238
    %v1324 = vrot.slane %v1125, 6
    %v1326 = vmul.f32 %v1321, %v1324
    %1328 = vrot.lane.b32.xlu0 %v1322, 64
    %v1329 = vpop.permute.xlu0 %1328
    %v1331 = vmul.f32 %v1321, %v1329
    %1333 = vrot.lane.b32.xlu0 %v1331, 32
    %v1334 = vpop.permute.xlu0 %1333
    %v1336 = vadd.f32 %v1326, %v1334
    %v1337 = vtanh.pop %v1336
    %1339 = vrot.lane.b32.xlu0 %v1337, 64
    %v1340 = vpop.permute.xlu0 %1339
    %v1342 = vmul.f32 %v1321, %v1340
    %v1343 = vxor.u32 %v1315, 2147483648
    %v1344 = vmul.f32 %v1343, 1.442695
    %v1345 = vpow.pop %v1344
    %v1346 = vadd.f32 %v1345, 1.0
    %v1347 = vrcp.pop %v1346
    %v1348 = vmul.f32 1.0, %v1347
    %v1349 = vtanh.pop %v1315
    %v1351 = vrot.slane %v1146, 2
    %v1353 = vmul.f32 %v1348, %v1351
    %1355 = vrot.lane.b32.xlu0 %v1349, 64
    %v1356 = vpop.permute.xlu0 %1355
    %v1358 = vmul.f32 %v1348, %v1356
    %1360 = vrot.lane.b32.xlu0 %v1358, 32
    %v1361 = vpop.permute.xlu0 %1360
    %v1363 = vadd.f32 %v1353, %v1361
    %v1364 = vtanh.pop %v1363
    %1366 = vrot.lane.b32.xlu0 %v1364, 64
    %v1367 = vpop.permute.xlu0 %1366
    %v1369 = vmul.f32 %v1348, %v1367
    %v1370 = vmul.f32 %v579, %v1342
    %v1371 = vrot.slane %v1115, 6
    %1372 = vrot.lane.b32.xlu0 %v1371, 32
    %v1373 = vpop.permute.xlu0 %1372
    %v1375 = vmul.f32 %v586, %v1373
    %1377 = vrot.lane.b32.xlu0 %v1375, 96
    %v1378 = vpop.permute.xlu0 %1377
    %v1380 = vadd.f32 %v1370, %v1378
    %v1381 = vmul.f32 %v579, %v1336
    %1382 = vrot.lane.b32.xlu0 %v1324, 96
    %v1383 = vpop.permute.xlu0 %1382
    %v1385 = vmul.f32 %v586, %v1383
    %1387 = vrot.lane.b32.xlu0 %v1385, 32
    %v1388 = vpop.permute.xlu0 %1387
    %v1390 = vadd.f32 %v1381, %v1388
    %v1391 = vmul.f32 %v595, %v1369
    %v1393 = vmul.f32 %v602, %v1242
    %1395 = vrot.lane.b32.xlu0 %v1393, 96
    %v1396 = vpop.permute.xlu0 %1395
    %v1398 = vadd.f32 %v1391, %v1396
    %v1399 = vmul.f32 %v595, %v1363
    %1400 = vrot.lane.b32.xlu0 %v1351, 96
    %v1401 = vpop.permute.xlu0 %1400
    %v1403 = vmul.f32 %v602, %v1401
    %1405 = vrot.lane.b32.xlu0 %v1403, 32
    %v1406 = vpop.permute.xlu0 %1405
    %v1408 = vadd.f32 %v1399, %v1406
    %v1409 = vmul.f32 %v1380, %v579
    %1411 = vrot.lane.b32.xlu0 %v1409, 32
    %v1412 = vpop.permute.xlu0 %1411
    %1414 = vst.msk [vmem:[#allocation2] sm:$0xc0] %vm620, %v1412
    %v1415 = vmul.f32 %v1398, %v595
    %1417 = vrot.lane.b32.xlu0 %v1415, 32
    %v1418 = vpop.permute.xlu0 %1417
    %1420 = vst.msk [vmem:[#allocation3 + $0x8] sm:$0x3] %vm613, %v1418
    %v1422 = vrot.slane %v1380, 6
    %1423 = vrot.lane.b32.xlu0 %v1422, 32
    %v1424 = vpop.permute.xlu0 %1423
    %v1425 = vsel %vm379, %v1424, 0
    %1427 = vmatprep.subr.mxu0 0.0
    %1428 = vmatpush1.msra.mxu0 %v371
    %1429 = vmatprep.subr.mxu0 0.0
    %1430 = vmatpush1.msra.mxu0 %v372
    %1431 = vmatprep.subr.mxu0 0.0
    %1432 = vmatpush1.msra.mxu0 %v373
    %1433 = vmatprep.subr.mxu0 0.0
    %1434 = vmatpush1.msra.mxu0 %v374
    %1435 = vmatprep.subr.mxu0 0.0
    %1436 = vmatpush1.msra.mxu0 0.0
    %1437 = vmatprep.subr.mxu0 0.0
    %1438 = vmatpush1.msra.mxu0 0.0
    %1439 = vmatprep.subr.mxu0 0.0
    %1440 = vmatpush1.msra.mxu0 0.0
    %1441 = vmatprep.subr.mxu0 0.0
    %1442 = vmatpush1.msra.mxu0 0.0
    %1443 = vmatprep.subr.mxu0 0.0
    %1444 = vmatpush1.msra.mxu0 0.0
    %1445 = vmatprep.subr.mxu0 0.0
    %1446 = vmatpush1.msra.mxu0 0.0
    %1447 = vmatprep.subr.mxu0 0.0
    %1448 = vmatpush1.msra.mxu0 0.0
    %1449 = vmatprep.subr.mxu0 0.0
    %1450 = vmatpush1.msra.mxu0 0.0
    %1451 = vmatprep.subr.mxu0 0.0
    %1452 = vmatpush1.msra.mxu0 0.0
    %1453 = vmatprep.subr.mxu0 0.0
    %1454 = vmatpush1.msra.mxu0 0.0
    %1455 = vmatprep.subr.mxu0 0.0
    %1456 = vmatpush1.msra.mxu0 0.0
    %1457 = vmatprep.subr.mxu0 0.0
    %1458 = vmatpush1.msra.mxu0 0.0
    %1459 = vmatprep.subr.mxu0 0.0
    %1460 = vmatpush1.msra.mxu0 0.0
    %1461 = vmatprep.subr.mxu0 0.0
    %1462 = vmatpush1.msra.mxu0 0.0
    %1463 = vmatprep.subr.mxu0 0.0
    %1464 = vmatpush1.msra.mxu0 0.0
    %1465 = vmatprep.subr.mxu0 0.0
    %1466 = vmatpush1.msra.mxu0 0.0
    %1467 = vmatprep.subr.mxu0 0.0
    %1468 = vmatpush1.msra.mxu0 0.0
    %1469 = vmatprep.subr.mxu0 0.0
    %1470 = vmatpush1.msra.mxu0 0.0
    %1471 = vmatprep.subr.mxu0 0.0
    %1472 = vmatpush1.msra.mxu0 0.0
    %1473 = vmatprep.subr.mxu0 0.0
    %1474 = vmatpush1.msra.mxu0 0.0
    %1475 = vmatprep.subr.mxu0 0.0
    %1476 = vmatpush1.msra.mxu0 0.0
    %1477 = vmatprep.subr.mxu0 0.0
    %1478 = vmatpush1.msra.mxu0 0.0
    %1479 = vmatprep.subr.mxu0 0.0
    %1480 = vmatpush1.msra.mxu0 0.0
    %1481 = vmatprep.subr.mxu0 0.0
    %1482 = vmatpush1.msra.mxu0 0.0
    %1483 = vmatprep.subr.mxu0 0.0
    %1484 = vmatpush1.msra.mxu0 0.0
    %1485 = vmatprep.subr.mxu0 0.0
    %1486 = vmatpush1.msra.mxu0 0.0
    %1487 = vmatprep.subr.mxu0 0.0
    %1488 = vmatpush1.msra.mxu0 0.0
    %1489 = vmatprep.subr.mxu0 0.0
    %1490 = vmatpush1.msra.mxu0 0.0
    %1491 = vmatprep.mubr.f32.mxu0 0.0
    %1492 = vmatmul.mubr.f32.gmra.mrb[0].mxu0 %v1425
    %v1493 = vpop.f32.mrb[0].mxu0
    %v1494 = vadd.f32 0.0, %v1493
    %v1495 = vpop.f32.mrb[0].mxu0
    %1496 = vdwg.mxu0
    %v1497 = vadd.f32 %v367, %v1494
    %1499 = vrot.lane.b32.xlu0 %v1398, 32
    %v1500 = vpop.permute.xlu0 %1499
    %v1501 = vsel %vm379, %v1500, 0
    %1503 = vmatprep.subr.mxu0 0.0
    %1504 = vmatpush1.msra.mxu0 %v375
    %1505 = vmatprep.subr.mxu0 0.0
    %1506 = vmatpush1.msra.mxu0 %v376
    %1507 = vmatprep.subr.mxu0 0.0
    %1508 = vmatpush1.msra.mxu0 %v377
    %1509 = vmatprep.subr.mxu0 0.0
    %1510 = vmatpush1.msra.mxu0 %v378
    %1511 = vmatprep.subr.mxu0 0.0
    %1512 = vmatpush1.msra.mxu0 0.0
    %1513 = vmatprep.subr.mxu0 0.0
    %1514 = vmatpush1.msra.mxu0 0.0
    %1515 = vmatprep.subr.mxu0 0.0
    %1516 = vmatpush1.msra.mxu0 0.0
    %1517 = vmatprep.subr.mxu0 0.0
    %1518 = vmatpush1.msra.mxu0 0.0
    %1519 = vmatprep.subr.mxu0 0.0
    %1520 = vmatpush1.msra.mxu0 0.0
    %1521 = vmatprep.subr.mxu0 0.0
    %1522 = vmatpush1.msra.mxu0 0.0
    %1523 = vmatprep.subr.mxu0 0.0
    %1524 = vmatpush1.msra.mxu0 0.0
    %1525 = vmatprep.subr.mxu0 0.0
    %1526 = vmatpush1.msra.mxu0 0.0
    %1527 = vmatprep.subr.mxu0 0.0
    %1528 = vmatpush1.msra.mxu0 0.0
    %1529 = vmatprep.subr.mxu0 0.0
    %1530 = vmatpush1.msra.mxu0 0.0
    %1531 = vmatprep.subr.mxu0 0.0
    %1532 = vmatpush1.msra.mxu0 0.0
    %1533 = vmatprep.subr.mxu0 0.0
    %1534 = vmatpush1.msra.mxu0 0.0
    %1535 = vmatprep.subr.mxu0 0.0
    %1536 = vmatpush1.msra.mxu0 0.0
    %1537 = vmatprep.subr.mxu0 0.0
    %1538 = vmatpush1.msra.mxu0 0.0
    %1539 = vmatprep.subr.mxu0 0.0
    %1540 = vmatpush1.msra.mxu0 0.0
    %1541 = vmatprep.subr.mxu0 0.0
    %1542 = vmatpush1.msra.mxu0 0.0
    %1543 = vmatprep.subr.mxu0 0.0
    %1544 = vmatpush1.msra.mxu0 0.0
    %1545 = vmatprep.subr.mxu0 0.0
    %1546 = vmatpush1.msra.mxu0 0.0
    %1547 = vmatprep.subr.mxu0 0.0
    %1548 = vmatpush1.msra.mxu0 0.0
    %1549 = vmatprep.subr.mxu0 0.0
    %1550 = vmatpush1.msra.mxu0 0.0
    %1551 = vmatprep.subr.mxu0 0.0
    %1552 = vmatpush1.msra.mxu0 0.0
    %1553 = vmatprep.subr.mxu0 0.0
    %1554 = vmatpush1.msra.mxu0 0.0
    %1555 = vmatprep.subr.mxu0 0.0
    %1556 = vmatpush1.msra.mxu0 0.0
    %1557 = vmatprep.subr.mxu0 0.0
    %1558 = vmatpush1.msra.mxu0 0.0
    %1559 = vmatprep.subr.mxu0 0.0
    %1560 = vmatpush1.msra.mxu0 0.0
    %1561 = vmatprep.subr.mxu0 0.0
    %1562 = vmatpush1.msra.mxu0 0.0
    %1563 = vmatprep.subr.mxu0 0.0
    %1564 = vmatpush1.msra.mxu0 0.0
    %1565 = vmatprep.subr.mxu0 0.0
    %1566 = vmatpush1.msra.mxu0 0.0
    %1567 = vmatprep.mubr.f32.mxu0 0.0
    %1568 = vmatmul.mubr.f32.gmra.mrb[0].mxu0 %v1501
    %v1569 = vpop.f32.mrb[0].mxu0
    %v1570 = vadd.f32 0.0, %v1569
    %v1571 = vpop.f32.mrb[0].mxu0
    %1572 = vdwg.mxu0
    %v1574 = vrot.slane %v1570, 2
    %v1576 = vadd.f32 %v363, %v1574
    %v1577 = vxor.u32 %v1497, 2147483648
    %v1578 = vmul.f32 %v1577, 1.442695
    %v1579 = vpow.pop %v1578
    %v1580 = vadd.f32 %v1579, 1.0
    %v1581 = vrcp.pop %v1580
    %v1582 = vmul.f32 1.0, %v1581
    %v1583 = vtanh.pop %v1497
    %v1585 = vrot.slane %v1390, 6
    %v1587 = vmul.f32 %v1582, %v1585
    %1589 = vrot.lane.b32.xlu0 %v1583, 64
    %v1590 = vpop.permute.xlu0 %1589
    %v1592 = vmul.f32 %v1582, %v1590
    %1594 = vrot.lane.b32.xlu0 %v1592, 32
    %v1595 = vpop.permute.xlu0 %1594
    %v1597 = vadd.f32 %v1587, %v1595
    %v1598 = vtanh.pop %v1597
    %1600 = vrot.lane.b32.xlu0 %v1598, 64
    %v1601 = vpop.permute.xlu0 %1600
    %v1603 = vmul.f32 %v1582, %v1601
    %v1604 = vxor.u32 %v1576, 2147483648
    %v1605 = vmul.f32 %v1604, 1.442695
    %v1606 = vpow.pop %v1605
    %v1607 = vadd.f32 %v1606, 1.0
    %v1608 = vrcp.pop %v1607
    %v1609 = vmul.f32 1.0, %v1608
    %v1610 = vtanh.pop %v1576
    %v1612 = vrot.slane %v1408, 2
    %v1614 = vmul.f32 %v1609, %v1612
    %1616 = vrot.lane.b32.xlu0 %v1610, 64
    %v1617 = vpop.permute.xlu0 %1616
    %v1619 = vmul.f32 %v1609, %v1617
    %1621 = vrot.lane.b32.xlu0 %v1619, 32
    %v1622 = vpop.permute.xlu0 %1621
    %v1624 = vadd.f32 %v1614, %v1622
    %v1625 = vtanh.pop %v1624
    %1627 = vrot.lane.b32.xlu0 %v1625, 64
    %v1628 = vpop.permute.xlu0 %1627
    %v1630 = vmul.f32 %v1609, %v1628
    %v1631 = vmul.f32 %v595, %v1603
    %v1633 = vmul.f32 %v602, %v1424
    %1635 = vrot.lane.b32.xlu0 %v1633, 96
    %v1636 = vpop.permute.xlu0 %1635
    %v1638 = vadd.f32 %v1631, %v1636
    %v1639 = vmul.f32 %v595, %v1597
    %1640 = vrot.lane.b32.xlu0 %v1585, 96
    %v1641 = vpop.permute.xlu0 %1640
    %v1643 = vmul.f32 %v602, %v1641
    %1645 = vrot.lane.b32.xlu0 %v1643, 32
    %v1646 = vpop.permute.xlu0 %1645
    %v1648 = vadd.f32 %v1639, %v1646
    %v1649 = vmul.f32 %v579, %v1630
    %v1650 = vrot.slane %v1398, 2
    %1651 = vrot.lane.b32.xlu0 %v1650, 32
    %v1652 = vpop.permute.xlu0 %1651
    %v1654 = vmul.f32 %v586, %v1652
    %1656 = vrot.lane.b32.xlu0 %v1654, 96
    %v1657 = vpop.permute.xlu0 %1656
    %v1659 = vadd.f32 %v1649, %v1657
    %v1660 = vmul.f32 %v579, %v1624
    %1661 = vrot.lane.b32.xlu0 %v1612, 96
    %v1662 = vpop.permute.xlu0 %1661
    %v1664 = vmul.f32 %v586, %v1662
    %1666 = vrot.lane.b32.xlu0 %v1664, 32
    %v1667 = vpop.permute.xlu0 %1666
    %v1669 = vadd.f32 %v1660, %v1667
    %v1670 = vmul.f32 %v1638, %v595
    %1672 = vrot.lane.b32.xlu0 %v1670, 32
    %v1673 = vpop.permute.xlu0 %1672
    %1675 = vst.msk [vmem:[#allocation2 + $0x8] sm:$0x3] %vm613, %v1673
    %v1676 = vmul.f32 %v1659, %v579
    %1678 = vrot.lane.b32.xlu0 %v1676, 32
    %v1679 = vpop.permute.xlu0 %1678
    %1681 = vst.msk [vmem:[#allocation3] sm:$0xc0] %vm620, %v1679
    %1683 = vrot.lane.b32.xlu0 %v1638, 32
    %v1684 = vpop.permute.xlu0 %1683
    %v1685 = vsel %vm379, %v1684, 0
    %1687 = vmatprep.subr.mxu0 0.0
    %1688 = vmatpush1.msra.mxu0 %v371
    %1689 = vmatprep.subr.mxu0 0.0
    %1690 = vmatpush1.msra.mxu0 %v372
    %1691 = vmatprep.subr.mxu0 0.0
    %1692 = vmatpush1.msra.mxu0 %v373
    %1693 = vmatprep.subr.mxu0 0.0
    %1694 = vmatpush1.msra.mxu0 %v374
    %1695 = vmatprep.subr.mxu0 0.0
    %1696 = vmatpush1.msra.mxu0 0.0
    %1697 = vmatprep.subr.mxu0 0.0
    %1698 = vmatpush1.msra.mxu0 0.0
    %1699 = vmatprep.subr.mxu0 0.0
    %1700 = vmatpush1.msra.mxu0 0.0
    %1701 = vmatprep.subr.mxu0 0.0
    %1702 = vmatpush1.msra.mxu0 0.0
    %1703 = vmatprep.subr.mxu0 0.0
    %1704 = vmatpush1.msra.mxu0 0.0
    %1705 = vmatprep.subr.mxu0 0.0
    %1706 = vmatpush1.msra.mxu0 0.0
    %1707 = vmatprep.subr.mxu0 0.0
    %1708 = vmatpush1.msra.mxu0 0.0
    %1709 = vmatprep.subr.mxu0 0.0
    %1710 = vmatpush1.msra.mxu0 0.0
    %1711 = vmatprep.subr.mxu0 0.0
    %1712 = vmatpush1.msra.mxu0 0.0
    %1713 = vmatprep.subr.mxu0 0.0
    %1714 = vmatpush1.msra.mxu0 0.0
    %1715 = vmatprep.subr.mxu0 0.0
    %1716 = vmatpush1.msra.mxu0 0.0
    %1717 = vmatprep.subr.mxu0 0.0
    %1718 = vmatpush1.msra.mxu0 0.0
    %1719 = vmatprep.subr.mxu0 0.0
    %1720 = vmatpush1.msra.mxu0 0.0
    %1721 = vmatprep.subr.mxu0 0.0
    %1722 = vmatpush1.msra.mxu0 0.0
    %1723 = vmatprep.subr.mxu0 0.0
    %1724 = vmatpush1.msra.mxu0 0.0
    %1725 = vmatprep.subr.mxu0 0.0
    %1726 = vmatpush1.msra.mxu0 0.0
    %1727 = vmatprep.subr.mxu0 0.0
    %1728 = vmatpush1.msra.mxu0 0.0
    %1729 = vmatprep.subr.mxu0 0.0
    %1730 = vmatpush1.msra.mxu0 0.0
    %1731 = vmatprep.subr.mxu0 0.0
    %1732 = vmatpush1.msra.mxu0 0.0
    %1733 = vmatprep.subr.mxu0 0.0
    %1734 = vmatpush1.msra.mxu0 0.0
    %1735 = vmatprep.subr.mxu0 0.0
    %1736 = vmatpush1.msra.mxu0 0.0
    %1737 = vmatprep.subr.mxu0 0.0
    %1738 = vmatpush1.msra.mxu0 0.0
    %1739 = vmatprep.subr.mxu0 0.0
    %1740 = vmatpush1.msra.mxu0 0.0
    %1741 = vmatprep.subr.mxu0 0.0
    %1742 = vmatpush1.msra.mxu0 0.0
    %1743 = vmatprep.subr.mxu0 0.0
    %1744 = vmatpush1.msra.mxu0 0.0
    %1745 = vmatprep.subr.mxu0 0.0
    %1746 = vmatpush1.msra.mxu0 0.0
    %1747 = vmatprep.subr.mxu0 0.0
    %1748 = vmatpush1.msra.mxu0 0.0
    %1749 = vmatprep.subr.mxu0 0.0
    %1750 = vmatpush1.msra.mxu0 0.0
    %1751 = vmatprep.mubr.f32.mxu0 0.0
    %1752 = vmatmul.mubr.f32.gmra.mrb[0].mxu0 %v1685
    %v1753 = vpop.f32.mrb[0].mxu0
    %v1754 = vadd.f32 0.0, %v1753
    %v1755 = vpop.f32.mrb[0].mxu0
    %1756 = vdwg.mxu0
    %v1758 = vrot.slane %v1754, 6
    %v1760 = vadd.f32 %v367, %v1758
    %v1762 = vrot.slane %v1659, 6
    %1763 = vrot.lane.b32.xlu0 %v1762, 32
    %v1764 = vpop.permute.xlu0 %1763
    %v1765 = vsel %vm379, %v1764, 0
    %1767 = vmatprep.subr.mxu0 0.0
    %1768 = vmatpush1.msra.mxu0 %v375
    %1769 = vmatprep.subr.mxu0 0.0
    %1770 = vmatpush1.msra.mxu0 %v376
    %1771 = vmatprep.subr.mxu0 0.0
    %1772 = vmatpush1.msra.mxu0 %v377
    %1773 = vmatprep.subr.mxu0 0.0
    %1774 = vmatpush1.msra.mxu0 %v378
    %1775 = vmatprep.subr.mxu0 0.0
    %1776 = vmatpush1.msra.mxu0 0.0
    %1777 = vmatprep.subr.mxu0 0.0
    %1778 = vmatpush1.msra.mxu0 0.0
    %1779 = vmatprep.subr.mxu0 0.0
    %1780 = vmatpush1.msra.mxu0 0.0
    %1781 = vmatprep.subr.mxu0 0.0
    %1782 = vmatpush1.msra.mxu0 0.0
    %1783 = vmatprep.subr.mxu0 0.0
    %1784 = vmatpush1.msra.mxu0 0.0
    %1785 = vmatprep.subr.mxu0 0.0
    %1786 = vmatpush1.msra.mxu0 0.0
    %1787 = vmatprep.subr.mxu0 0.0
    %1788 = vmatpush1.msra.mxu0 0.0
    %1789 = vmatprep.subr.mxu0 0.0
    %1790 = vmatpush1.msra.mxu0 0.0
    %1791 = vmatprep.subr.mxu0 0.0
    %1792 = vmatpush1.msra.mxu0 0.0
    %1793 = vmatprep.subr.mxu0 0.0
    %1794 = vmatpush1.msra.mxu0 0.0
    %1795 = vmatprep.subr.mxu0 0.0
    %1796 = vmatpush1.msra.mxu0 0.0
    %1797 = vmatprep.subr.mxu0 0.0
    %1798 = vmatpush1.msra.mxu0 0.0
    %1799 = vmatprep.subr.mxu0 0.0
    %1800 = vmatpush1.msra.mxu0 0.0
    %1801 = vmatprep.subr.mxu0 0.0
    %1802 = vmatpush1.msra.mxu0 0.0
    %1803 = vmatprep.subr.mxu0 0.0
    %1804 = vmatpush1.msra.mxu0 0.0
    %1805 = vmatprep.subr.mxu0 0.0
    %1806 = vmatpush1.msra.mxu0 0.0
    %1807 = vmatprep.subr.mxu0 0.0
    %1808 = vmatpush1.msra.mxu0 0.0
    %1809 = vmatprep.subr.mxu0 0.0
    %1810 = vmatpush1.msra.mxu0 0.0
    %1811 = vmatprep.subr.mxu0 0.0
    %1812 = vmatpush1.msra.mxu0 0.0
    %1813 = vmatprep.subr.mxu0 0.0
    %1814 = vmatpush1.msra.mxu0 0.0
    %1815 = vmatprep.subr.mxu0 0.0
    %1816 = vmatpush1.msra.mxu0 0.0
    %1817 = vmatprep.subr.mxu0 0.0
    %1818 = vmatpush1.msra.mxu0 0.0
    %1819 = vmatprep.subr.mxu0 0.0
    %1820 = vmatpush1.msra.mxu0 0.0
    %1821 = vmatprep.subr.mxu0 0.0
    %1822 = vmatpush1.msra.mxu0 0.0
    %1823 = vmatprep.subr.mxu0 0.0
    %1824 = vmatpush1.msra.mxu0 0.0
    %1825 = vmatprep.subr.mxu0 0.0
    %1826 = vmatpush1.msra.mxu0 0.0
    %1827 = vmatprep.subr.mxu0 0.0
    %1828 = vmatpush1.msra.mxu0 0.0
    %1829 = vmatprep.subr.mxu0 0.0
    %1830 = vmatpush1.msra.mxu0 0.0
    %1831 = vmatprep.mubr.f32.mxu0 0.0
    %1832 = vmatmul.mubr.f32.gmra.mrb[0].mxu0 %v1765
    %v1833 = vpop.f32.mrb[0].mxu0
    %v1834 = vadd.f32 0.0, %v1833
    %v1835 = vpop.f32.mrb[0].mxu0
    %1836 = vdwg.mxu0
    %v1838 = vrot.slane %v1834, 4
    %v1840 = vadd.f32 %v363, %v1838
    %v1841 = vxor.u32 %v1760, 2147483648
    %v1842 = vmul.f32 %v1841, 1.442695
    %v1843 = vpow.pop %v1842
    %v1844 = vadd.f32 %v1843, 1.0
    %v1845 = vrcp.pop %v1844
    %v1846 = vmul.f32 1.0, %v1845
    %v1847 = vtanh.pop %v1760
    %v1849 = vrot.slane %v1648, 6
    %v1851 = vmul.f32 %v1846, %v1849
    %1853 = vrot.lane.b32.xlu0 %v1847, 64
    %v1854 = vpop.permute.xlu0 %1853
    %v1856 = vmul.f32 %v1846, %v1854
    %1858 = vrot.lane.b32.xlu0 %v1856, 32
    %v1859 = vpop.permute.xlu0 %1858
    %v1861 = vadd.f32 %v1851, %v1859
    %v1862 = vtanh.pop %v1861
    %1864 = vrot.lane.b32.xlu0 %v1862, 64
    %v1865 = vpop.permute.xlu0 %1864
    %v1867 = vmul.f32 %v1846, %v1865
    %v1868 = vxor.u32 %v1840, 2147483648
    %v1869 = vmul.f32 %v1868, 1.442695
    %v1870 = vpow.pop %v1869
    %v1871 = vadd.f32 %v1870, 1.0
    %v1872 = vrcp.pop %v1871
    %v1873 = vmul.f32 1.0, %v1872
    %v1874 = vtanh.pop %v1840
    %v1876 = vrot.slane %v1669, 2
    %v1878 = vmul.f32 %v1873, %v1876
    %1880 = vrot.lane.b32.xlu0 %v1874, 64
    %v1881 = vpop.permute.xlu0 %1880
    %v1883 = vmul.f32 %v1873, %v1881
    %1885 = vrot.lane.b32.xlu0 %v1883, 32
    %v1886 = vpop.permute.xlu0 %1885
    %v1888 = vadd.f32 %v1878, %v1886
    %v1889 = vtanh.pop %v1888
    %1891 = vrot.lane.b32.xlu0 %v1889, 64
    %v1892 = vpop.permute.xlu0 %1891
    %v1894 = vmul.f32 %v1873, %v1892
    %v1895 = vmul.f32 %v595, %v1867
    %v1896 = vrot.slane %v1638, 6
    %1897 = vrot.lane.b32.xlu0 %v1896, 32
    %v1898 = vpop.permute.xlu0 %1897
    %v1900 = vmul.f32 %v602, %v1898
    %1902 = vrot.lane.b32.xlu0 %v1900, 96
    %v1903 = vpop.permute.xlu0 %1902
    %v1905 = vadd.f32 %v1895, %v1903
    %v1906 = vmul.f32 %v595, %v1861
    %1907 = vrot.lane.b32.xlu0 %v1849, 96
    %v1908 = vpop.permute.xlu0 %1907
    %v1910 = vmul.f32 %v602, %v1908
    %1912 = vrot.lane.b32.xlu0 %v1910, 32
    %v1913 = vpop.permute.xlu0 %1912
    %v1915 = vadd.f32 %v1906, %v1913
    %v1916 = vmul.f32 %v579, %v1894
    %v1917 = vrot.slane %v1659, 2
    %1918 = vrot.lane.b32.xlu0 %v1917, 32
    %v1919 = vpop.permute.xlu0 %1918
    %v1921 = vmul.f32 %v586, %v1919
    %1923 = vrot.lane.b32.xlu0 %v1921, 96
    %v1924 = vpop.permute.xlu0 %1923
    %v1926 = vadd.f32 %v1916, %v1924
    %v1927 = vmul.f32 %v579, %v1888
    %1928 = vrot.lane.b32.xlu0 %v1876, 96
    %v1929 = vpop.permute.xlu0 %1928
    %v1931 = vmul.f32 %v586, %v1929
    %1933 = vrot.lane.b32.xlu0 %v1931, 32
    %v1934 = vpop.permute.xlu0 %1933
    %v1936 = vadd.f32 %v1927, %v1934
    %v1937 = vmul.f32 %v1905, %v595
    %1939 = vrot.lane.b32.xlu0 %v1937, 32
    %v1940 = vpop.permute.xlu0 %1939
    %1942 = vst.msk [vmem:[#allocation2 + $0x8] sm:$0xc] %vm882, %v1940
    %v1943 = vmul.f32 %v1926, %v579
    %1945 = vrot.lane.b32.xlu0 %v1943, 32
    %v1946 = vpop.permute.xlu0 %1945
    %1948 = vst.msk [vmem:[#allocation3] sm:$0x30] %vm889, %v1946
    %v1950 = vrot.slane %v1905, 2
    %1951 = vrot.lane.b32.xlu0 %v1950, 32
    %v1952 = vpop.permute.xlu0 %1951
    %v1953 = vsel %vm379, %v1952, 0
    %1955 = vmatprep.subr.mxu0 0.0
    %1956 = vmatpush1.msra.mxu0 %v371
    %1957 = vmatprep.subr.mxu0 0.0
    %1958 = vmatpush1.msra.mxu0 %v372
    %1959 = vmatprep.subr.mxu0 0.0
    %1960 = vmatpush1.msra.mxu0 %v373
    %1961 = vmatprep.subr.mxu0 0.0
    %1962 = vmatpush1.msra.mxu0 %v374
    %1963 = vmatprep.subr.mxu0 0.0
    %1964 = vmatpush1.msra.mxu0 0.0
    %1965 = vmatprep.subr.mxu0 0.0
    %1966 = vmatpush1.msra.mxu0 0.0
    %1967 = vmatprep.subr.mxu0 0.0
    %1968 = vmatpush1.msra.mxu0 0.0
    %1969 = vmatprep.subr.mxu0 0.0
    %1970 = vmatpush1.msra.mxu0 0.0
    %1971 = vmatprep.subr.mxu0 0.0
    %1972 = vmatpush1.msra.mxu0 0.0
    %1973 = vmatprep.subr.mxu0 0.0
    %1974 = vmatpush1.msra.mxu0 0.0
    %1975 = vmatprep.subr.mxu0 0.0
    %1976 = vmatpush1.msra.mxu0 0.0
    %1977 = vmatprep.subr.mxu0 0.0
    %1978 = vmatpush1.msra.mxu0 0.0
    %1979 = vmatprep.subr.mxu0 0.0
    %1980 = vmatpush1.msra.mxu0 0.0
    %1981 = vmatprep.subr.mxu0 0.0
    %1982 = vmatpush1.msra.mxu0 0.0
    %1983 = vmatprep.subr.mxu0 0.0
    %1984 = vmatpush1.msra.mxu0 0.0
    %1985 = vmatprep.subr.mxu0 0.0
    %1986 = vmatpush1.msra.mxu0 0.0
    %1987 = vmatprep.subr.mxu0 0.0
    %1988 = vmatpush1.msra.mxu0 0.0
    %1989 = vmatprep.subr.mxu0 0.0
    %1990 = vmatpush1.msra.mxu0 0.0
    %1991 = vmatprep.subr.mxu0 0.0
    %1992 = vmatpush1.msra.mxu0 0.0
    %1993 = vmatprep.subr.mxu0 0.0
    %1994 = vmatpush1.msra.mxu0 0.0
    %1995 = vmatprep.subr.mxu0 0.0
    %1996 = vmatpush1.msra.mxu0 0.0
    %1997 = vmatprep.subr.mxu0 0.0
    %1998 = vmatpush1.msra.mxu0 0.0
    %1999 = vmatprep.subr.mxu0 0.0
    %2000 = vmatpush1.msra.mxu0 0.0
    %2001 = vmatprep.subr.mxu0 0.0
    %2002 = vmatpush1.msra.mxu0 0.0
    %2003 = vmatprep.subr.mxu0 0.0
    %2004 = vmatpush1.msra.mxu0 0.0
    %2005 = vmatprep.subr.mxu0 0.0
    %2006 = vmatpush1.msra.mxu0 0.0
    %2007 = vmatprep.subr.mxu0 0.0
    %2008 = vmatpush1.msra.mxu0 0.0
    %2009 = vmatprep.subr.mxu0 0.0
    %2010 = vmatpush1.msra.mxu0 0.0
    %2011 = vmatprep.subr.mxu0 0.0
    %2012 = vmatpush1.msra.mxu0 0.0
    %2013 = vmatprep.subr.mxu0 0.0
    %2014 = vmatpush1.msra.mxu0 0.0
    %2015 = vmatprep.subr.mxu0 0.0
    %2016 = vmatpush1.msra.mxu0 0.0
    %2017 = vmatprep.subr.mxu0 0.0
    %2018 = vmatpush1.msra.mxu0 0.0
    %2019 = vmatprep.mubr.f32.mxu0 0.0
    %2020 = vmatmul.mubr.f32.gmra.mrb[0].mxu0 %v1953
    %v2021 = vpop.f32.mrb[0].mxu0
    %v2022 = vadd.f32 0.0, %v2021
    %v2023 = vpop.f32.mrb[0].mxu0
    %2024 = vdwg.mxu0
    %v2026 = vrot.slane %v2022, 4
    %v2028 = vadd.f32 %v367, %v2026
    %v2030 = vrot.slane %v1926, 4
    %2031 = vrot.lane.b32.xlu0 %v2030, 32
    %v2032 = vpop.permute.xlu0 %2031
    %v2033 = vsel %vm379, %v2032, 0
    %2035 = vmatprep.subr.mxu0 0.0
    %2036 = vmatpush1.msra.mxu0 %v375
    %2037 = vmatprep.subr.mxu0 0.0
    %2038 = vmatpush1.msra.mxu0 %v376
    %2039 = vmatprep.subr.mxu0 0.0
    %2040 = vmatpush1.msra.mxu0 %v377
    %2041 = vmatprep.subr.mxu0 0.0
    %2042 = vmatpush1.msra.mxu0 %v378
    %2043 = vmatprep.subr.mxu0 0.0
    %2044 = vmatpush1.msra.mxu0 0.0
    %2045 = vmatprep.subr.mxu0 0.0
    %2046 = vmatpush1.msra.mxu0 0.0
    %2047 = vmatprep.subr.mxu0 0.0
    %2048 = vmatpush1.msra.mxu0 0.0
    %2049 = vmatprep.subr.mxu0 0.0
    %2050 = vmatpush1.msra.mxu0 0.0
    %2051 = vmatprep.subr.mxu0 0.0
    %2052 = vmatpush1.msra.mxu0 0.0
    %2053 = vmatprep.subr.mxu0 0.0
    %2054 = vmatpush1.msra.mxu0 0.0
    %2055 = vmatprep.subr.mxu0 0.0
    %2056 = vmatpush1.msra.mxu0 0.0
    %2057 = vmatprep.subr.mxu0 0.0
    %2058 = vmatpush1.msra.mxu0 0.0
    %2059 = vmatprep.subr.mxu0 0.0
    %2060 = vmatpush1.msra.mxu0 0.0
    %2061 = vmatprep.subr.mxu0 0.0
    %2062 = vmatpush1.msra.mxu0 0.0
    %2063 = vmatprep.subr.mxu0 0.0
    %2064 = vmatpush1.msra.mxu0 0.0
    %2065 = vmatprep.subr.mxu0 0.0
    %2066 = vmatpush1.msra.mxu0 0.0
    %2067 = vmatprep.subr.mxu0 0.0
    %2068 = vmatpush1.msra.mxu0 0.0
    %2069 = vmatprep.subr.mxu0 0.0
    %2070 = vmatpush1.msra.mxu0 0.0
    %2071 = vmatprep.subr.mxu0 0.0
    %2072 = vmatpush1.msra.mxu0 0.0
    %2073 = vmatprep.subr.mxu0 0.0
    %2074 = vmatpush1.msra.mxu0 0.0
    %2075 = vmatprep.subr.mxu0 0.0
    %2076 = vmatpush1.msra.mxu0 0.0
    %2077 = vmatprep.subr.mxu0 0.0
    %2078 = vmatpush1.msra.mxu0 0.0
    %2079 = vmatprep.subr.mxu0 0.0
    %2080 = vmatpush1.msra.mxu0 0.0
    %2081 = vmatprep.subr.mxu0 0.0
    %2082 = vmatpush1.msra.mxu0 0.0
    %2083 = vmatprep.subr.mxu0 0.0
    %2084 = vmatpush1.msra.mxu0 0.0
    %2085 = vmatprep.subr.mxu0 0.0
    %2086 = vmatpush1.msra.mxu0 0.0
    %2087 = vmatprep.subr.mxu0 0.0
    %2088 = vmatpush1.msra.mxu0 0.0
    %2089 = vmatprep.subr.mxu0 0.0
    %2090 = vmatpush1.msra.mxu0 0.0
    %2091 = vmatprep.subr.mxu0 0.0
    %2092 = vmatpush1.msra.mxu0 0.0
    %2093 = vmatprep.subr.mxu0 0.0
    %2094 = vmatpush1.msra.mxu0 0.0
    %2095 = vmatprep.subr.mxu0 0.0
    %2096 = vmatpush1.msra.mxu0 0.0
    %2097 = vmatprep.subr.mxu0 0.0
    %2098 = vmatpush1.msra.mxu0 0.0
    %2099 = vmatprep.mubr.f32.mxu0 0.0
    %2100 = vmatmul.mubr.f32.gmra.mrb[0].mxu0 %v2033
    %v2101 = vpop.f32.mrb[0].mxu0
    %v2102 = vadd.f32 0.0, %v2101
    %v2103 = vpop.f32.mrb[0].mxu0
    %2104 = vdwg.mxu0
    %v2106 = vrot.slane %v2102, 6
    %v2108 = vadd.f32 %v363, %v2106
    %v2109 = vxor.u32 %v2028, 2147483648
    %v2110 = vmul.f32 %v2109, 1.442695
    %v2111 = vpow.pop %v2110
    %v2112 = vadd.f32 %v2111, 1.0
    %v2113 = vrcp.pop %v2112
    %v2114 = vmul.f32 1.0, %v2113
    %v2115 = vtanh.pop %v2028
    %v2117 = vrot.slane %v1915, 6
    %v2119 = vmul.f32 %v2114, %v2117
    %2121 = vrot.lane.b32.xlu0 %v2115, 64
    %v2122 = vpop.permute.xlu0 %2121
    %v2124 = vmul.f32 %v2114, %v2122
    %2126 = vrot.lane.b32.xlu0 %v2124, 32
    %v2127 = vpop.permute.xlu0 %2126
    %v2129 = vadd.f32 %v2119, %v2127
    %v2130 = vtanh.pop %v2129
    %2132 = vrot.lane.b32.xlu0 %v2130, 64
    %v2133 = vpop.permute.xlu0 %2132
    %v2135 = vmul.f32 %v2114, %v2133
    %v2136 = vxor.u32 %v2108, 2147483648
    %v2137 = vmul.f32 %v2136, 1.442695
    %v2138 = vpow.pop %v2137
    %v2139 = vadd.f32 %v2138, 1.0
    %v2140 = vrcp.pop %v2139
    %v2141 = vmul.f32 1.0, %v2140
    %v2142 = vtanh.pop %v2108
    %v2144 = vrot.slane %v1936, 2
    %v2146 = vmul.f32 %v2141, %v2144
    %2148 = vrot.lane.b32.xlu0 %v2142, 64
    %v2149 = vpop.permute.xlu0 %2148
    %v2151 = vmul.f32 %v2141, %v2149
    %2153 = vrot.lane.b32.xlu0 %v2151, 32
    %v2154 = vpop.permute.xlu0 %2153
    %v2156 = vadd.f32 %v2146, %v2154
    %v2157 = vtanh.pop %v2156
    %2159 = vrot.lane.b32.xlu0 %v2157, 64
    %v2160 = vpop.permute.xlu0 %2159
    %v2162 = vmul.f32 %v2141, %v2160
    %v2163 = vmul.f32 %v595, %v2135
    %v2164 = vrot.slane %v1905, 6
    %2165 = vrot.lane.b32.xlu0 %v2164, 32
    %v2166 = vpop.permute.xlu0 %2165
    %v2168 = vmul.f32 %v602, %v2166
    %2170 = vrot.lane.b32.xlu0 %v2168, 96
    %v2171 = vpop.permute.xlu0 %2170
    %v2173 = vadd.f32 %v2163, %v2171
    %v2174 = vmul.f32 %v595, %v2129
    %2175 = vrot.lane.b32.xlu0 %v2117, 96
    %v2176 = vpop.permute.xlu0 %2175
    %v2178 = vmul.f32 %v602, %v2176
    %2180 = vrot.lane.b32.xlu0 %v2178, 32
    %v2181 = vpop.permute.xlu0 %2180
    %v2183 = vadd.f32 %v2174, %v2181
    %v2184 = vmul.f32 %v579, %v2162
    %v2185 = vrot.slane %v1926, 2
    %2186 = vrot.lane.b32.xlu0 %v2185, 32
    %v2187 = vpop.permute.xlu0 %2186
    %v2189 = vmul.f32 %v586, %v2187
    %2191 = vrot.lane.b32.xlu0 %v2189, 96
    %v2192 = vpop.permute.xlu0 %2191
    %v2194 = vadd.f32 %v2184, %v2192
    %v2195 = vmul.f32 %v579, %v2156
    %2196 = vrot.lane.b32.xlu0 %v2144, 96
    %v2197 = vpop.permute.xlu0 %2196
    %v2199 = vmul.f32 %v586, %v2197
    %2201 = vrot.lane.b32.xlu0 %v2199, 32
    %v2202 = vpop.permute.xlu0 %2201
    %v2204 = vadd.f32 %v2195, %v2202
    %v2205 = vmul.f32 %v2173, %v595
    %2207 = vrot.lane.b32.xlu0 %v2205, 32
    %v2208 = vpop.permute.xlu0 %2207
    %2210 = vst.msk [vmem:[#allocation2 + $0x8] sm:$0x30] %vm889, %v2208
    %v2211 = vmul.f32 %v2194, %v579
    %2213 = vrot.lane.b32.xlu0 %v2211, 32
    %v2214 = vpop.permute.xlu0 %2213
    %2216 = vst.msk [vmem:[#allocation3] sm:$0xc] %vm882, %v2214
    %v2218 = vrot.slane %v2173, 4
    %2219 = vrot.lane.b32.xlu0 %v2218, 32
    %v2220 = vpop.permute.xlu0 %2219
    %v2221 = vsel %vm379, %v2220, 0
    %2223 = vmatprep.subr.mxu0 0.0
    %2224 = vmatpush1.msra.mxu0 %v371
    %2225 = vmatprep.subr.mxu0 0.0
    %2226 = vmatpush1.msra.mxu0 %v372
    %2227 = vmatprep.subr.mxu0 0.0
    %2228 = vmatpush1.msra.mxu0 %v373
    %2229 = vmatprep.subr.mxu0 0.0
    %2230 = vmatpush1.msra.mxu0 %v374
    %2231 = vmatprep.subr.mxu0 0.0
    %2232 = vmatpush1.msra.mxu0 0.0
    %2233 = vmatprep.subr.mxu0 0.0
    %2234 = vmatpush1.msra.mxu0 0.0
    %2235 = vmatprep.subr.mxu0 0.0
    %2236 = vmatpush1.msra.mxu0 0.0
    %2237 = vmatprep.subr.mxu0 0.0
    %2238 = vmatpush1.msra.mxu0 0.0
    %2239 = vmatprep.subr.mxu0 0.0
    %2240 = vmatpush1.msra.mxu0 0.0
    %2241 = vmatprep.subr.mxu0 0.0
    %2242 = vmatpush1.msra.mxu0 0.0
    %2243 = vmatprep.subr.mxu0 0.0
    %2244 = vmatpush1.msra.mxu0 0.0
    %2245 = vmatprep.subr.mxu0 0.0
    %2246 = vmatpush1.msra.mxu0 0.0
    %2247 = vmatprep.subr.mxu0 0.0
    %2248 = vmatpush1.msra.mxu0 0.0
    %2249 = vmatprep.subr.mxu0 0.0
    %2250 = vmatpush1.msra.mxu0 0.0
    %2251 = vmatprep.subr.mxu0 0.0
    %2252 = vmatpush1.msra.mxu0 0.0
    %2253 = vmatprep.subr.mxu0 0.0
    %2254 = vmatpush1.msra.mxu0 0.0
    %2255 = vmatprep.subr.mxu0 0.0
    %2256 = vmatpush1.msra.mxu0 0.0
    %2257 = vmatprep.subr.mxu0 0.0
    %2258 = vmatpush1.msra.mxu0 0.0
    %2259 = vmatprep.subr.mxu0 0.0
    %2260 = vmatpush1.msra.mxu0 0.0
    %2261 = vmatprep.subr.mxu0 0.0
    %2262 = vmatpush1.msra.mxu0 0.0
    %2263 = vmatprep.subr.mxu0 0.0
    %2264 = vmatpush1.msra.mxu0 0.0
    %2265 = vmatprep.subr.mxu0 0.0
    %2266 = vmatpush1.msra.mxu0 0.0
    %2267 = vmatprep.subr.mxu0 0.0
    %2268 = vmatpush1.msra.mxu0 0.0
    %2269 = vmatprep.subr.mxu0 0.0
    %2270 = vmatpush1.msra.mxu0 0.0
    %2271 = vmatprep.subr.mxu0 0.0
    %2272 = vmatpush1.msra.mxu0 0.0
    %2273 = vmatprep.subr.mxu0 0.0
    %2274 = vmatpush1.msra.mxu0 0.0
    %2275 = vmatprep.subr.mxu0 0.0
    %2276 = vmatpush1.msra.mxu0 0.0
    %2277 = vmatprep.subr.mxu0 0.0
    %2278 = vmatpush1.msra.mxu0 0.0
    %2279 = vmatprep.subr.mxu0 0.0
    %2280 = vmatpush1.msra.mxu0 0.0
    %2281 = vmatprep.subr.mxu0 0.0
    %2282 = vmatpush1.msra.mxu0 0.0
    %2283 = vmatprep.subr.mxu0 0.0
    %2284 = vmatpush1.msra.mxu0 0.0
    %2285 = vmatprep.subr.mxu0 0.0
    %2286 = vmatpush1.msra.mxu0 0.0
    %2287 = vmatprep.mubr.f32.mxu0 0.0
    %2288 = vmatmul.mubr.f32.gmra.mrb[0].mxu0 %v2221
    %v2289 = vpop.f32.mrb[0].mxu0
    %v2290 = vadd.f32 0.0, %v2289
    %v2291 = vpop.f32.mrb[0].mxu0
    %2292 = vdwg.mxu0
    %v2294 = vrot.slane %v2290, 2
    %v2296 = vadd.f32 %v367, %v2294
    %v2298 = vrot.slane %v2194, 2
    %2299 = vrot.lane.b32.xlu0 %v2298, 32
    %v2300 = vpop.permute.xlu0 %2299
    %v2301 = vsel %vm379, %v2300, 0
    %2303 = vmatprep.subr.mxu0 0.0
    %2304 = vmatpush1.msra.mxu0 %v375
    %2305 = vmatprep.subr.mxu0 0.0
    %2306 = vmatpush1.msra.mxu0 %v376
    %2307 = vmatprep.subr.mxu0 0.0
    %2308 = vmatpush1.msra.mxu0 %v377
    %2309 = vmatprep.subr.mxu0 0.0
    %2310 = vmatpush1.msra.mxu0 %v378
    %2311 = vmatprep.subr.mxu0 0.0
    %2312 = vmatpush1.msra.mxu0 0.0
    %2313 = vmatprep.subr.mxu0 0.0
    %2314 = vmatpush1.msra.mxu0 0.0
    %2315 = vmatprep.subr.mxu0 0.0
    %2316 = vmatpush1.msra.mxu0 0.0
    %2317 = vmatprep.subr.mxu0 0.0
    %2318 = vmatpush1.msra.mxu0 0.0
    %2319 = vmatprep.subr.mxu0 0.0
    %2320 = vmatpush1.msra.mxu0 0.0
    %2321 = vmatprep.subr.mxu0 0.0
    %2322 = vmatpush1.msra.mxu0 0.0
    %2323 = vmatprep.subr.mxu0 0.0
    %2324 = vmatpush1.msra.mxu0 0.0
    %2325 = vmatprep.subr.mxu0 0.0
    %2326 = vmatpush1.msra.mxu0 0.0
    %2327 = vmatprep.subr.mxu0 0.0
    %2328 = vmatpush1.msra.mxu0 0.0
    %2329 = vmatprep.subr.mxu0 0.0
    %2330 = vmatpush1.msra.mxu0 0.0
    %2331 = vmatprep.subr.mxu0 0.0
    %2332 = vmatpush1.msra.mxu0 0.0
    %2333 = vmatprep.subr.mxu0 0.0
    %2334 = vmatpush1.msra.mxu0 0.0
    %2335 = vmatprep.subr.mxu0 0.0
    %2336 = vmatpush1.msra.mxu0 0.0
    %2337 = vmatprep.subr.mxu0 0.0
    %2338 = vmatpush1.msra.mxu0 0.0
    %2339 = vmatprep.subr.mxu0 0.0
    %2340 = vmatpush1.msra.mxu0 0.0
    %2341 = vmatprep.subr.mxu0 0.0
    %2342 = vmatpush1.msra.mxu0 0.0
    %2343 = vmatprep.subr.mxu0 0.0
    %2344 = vmatpush1.msra.mxu0 0.0
    %2345 = vmatprep.subr.mxu0 0.0
    %2346 = vmatpush1.msra.mxu0 0.0
    %2347 = vmatprep.subr.mxu0 0.0
    %2348 = vmatpush1.msra.mxu0 0.0
    %2349 = vmatprep.subr.mxu0 0.0
    %2350 = vmatpush1.msra.mxu0 0.0
    %2351 = vmatprep.subr.mxu0 0.0
    %2352 = vmatpush1.msra.mxu0 0.0
    %2353 = vmatprep.subr.mxu0 0.0
    %2354 = vmatpush1.msra.mxu0 0.0
    %2355 = vmatprep.subr.mxu0 0.0
    %2356 = vmatpush1.msra.mxu0 0.0
    %2357 = vmatprep.subr.mxu0 0.0
    %2358 = vmatpush1.msra.mxu0 0.0
    %2359 = vmatprep.subr.mxu0 0.0
    %2360 = vmatpush1.msra.mxu0 0.0
    %2361 = vmatprep.subr.mxu0 0.0
    %2362 = vmatpush1.msra.mxu0 0.0
    %2363 = vmatprep.subr.mxu0 0.0
    %2364 = vmatpush1.msra.mxu0 0.0
    %2365 = vmatprep.subr.mxu0 0.0
    %2366 = vmatpush1.msra.mxu0 0.0
    %2367 = vmatprep.mubr.f32.mxu0 0.0
    %2368 = vmatmul.mubr.f32.gmra.mrb[0].mxu0 %v2301
    %v2369 = vpop.f32.mrb[0].mxu0
    %v2370 = vadd.f32 0.0, %v2369
    %v2371 = vpop.f32.mrb[0].mxu0
    %2372 = vdwg.mxu0
    %v2373 = vadd.f32 %v363, %v2370
    %v2374 = vxor.u32 %v2296, 2147483648
    %v2375 = vmul.f32 %v2374, 1.442695
    %v2376 = vpow.pop %v2375
    %v2377 = vadd.f32 %v2376, 1.0
    %v2378 = vrcp.pop %v2377
    %v2379 = vmul.f32 1.0, %v2378
    %v2380 = vtanh.pop %v2296
    %v2382 = vrot.slane %v2183, 6
    %v2384 = vmul.f32 %v2379, %v2382
    %2386 = vrot.lane.b32.xlu0 %v2380, 64
    %v2387 = vpop.permute.xlu0 %2386
    %v2389 = vmul.f32 %v2379, %v2387
    %2391 = vrot.lane.b32.xlu0 %v2389, 32
    %v2392 = vpop.permute.xlu0 %2391
    %v2394 = vadd.f32 %v2384, %v2392
    %v2395 = vtanh.pop %v2394
    %2397 = vrot.lane.b32.xlu0 %v2395, 64
    %v2398 = vpop.permute.xlu0 %2397
    %v2400 = vmul.f32 %v2379, %v2398
    %v2401 = vxor.u32 %v2373, 2147483648
    %v2402 = vmul.f32 %v2401, 1.442695
    %v2403 = vpow.pop %v2402
    %v2404 = vadd.f32 %v2403, 1.0
    %v2405 = vrcp.pop %v2404
    %v2406 = vmul.f32 1.0, %v2405
    %v2407 = vtanh.pop %v2373
    %v2409 = vrot.slane %v2204, 2
    %v2411 = vmul.f32 %v2406, %v2409
    %2413 = vrot.lane.b32.xlu0 %v2407, 64
    %v2414 = vpop.permute.xlu0 %2413
    %v2416 = vmul.f32 %v2406, %v2414
    %2418 = vrot.lane.b32.xlu0 %v2416, 32
    %v2419 = vpop.permute.xlu0 %2418
    %v2421 = vadd.f32 %v2411, %v2419
    %v2422 = vtanh.pop %v2421
    %2424 = vrot.lane.b32.xlu0 %v2422, 64
    %v2425 = vpop.permute.xlu0 %2424
    %v2427 = vmul.f32 %v2406, %v2425
    %v2428 = vmul.f32 %v595, %v2400
    %v2429 = vrot.slane %v2173, 6
    %2430 = vrot.lane.b32.xlu0 %v2429, 32
    %v2431 = vpop.permute.xlu0 %2430
    %v2433 = vmul.f32 %v602, %v2431
    %2435 = vrot.lane.b32.xlu0 %v2433, 96
    %v2436 = vpop.permute.xlu0 %2435
    %v2438 = vadd.f32 %v2428, %v2436
    %v2439 = vmul.f32 %v579, %v2427
    %v2441 = vmul.f32 %v586, %v2300
    %2443 = vrot.lane.b32.xlu0 %v2441, 96
    %v2444 = vpop.permute.xlu0 %2443
    %v2446 = vadd.f32 %v2439, %v2444
    %v2447 = vmul.f32 %v2438, %v595
    %2449 = vrot.lane.b32.xlu0 %v2447, 32
    %v2450 = vpop.permute.xlu0 %2449
    %2452 = vst.msk [vmem:[#allocation2 + $0x8] sm:$0xc0] %vm620, %v2450
    %v2453 = vmul.f32 %v2446, %v579
    %2455 = vrot.lane.b32.xlu0 %v2453, 32
    %v2456 = vpop.permute.xlu0 %2455
    %2458 = vst.msk [vmem:[#allocation3] sm:$0x3] %vm613, %v2456
    %v2459 = vld [vmem:[#allocation2] sm:$0xff]
    %v2460 = vld [vmem:[#allocation2 + $0x8] sm:$0xff]
    %v2461 = vld [vmem:[#allocation12] sm:$0xff]
    %v2462 = vld [vmem:[#allocation12 + $0x8] sm:$0xff]
    %v2463 = vld [vmem:[#allocation12 + $0x10] sm:$0xff]
    %v2464 = vld [vmem:[#allocation12 + $0x18] sm:$0xff]
    %v2465 = vld [vmem:[#allocation3] sm:$0xff]
    %v2466 = vld [vmem:[#allocation3 + $0x8] sm:$0xff]
    %v2467 = vld [vmem:[#allocation12 + $0x20] sm:$0xff]
    %v2468 = vld [vmem:[#allocation12 + $0x28] sm:$0xff]
    %v2469 = vld [vmem:[#allocation12 + $0x30] sm:$0xff]
    %v2470 = vld [vmem:[#allocation12 + $0x38] sm:$0xff]
    %v2472 = vsel %vm379, %v2465, 0
    %v2475 = vsel %vm379, %v2466, 0
    %2477 = vmatprep.subr.mxu0 0.0
    %2478 = vmatpush1.msra.mxu0 %v2467
    %2479 = vmatprep.subr.mxu0 0.0
    %2480 = vmatpush1.msra.mxu0 %v2468
    %2481 = vmatprep.subr.mxu0 0.0
    %2482 = vmatpush1.msra.mxu0 %v2469
    %2483 = vmatprep.subr.mxu0 0.0
    %2484 = vmatpush1.msra.mxu0 %v2470
    %2485 = vmatprep.subr.mxu0 0.0
    %2486 = vmatpush1.msra.mxu0 0.0
    %2487 = vmatprep.subr.mxu0 0.0
    %2488 = vmatpush1.msra.mxu0 0.0
    %2489 = vmatprep.subr.mxu0 0.0
    %2490 = vmatpush1.msra.mxu0 0.0
    %2491 = vmatprep.subr.mxu0 0.0
    %2492 = vmatpush1.msra.mxu0 0.0
    %2493 = vmatprep.subr.mxu0 0.0
    %2494 = vmatpush1.msra.mxu0 0.0
    %2495 = vmatprep.subr.mxu0 0.0
    %2496 = vmatpush1.msra.mxu0 0.0
    %2497 = vmatprep.subr.mxu0 0.0
    %2498 = vmatpush1.msra.mxu0 0.0
    %2499 = vmatprep.subr.mxu0 0.0
    %2500 = vmatpush1.msra.mxu0 0.0
    %2501 = vmatprep.subr.mxu0 0.0
    %2502 = vmatpush1.msra.mxu0 0.0
    %2503 = vmatprep.subr.mxu0 0.0
    %2504 = vmatpush1.msra.mxu0 0.0
    %2505 = vmatprep.subr.mxu0 0.0
    %2506 = vmatpush1.msra.mxu0 0.0
    %2507 = vmatprep.subr.mxu0 0.0
    %2508 = vmatpush1.msra.mxu0 0.0
    %2509 = vmatprep.subr.mxu0 0.0
    %2510 = vmatpush1.msra.mxu0 0.0
    %2511 = vmatprep.subr.mxu0 0.0
    %2512 = vmatpush1.msra.mxu0 0.0
    %2513 = vmatprep.subr.mxu0 0.0
    %2514 = vmatpush1.msra.mxu0 0.0
    %2515 = vmatprep.subr.mxu0 0.0
    %2516 = vmatpush1.msra.mxu0 0.0
    %2517 = vmatprep.subr.mxu0 0.0
    %2518 = vmatpush1.msra.mxu0 0.0
    %2519 = vmatprep.subr.mxu0 0.0
    %2520 = vmatpush1.msra.mxu0 0.0
    %2521 = vmatprep.subr.mxu0 0.0
    %2522 = vmatpush1.msra.mxu0 0.0
    %2523 = vmatprep.subr.mxu0 0.0
    %2524 = vmatpush1.msra.mxu0 0.0
    %2525 = vmatprep.subr.mxu0 0.0
    %2526 = vmatpush1.msra.mxu0 0.0
    %2527 = vmatprep.subr.mxu0 0.0
    %2528 = vmatpush1.msra.mxu0 0.0
    %2529 = vmatprep.subr.mxu0 0.0
    %2530 = vmatpush1.msra.mxu0 0.0
    %2531 = vmatprep.subr.mxu0 0.0
    %2532 = vmatpush1.msra.mxu0 0.0
    %2533 = vmatprep.subr.mxu0 0.0
    %2534 = vmatpush1.msra.mxu0 0.0
    %2535 = vmatprep.subr.mxu0 0.0
    %2536 = vmatpush1.msra.mxu0 0.0
    %2537 = vmatprep.subr.mxu0 0.0
    %2538 = vmatpush1.msra.mxu0 0.0
    %2539 = vmatprep.subr.mxu0 0.0
    %2540 = vmatpush1.msra.mxu0 0.0
    %2541 = vmatprep.mubr.f32.mxu0 0.0
    %2542 = vmatmul.mubr.f32.gmra.mrb[0].mxu0 %v2472
    %v2543 = vpop.f32.mrb[0].mxu0
    %v2544 = vadd.f32 0.0, %v2543
    %v2545 = vpop.f32.mrb[0].mxu0
    %2546 = vmatprep.mubr.f32.mxu0 0.0
    %2547 = vmatmul.mubr.f32.gmra.mrb[0].mxu0 %v2475
    %v2548 = vpop.f32.mrb[0].mxu0
    %v2549 = vadd.f32 0.0, %v2548
    %v2550 = vpop.f32.mrb[0].mxu0
    %2551 = vdwg.mxu0
    %v2553 = vsel %vm379, %v2459, 0
    %v2556 = vsel %vm379, %v2460, 0
    %2558 = vmatprep.subr.mxu0 0.0
    %2559 = vmatpush1.msra.mxu0 %v2461
    %2560 = vmatprep.subr.mxu0 0.0
    %2561 = vmatpush1.msra.mxu0 %v2462
    %2562 = vmatprep.subr.mxu0 0.0
    %2563 = vmatpush1.msra.mxu0 %v2463
    %2564 = vmatprep.subr.mxu0 0.0
    %2565 = vmatpush1.msra.mxu0 %v2464
    %2566 = vmatprep.subr.mxu0 0.0
    %2567 = vmatpush1.msra.mxu0 0.0
    %2568 = vmatprep.subr.mxu0 0.0
    %2569 = vmatpush1.msra.mxu0 0.0
    %2570 = vmatprep.subr.mxu0 0.0
    %2571 = vmatpush1.msra.mxu0 0.0
    %2572 = vmatprep.subr.mxu0 0.0
    %2573 = vmatpush1.msra.mxu0 0.0
    %2574 = vmatprep.subr.mxu0 0.0
    %2575 = vmatpush1.msra.mxu0 0.0
    %2576 = vmatprep.subr.mxu0 0.0
    %2577 = vmatpush1.msra.mxu0 0.0
    %2578 = vmatprep.subr.mxu0 0.0
    %2579 = vmatpush1.msra.mxu0 0.0
    %2580 = vmatprep.subr.mxu0 0.0
    %2581 = vmatpush1.msra.mxu0 0.0
    %2582 = vmatprep.subr.mxu0 0.0
    %2583 = vmatpush1.msra.mxu0 0.0
    %2584 = vmatprep.subr.mxu0 0.0
    %2585 = vmatpush1.msra.mxu0 0.0
    %2586 = vmatprep.subr.mxu0 0.0
    %2587 = vmatpush1.msra.mxu0 0.0
    %2588 = vmatprep.subr.mxu0 0.0
    %2589 = vmatpush1.msra.mxu0 0.0
    %2590 = vmatprep.subr.mxu0 0.0
    %2591 = vmatpush1.msra.mxu0 0.0
    %2592 = vmatprep.subr.mxu0 0.0
    %2593 = vmatpush1.msra.mxu0 0.0
    %2594 = vmatprep.subr.mxu0 0.0
    %2595 = vmatpush1.msra.mxu0 0.0
    %2596 = vmatprep.subr.mxu0 0.0
    %2597 = vmatpush1.msra.mxu0 0.0
    %2598 = vmatprep.subr.mxu0 0.0
    %2599 = vmatpush1.msra.mxu0 0.0
    %2600 = vmatprep.subr.mxu0 0.0
    %2601 = vmatpush1.msra.mxu0 0.0
    %2602 = vmatprep.subr.mxu0 0.0
    %2603 = vmatpush1.msra.mxu0 0.0
    %2604 = vmatprep.subr.mxu0 0.0
    %2605 = vmatpush1.msra.mxu0 0.0
    %2606 = vmatprep.subr.mxu0 0.0
    %2607 = vmatpush1.msra.mxu0 0.0
    %2608 = vmatprep.subr.mxu0 0.0
    %2609 = vmatpush1.msra.mxu0 0.0
    %2610 = vmatprep.subr.mxu0 0.0
    %2611 = vmatpush1.msra.mxu0 0.0
    %2612 = vmatprep.subr.mxu0 0.0
    %2613 = vmatpush1.msra.mxu0 0.0
    %2614 = vmatprep.subr.mxu0 0.0
    %2615 = vmatpush1.msra.mxu0 0.0
    %2616 = vmatprep.subr.mxu0 0.0
    %2617 = vmatpush1.msra.mxu0 0.0
    %2618 = vmatprep.subr.mxu0 0.0
    %2619 = vmatpush1.msra.mxu0 0.0
    %2620 = vmatprep.subr.mxu0 0.0
    %2621 = vmatpush1.msra.mxu0 0.0
    %2622 = vmatprep.mubr.f32.mxu0 0.0
    %2623 = vmatmul.mubr.f32.gmra.mrb[0].mxu0 %v2553
    %v2624 = vpop.f32.mrb[0].mxu0
    %v2625 = vadd.f32 %v2544, %v2624
    %v2626 = vpop.f32.mrb[0].mxu0
    %2627 = vmatprep.mubr.f32.mxu0 0.0
    %2628 = vmatmul.mubr.f32.gmra.mrb[0].mxu0 %v2556
    %v2629 = vpop.f32.mrb[0].mxu0
    %v2630 = vadd.f32 %v2549, %v2629
    %v2631 = vpop.f32.mrb[0].mxu0
    %2632 = vdwg.mxu0
    %v2633 = vld [vmem:[%s7] sm:$0x1]
    %v2635 = vlaneseq
    %v2636 = vshrl.u32 %v2635, 7
    %v2637 = vsub.s32 0, %v2636
    %v2638 = vrot.slane %v2633, %v2637
    %v2640 = vadd.f32 %v2625, %v2638
    %v2641 = vadd.f32 %v2630, %v2638
    %vm2642 = vcmp.gt.f32.partialorder %v2640, 20.0
    %vm2643 = vcmp.gt.f32.partialorder %v2641, 20.0
    %v2644 = vmin.f32 %v2640, 20.0
    %v2645 = vmin.f32 %v2641, 20.0
    %v2646 = vmul.f32 %v2644, 1.442695
    %v2647 = vpow.pop %v2646
    %v2648 = vmul.f32 %v2645, 1.442695
    %v2649 = vpow.pop %v2648
    %v2650 = vadd.f32 %v2647, 1.0
    %v2651 = vadd.f32 %v2649, 1.0
    %v2652 = vlog2.pop %v2650
    %v2653 = vmul.f32 %v2652, 0.6931472
    %v2654 = vlog2.pop %v2651
    %v2655 = vmul.f32 %v2654, 0.6931472
    %v2656 = vsel %vm2642, %v2640, %v2653
    %v2657 = vsel %vm2643, %v2641, %v2655
    %v2658 = vmax.f32 %v2656, 1e-06
    %v2659 = vmax.f32 %v2657, 1e-06
    %v2660 = vmin.f32 %v2658, 100.0
    %v2661 = vmin.f32 %v2659, 100.0
    %v2662 = vmul.f32 %v2660, -2.4849067
    %v2663 = vmul.f32 %v2661, -2.4849067
    %v2664 = vmul.f32 %v2662, 1.442695
    %v2665 = vpow.pop %v2664
    %v2666 = vmul.f32 %v2663, 1.442695
    %v2667 = vpow.pop %v2666
    %v2668 = vsub.f32 1.0, %v2665
    %v2669 = vsub.f32 1.0, %v2667
    %v2670 = vmax.f32 %v2668, 1e-30
    %v2671 = vmax.f32 %v2669, 1e-30
    %v2672 = vlog2.pop %v2670
    %v2673 = vmul.f32 %v2672, 0.6931472
    %v2674 = vlog2.pop %v2671
    %v2675 = vmul.f32 %v2674, 0.6931472
    %2678 = vrot.lane.b32.xlu0 %v2673, 1
    %v2679 = vpop.permute.xlu0 %2678
    %2680 = vrot.lane.b32.xlu0 %v2675, 1
    %v2681 = vpop.permute.xlu0 %2680
    %v2684 = vmul.f32 %v2660, %v2679
    %v2685 = vmul.f32 %v2661, %v2681
    %v2686 = vmul.f32 %v2684, 1.442695
    %v2687 = vpow.pop %v2686
    %v2688 = vmul.f32 %v2685, 1.442695
    %v2689 = vpow.pop %v2688
    %v2690 = vsub.f32 1.0, %v2687
    %v2691 = vsub.f32 1.0, %v2689
    %v2692 = vmul.f32 %v2660, -0.087011375
    %v2693 = vmul.f32 %v2661, -0.087011375
    %v2694 = vmul.f32 %v2692, 1.442695
    %v2695 = vpow.pop %v2694
    %v2696 = vmul.f32 %v2693, 1.442695
    %v2697 = vpow.pop %v2696
    %v2698 = vsub.f32 1.0, %v2695
    %v2699 = vsub.f32 1.0, %v2697
    %v2700 = vmax.f32 %v2698, 1e-30
    %v2701 = vmax.f32 %v2699, 1e-30
    %v2702 = vlog2.pop %v2700
    %v2703 = vmul.f32 %v2702, 0.6931472
    %v2704 = vlog2.pop %v2701
    %v2705 = vmul.f32 %v2704, 0.6931472
    %2708 = vrot.lane.b32.xlu0 %v2703, 1
    %v2709 = vpop.permute.xlu0 %2708
    %2710 = vrot.lane.b32.xlu0 %v2705, 1
    %v2711 = vpop.permute.xlu0 %2710
    %v2714 = vmul.f32 %v2660, %v2709
    %v2715 = vmul.f32 %v2661, %v2711
    %v2716 = vmul.f32 %v2714, 1.442695
    %v2717 = vpow.pop %v2716
    %v2718 = vmul.f32 %v2715, 1.442695
    %v2719 = vpow.pop %v2718
    %v2720 = vsub.f32 1.0, %v2717
    %v2721 = vsub.f32 1.0, %v2719
    %v2722 = vsub.f32 1.0, %v2720
    %v2723 = vsub.f32 1.0, %v2721
    %v2724 = vsub.f32 1.0, %v2690
    %v2725 = vsub.f32 1.0, %v2691
    %v2726 = vsub.f32 %v2724, %v2722
    %v2727 = vsub.f32 %v2725, %v2723
    %v2728 = vrcp.pop %v2660
    %v2729 = vmul.f32 1.0, %v2728
    %v2730 = vrcp.pop %v2661
    %v2731 = vmul.f32 1.0, %v2730
    %v2732 = vadd.f32 %v2729, 1.0
    %v2733 = vadd.f32 %v2731, 1.0
    %v2734 = vlog2.pop %v2660
    %v2735 = vmul.f32 %v2734, 0.6931472
    %v2736 = vlog2.pop %v2661
    %v2737 = vmul.f32 %v2736, 0.6931472
    %v2738 = vadd.f32 %v2735, 0.0
    %v2739 = vadd.f32 %v2737, 0.0
    %v2740 = vadd.f32 %v2660, 1.0
    %v2741 = vadd.f32 %v2661, 1.0
    %v2742 = vlog2.pop %v2740
    %v2743 = vmul.f32 %v2742, 0.6931472
    %v2744 = vlog2.pop %v2741
    %v2745 = vmul.f32 %v2744, 0.6931472
    %v2746 = vadd.f32 %v2738, %v2743
    %v2747 = vadd.f32 %v2739, %v2745
    %v2748 = vadd.f32 %v2740, 1.0
    %v2749 = vadd.f32 %v2741, 1.0
    %v2750 = vlog2.pop %v2748
    %v2751 = vmul.f32 %v2750, 0.6931472
    %v2752 = vlog2.pop %v2749
    %v2753 = vmul.f32 %v2752, 0.6931472
    %v2754 = vadd.f32 %v2746, %v2751
    %v2755 = vadd.f32 %v2747, %v2753
    %v2756 = vadd.f32 %v2748, 1.0
    %v2757 = vadd.f32 %v2749, 1.0
    %v2758 = vlog2.pop %v2756
    %v2759 = vmul.f32 %v2758, 0.6931472
    %v2760 = vlog2.pop %v2757
    %v2761 = vmul.f32 %v2760, 0.6931472
    %v2762 = vadd.f32 %v2754, %v2759
    %v2763 = vadd.f32 %v2755, %v2761
    %v2764 = vadd.f32 %v2756, 1.0
    %v2765 = vadd.f32 %v2757, 1.0
    %v2766 = vrcp.pop %v2764
    %v2767 = vrcp.pop %v2765
    %v2768 = vmul.f32 %v2766, %v2766
    %v2769 = vmul.f32 %v2767, %v2767
    %v2770 = vmul.f32 %v2768, 0.0007936508
    %v2771 = vmul.f32 %v2769, 0.0007936508
    %v2772 = vsub.f32 0.0027777778, %v2770
    %v2773 = vsub.f32 0.0027777778, %v2771
    %v2774 = vmul.f32 %v2768, %v2772
    %v2775 = vmul.f32 %v2769, %v2773
    %v2776 = vsub.f32 0.083333336, %v2774
    %v2777 = vsub.f32 0.083333336, %v2775
    %v2778 = vmul.f32 %v2766, %v2776
    %v2779 = vmul.f32 %v2767, %v2777
    %v2780 = vsub.f32 %v2764, 0.5
    %v2781 = vsub.f32 %v2765, 0.5
    %v2782 = vlog2.pop %v2764
    %v2783 = vmul.f32 %v2782, 0.6931472
    %v2784 = vlog2.pop %v2765
    %v2785 = vmul.f32 %v2784, 0.6931472
    %v2786 = vmul.f32 %v2780, %v2783
    %v2787 = vmul.f32 %v2781, %v2785
    %v2788 = vsub.f32 %v2786, %v2764
    %v2789 = vsub.f32 %v2787, %v2765
    %v2790 = vadd.f32 %v2788, 0.9189385
    %v2791 = vadd.f32 %v2789, 0.9189385
    %v2792 = vadd.f32 %v2790, %v2778
    %v2793 = vadd.f32 %v2791, %v2779
    %v2794 = vsub.f32 %v2792, %v2762
    %v2795 = vsub.f32 %v2793, %v2763
    %vm2796 = vcmp.gt.f32.partialorder %v2732, 10000.0
    %vm2797 = vcmp.gt.f32.partialorder %v2733, 10000.0
    %v2798 = vsub.f32 0.0, %v2660
    %v2799 = vsub.f32 0.0, %v2661
    %v2800 = vlog2.pop %v2732
    %v2801 = vmul.f32 %v2800, 0.6931472
    %v2802 = vlog2.pop %v2733
    %v2803 = vmul.f32 %v2802, 0.6931472
    %2806 = vrot.lane.b32.xlu0 %v2801, 1
    %v2807 = vpop.permute.xlu0 %2806
    %2808 = vrot.lane.b32.xlu0 %v2803, 1
    %v2809 = vpop.permute.xlu0 %2808
    %v2812 = vmul.f32 %v2798, %v2807
    %v2813 = vmul.f32 %v2799, %v2809
    %v2814 = vsub.f32 %v2660, 1.0
    %v2815 = vsub.f32 %v2661, 1.0
    %v2816 = vmul.f32 %v2660, %v2814
    %v2817 = vmul.f32 %v2661, %v2815
    %v2818 = vmul.f32 %v2816, 0.5
    %v2819 = vmul.f32 %v2817, 0.5
    %2822 = vrot.lane.b32.xlu0 %v2732, 1
    %v2823 = vpop.permute.xlu0 %2822
    %2824 = vrot.lane.b32.xlu0 %v2733, 1
    %v2825 = vpop.permute.xlu0 %2824
    %v2828 = vrcp.pop %v2823
    %v2829 = vmul.f32 %v2818, %v2828
    %v2830 = vrcp.pop %v2825
    %v2831 = vmul.f32 %v2819, %v2830
    %v2832 = vsub.f32 %v2812, %v2829
    %v2833 = vsub.f32 %v2813, %v2831
    %v2834 = vadd.f32 %v2801, 0.0
    %v2835 = vadd.f32 %v2803, 0.0
    %v2836 = vadd.f32 %v2732, 1.0
    %v2837 = vadd.f32 %v2733, 1.0
    %v2838 = vlog2.pop %v2836
    %v2839 = vmul.f32 %v2838, 0.6931472
    %v2840 = vlog2.pop %v2837
    %v2841 = vmul.f32 %v2840, 0.6931472
    %v2842 = vadd.f32 %v2834, %v2839
    %v2843 = vadd.f32 %v2835, %v2841
    %v2844 = vadd.f32 %v2836, 1.0
    %v2845 = vadd.f32 %v2837, 1.0
    %v2846 = vlog2.pop %v2844
    %v2847 = vmul.f32 %v2846, 0.6931472
    %v2848 = vlog2.pop %v2845
    %v2849 = vmul.f32 %v2848, 0.6931472
    %v2850 = vadd.f32 %v2842, %v2847
    %v2851 = vadd.f32 %v2843, %v2849
    %v2852 = vadd.f32 %v2844, 1.0
    %v2853 = vadd.f32 %v2845, 1.0
    %v2854 = vlog2.pop %v2852
    %v2855 = vmul.f32 %v2854, 0.6931472
    %v2856 = vlog2.pop %v2853
    %v2857 = vmul.f32 %v2856, 0.6931472
    %v2858 = vadd.f32 %v2850, %v2855
    %v2859 = vadd.f32 %v2851, %v2857
    %v2860 = vadd.f32 %v2852, 1.0
    %v2861 = vadd.f32 %v2853, 1.0
    %v2862 = vrcp.pop %v2860
    %v2863 = vrcp.pop %v2861
    %v2864 = vmul.f32 %v2862, %v2862
    %v2865 = vmul.f32 %v2863, %v2863
    %v2866 = vmul.f32 %v2864, 0.0007936508
    %v2867 = vmul.f32 %v2865, 0.0007936508
    %v2868 = vsub.f32 0.0027777778, %v2866
    %v2869 = vsub.f32 0.0027777778, %v2867
    %v2870 = vmul.f32 %v2864, %v2868
    %v2871 = vmul.f32 %v2865, %v2869
    %v2872 = vsub.f32 0.083333336, %v2870
    %v2873 = vsub.f32 0.083333336, %v2871
    %v2874 = vmul.f32 %v2862, %v2872
    %v2875 = vmul.f32 %v2863, %v2873
    %v2876 = vsub.f32 %v2860, 0.5
    %v2877 = vsub.f32 %v2861, 0.5
    %v2878 = vlog2.pop %v2860
    %v2879 = vmul.f32 %v2878, 0.6931472
    %v2880 = vlog2.pop %v2861
    %v2881 = vmul.f32 %v2880, 0.6931472
    %v2882 = vmul.f32 %v2876, %v2879
    %v2883 = vmul.f32 %v2877, %v2881
    %v2884 = vsub.f32 %v2882, %v2860
    %v2885 = vsub.f32 %v2883, %v2861
    %v2886 = vadd.f32 %v2884, 0.9189385
    %v2887 = vadd.f32 %v2885, 0.9189385
    %v2888 = vadd.f32 %v2886, %v2874
    %v2889 = vadd.f32 %v2887, %v2875
    %v2890 = vsub.f32 %v2888, %v2858
    %v2891 = vsub.f32 %v2889, %v2859
    %2894 = vrot.lane.b32.xlu0 %v2660, 127
    %v2895 = vpop.permute.xlu0 %2894
    %2896 = vrot.lane.b32.xlu0 %v2661, 127
    %v2897 = vpop.permute.xlu0 %2896
    %v2900 = vadd.f32 %v2732, %v2895
    %v2901 = vadd.f32 %v2733, %v2897
    %v2902 = vlog2.pop %v2900
    %v2903 = vmul.f32 %v2902, 0.6931472
    %v2904 = vlog2.pop %v2901
    %v2905 = vmul.f32 %v2904, 0.6931472
    %v2906 = vadd.f32 %v2903, 0.0
    %v2907 = vadd.f32 %v2905, 0.0
    %v2908 = vadd.f32 %v2900, 1.0
    %v2909 = vadd.f32 %v2901, 1.0
    %v2910 = vlog2.pop %v2908
    %v2911 = vmul.f32 %v2910, 0.6931472
    %v2912 = vlog2.pop %v2909
    %v2913 = vmul.f32 %v2912, 0.6931472
    %v2914 = vadd.f32 %v2906, %v2911
    %v2915 = vadd.f32 %v2907, %v2913
    %v2916 = vadd.f32 %v2908, 1.0
    %v2917 = vadd.f32 %v2909, 1.0
    %v2918 = vlog2.pop %v2916
    %v2919 = vmul.f32 %v2918, 0.6931472
    %v2920 = vlog2.pop %v2917
    %v2921 = vmul.f32 %v2920, 0.6931472
    %v2922 = vadd.f32 %v2914, %v2919
    %v2923 = vadd.f32 %v2915, %v2921
    %v2924 = vadd.f32 %v2916, 1.0
    %v2925 = vadd.f32 %v2917, 1.0
    %v2926 = vlog2.pop %v2924
    %v2927 = vmul.f32 %v2926, 0.6931472
    %v2928 = vlog2.pop %v2925
    %v2929 = vmul.f32 %v2928, 0.6931472
    %v2930 = vadd.f32 %v2922, %v2927
    %v2931 = vadd.f32 %v2923, %v2929
    %v2932 = vadd.f32 %v2924, 1.0
    %v2933 = vadd.f32 %v2925, 1.0
    %v2934 = vrcp.pop %v2932
    %v2935 = vrcp.pop %v2933
    %v2936 = vmul.f32 %v2934, %v2934
    %v2937 = vmul.f32 %v2935, %v2935
    %v2938 = vmul.f32 %v2936, 0.0007936508
    %v2939 = vmul.f32 %v2937, 0.0007936508
    %v2940 = vsub.f32 0.0027777778, %v2938
    %v2941 = vsub.f32 0.0027777778, %v2939
    %v2942 = vmul.f32 %v2936, %v2940
    %v2943 = vmul.f32 %v2937, %v2941
    %v2944 = vsub.f32 0.083333336, %v2942
    %v2945 = vsub.f32 0.083333336, %v2943
    %v2946 = vmul.f32 %v2934, %v2944
    %v2947 = vmul.f32 %v2935, %v2945
    %v2948 = vsub.f32 %v2932, 0.5
    %v2949 = vsub.f32 %v2933, 0.5
    %v2950 = vlog2.pop %v2932
    %v2951 = vmul.f32 %v2950, 0.6931472
    %v2952 = vlog2.pop %v2933
    %v2953 = vmul.f32 %v2952, 0.6931472
    %v2954 = vmul.f32 %v2948, %v2951
    %v2955 = vmul.f32 %v2949, %v2953
    %v2956 = vsub.f32 %v2954, %v2932
    %v2957 = vsub.f32 %v2955, %v2933
    %v2958 = vadd.f32 %v2956, 0.9189385
    %v2959 = vadd.f32 %v2957, 0.9189385
    %v2960 = vadd.f32 %v2958, %v2946
    %v2961 = vadd.f32 %v2959, %v2947
    %v2962 = vsub.f32 %v2960, %v2930
    %v2963 = vsub.f32 %v2961, %v2931
    %v2964 = vsub.f32 %v2890, %v2962
    %v2965 = vsub.f32 %v2891, %v2963
    %2968 = vrot.lane.b32.xlu0 %v2832, 127
    %v2969 = vpop.permute.xlu0 %2968
    %2970 = vrot.lane.b32.xlu0 %v2833, 127
    %v2971 = vpop.permute.xlu0 %2970
    %v2974 = vsel %vm2796, %v2969, %v2964
    %v2975 = vsel %vm2797, %v2971, %v2965
    %2978 = vrot.lane.b32.xlu0 %v2794, 127
    %v2979 = vpop.permute.xlu0 %2978
    %2980 = vrot.lane.b32.xlu0 %v2795, 127
    %v2981 = vpop.permute.xlu0 %2980
    %v2984 = vadd.f32 %v2974, %v2979
    %v2985 = vadd.f32 %v2975, %v2981
    %v2986 = vmul.f32 %v2984, 1.442695
    %v2987 = vpow.pop %v2986
    %v2988 = vmul.f32 %v2985, 1.442695
    %v2989 = vpow.pop %v2988
    %2992 = vrot.lane.b32.xlu0 %v2987, 1
    %v2993 = vpop.permute.xlu0 %2992
    %2994 = vrot.lane.b32.xlu0 %v2989, 1
    %v2995 = vpop.permute.xlu0 %2994
    %v2998 = vmul.f32 %v2660, %v2993
    %v2999 = vmul.f32 %v2661, %v2995
    %vm3000 = vcmp.gt.f32.partialorder %v2690, %v2722
    %vm3001 = vcmp.gt.f32.partialorder %v2691, %v2723
    %v3002 = vsel %vm3000, 0.0, 1.0
    %v3003 = vsel %vm3001, 0.0, 1.0
    %vm3004 = vcmp.gt.f32.partialorder %v2726, %v2690
    %vm3005 = vcmp.gt.f32.partialorder %v2727, %v2691
    %vm3006 = vcmp.gt.f32.partialorder %v2726, %v2722
    %vm3007 = vcmp.gt.f32.partialorder %v2727, %v2723
    %vm3008 = vmand %vm3004, %vm3006
    %vm3009 = vmand %vm3005, %vm3007
    %v3010 = vsel %vm3008, %v2998, %v3002
    %v3011 = vsel %vm3009, %v2999, %v3003
    %vm3012 = vcmp.gt.f32.partialorder %v269, 0.0
    %vm3013 = vcmp.gt.f32.partialorder %v270, 0.0
    %3016 = vrot.lane.b32.xlu0 %v3010, 127
    %v3017 = vpop.permute.xlu0 %3016
    %3018 = vrot.lane.b32.xlu0 %v3011, 127
    %v3019 = vpop.permute.xlu0 %3018
    %v3022 = vsel %vm3012, %v3017, 0.0
    %v3023 = vsel %vm3013, %v3019, 0.0
    %vm3024 = vcmask 7168
    %3025 = vst.msk [vmem:[%s15] sm:$0xff] %vm3024, %v3022
    %3026 = vst.msk [vmem:[%s15 + $0x8] sm:$0xff] %vm3024, %v3023
    %v3027 = vmul.f32 %v269, %v3022
    %v3028 = vmul.f32 %v270, %v3023
    %3030 = vset.pattern.permute.xlu0 0
    %3031 = vperm.xlu0 %3030, %v3027
    %v3032 = vpop.permute.xlu0 %3031
    %3035 = vset.pattern.permute.xlu0 0
    %3036 = vperm.xlu0 %3035, %v3028
    %v3037 = vpop.permute.xlu0 %3036
    %v3039 = vmul.f32 %v257, %v3032
    %v3040 = vmul.f32 %v262, %v3037
    %v3041 = vld [vmem:[#allocation13] sm:$0xff]
    %v3042 = vld [vmem:[#allocation13 + $0x8] sm:$0xff]
    %v3043 = vld [vmem:[#allocation13 + $0x10] sm:$0xff]
    %v3044 = vld [vmem:[#allocation13 + $0x18] sm:$0xff]
    %v3045 = vld [vmem:[%s9] sm:$0x3]
    %v3047 = vlaneseq
    %v3048 = vshrl.u32 %v3047, 7
    %v3049 = vsub.s32 0, %v3048
    %v3050 = vrot.slane %v3045, %v3049
    %v3051 = vlaneseq
    %v3052 = vshrl.u32 %v3051, 7
    %v3053 = vsub.s32 1, %v3052
    %v3054 = vrot.slane %v3045, %v3053
    %v3058 = vsel %vm287, %v3039, 0
    %v3061 = vsel %vm287, %v3040, 0
    %3063 = vmatprep.subr.mxu0 %v3042
    %3064 = vmatpush1.msra.mxu0 %v3041
    %3065 = vmatprep.subr.mxu0 %v3044
    %3066 = vmatpush1.msra.mxu0 %v3043
    %3067 = vmatprep.subr.mxu0 0.0
    %3068 = vmatpush1.msra.mxu0 0.0
    %3069 = vmatprep.subr.mxu0 0.0
    %3070 = vmatpush1.msra.mxu0 0.0
    %3071 = vmatprep.subr.mxu0 0.0
    %3072 = vmatpush1.msra.mxu0 0.0
    %3073 = vmatprep.subr.mxu0 0.0
    %3074 = vmatpush1.msra.mxu0 0.0
    %3075 = vmatprep.subr.mxu0 0.0
    %3076 = vmatpush1.msra.mxu0 0.0
    %3077 = vmatprep.subr.mxu0 0.0
    %3078 = vmatpush1.msra.mxu0 0.0
    %3079 = vmatprep.subr.mxu0 0.0
    %3080 = vmatpush1.msra.mxu0 0.0
    %3081 = vmatprep.subr.mxu0 0.0
    %3082 = vmatpush1.msra.mxu0 0.0
    %3083 = vmatprep.subr.mxu0 0.0
    %3084 = vmatpush1.msra.mxu0 0.0
    %3085 = vmatprep.subr.mxu0 0.0
    %3086 = vmatpush1.msra.mxu0 0.0
    %3087 = vmatprep.subr.mxu0 0.0
    %3088 = vmatpush1.msra.mxu0 0.0
    %3089 = vmatprep.subr.mxu0 0.0
    %3090 = vmatpush1.msra.mxu0 0.0
    %3091 = vmatprep.subr.mxu0 0.0
    %3092 = vmatpush1.msra.mxu0 0.0
    %3093 = vmatprep.subr.mxu0 0.0
    %3094 = vmatpush1.msra.mxu0 0.0
    %3095 = vmatprep.subr.mxu0 0.0
    %3096 = vmatpush1.msra.mxu0 0.0
    %3097 = vmatprep.subr.mxu0 0.0
    %3098 = vmatpush1.msra.mxu0 0.0
    %3099 = vmatprep.subr.mxu0 0.0
    %3100 = vmatpush1.msra.mxu0 0.0
    %3101 = vmatprep.subr.mxu0 0.0
    %3102 = vmatpush1.msra.mxu0 0.0
    %3103 = vmatprep.subr.mxu0 0.0
    %3104 = vmatpush1.msra.mxu0 0.0
    %3105 = vmatprep.subr.mxu0 0.0
    %3106 = vmatpush1.msra.mxu0 0.0
    %3107 = vmatprep.subr.mxu0 0.0
    %3108 = vmatpush1.msra.mxu0 0.0
    %3109 = vmatprep.subr.mxu0 0.0
    %3110 = vmatpush1.msra.mxu0 0.0
    %3111 = vmatprep.subr.mxu0 0.0
    %3112 = vmatpush1.msra.mxu0 0.0
    %3113 = vmatprep.subr.mxu0 0.0
    %3114 = vmatpush1.msra.mxu0 0.0
    %3115 = vmatprep.subr.mxu0 0.0
    %3116 = vmatpush1.msra.mxu0 0.0
    %3117 = vmatprep.subr.mxu0 0.0
    %3118 = vmatpush1.msra.mxu0 0.0
    %3119 = vmatprep.subr.mxu0 0.0
    %3120 = vmatpush1.msra.mxu0 0.0
    %3121 = vmatprep.subr.mxu0 0.0
    %3122 = vmatpush1.msra.mxu0 0.0
    %3123 = vmatprep.subr.mxu0 0.0
    %3124 = vmatpush1.msra.mxu0 0.0
    %3125 = vmatprep.subr.mxu0 0.0
    %3126 = vmatpush1.msra.mxu0 0.0
    %3127 = vmatprep.mubr.f32.mxu0 0.0
    %3128 = vmatmul.mubr.f32.gmra.mrb[0].mxu0 %v3058
    %v3129 = vpop.f32.mrb[0].mxu0
    %v3130 = vadd.f32 %v3050, %v3129
    %v3131 = vpop.f32.mrb[0].mxu0
    %v3132 = vadd.f32 %v3054, %v3131
    %3133 = vmatprep.mubr.f32.mxu0 0.0
    %3134 = vmatmul.mubr.f32.gmra.mrb[0].mxu0 %v3061
    %v3135 = vpop.f32.mrb[0].mxu0
    %v3136 = vadd.f32 %v3050, %v3135
    %v3137 = vpop.f32.mrb[0].mxu0
    %v3138 = vadd.f32 %v3054, %v3137
    %3139 = vdwg.mxu0
    %v3140 = vld [vmem:[#allocation15] sm:$0xff]
    %v3141 = vld [vmem:[#allocation15 + $0x8] sm:$0xff]
    %v3142 = vld [vmem:[#allocation15 + $0x10] sm:$0xff]
    %v3143 = vld [vmem:[#allocation15 + $0x18] sm:$0xff]
    %v3144 = vld [vmem:[#allocation16] sm:$0xff]
    %v3145 = vld [vmem:[#allocation16 + $0x8] sm:$0xff]
    %v3146 = vld [vmem:[#allocation16 + $0x10] sm:$0xff]
    %v3147 = vld [vmem:[#allocation16 + $0x18] sm:$0xff]
    %3148 = vmatprep.subr.mxu0 0.0
    %3149 = vmatpush1.msra.mxu0 %v3140
    %3150 = vmatprep.subr.mxu0 0.0
    %3151 = vmatpush1.msra.mxu0 %v3141
    %3152 = vmatprep.subr.mxu0 0.0
    %3153 = vmatpush1.msra.mxu0 %v3142
    %3154 = vmatprep.subr.mxu0 0.0
    %3155 = vmatpush1.msra.mxu0 %v3143
    %3156 = vmatprep.subr.mxu0 0.0
    %3157 = vmatpush1.msra.mxu0 0.0
    %3158 = vmatprep.subr.mxu0 0.0
    %3159 = vmatpush1.msra.mxu0 0.0
    %3160 = vmatprep.subr.mxu0 0.0
    %3161 = vmatpush1.msra.mxu0 0.0
    %3162 = vmatprep.subr.mxu0 0.0
    %3163 = vmatpush1.msra.mxu0 0.0
    %3164 = vmatprep.subr.mxu0 0.0
    %3165 = vmatpush1.msra.mxu0 0.0
    %3166 = vmatprep.subr.mxu0 0.0
    %3167 = vmatpush1.msra.mxu0 0.0
    %3168 = vmatprep.subr.mxu0 0.0
    %3169 = vmatpush1.msra.mxu0 0.0
    %3170 = vmatprep.subr.mxu0 0.0
    %3171 = vmatpush1.msra.mxu0 0.0
    %3172 = vmatprep.subr.mxu0 0.0
    %3173 = vmatpush1.msra.mxu0 0.0
    %3174 = vmatprep.subr.mxu0 0.0
    %3175 = vmatpush1.msra.mxu0 0.0
    %3176 = vmatprep.subr.mxu0 0.0
    %3177 = vmatpush1.msra.mxu0 0.0
    %3178 = vmatprep.subr.mxu0 0.0
    %3179 = vmatpush1.msra.mxu0 0.0
    %3180 = vmatprep.subr.mxu0 0.0
    %3181 = vmatpush1.msra.mxu0 0.0
    %3182 = vmatprep.subr.mxu0 0.0
    %3183 = vmatpush1.msra.mxu0 0.0
    %3184 = vmatprep.subr.mxu0 0.0
    %3185 = vmatpush1.msra.mxu0 0.0
    %3186 = vmatprep.subr.mxu0 0.0
    %3187 = vmatpush1.msra.mxu0 0.0
    %3188 = vmatprep.subr.mxu0 0.0
    %3189 = vmatpush1.msra.mxu0 0.0
    %3190 = vmatprep.subr.mxu0 0.0
    %3191 = vmatpush1.msra.mxu0 0.0
    %3192 = vmatprep.subr.mxu0 0.0
    %3193 = vmatpush1.msra.mxu0 0.0
    %3194 = vmatprep.subr.mxu0 0.0
    %3195 = vmatpush1.msra.mxu0 0.0
    %3196 = vmatprep.subr.mxu0 0.0
    %3197 = vmatpush1.msra.mxu0 0.0
    %3198 = vmatprep.subr.mxu0 0.0
    %3199 = vmatpush1.msra.mxu0 0.0
    %3200 = vmatprep.subr.mxu0 0.0
    %3201 = vmatpush1.msra.mxu0 0.0
    %3202 = vmatprep.subr.mxu0 0.0
    %3203 = vmatpush1.msra.mxu0 0.0
    %3204 = vmatprep.subr.mxu0 0.0
    %3205 = vmatpush1.msra.mxu0 0.0
    %3206 = vmatprep.subr.mxu0 0.0
    %3207 = vmatpush1.msra.mxu0 0.0
    %3208 = vmatprep.subr.mxu0 0.0
    %3209 = vmatpush1.msra.mxu0 0.0
    %3210 = vmatprep.subr.mxu0 0.0
    %3211 = vmatpush1.msra.mxu0 0.0
    %3212 = vmatprep.mubr.f32.mxu0 0.0
    %3213 = vmatmul.mubr.f32.gmra.mrb[0].mxu0 %v381
    %v3214 = vpop.f32.mrb[0].mxu0
    %v3215 = vadd.f32 0.0, %v3214
    %v3216 = vpop.f32.mrb[0].mxu0
    %3217 = vdwg.mxu0
    %v3218 = vadd.f32 %v3130, %v3215
    %3219 = vmatprep.subr.mxu0 0.0
    %3220 = vmatpush1.msra.mxu0 %v3144
    %3221 = vmatprep.subr.mxu0 0.0
    %3222 = vmatpush1.msra.mxu0 %v3145
    %3223 = vmatprep.subr.mxu0 0.0
    %3224 = vmatpush1.msra.mxu0 %v3146
    %3225 = vmatprep.subr.mxu0 0.0
    %3226 = vmatpush1.msra.mxu0 %v3147
    %3227 = vmatprep.subr.mxu0 0.0
    %3228 = vmatpush1.msra.mxu0 0.0
    %3229 = vmatprep.subr.mxu0 0.0
    %3230 = vmatpush1.msra.mxu0 0.0
    %3231 = vmatprep.subr.mxu0 0.0
    %3232 = vmatpush1.msra.mxu0 0.0
    %3233 = vmatprep.subr.mxu0 0.0
    %3234 = vmatpush1.msra.mxu0 0.0
    %3235 = vmatprep.subr.mxu0 0.0
    %3236 = vmatpush1.msra.mxu0 0.0
    %3237 = vmatprep.subr.mxu0 0.0
    %3238 = vmatpush1.msra.mxu0 0.0
    %3239 = vmatprep.subr.mxu0 0.0
    %3240 = vmatpush1.msra.mxu0 0.0
    %3241 = vmatprep.subr.mxu0 0.0
    %3242 = vmatpush1.msra.mxu0 0.0
    %3243 = vmatprep.subr.mxu0 0.0
    %3244 = vmatpush1.msra.mxu0 0.0
    %3245 = vmatprep.subr.mxu0 0.0
    %3246 = vmatpush1.msra.mxu0 0.0
    %3247 = vmatprep.subr.mxu0 0.0
    %3248 = vmatpush1.msra.mxu0 0.0
    %3249 = vmatprep.subr.mxu0 0.0
    %3250 = vmatpush1.msra.mxu0 0.0
    %3251 = vmatprep.subr.mxu0 0.0
    %3252 = vmatpush1.msra.mxu0 0.0
    %3253 = vmatprep.subr.mxu0 0.0
    %3254 = vmatpush1.msra.mxu0 0.0
    %3255 = vmatprep.subr.mxu0 0.0
    %3256 = vmatpush1.msra.mxu0 0.0
    %3257 = vmatprep.subr.mxu0 0.0
    %3258 = vmatpush1.msra.mxu0 0.0
    %3259 = vmatprep.subr.mxu0 0.0
    %3260 = vmatpush1.msra.mxu0 0.0
    %3261 = vmatprep.subr.mxu0 0.0
    %3262 = vmatpush1.msra.mxu0 0.0
    %3263 = vmatprep.subr.mxu0 0.0
    %3264 = vmatpush1.msra.mxu0 0.0
    %3265 = vmatprep.subr.mxu0 0.0
    %3266 = vmatpush1.msra.mxu0 0.0
    %3267 = vmatprep.subr.mxu0 0.0
    %3268 = vmatpush1.msra.mxu0 0.0
    %3269 = vmatprep.subr.mxu0 0.0
    %3270 = vmatpush1.msra.mxu0 0.0
    %3271 = vmatprep.subr.mxu0 0.0
    %3272 = vmatpush1.msra.mxu0 0.0
    %3273 = vmatprep.subr.mxu0 0.0
    %3274 = vmatpush1.msra.mxu0 0.0
    %3275 = vmatprep.subr.mxu0 0.0
    %3276 = vmatpush1.msra.mxu0 0.0
    %3277 = vmatprep.subr.mxu0 0.0
    %3278 = vmatpush1.msra.mxu0 0.0
    %3279 = vmatprep.subr.mxu0 0.0
    %3280 = vmatpush1.msra.mxu0 0.0
    %3281 = vmatprep.subr.mxu0 0.0
    %3282 = vmatpush1.msra.mxu0 0.0
    %3283 = vmatprep.mubr.f32.mxu0 0.0
    %3284 = vmatmul.mubr.f32.gmra.mrb[0].mxu0 %v381
    %v3285 = vpop.f32.mrb[0].mxu0
    %v3286 = vadd.f32 0.0, %v3285
    %v3287 = vpop.f32.mrb[0].mxu0
    %3288 = vdwg.mxu0
    %v3290 = vrot.slane %v3286, 2
    %v3292 = vadd.f32 %v3138, %v3290
    %v3293 = vxor.u32 %v3218, 2147483648
    %v3294 = vmul.f32 %v3293, 1.442695
    %v3295 = vpow.pop %v3294
    %v3296 = vadd.f32 %v3295, 1.0
    %v3297 = vrcp.pop %v3296
    %v3298 = vmul.f32 1.0, %v3297
    %v3299 = vtanh.pop %v3218
    %v3300 = vmul.f32 %v3298, 0.0
    %3302 = vrot.lane.b32.xlu0 %v3299, 64
    %v3303 = vpop.permute.xlu0 %3302
    %v3305 = vmul.f32 %v3298, %v3303
    %3307 = vrot.lane.b32.xlu0 %v3305, 32
    %v3308 = vpop.permute.xlu0 %3307
    %v3310 = vadd.f32 %v3300, %v3308
    %v3311 = vtanh.pop %v3310
    %3313 = vrot.lane.b32.xlu0 %v3311, 64
    %v3314 = vpop.permute.xlu0 %3313
    %v3316 = vmul.f32 %v3298, %v3314
    %v3317 = vxor.u32 %v3292, 2147483648
    %v3318 = vmul.f32 %v3317, 1.442695
    %v3319 = vpow.pop %v3318
    %v3320 = vadd.f32 %v3319, 1.0
    %v3321 = vrcp.pop %v3320
    %v3322 = vmul.f32 1.0, %v3321
    %v3323 = vtanh.pop %v3292
    %v3324 = vmul.f32 %v3322, 0.0
    %3326 = vrot.lane.b32.xlu0 %v3323, 64
    %v3327 = vpop.permute.xlu0 %3326
    %v3329 = vmul.f32 %v3322, %v3327
    %3331 = vrot.lane.b32.xlu0 %v3329, 32
    %v3332 = vpop.permute.xlu0 %3331
    %v3334 = vadd.f32 %v3324, %v3332
    %v3335 = vtanh.pop %v3334
    %3337 = vrot.lane.b32.xlu0 %v3335, 64
    %v3338 = vpop.permute.xlu0 %3337
    %v3340 = vmul.f32 %v3322, %v3338
    %v3341 = vmul.f32 %v579, %v3316
    %v3342 = vadd.f32 %v3341, %v588
    %v3343 = vmul.f32 %v579, %v3310
    %v3344 = vadd.f32 %v3343, %v588
    %v3345 = vmul.f32 %v595, %v3340
    %v3346 = vadd.f32 %v3345, %v604
    %v3347 = vmul.f32 %v595, %v3334
    %v3348 = vadd.f32 %v3347, %v604
    %3350 = vrot.lane.b32.xlu0 %v3342, 32
    %v3351 = vpop.permute.xlu0 %3350
    %v3352 = vsel %vm379, %v3351, 0
    %3354 = vmatprep.subr.mxu0 0.0
    %3355 = vmatpush1.msra.mxu0 %v3140
    %3356 = vmatprep.subr.mxu0 0.0
    %3357 = vmatpush1.msra.mxu0 %v3141
    %3358 = vmatprep.subr.mxu0 0.0
    %3359 = vmatpush1.msra.mxu0 %v3142
    %3360 = vmatprep.subr.mxu0 0.0
    %3361 = vmatpush1.msra.mxu0 %v3143
    %3362 = vmatprep.subr.mxu0 0.0
    %3363 = vmatpush1.msra.mxu0 0.0
    %3364 = vmatprep.subr.mxu0 0.0
    %3365 = vmatpush1.msra.mxu0 0.0
    %3366 = vmatprep.subr.mxu0 0.0
    %3367 = vmatpush1.msra.mxu0 0.0
    %3368 = vmatprep.subr.mxu0 0.0
    %3369 = vmatpush1.msra.mxu0 0.0
    %3370 = vmatprep.subr.mxu0 0.0
    %3371 = vmatpush1.msra.mxu0 0.0
    %3372 = vmatprep.subr.mxu0 0.0
    %3373 = vmatpush1.msra.mxu0 0.0
    %3374 = vmatprep.subr.mxu0 0.0
    %3375 = vmatpush1.msra.mxu0 0.0
    %3376 = vmatprep.subr.mxu0 0.0
    %3377 = vmatpush1.msra.mxu0 0.0
    %3378 = vmatprep.subr.mxu0 0.0
    %3379 = vmatpush1.msra.mxu0 0.0
    %3380 = vmatprep.subr.mxu0 0.0
    %3381 = vmatpush1.msra.mxu0 0.0
    %3382 = vmatprep.subr.mxu0 0.0
    %3383 = vmatpush1.msra.mxu0 0.0
    %3384 = vmatprep.subr.mxu0 0.0
    %3385 = vmatpush1.msra.mxu0 0.0
    %3386 = vmatprep.subr.mxu0 0.0
    %3387 = vmatpush1.msra.mxu0 0.0
    %3388 = vmatprep.subr.mxu0 0.0
    %3389 = vmatpush1.msra.mxu0 0.0
    %3390 = vmatprep.subr.mxu0 0.0
    %3391 = vmatpush1.msra.mxu0 0.0
    %3392 = vmatprep.subr.mxu0 0.0
    %3393 = vmatpush1.msra.mxu0 0.0
    %3394 = vmatprep.subr.mxu0 0.0
    %3395 = vmatpush1.msra.mxu0 0.0
    %3396 = vmatprep.subr.mxu0 0.0
    %3397 = vmatpush1.msra.mxu0 0.0
    %3398 = vmatprep.subr.mxu0 0.0
    %3399 = vmatpush1.msra.mxu0 0.0
    %3400 = vmatprep.subr.mxu0 0.0
    %3401 = vmatpush1.msra.mxu0 0.0
    %3402 = vmatprep.subr.mxu0 0.0
    %3403 = vmatpush1.msra.mxu0 0.0
    %3404 = vmatprep.subr.mxu0 0.0
    %3405 = vmatpush1.msra.mxu0 0.0
    %3406 = vmatprep.subr.mxu0 0.0
    %3407 = vmatpush1.msra.mxu0 0.0
    %3408 = vmatprep.subr.mxu0 0.0
    %3409 = vmatpush1.msra.mxu0 0.0
    %3410 = vmatprep.subr.mxu0 0.0
    %3411 = vmatpush1.msra.mxu0 0.0
    %3412 = vmatprep.subr.mxu0 0.0
    %3413 = vmatpush1.msra.mxu0 0.0
    %3414 = vmatprep.subr.mxu0 0.0
    %3415 = vmatpush1.msra.mxu0 0.0
    %3416 = vmatprep.subr.mxu0 0.0
    %3417 = vmatpush1.msra.mxu0 0.0
    %3418 = vmatprep.mubr.f32.mxu0 0.0
    %3419 = vmatmul.mubr.f32.gmra.mrb[0].mxu0 %v3352
    %v3420 = vpop.f32.mrb[0].mxu0
    %v3421 = vadd.f32 0.0, %v3420
    %v3422 = vpop.f32.mrb[0].mxu0
    %3423 = vdwg.mxu0
    %v3425 = vrot.slane %v3421, 6
    %v3427 = vadd.f32 %v3130, %v3425
    %v3429 = vrot.slane %v3346, 6
    %3430 = vrot.lane.b32.xlu0 %v3429, 32
    %v3431 = vpop.permute.xlu0 %3430
    %v3432 = vsel %vm379, %v3431, 0
    %3434 = vmatprep.subr.mxu0 0.0
    %3435 = vmatpush1.msra.mxu0 %v3144
    %3436 = vmatprep.subr.mxu0 0.0
    %3437 = vmatpush1.msra.mxu0 %v3145
    %3438 = vmatprep.subr.mxu0 0.0
    %3439 = vmatpush1.msra.mxu0 %v3146
    %3440 = vmatprep.subr.mxu0 0.0
    %3441 = vmatpush1.msra.mxu0 %v3147
    %3442 = vmatprep.subr.mxu0 0.0
    %3443 = vmatpush1.msra.mxu0 0.0
    %3444 = vmatprep.subr.mxu0 0.0
    %3445 = vmatpush1.msra.mxu0 0.0
    %3446 = vmatprep.subr.mxu0 0.0
    %3447 = vmatpush1.msra.mxu0 0.0
    %3448 = vmatprep.subr.mxu0 0.0
    %3449 = vmatpush1.msra.mxu0 0.0
    %3450 = vmatprep.subr.mxu0 0.0
    %3451 = vmatpush1.msra.mxu0 0.0
    %3452 = vmatprep.subr.mxu0 0.0
    %3453 = vmatpush1.msra.mxu0 0.0
    %3454 = vmatprep.subr.mxu0 0.0
    %3455 = vmatpush1.msra.mxu0 0.0
    %3456 = vmatprep.subr.mxu0 0.0
    %3457 = vmatpush1.msra.mxu0 0.0
    %3458 = vmatprep.subr.mxu0 0.0
    %3459 = vmatpush1.msra.mxu0 0.0
    %3460 = vmatprep.subr.mxu0 0.0
    %3461 = vmatpush1.msra.mxu0 0.0
    %3462 = vmatprep.subr.mxu0 0.0
    %3463 = vmatpush1.msra.mxu0 0.0
    %3464 = vmatprep.subr.mxu0 0.0
    %3465 = vmatpush1.msra.mxu0 0.0
    %3466 = vmatprep.subr.mxu0 0.0
    %3467 = vmatpush1.msra.mxu0 0.0
    %3468 = vmatprep.subr.mxu0 0.0
    %3469 = vmatpush1.msra.mxu0 0.0
    %3470 = vmatprep.subr.mxu0 0.0
    %3471 = vmatpush1.msra.mxu0 0.0
    %3472 = vmatprep.subr.mxu0 0.0
    %3473 = vmatpush1.msra.mxu0 0.0
    %3474 = vmatprep.subr.mxu0 0.0
    %3475 = vmatpush1.msra.mxu0 0.0
    %3476 = vmatprep.subr.mxu0 0.0
    %3477 = vmatpush1.msra.mxu0 0.0
    %3478 = vmatprep.subr.mxu0 0.0
    %3479 = vmatpush1.msra.mxu0 0.0
    %3480 = vmatprep.subr.mxu0 0.0
    %3481 = vmatpush1.msra.mxu0 0.0
    %3482 = vmatprep.subr.mxu0 0.0
    %3483 = vmatpush1.msra.mxu0 0.0
    %3484 = vmatprep.subr.mxu0 0.0
    %3485 = vmatpush1.msra.mxu0 0.0
    %3486 = vmatprep.subr.mxu0 0.0
    %3487 = vmatpush1.msra.mxu0 0.0
    %3488 = vmatprep.subr.mxu0 0.0
    %3489 = vmatpush1.msra.mxu0 0.0
    %3490 = vmatprep.subr.mxu0 0.0
    %3491 = vmatpush1.msra.mxu0 0.0
    %3492 = vmatprep.subr.mxu0 0.0
    %3493 = vmatpush1.msra.mxu0 0.0
    %3494 = vmatprep.subr.mxu0 0.0
    %3495 = vmatpush1.msra.mxu0 0.0
    %3496 = vmatprep.subr.mxu0 0.0
    %3497 = vmatpush1.msra.mxu0 0.0
    %3498 = vmatprep.mubr.f32.mxu0 0.0
    %3499 = vmatmul.mubr.f32.gmra.mrb[0].mxu0 %v3432
    %v3500 = vpop.f32.mrb[0].mxu0
    %v3501 = vadd.f32 0.0, %v3500
    %v3502 = vpop.f32.mrb[0].mxu0
    %3503 = vdwg.mxu0
    %v3505 = vrot.slane %v3501, 4
    %v3507 = vadd.f32 %v3138, %v3505
    %v3508 = vxor.u32 %v3427, 2147483648
    %v3509 = vmul.f32 %v3508, 1.442695
    %v3510 = vpow.pop %v3509
    %v3511 = vadd.f32 %v3510, 1.0
    %v3512 = vrcp.pop %v3511
    %v3513 = vmul.f32 1.0, %v3512
    %v3514 = vtanh.pop %v3427
    %v3516 = vrot.slane %v3344, 6
    %v3518 = vmul.f32 %v3513, %v3516
    %3520 = vrot.lane.b32.xlu0 %v3514, 64
    %v3521 = vpop.permute.xlu0 %3520
    %v3523 = vmul.f32 %v3513, %v3521
    %3525 = vrot.lane.b32.xlu0 %v3523, 32
    %v3526 = vpop.permute.xlu0 %3525
    %v3528 = vadd.f32 %v3518, %v3526
    %v3529 = vtanh.pop %v3528
    %3531 = vrot.lane.b32.xlu0 %v3529, 64
    %v3532 = vpop.permute.xlu0 %3531
    %v3534 = vmul.f32 %v3513, %v3532
    %v3535 = vxor.u32 %v3507, 2147483648
    %v3536 = vmul.f32 %v3535, 1.442695
    %v3537 = vpow.pop %v3536
    %v3538 = vadd.f32 %v3537, 1.0
    %v3539 = vrcp.pop %v3538
    %v3540 = vmul.f32 1.0, %v3539
    %v3541 = vtanh.pop %v3507
    %v3543 = vrot.slane %v3348, 2
    %v3545 = vmul.f32 %v3540, %v3543
    %3547 = vrot.lane.b32.xlu0 %v3541, 64
    %v3548 = vpop.permute.xlu0 %3547
    %v3550 = vmul.f32 %v3540, %v3548
    %3552 = vrot.lane.b32.xlu0 %v3550, 32
    %v3553 = vpop.permute.xlu0 %3552
    %v3555 = vadd.f32 %v3545, %v3553
    %v3556 = vtanh.pop %v3555
    %3558 = vrot.lane.b32.xlu0 %v3556, 64
    %v3559 = vpop.permute.xlu0 %3558
    %v3561 = vmul.f32 %v3540, %v3559
    %v3562 = vmul.f32 %v579, %v3534
    %v3563 = vrot.slane %v3342, 6
    %3564 = vrot.lane.b32.xlu0 %v3563, 32
    %v3565 = vpop.permute.xlu0 %3564
    %v3567 = vmul.f32 %v586, %v3565
    %3569 = vrot.lane.b32.xlu0 %v3567, 96
    %v3570 = vpop.permute.xlu0 %3569
    %v3572 = vadd.f32 %v3562, %v3570
    %v3573 = vmul.f32 %v579, %v3528
    %3574 = vrot.lane.b32.xlu0 %v3516, 96
    %v3575 = vpop.permute.xlu0 %3574
    %v3577 = vmul.f32 %v586, %v3575
    %3579 = vrot.lane.b32.xlu0 %v3577, 32
    %v3580 = vpop.permute.xlu0 %3579
    %v3582 = vadd.f32 %v3573, %v3580
    %v3583 = vmul.f32 %v595, %v3561
    %v3584 = vrot.slane %v3346, 2
    %3585 = vrot.lane.b32.xlu0 %v3584, 32
    %v3586 = vpop.permute.xlu0 %3585
    %v3588 = vmul.f32 %v602, %v3586
    %3590 = vrot.lane.b32.xlu0 %v3588, 96
    %v3591 = vpop.permute.xlu0 %3590
    %v3593 = vadd.f32 %v3583, %v3591
    %v3594 = vmul.f32 %v595, %v3555
    %3595 = vrot.lane.b32.xlu0 %v3543, 96
    %v3596 = vpop.permute.xlu0 %3595
    %v3598 = vmul.f32 %v602, %v3596
    %3600 = vrot.lane.b32.xlu0 %v3598, 32
    %v3601 = vpop.permute.xlu0 %3600
    %v3603 = vadd.f32 %v3594, %v3601
    %v3605 = vrot.slane %v3572, 2
    %3606 = vrot.lane.b32.xlu0 %v3605, 32
    %v3607 = vpop.permute.xlu0 %3606
    %v3608 = vsel %vm379, %v3607, 0
    %3610 = vmatprep.subr.mxu0 0.0
    %3611 = vmatpush1.msra.mxu0 %v3140
    %3612 = vmatprep.subr.mxu0 0.0
    %3613 = vmatpush1.msra.mxu0 %v3141
    %3614 = vmatprep.subr.mxu0 0.0
    %3615 = vmatpush1.msra.mxu0 %v3142
    %3616 = vmatprep.subr.mxu0 0.0
    %3617 = vmatpush1.msra.mxu0 %v3143
    %3618 = vmatprep.subr.mxu0 0.0
    %3619 = vmatpush1.msra.mxu0 0.0
    %3620 = vmatprep.subr.mxu0 0.0
    %3621 = vmatpush1.msra.mxu0 0.0
    %3622 = vmatprep.subr.mxu0 0.0
    %3623 = vmatpush1.msra.mxu0 0.0
    %3624 = vmatprep.subr.mxu0 0.0
    %3625 = vmatpush1.msra.mxu0 0.0
    %3626 = vmatprep.subr.mxu0 0.0
    %3627 = vmatpush1.msra.mxu0 0.0
    %3628 = vmatprep.subr.mxu0 0.0
    %3629 = vmatpush1.msra.mxu0 0.0
    %3630 = vmatprep.subr.mxu0 0.0
    %3631 = vmatpush1.msra.mxu0 0.0
    %3632 = vmatprep.subr.mxu0 0.0
    %3633 = vmatpush1.msra.mxu0 0.0
    %3634 = vmatprep.subr.mxu0 0.0
    %3635 = vmatpush1.msra.mxu0 0.0
    %3636 = vmatprep.subr.mxu0 0.0
    %3637 = vmatpush1.msra.mxu0 0.0
    %3638 = vmatprep.subr.mxu0 0.0
    %3639 = vmatpush1.msra.mxu0 0.0
    %3640 = vmatprep.subr.mxu0 0.0
    %3641 = vmatpush1.msra.mxu0 0.0
    %3642 = vmatprep.subr.mxu0 0.0
    %3643 = vmatpush1.msra.mxu0 0.0
    %3644 = vmatprep.subr.mxu0 0.0
    %3645 = vmatpush1.msra.mxu0 0.0
    %3646 = vmatprep.subr.mxu0 0.0
    %3647 = vmatpush1.msra.mxu0 0.0
    %3648 = vmatprep.subr.mxu0 0.0
    %3649 = vmatpush1.msra.mxu0 0.0
    %3650 = vmatprep.subr.mxu0 0.0
    %3651 = vmatpush1.msra.mxu0 0.0
    %3652 = vmatprep.subr.mxu0 0.0
    %3653 = vmatpush1.msra.mxu0 0.0
    %3654 = vmatprep.subr.mxu0 0.0
    %3655 = vmatpush1.msra.mxu0 0.0
    %3656 = vmatprep.subr.mxu0 0.0
    %3657 = vmatpush1.msra.mxu0 0.0
    %3658 = vmatprep.subr.mxu0 0.0
    %3659 = vmatpush1.msra.mxu0 0.0
    %3660 = vmatprep.subr.mxu0 0.0
    %3661 = vmatpush1.msra.mxu0 0.0
    %3662 = vmatprep.subr.mxu0 0.0
    %3663 = vmatpush1.msra.mxu0 0.0
    %3664 = vmatprep.subr.mxu0 0.0
    %3665 = vmatpush1.msra.mxu0 0.0
    %3666 = vmatprep.subr.mxu0 0.0
    %3667 = vmatpush1.msra.mxu0 0.0
    %3668 = vmatprep.subr.mxu0 0.0
    %3669 = vmatpush1.msra.mxu0 0.0
    %3670 = vmatprep.subr.mxu0 0.0
    %3671 = vmatpush1.msra.mxu0 0.0
    %3672 = vmatprep.subr.mxu0 0.0
    %3673 = vmatpush1.msra.mxu0 0.0
    %3674 = vmatprep.mubr.f32.mxu0 0.0
    %3675 = vmatmul.mubr.f32.gmra.mrb[0].mxu0 %v3608
    %v3676 = vpop.f32.mrb[0].mxu0
    %v3677 = vadd.f32 0.0, %v3676
    %v3678 = vpop.f32.mrb[0].mxu0
    %3679 = vdwg.mxu0
    %v3681 = vrot.slane %v3677, 4
    %v3683 = vadd.f32 %v3130, %v3681
    %v3685 = vrot.slane %v3593, 4
    %3686 = vrot.lane.b32.xlu0 %v3685, 32
    %v3687 = vpop.permute.xlu0 %3686
    %v3688 = vsel %vm379, %v3687, 0
    %3690 = vmatprep.subr.mxu0 0.0
    %3691 = vmatpush1.msra.mxu0 %v3144
    %3692 = vmatprep.subr.mxu0 0.0
    %3693 = vmatpush1.msra.mxu0 %v3145
    %3694 = vmatprep.subr.mxu0 0.0
    %3695 = vmatpush1.msra.mxu0 %v3146
    %3696 = vmatprep.subr.mxu0 0.0
    %3697 = vmatpush1.msra.mxu0 %v3147
    %3698 = vmatprep.subr.mxu0 0.0
    %3699 = vmatpush1.msra.mxu0 0.0
    %3700 = vmatprep.subr.mxu0 0.0
    %3701 = vmatpush1.msra.mxu0 0.0
    %3702 = vmatprep.subr.mxu0 0.0
    %3703 = vmatpush1.msra.mxu0 0.0
    %3704 = vmatprep.subr.mxu0 0.0
    %3705 = vmatpush1.msra.mxu0 0.0
    %3706 = vmatprep.subr.mxu0 0.0
    %3707 = vmatpush1.msra.mxu0 0.0
    %3708 = vmatprep.subr.mxu0 0.0
    %3709 = vmatpush1.msra.mxu0 0.0
    %3710 = vmatprep.subr.mxu0 0.0
    %3711 = vmatpush1.msra.mxu0 0.0
    %3712 = vmatprep.subr.mxu0 0.0
    %3713 = vmatpush1.msra.mxu0 0.0
    %3714 = vmatprep.subr.mxu0 0.0
    %3715 = vmatpush1.msra.mxu0 0.0
    %3716 = vmatprep.subr.mxu0 0.0
    %3717 = vmatpush1.msra.mxu0 0.0
    %3718 = vmatprep.subr.mxu0 0.0
    %3719 = vmatpush1.msra.mxu0 0.0
    %3720 = vmatprep.subr.mxu0 0.0
    %3721 = vmatpush1.msra.mxu0 0.0
    %3722 = vmatprep.subr.mxu0 0.0
    %3723 = vmatpush1.msra.mxu0 0.0
    %3724 = vmatprep.subr.mxu0 0.0
    %3725 = vmatpush1.msra.mxu0 0.0
    %3726 = vmatprep.subr.mxu0 0.0
    %3727 = vmatpush1.msra.mxu0 0.0
    %3728 = vmatprep.subr.mxu0 0.0
    %3729 = vmatpush1.msra.mxu0 0.0
    %3730 = vmatprep.subr.mxu0 0.0
    %3731 = vmatpush1.msra.mxu0 0.0
    %3732 = vmatprep.subr.mxu0 0.0
    %3733 = vmatpush1.msra.mxu0 0.0
    %3734 = vmatprep.subr.mxu0 0.0
    %3735 = vmatpush1.msra.mxu0 0.0
    %3736 = vmatprep.subr.mxu0 0.0
    %3737 = vmatpush1.msra.mxu0 0.0
    %3738 = vmatprep.subr.mxu0 0.0
    %3739 = vmatpush1.msra.mxu0 0.0
    %3740 = vmatprep.subr.mxu0 0.0
    %3741 = vmatpush1.msra.mxu0 0.0
    %3742 = vmatprep.subr.mxu0 0.0
    %3743 = vmatpush1.msra.mxu0 0.0
    %3744 = vmatprep.subr.mxu0 0.0
    %3745 = vmatpush1.msra.mxu0 0.0
    %3746 = vmatprep.subr.mxu0 0.0
    %3747 = vmatpush1.msra.mxu0 0.0
    %3748 = vmatprep.subr.mxu0 0.0
    %3749 = vmatpush1.msra.mxu0 0.0
    %3750 = vmatprep.subr.mxu0 0.0
    %3751 = vmatpush1.msra.mxu0 0.0
    %3752 = vmatprep.subr.mxu0 0.0
    %3753 = vmatpush1.msra.mxu0 0.0
    %3754 = vmatprep.mubr.f32.mxu0 0.0
    %3755 = vmatmul.mubr.f32.gmra.mrb[0].mxu0 %v3688
    %v3756 = vpop.f32.mrb[0].mxu0
    %v3757 = vadd.f32 0.0, %v3756
    %v3758 = vpop.f32.mrb[0].mxu0
    %3759 = vdwg.mxu0
    %v3761 = vrot.slane %v3757, 6
    %v3763 = vadd.f32 %v3138, %v3761
    %v3764 = vxor.u32 %v3683, 2147483648
    %v3765 = vmul.f32 %v3764, 1.442695
    %v3766 = vpow.pop %v3765
    %v3767 = vadd.f32 %v3766, 1.0
    %v3768 = vrcp.pop %v3767
    %v3769 = vmul.f32 1.0, %v3768
    %v3770 = vtanh.pop %v3683
    %v3772 = vrot.slane %v3582, 6
    %v3774 = vmul.f32 %v3769, %v3772
    %3776 = vrot.lane.b32.xlu0 %v3770, 64
    %v3777 = vpop.permute.xlu0 %3776
    %v3779 = vmul.f32 %v3769, %v3777
    %3781 = vrot.lane.b32.xlu0 %v3779, 32
    %v3782 = vpop.permute.xlu0 %3781
    %v3784 = vadd.f32 %v3774, %v3782
    %v3785 = vtanh.pop %v3784
    %3787 = vrot.lane.b32.xlu0 %v3785, 64
    %v3788 = vpop.permute.xlu0 %3787
    %v3790 = vmul.f32 %v3769, %v3788
    %v3791 = vxor.u32 %v3763, 2147483648
    %v3792 = vmul.f32 %v3791, 1.442695
    %v3793 = vpow.pop %v3792
    %v3794 = vadd.f32 %v3793, 1.0
    %v3795 = vrcp.pop %v3794
    %v3796 = vmul.f32 1.0, %v3795
    %v3797 = vtanh.pop %v3763
    %v3799 = vrot.slane %v3603, 2
    %v3801 = vmul.f32 %v3796, %v3799
    %3803 = vrot.lane.b32.xlu0 %v3797, 64
    %v3804 = vpop.permute.xlu0 %3803
    %v3806 = vmul.f32 %v3796, %v3804
    %3808 = vrot.lane.b32.xlu0 %v3806, 32
    %v3809 = vpop.permute.xlu0 %3808
    %v3811 = vadd.f32 %v3801, %v3809
    %v3812 = vtanh.pop %v3811
    %3814 = vrot.lane.b32.xlu0 %v3812, 64
    %v3815 = vpop.permute.xlu0 %3814
    %v3817 = vmul.f32 %v3796, %v3815
    %v3818 = vmul.f32 %v579, %v3790
    %v3819 = vrot.slane %v3572, 6
    %3820 = vrot.lane.b32.xlu0 %v3819, 32
    %v3821 = vpop.permute.xlu0 %3820
    %v3823 = vmul.f32 %v586, %v3821
    %3825 = vrot.lane.b32.xlu0 %v3823, 96
    %v3826 = vpop.permute.xlu0 %3825
    %v3828 = vadd.f32 %v3818, %v3826
    %v3829 = vmul.f32 %v579, %v3784
    %3830 = vrot.lane.b32.xlu0 %v3772, 96
    %v3831 = vpop.permute.xlu0 %3830
    %v3833 = vmul.f32 %v586, %v3831
    %3835 = vrot.lane.b32.xlu0 %v3833, 32
    %v3836 = vpop.permute.xlu0 %3835
    %v3838 = vadd.f32 %v3829, %v3836
    %v3839 = vmul.f32 %v595, %v3817
    %v3840 = vrot.slane %v3593, 2
    %3841 = vrot.lane.b32.xlu0 %v3840, 32
    %v3842 = vpop.permute.xlu0 %3841
    %v3844 = vmul.f32 %v602, %v3842
    %3846 = vrot.lane.b32.xlu0 %v3844, 96
    %v3847 = vpop.permute.xlu0 %3846
    %v3849 = vadd.f32 %v3839, %v3847
    %v3850 = vmul.f32 %v595, %v3811
    %3851 = vrot.lane.b32.xlu0 %v3799, 96
    %v3852 = vpop.permute.xlu0 %3851
    %v3854 = vmul.f32 %v602, %v3852
    %3856 = vrot.lane.b32.xlu0 %v3854, 32
    %v3857 = vpop.permute.xlu0 %3856
    %v3859 = vadd.f32 %v3850, %v3857
    %v3861 = vrot.slane %v3828, 4
    %3862 = vrot.lane.b32.xlu0 %v3861, 32
    %v3863 = vpop.permute.xlu0 %3862
    %v3864 = vsel %vm379, %v3863, 0
    %3866 = vmatprep.subr.mxu0 0.0
    %3867 = vmatpush1.msra.mxu0 %v3140
    %3868 = vmatprep.subr.mxu0 0.0
    %3869 = vmatpush1.msra.mxu0 %v3141
    %3870 = vmatprep.subr.mxu0 0.0
    %3871 = vmatpush1.msra.mxu0 %v3142
    %3872 = vmatprep.subr.mxu0 0.0
    %3873 = vmatpush1.msra.mxu0 %v3143
    %3874 = vmatprep.subr.mxu0 0.0
    %3875 = vmatpush1.msra.mxu0 0.0
    %3876 = vmatprep.subr.mxu0 0.0
    %3877 = vmatpush1.msra.mxu0 0.0
    %3878 = vmatprep.subr.mxu0 0.0
    %3879 = vmatpush1.msra.mxu0 0.0
    %3880 = vmatprep.subr.mxu0 0.0
    %3881 = vmatpush1.msra.mxu0 0.0
    %3882 = vmatprep.subr.mxu0 0.0
    %3883 = vmatpush1.msra.mxu0 0.0
    %3884 = vmatprep.subr.mxu0 0.0
    %3885 = vmatpush1.msra.mxu0 0.0
    %3886 = vmatprep.subr.mxu0 0.0
    %3887 = vmatpush1.msra.mxu0 0.0
    %3888 = vmatprep.subr.mxu0 0.0
    %3889 = vmatpush1.msra.mxu0 0.0
    %3890 = vmatprep.subr.mxu0 0.0
    %3891 = vmatpush1.msra.mxu0 0.0
    %3892 = vmatprep.subr.mxu0 0.0
    %3893 = vmatpush1.msra.mxu0 0.0
    %3894 = vmatprep.subr.mxu0 0.0
    %3895 = vmatpush1.msra.mxu0 0.0
    %3896 = vmatprep.subr.mxu0 0.0
    %3897 = vmatpush1.msra.mxu0 0.0
    %3898 = vmatprep.subr.mxu0 0.0
    %3899 = vmatpush1.msra.mxu0 0.0
    %3900 = vmatprep.subr.mxu0 0.0
    %3901 = vmatpush1.msra.mxu0 0.0
    %3902 = vmatprep.subr.mxu0 0.0
    %3903 = vmatpush1.msra.mxu0 0.0
    %3904 = vmatprep.subr.mxu0 0.0
    %3905 = vmatpush1.msra.mxu0 0.0
    %3906 = vmatprep.subr.mxu0 0.0
    %3907 = vmatpush1.msra.mxu0 0.0
    %3908 = vmatprep.subr.mxu0 0.0
    %3909 = vmatpush1.msra.mxu0 0.0
    %3910 = vmatprep.subr.mxu0 0.0
    %3911 = vmatpush1.msra.mxu0 0.0
    %3912 = vmatprep.subr.mxu0 0.0
    %3913 = vmatpush1.msra.mxu0 0.0
    %3914 = vmatprep.subr.mxu0 0.0
    %3915 = vmatpush1.msra.mxu0 0.0
    %3916 = vmatprep.subr.mxu0 0.0
    %3917 = vmatpush1.msra.mxu0 0.0
    %3918 = vmatprep.subr.mxu0 0.0
    %3919 = vmatpush1.msra.mxu0 0.0
    %3920 = vmatprep.subr.mxu0 0.0
    %3921 = vmatpush1.msra.mxu0 0.0
    %3922 = vmatprep.subr.mxu0 0.0
    %3923 = vmatpush1.msra.mxu0 0.0
    %3924 = vmatprep.subr.mxu0 0.0
    %3925 = vmatpush1.msra.mxu0 0.0
    %3926 = vmatprep.subr.mxu0 0.0
    %3927 = vmatpush1.msra.mxu0 0.0
    %3928 = vmatprep.subr.mxu0 0.0
    %3929 = vmatpush1.msra.mxu0 0.0
    %3930 = vmatprep.mubr.f32.mxu0 0.0
    %3931 = vmatmul.mubr.f32.gmra.mrb[0].mxu0 %v3864
    %v3932 = vpop.f32.mrb[0].mxu0
    %v3933 = vadd.f32 0.0, %v3932
    %v3934 = vpop.f32.mrb[0].mxu0
    %3935 = vdwg.mxu0
    %v3937 = vrot.slane %v3933, 2
    %v3939 = vadd.f32 %v3130, %v3937
    %v3941 = vrot.slane %v3849, 2
    %3942 = vrot.lane.b32.xlu0 %v3941, 32
    %v3943 = vpop.permute.xlu0 %3942
    %v3944 = vsel %vm379, %v3943, 0
    %3946 = vmatprep.subr.mxu0 0.0
    %3947 = vmatpush1.msra.mxu0 %v3144
    %3948 = vmatprep.subr.mxu0 0.0
    %3949 = vmatpush1.msra.mxu0 %v3145
    %3950 = vmatprep.subr.mxu0 0.0
    %3951 = vmatpush1.msra.mxu0 %v3146
    %3952 = vmatprep.subr.mxu0 0.0
    %3953 = vmatpush1.msra.mxu0 %v3147
    %3954 = vmatprep.subr.mxu0 0.0
    %3955 = vmatpush1.msra.mxu0 0.0
    %3956 = vmatprep.subr.mxu0 0.0
    %3957 = vmatpush1.msra.mxu0 0.0
    %3958 = vmatprep.subr.mxu0 0.0
    %3959 = vmatpush1.msra.mxu0 0.0
    %3960 = vmatprep.subr.mxu0 0.0
    %3961 = vmatpush1.msra.mxu0 0.0
    %3962 = vmatprep.subr.mxu0 0.0
    %3963 = vmatpush1.msra.mxu0 0.0
    %3964 = vmatprep.subr.mxu0 0.0
    %3965 = vmatpush1.msra.mxu0 0.0
    %3966 = vmatprep.subr.mxu0 0.0
    %3967 = vmatpush1.msra.mxu0 0.0
    %3968 = vmatprep.subr.mxu0 0.0
    %3969 = vmatpush1.msra.mxu0 0.0
    %3970 = vmatprep.subr.mxu0 0.0
    %3971 = vmatpush1.msra.mxu0 0.0
    %3972 = vmatprep.subr.mxu0 0.0
    %3973 = vmatpush1.msra.mxu0 0.0
    %3974 = vmatprep.subr.mxu0 0.0
    %3975 = vmatpush1.msra.mxu0 0.0
    %3976 = vmatprep.subr.mxu0 0.0
    %3977 = vmatpush1.msra.mxu0 0.0
    %3978 = vmatprep.subr.mxu0 0.0
    %3979 = vmatpush1.msra.mxu0 0.0
    %3980 = vmatprep.subr.mxu0 0.0
    %3981 = vmatpush1.msra.mxu0 0.0
    %3982 = vmatprep.subr.mxu0 0.0
    %3983 = vmatpush1.msra.mxu0 0.0
    %3984 = vmatprep.subr.mxu0 0.0
    %3985 = vmatpush1.msra.mxu0 0.0
    %3986 = vmatprep.subr.mxu0 0.0
    %3987 = vmatpush1.msra.mxu0 0.0
    %3988 = vmatprep.subr.mxu0 0.0
    %3989 = vmatpush1.msra.mxu0 0.0
    %3990 = vmatprep.subr.mxu0 0.0
    %3991 = vmatpush1.msra.mxu0 0.0
    %3992 = vmatprep.subr.mxu0 0.0
    %3993 = vmatpush1.msra.mxu0 0.0
    %3994 = vmatprep.subr.mxu0 0.0
    %3995 = vmatpush1.msra.mxu0 0.0
    %3996 = vmatprep.subr.mxu0 0.0
    %3997 = vmatpush1.msra.mxu0 0.0
    %3998 = vmatprep.subr.mxu0 0.0
    %3999 = vmatpush1.msra.mxu0 0.0
    %4000 = vmatprep.subr.mxu0 0.0
    %4001 = vmatpush1.msra.mxu0 0.0
    %4002 = vmatprep.subr.mxu0 0.0
    %4003 = vmatpush1.msra.mxu0 0.0
    %4004 = vmatprep.subr.mxu0 0.0
    %4005 = vmatpush1.msra.mxu0 0.0
    %4006 = vmatprep.subr.mxu0 0.0
    %4007 = vmatpush1.msra.mxu0 0.0
    %4008 = vmatprep.subr.mxu0 0.0
    %4009 = vmatpush1.msra.mxu0 0.0
    %4010 = vmatprep.mubr.f32.mxu0 0.0
    %4011 = vmatmul.mubr.f32.gmra.mrb[0].mxu0 %v3944
    %v4012 = vpop.f32.mrb[0].mxu0
    %v4013 = vadd.f32 0.0, %v4012
    %v4014 = vpop.f32.mrb[0].mxu0
    %4015 = vdwg.mxu0
    %v4016 = vadd.f32 %v3138, %v4013
    %v4017 = vxor.u32 %v3939, 2147483648
    %v4018 = vmul.f32 %v4017, 1.442695
    %v4019 = vpow.pop %v4018
    %v4020 = vadd.f32 %v4019, 1.0
    %v4021 = vrcp.pop %v4020
    %v4022 = vmul.f32 1.0, %v4021
    %v4023 = vtanh.pop %v3939
    %v4025 = vrot.slane %v3838, 6
    %v4027 = vmul.f32 %v4022, %v4025
    %4029 = vrot.lane.b32.xlu0 %v4023, 64
    %v4030 = vpop.permute.xlu0 %4029
    %v4032 = vmul.f32 %v4022, %v4030
    %4034 = vrot.lane.b32.xlu0 %v4032, 32
    %v4035 = vpop.permute.xlu0 %4034
    %v4037 = vadd.f32 %v4027, %v4035
    %v4038 = vtanh.pop %v4037
    %4040 = vrot.lane.b32.xlu0 %v4038, 64
    %v4041 = vpop.permute.xlu0 %4040
    %v4043 = vmul.f32 %v4022, %v4041
    %v4044 = vxor.u32 %v4016, 2147483648
    %v4045 = vmul.f32 %v4044, 1.442695
    %v4046 = vpow.pop %v4045
    %v4047 = vadd.f32 %v4046, 1.0
    %v4048 = vrcp.pop %v4047
    %v4049 = vmul.f32 1.0, %v4048
    %v4050 = vtanh.pop %v4016
    %v4052 = vrot.slane %v3859, 2
    %v4054 = vmul.f32 %v4049, %v4052
    %4056 = vrot.lane.b32.xlu0 %v4050, 64
    %v4057 = vpop.permute.xlu0 %4056
    %v4059 = vmul.f32 %v4049, %v4057
    %4061 = vrot.lane.b32.xlu0 %v4059, 32
    %v4062 = vpop.permute.xlu0 %4061
    %v4064 = vadd.f32 %v4054, %v4062
    %v4065 = vtanh.pop %v4064
    %4067 = vrot.lane.b32.xlu0 %v4065, 64
    %v4068 = vpop.permute.xlu0 %4067
    %v4070 = vmul.f32 %v4049, %v4068
    %v4071 = vmul.f32 %v579, %v4043
    %v4072 = vrot.slane %v3828, 6
    %4073 = vrot.lane.b32.xlu0 %v4072, 32
    %v4074 = vpop.permute.xlu0 %4073
    %v4076 = vmul.f32 %v586, %v4074
    %4078 = vrot.lane.b32.xlu0 %v4076, 96
    %v4079 = vpop.permute.xlu0 %4078
    %v4081 = vadd.f32 %v4071, %v4079
    %v4082 = vmul.f32 %v579, %v4037
    %4083 = vrot.lane.b32.xlu0 %v4025, 96
    %v4084 = vpop.permute.xlu0 %4083
    %v4086 = vmul.f32 %v586, %v4084
    %4088 = vrot.lane.b32.xlu0 %v4086, 32
    %v4089 = vpop.permute.xlu0 %4088
    %v4091 = vadd.f32 %v4082, %v4089
    %v4092 = vmul.f32 %v595, %v4070
    %v4094 = vmul.f32 %v602, %v3943
    %4096 = vrot.lane.b32.xlu0 %v4094, 96
    %v4097 = vpop.permute.xlu0 %4096
    %v4099 = vadd.f32 %v4092, %v4097
    %v4100 = vmul.f32 %v595, %v4064
    %4101 = vrot.lane.b32.xlu0 %v4052, 96
    %v4102 = vpop.permute.xlu0 %4101
    %v4104 = vmul.f32 %v602, %v4102
    %4106 = vrot.lane.b32.xlu0 %v4104, 32
    %v4107 = vpop.permute.xlu0 %4106
    %v4109 = vadd.f32 %v4100, %v4107
    %v4111 = vrot.slane %v4081, 6
    %4112 = vrot.lane.b32.xlu0 %v4111, 32
    %v4113 = vpop.permute.xlu0 %4112
    %v4114 = vsel %vm379, %v4113, 0
    %4116 = vmatprep.subr.mxu0 0.0
    %4117 = vmatpush1.msra.mxu0 %v3140
    %4118 = vmatprep.subr.mxu0 0.0
    %4119 = vmatpush1.msra.mxu0 %v3141
    %4120 = vmatprep.subr.mxu0 0.0
    %4121 = vmatpush1.msra.mxu0 %v3142
    %4122 = vmatprep.subr.mxu0 0.0
    %4123 = vmatpush1.msra.mxu0 %v3143
    %4124 = vmatprep.subr.mxu0 0.0
    %4125 = vmatpush1.msra.mxu0 0.0
    %4126 = vmatprep.subr.mxu0 0.0
    %4127 = vmatpush1.msra.mxu0 0.0
    %4128 = vmatprep.subr.mxu0 0.0
    %4129 = vmatpush1.msra.mxu0 0.0
    %4130 = vmatprep.subr.mxu0 0.0
    %4131 = vmatpush1.msra.mxu0 0.0
    %4132 = vmatprep.subr.mxu0 0.0
    %4133 = vmatpush1.msra.mxu0 0.0
    %4134 = vmatprep.subr.mxu0 0.0
    %4135 = vmatpush1.msra.mxu0 0.0
    %4136 = vmatprep.subr.mxu0 0.0
    %4137 = vmatpush1.msra.mxu0 0.0
    %4138 = vmatprep.subr.mxu0 0.0
    %4139 = vmatpush1.msra.mxu0 0.0
    %4140 = vmatprep.subr.mxu0 0.0
    %4141 = vmatpush1.msra.mxu0 0.0
    %4142 = vmatprep.subr.mxu0 0.0
    %4143 = vmatpush1.msra.mxu0 0.0
    %4144 = vmatprep.subr.mxu0 0.0
    %4145 = vmatpush1.msra.mxu0 0.0
    %4146 = vmatprep.subr.mxu0 0.0
    %4147 = vmatpush1.msra.mxu0 0.0
    %4148 = vmatprep.subr.mxu0 0.0
    %4149 = vmatpush1.msra.mxu0 0.0
    %4150 = vmatprep.subr.mxu0 0.0
    %4151 = vmatpush1.msra.mxu0 0.0
    %4152 = vmatprep.subr.mxu0 0.0
    %4153 = vmatpush1.msra.mxu0 0.0
    %4154 = vmatprep.subr.mxu0 0.0
    %4155 = vmatpush1.msra.mxu0 0.0
    %4156 = vmatprep.subr.mxu0 0.0
    %4157 = vmatpush1.msra.mxu0 0.0
    %4158 = vmatprep.subr.mxu0 0.0
    %4159 = vmatpush1.msra.mxu0 0.0
    %4160 = vmatprep.subr.mxu0 0.0
    %4161 = vmatpush1.msra.mxu0 0.0
    %4162 = vmatprep.subr.mxu0 0.0
    %4163 = vmatpush1.msra.mxu0 0.0
    %4164 = vmatprep.subr.mxu0 0.0
    %4165 = vmatpush1.msra.mxu0 0.0
    %4166 = vmatprep.subr.mxu0 0.0
    %4167 = vmatpush1.msra.mxu0 0.0
    %4168 = vmatprep.subr.mxu0 0.0
    %4169 = vmatpush1.msra.mxu0 0.0
    %4170 = vmatprep.subr.mxu0 0.0
    %4171 = vmatpush1.msra.mxu0 0.0
    %4172 = vmatprep.subr.mxu0 0.0
    %4173 = vmatpush1.msra.mxu0 0.0
    %4174 = vmatprep.subr.mxu0 0.0
    %4175 = vmatpush1.msra.mxu0 0.0
    %4176 = vmatprep.subr.mxu0 0.0
    %4177 = vmatpush1.msra.mxu0 0.0
    %4178 = vmatprep.subr.mxu0 0.0
    %4179 = vmatpush1.msra.mxu0 0.0
    %4180 = vmatprep.mubr.f32.mxu0 0.0
    %4181 = vmatmul.mubr.f32.gmra.mrb[0].mxu0 %v4114
    %v4182 = vpop.f32.mrb[0].mxu0
    %v4183 = vadd.f32 0.0, %v4182
    %v4184 = vpop.f32.mrb[0].mxu0
    %4185 = vdwg.mxu0
    %v4186 = vadd.f32 %v3136, %v4183
    %4188 = vrot.lane.b32.xlu0 %v4099, 32
    %v4189 = vpop.permute.xlu0 %4188
    %v4190 = vsel %vm379, %v4189, 0
    %4192 = vmatprep.subr.mxu0 0.0
    %4193 = vmatpush1.msra.mxu0 %v3144
    %4194 = vmatprep.subr.mxu0 0.0
    %4195 = vmatpush1.msra.mxu0 %v3145
    %4196 = vmatprep.subr.mxu0 0.0
    %4197 = vmatpush1.msra.mxu0 %v3146
    %4198 = vmatprep.subr.mxu0 0.0
    %4199 = vmatpush1.msra.mxu0 %v3147
    %4200 = vmatprep.subr.mxu0 0.0
    %4201 = vmatpush1.msra.mxu0 0.0
    %4202 = vmatprep.subr.mxu0 0.0
    %4203 = vmatpush1.msra.mxu0 0.0
    %4204 = vmatprep.subr.mxu0 0.0
    %4205 = vmatpush1.msra.mxu0 0.0
    %4206 = vmatprep.subr.mxu0 0.0
    %4207 = vmatpush1.msra.mxu0 0.0
    %4208 = vmatprep.subr.mxu0 0.0
    %4209 = vmatpush1.msra.mxu0 0.0
    %4210 = vmatprep.subr.mxu0 0.0
    %4211 = vmatpush1.msra.mxu0 0.0
    %4212 = vmatprep.subr.mxu0 0.0
    %4213 = vmatpush1.msra.mxu0 0.0
    %4214 = vmatprep.subr.mxu0 0.0
    %4215 = vmatpush1.msra.mxu0 0.0
    %4216 = vmatprep.subr.mxu0 0.0
    %4217 = vmatpush1.msra.mxu0 0.0
    %4218 = vmatprep.subr.mxu0 0.0
    %4219 = vmatpush1.msra.mxu0 0.0
    %4220 = vmatprep.subr.mxu0 0.0
    %4221 = vmatpush1.msra.mxu0 0.0
    %4222 = vmatprep.subr.mxu0 0.0
    %4223 = vmatpush1.msra.mxu0 0.0
    %4224 = vmatprep.subr.mxu0 0.0
    %4225 = vmatpush1.msra.mxu0 0.0
    %4226 = vmatprep.subr.mxu0 0.0
    %4227 = vmatpush1.msra.mxu0 0.0
    %4228 = vmatprep.subr.mxu0 0.0
    %4229 = vmatpush1.msra.mxu0 0.0
    %4230 = vmatprep.subr.mxu0 0.0
    %4231 = vmatpush1.msra.mxu0 0.0
    %4232 = vmatprep.subr.mxu0 0.0
    %4233 = vmatpush1.msra.mxu0 0.0
    %4234 = vmatprep.subr.mxu0 0.0
    %4235 = vmatpush1.msra.mxu0 0.0
    %4236 = vmatprep.subr.mxu0 0.0
    %4237 = vmatpush1.msra.mxu0 0.0
    %4238 = vmatprep.subr.mxu0 0.0
    %4239 = vmatpush1.msra.mxu0 0.0
    %4240 = vmatprep.subr.mxu0 0.0
    %4241 = vmatpush1.msra.mxu0 0.0
    %4242 = vmatprep.subr.mxu0 0.0
    %4243 = vmatpush1.msra.mxu0 0.0
    %4244 = vmatprep.subr.mxu0 0.0
    %4245 = vmatpush1.msra.mxu0 0.0
    %4246 = vmatprep.subr.mxu0 0.0
    %4247 = vmatpush1.msra.mxu0 0.0
    %4248 = vmatprep.subr.mxu0 0.0
    %4249 = vmatpush1.msra.mxu0 0.0
    %4250 = vmatprep.subr.mxu0 0.0
    %4251 = vmatpush1.msra.mxu0 0.0
    %4252 = vmatprep.subr.mxu0 0.0
    %4253 = vmatpush1.msra.mxu0 0.0
    %4254 = vmatprep.subr.mxu0 0.0
    %4255 = vmatpush1.msra.mxu0 0.0
    %4256 = vmatprep.mubr.f32.mxu0 0.0
    %4257 = vmatmul.mubr.f32.gmra.mrb[0].mxu0 %v4190
    %v4258 = vpop.f32.mrb[0].mxu0
    %v4259 = vadd.f32 0.0, %v4258
    %v4260 = vpop.f32.mrb[0].mxu0
    %4261 = vdwg.mxu0
    %v4263 = vrot.slane %v4259, 2
    %v4265 = vadd.f32 %v3132, %v4263
    %v4266 = vxor.u32 %v4186, 2147483648
    %v4267 = vmul.f32 %v4266, 1.442695
    %v4268 = vpow.pop %v4267
    %v4269 = vadd.f32 %v4268, 1.0
    %v4270 = vrcp.pop %v4269
    %v4271 = vmul.f32 1.0, %v4270
    %v4272 = vtanh.pop %v4186
    %v4274 = vrot.slane %v4091, 6
    %v4276 = vmul.f32 %v4271, %v4274
    %4278 = vrot.lane.b32.xlu0 %v4272, 64
    %v4279 = vpop.permute.xlu0 %4278
    %v4281 = vmul.f32 %v4271, %v4279
    %4283 = vrot.lane.b32.xlu0 %v4281, 32
    %v4284 = vpop.permute.xlu0 %4283
    %v4286 = vadd.f32 %v4276, %v4284
    %v4287 = vtanh.pop %v4286
    %4289 = vrot.lane.b32.xlu0 %v4287, 64
    %v4290 = vpop.permute.xlu0 %4289
    %v4292 = vmul.f32 %v4271, %v4290
    %v4293 = vxor.u32 %v4265, 2147483648
    %v4294 = vmul.f32 %v4293, 1.442695
    %v4295 = vpow.pop %v4294
    %v4296 = vadd.f32 %v4295, 1.0
    %v4297 = vrcp.pop %v4296
    %v4298 = vmul.f32 1.0, %v4297
    %v4299 = vtanh.pop %v4265
    %v4301 = vrot.slane %v4109, 2
    %v4303 = vmul.f32 %v4298, %v4301
    %4305 = vrot.lane.b32.xlu0 %v4299, 64
    %v4306 = vpop.permute.xlu0 %4305
    %v4308 = vmul.f32 %v4298, %v4306
    %4310 = vrot.lane.b32.xlu0 %v4308, 32
    %v4311 = vpop.permute.xlu0 %4310
    %v4313 = vadd.f32 %v4303, %v4311
    %v4314 = vtanh.pop %v4313
    %4316 = vrot.lane.b32.xlu0 %v4314, 64
    %v4317 = vpop.permute.xlu0 %4316
    %v4319 = vmul.f32 %v4298, %v4317
    %v4320 = vmul.f32 %v595, %v4292
    %v4322 = vmul.f32 %v602, %v4113
    %4324 = vrot.lane.b32.xlu0 %v4322, 96
    %v4325 = vpop.permute.xlu0 %4324
    %v4327 = vadd.f32 %v4320, %v4325
    %v4328 = vmul.f32 %v595, %v4286
    %4329 = vrot.lane.b32.xlu0 %v4274, 96
    %v4330 = vpop.permute.xlu0 %4329
    %v4332 = vmul.f32 %v602, %v4330
    %4334 = vrot.lane.b32.xlu0 %v4332, 32
    %v4335 = vpop.permute.xlu0 %4334
    %v4337 = vadd.f32 %v4328, %v4335
    %v4338 = vmul.f32 %v579, %v4319
    %v4339 = vrot.slane %v4099, 2
    %4340 = vrot.lane.b32.xlu0 %v4339, 32
    %v4341 = vpop.permute.xlu0 %4340
    %v4343 = vmul.f32 %v586, %v4341
    %4345 = vrot.lane.b32.xlu0 %v4343, 96
    %v4346 = vpop.permute.xlu0 %4345
    %v4348 = vadd.f32 %v4338, %v4346
    %v4349 = vmul.f32 %v579, %v4313
    %4350 = vrot.lane.b32.xlu0 %v4301, 96
    %v4351 = vpop.permute.xlu0 %4350
    %v4353 = vmul.f32 %v586, %v4351
    %4355 = vrot.lane.b32.xlu0 %v4353, 32
    %v4356 = vpop.permute.xlu0 %4355
    %v4358 = vadd.f32 %v4349, %v4356
    %4360 = vrot.lane.b32.xlu0 %v4327, 32
    %v4361 = vpop.permute.xlu0 %4360
    %v4362 = vsel %vm379, %v4361, 0
    %4364 = vmatprep.subr.mxu0 0.0
    %4365 = vmatpush1.msra.mxu0 %v3140
    %4366 = vmatprep.subr.mxu0 0.0
    %4367 = vmatpush1.msra.mxu0 %v3141
    %4368 = vmatprep.subr.mxu0 0.0
    %4369 = vmatpush1.msra.mxu0 %v3142
    %4370 = vmatprep.subr.mxu0 0.0
    %4371 = vmatpush1.msra.mxu0 %v3143
    %4372 = vmatprep.subr.mxu0 0.0
    %4373 = vmatpush1.msra.mxu0 0.0
    %4374 = vmatprep.subr.mxu0 0.0
    %4375 = vmatpush1.msra.mxu0 0.0
    %4376 = vmatprep.subr.mxu0 0.0
    %4377 = vmatpush1.msra.mxu0 0.0
    %4378 = vmatprep.subr.mxu0 0.0
    %4379 = vmatpush1.msra.mxu0 0.0
    %4380 = vmatprep.subr.mxu0 0.0
    %4381 = vmatpush1.msra.mxu0 0.0
    %4382 = vmatprep.subr.mxu0 0.0
    %4383 = vmatpush1.msra.mxu0 0.0
    %4384 = vmatprep.subr.mxu0 0.0
    %4385 = vmatpush1.msra.mxu0 0.0
    %4386 = vmatprep.subr.mxu0 0.0
    %4387 = vmatpush1.msra.mxu0 0.0
    %4388 = vmatprep.subr.mxu0 0.0
    %4389 = vmatpush1.msra.mxu0 0.0
    %4390 = vmatprep.subr.mxu0 0.0
    %4391 = vmatpush1.msra.mxu0 0.0
    %4392 = vmatprep.subr.mxu0 0.0
    %4393 = vmatpush1.msra.mxu0 0.0
    %4394 = vmatprep.subr.mxu0 0.0
    %4395 = vmatpush1.msra.mxu0 0.0
    %4396 = vmatprep.subr.mxu0 0.0
    %4397 = vmatpush1.msra.mxu0 0.0
    %4398 = vmatprep.subr.mxu0 0.0
    %4399 = vmatpush1.msra.mxu0 0.0
    %4400 = vmatprep.subr.mxu0 0.0
    %4401 = vmatpush1.msra.mxu0 0.0
    %4402 = vmatprep.subr.mxu0 0.0
    %4403 = vmatpush1.msra.mxu0 0.0
    %4404 = vmatprep.subr.mxu0 0.0
    %4405 = vmatpush1.msra.mxu0 0.0
    %4406 = vmatprep.subr.mxu0 0.0
    %4407 = vmatpush1.msra.mxu0 0.0
    %4408 = vmatprep.subr.mxu0 0.0
    %4409 = vmatpush1.msra.mxu0 0.0
    %4410 = vmatprep.subr.mxu0 0.0
    %4411 = vmatpush1.msra.mxu0 0.0
    %4412 = vmatprep.subr.mxu0 0.0
    %4413 = vmatpush1.msra.mxu0 0.0
    %4414 = vmatprep.subr.mxu0 0.0
    %4415 = vmatpush1.msra.mxu0 0.0
    %4416 = vmatprep.subr.mxu0 0.0
    %4417 = vmatpush1.msra.mxu0 0.0
    %4418 = vmatprep.subr.mxu0 0.0
    %4419 = vmatpush1.msra.mxu0 0.0
    %4420 = vmatprep.subr.mxu0 0.0
    %4421 = vmatpush1.msra.mxu0 0.0
    %4422 = vmatprep.subr.mxu0 0.0
    %4423 = vmatpush1.msra.mxu0 0.0
    %4424 = vmatprep.subr.mxu0 0.0
    %4425 = vmatpush1.msra.mxu0 0.0
    %4426 = vmatprep.subr.mxu0 0.0
    %4427 = vmatpush1.msra.mxu0 0.0
    %4428 = vmatprep.mubr.f32.mxu0 0.0
    %4429 = vmatmul.mubr.f32.gmra.mrb[0].mxu0 %v4362
    %v4430 = vpop.f32.mrb[0].mxu0
    %v4431 = vadd.f32 0.0, %v4430
    %v4432 = vpop.f32.mrb[0].mxu0
    %4433 = vdwg.mxu0
    %v4435 = vrot.slane %v4431, 6
    %v4437 = vadd.f32 %v3136, %v4435
    %v4439 = vrot.slane %v4348, 6
    %4440 = vrot.lane.b32.xlu0 %v4439, 32
    %v4441 = vpop.permute.xlu0 %4440
    %v4442 = vsel %vm379, %v4441, 0
    %4444 = vmatprep.subr.mxu0 0.0
    %4445 = vmatpush1.msra.mxu0 %v3144
    %4446 = vmatprep.subr.mxu0 0.0
    %4447 = vmatpush1.msra.mxu0 %v3145
    %4448 = vmatprep.subr.mxu0 0.0
    %4449 = vmatpush1.msra.mxu0 %v3146
    %4450 = vmatprep.subr.mxu0 0.0
    %4451 = vmatpush1.msra.mxu0 %v3147
    %4452 = vmatprep.subr.mxu0 0.0
    %4453 = vmatpush1.msra.mxu0 0.0
    %4454 = vmatprep.subr.mxu0 0.0
    %4455 = vmatpush1.msra.mxu0 0.0
    %4456 = vmatprep.subr.mxu0 0.0
    %4457 = vmatpush1.msra.mxu0 0.0
    %4458 = vmatprep.subr.mxu0 0.0
    %4459 = vmatpush1.msra.mxu0 0.0
    %4460 = vmatprep.subr.mxu0 0.0
    %4461 = vmatpush1.msra.mxu0 0.0
    %4462 = vmatprep.subr.mxu0 0.0
    %4463 = vmatpush1.msra.mxu0 0.0
    %4464 = vmatprep.subr.mxu0 0.0
    %4465 = vmatpush1.msra.mxu0 0.0
    %4466 = vmatprep.subr.mxu0 0.0
    %4467 = vmatpush1.msra.mxu0 0.0
    %4468 = vmatprep.subr.mxu0 0.0
    %4469 = vmatpush1.msra.mxu0 0.0
    %4470 = vmatprep.subr.mxu0 0.0
    %4471 = vmatpush1.msra.mxu0 0.0
    %4472 = vmatprep.subr.mxu0 0.0
    %4473 = vmatpush1.msra.mxu0 0.0
    %4474 = vmatprep.subr.mxu0 0.0
    %4475 = vmatpush1.msra.mxu0 0.0
    %4476 = vmatprep.subr.mxu0 0.0
    %4477 = vmatpush1.msra.mxu0 0.0
    %4478 = vmatprep.subr.mxu0 0.0
    %4479 = vmatpush1.msra.mxu0 0.0
    %4480 = vmatprep.subr.mxu0 0.0
    %4481 = vmatpush1.msra.mxu0 0.0
    %4482 = vmatprep.subr.mxu0 0.0
    %4483 = vmatpush1.msra.mxu0 0.0
    %4484 = vmatprep.subr.mxu0 0.0
    %4485 = vmatpush1.msra.mxu0 0.0
    %4486 = vmatprep.subr.mxu0 0.0
    %4487 = vmatpush1.msra.mxu0 0.0
    %4488 = vmatprep.subr.mxu0 0.0
    %4489 = vmatpush1.msra.mxu0 0.0
    %4490 = vmatprep.subr.mxu0 0.0
    %4491 = vmatpush1.msra.mxu0 0.0
    %4492 = vmatprep.subr.mxu0 0.0
    %4493 = vmatpush1.msra.mxu0 0.0
    %4494 = vmatprep.subr.mxu0 0.0
    %4495 = vmatpush1.msra.mxu0 0.0
    %4496 = vmatprep.subr.mxu0 0.0
    %4497 = vmatpush1.msra.mxu0 0.0
    %4498 = vmatprep.subr.mxu0 0.0
    %4499 = vmatpush1.msra.mxu0 0.0
    %4500 = vmatprep.subr.mxu0 0.0
    %4501 = vmatpush1.msra.mxu0 0.0
    %4502 = vmatprep.subr.mxu0 0.0
    %4503 = vmatpush1.msra.mxu0 0.0
    %4504 = vmatprep.subr.mxu0 0.0
    %4505 = vmatpush1.msra.mxu0 0.0
    %4506 = vmatprep.subr.mxu0 0.0
    %4507 = vmatpush1.msra.mxu0 0.0
    %4508 = vmatprep.mubr.f32.mxu0 0.0
    %4509 = vmatmul.mubr.f32.gmra.mrb[0].mxu0 %v4442
    %v4510 = vpop.f32.mrb[0].mxu0
    %v4511 = vadd.f32 0.0, %v4510
    %v4512 = vpop.f32.mrb[0].mxu0
    %4513 = vdwg.mxu0
    %v4515 = vrot.slane %v4511, 4
    %v4517 = vadd.f32 %v3132, %v4515
    %v4518 = vxor.u32 %v4437, 2147483648
    %v4519 = vmul.f32 %v4518, 1.442695
    %v4520 = vpow.pop %v4519
    %v4521 = vadd.f32 %v4520, 1.0
    %v4522 = vrcp.pop %v4521
    %v4523 = vmul.f32 1.0, %v4522
    %v4524 = vtanh.pop %v4437
    %v4526 = vrot.slane %v4337, 6
    %v4528 = vmul.f32 %v4523, %v4526
    %4530 = vrot.lane.b32.xlu0 %v4524, 64
    %v4531 = vpop.permute.xlu0 %4530
    %v4533 = vmul.f32 %v4523, %v4531
    %4535 = vrot.lane.b32.xlu0 %v4533, 32
    %v4536 = vpop.permute.xlu0 %4535
    %v4538 = vadd.f32 %v4528, %v4536
    %v4539 = vtanh.pop %v4538
    %4541 = vrot.lane.b32.xlu0 %v4539, 64
    %v4542 = vpop.permute.xlu0 %4541
    %v4544 = vmul.f32 %v4523, %v4542
    %v4545 = vxor.u32 %v4517, 2147483648
    %v4546 = vmul.f32 %v4545, 1.442695
    %v4547 = vpow.pop %v4546
    %v4548 = vadd.f32 %v4547, 1.0
    %v4549 = vrcp.pop %v4548
    %v4550 = vmul.f32 1.0, %v4549
    %v4551 = vtanh.pop %v4517
    %v4553 = vrot.slane %v4358, 2
    %v4555 = vmul.f32 %v4550, %v4553
    %4557 = vrot.lane.b32.xlu0 %v4551, 64
    %v4558 = vpop.permute.xlu0 %4557
    %v4560 = vmul.f32 %v4550, %v4558
    %4562 = vrot.lane.b32.xlu0 %v4560, 32
    %v4563 = vpop.permute.xlu0 %4562
    %v4565 = vadd.f32 %v4555, %v4563
    %v4566 = vtanh.pop %v4565
    %4568 = vrot.lane.b32.xlu0 %v4566, 64
    %v4569 = vpop.permute.xlu0 %4568
    %v4571 = vmul.f32 %v4550, %v4569
    %v4572 = vmul.f32 %v595, %v4544
    %v4573 = vrot.slane %v4327, 6
    %4574 = vrot.lane.b32.xlu0 %v4573, 32
    %v4575 = vpop.permute.xlu0 %4574
    %v4577 = vmul.f32 %v602, %v4575
    %4579 = vrot.lane.b32.xlu0 %v4577, 96
    %v4580 = vpop.permute.xlu0 %4579
    %v4582 = vadd.f32 %v4572, %v4580
    %v4583 = vmul.f32 %v595, %v4538
    %4584 = vrot.lane.b32.xlu0 %v4526, 96
    %v4585 = vpop.permute.xlu0 %4584
    %v4587 = vmul.f32 %v602, %v4585
    %4589 = vrot.lane.b32.xlu0 %v4587, 32
    %v4590 = vpop.permute.xlu0 %4589
    %v4592 = vadd.f32 %v4583, %v4590
    %v4593 = vmul.f32 %v579, %v4571
    %v4594 = vrot.slane %v4348, 2
    %4595 = vrot.lane.b32.xlu0 %v4594, 32
    %v4596 = vpop.permute.xlu0 %4595
    %v4598 = vmul.f32 %v586, %v4596
    %4600 = vrot.lane.b32.xlu0 %v4598, 96
    %v4601 = vpop.permute.xlu0 %4600
    %v4603 = vadd.f32 %v4593, %v4601
    %v4604 = vmul.f32 %v579, %v4565
    %4605 = vrot.lane.b32.xlu0 %v4553, 96
    %v4606 = vpop.permute.xlu0 %4605
    %v4608 = vmul.f32 %v586, %v4606
    %4610 = vrot.lane.b32.xlu0 %v4608, 32
    %v4611 = vpop.permute.xlu0 %4610
    %v4613 = vadd.f32 %v4604, %v4611
    %v4615 = vrot.slane %v4582, 2
    %4616 = vrot.lane.b32.xlu0 %v4615, 32
    %v4617 = vpop.permute.xlu0 %4616
    %v4618 = vsel %vm379, %v4617, 0
    %4620 = vmatprep.subr.mxu0 0.0
    %4621 = vmatpush1.msra.mxu0 %v3140
    %4622 = vmatprep.subr.mxu0 0.0
    %4623 = vmatpush1.msra.mxu0 %v3141
    %4624 = vmatprep.subr.mxu0 0.0
    %4625 = vmatpush1.msra.mxu0 %v3142
    %4626 = vmatprep.subr.mxu0 0.0
    %4627 = vmatpush1.msra.mxu0 %v3143
    %4628 = vmatprep.subr.mxu0 0.0
    %4629 = vmatpush1.msra.mxu0 0.0
    %4630 = vmatprep.subr.mxu0 0.0
    %4631 = vmatpush1.msra.mxu0 0.0
    %4632 = vmatprep.subr.mxu0 0.0
    %4633 = vmatpush1.msra.mxu0 0.0
    %4634 = vmatprep.subr.mxu0 0.0
    %4635 = vmatpush1.msra.mxu0 0.0
    %4636 = vmatprep.subr.mxu0 0.0
    %4637 = vmatpush1.msra.mxu0 0.0
    %4638 = vmatprep.subr.mxu0 0.0
    %4639 = vmatpush1.msra.mxu0 0.0
    %4640 = vmatprep.subr.mxu0 0.0
    %4641 = vmatpush1.msra.mxu0 0.0
    %4642 = vmatprep.subr.mxu0 0.0
    %4643 = vmatpush1.msra.mxu0 0.0
    %4644 = vmatprep.subr.mxu0 0.0
    %4645 = vmatpush1.msra.mxu0 0.0
    %4646 = vmatprep.subr.mxu0 0.0
    %4647 = vmatpush1.msra.mxu0 0.0
    %4648 = vmatprep.subr.mxu0 0.0
    %4649 = vmatpush1.msra.mxu0 0.0
    %4650 = vmatprep.subr.mxu0 0.0
    %4651 = vmatpush1.msra.mxu0 0.0
    %4652 = vmatprep.subr.mxu0 0.0
    %4653 = vmatpush1.msra.mxu0 0.0
    %4654 = vmatprep.subr.mxu0 0.0
    %4655 = vmatpush1.msra.mxu0 0.0
    %4656 = vmatprep.subr.mxu0 0.0
    %4657 = vmatpush1.msra.mxu0 0.0
    %4658 = vmatprep.subr.mxu0 0.0
    %4659 = vmatpush1.msra.mxu0 0.0
    %4660 = vmatprep.subr.mxu0 0.0
    %4661 = vmatpush1.msra.mxu0 0.0
    %4662 = vmatprep.subr.mxu0 0.0
    %4663 = vmatpush1.msra.mxu0 0.0
    %4664 = vmatprep.subr.mxu0 0.0
    %4665 = vmatpush1.msra.mxu0 0.0
    %4666 = vmatprep.subr.mxu0 0.0
    %4667 = vmatpush1.msra.mxu0 0.0
    %4668 = vmatprep.subr.mxu0 0.0
    %4669 = vmatpush1.msra.mxu0 0.0
    %4670 = vmatprep.subr.mxu0 0.0
    %4671 = vmatpush1.msra.mxu0 0.0
    %4672 = vmatprep.subr.mxu0 0.0
    %4673 = vmatpush1.msra.mxu0 0.0
    %4674 = vmatprep.subr.mxu0 0.0
    %4675 = vmatpush1.msra.mxu0 0.0
    %4676 = vmatprep.subr.mxu0 0.0
    %4677 = vmatpush1.msra.mxu0 0.0
    %4678 = vmatprep.subr.mxu0 0.0
    %4679 = vmatpush1.msra.mxu0 0.0
    %4680 = vmatprep.subr.mxu0 0.0
    %4681 = vmatpush1.msra.mxu0 0.0
    %4682 = vmatprep.subr.mxu0 0.0
    %4683 = vmatpush1.msra.mxu0 0.0
    %4684 = vmatprep.mubr.f32.mxu0 0.0
    %4685 = vmatmul.mubr.f32.gmra.mrb[0].mxu0 %v4618
    %v4686 = vpop.f32.mrb[0].mxu0
    %v4687 = vadd.f32 0.0, %v4686
    %v4688 = vpop.f32.mrb[0].mxu0
    %4689 = vdwg.mxu0
    %v4691 = vrot.slane %v4687, 4
    %v4693 = vadd.f32 %v3136, %v4691
    %v4695 = vrot.slane %v4603, 4
    %4696 = vrot.lane.b32.xlu0 %v4695, 32
    %v4697 = vpop.permute.xlu0 %4696
    %v4698 = vsel %vm379, %v4697, 0
    %4700 = vmatprep.subr.mxu0 0.0
    %4701 = vmatpush1.msra.mxu0 %v3144
    %4702 = vmatprep.subr.mxu0 0.0
    %4703 = vmatpush1.msra.mxu0 %v3145
    %4704 = vmatprep.subr.mxu0 0.0
    %4705 = vmatpush1.msra.mxu0 %v3146
    %4706 = vmatprep.subr.mxu0 0.0
    %4707 = vmatpush1.msra.mxu0 %v3147
    %4708 = vmatprep.subr.mxu0 0.0
    %4709 = vmatpush1.msra.mxu0 0.0
    %4710 = vmatprep.subr.mxu0 0.0
    %4711 = vmatpush1.msra.mxu0 0.0
    %4712 = vmatprep.subr.mxu0 0.0
    %4713 = vmatpush1.msra.mxu0 0.0
    %4714 = vmatprep.subr.mxu0 0.0
    %4715 = vmatpush1.msra.mxu0 0.0
    %4716 = vmatprep.subr.mxu0 0.0
    %4717 = vmatpush1.msra.mxu0 0.0
    %4718 = vmatprep.subr.mxu0 0.0
    %4719 = vmatpush1.msra.mxu0 0.0
    %4720 = vmatprep.subr.mxu0 0.0
    %4721 = vmatpush1.msra.mxu0 0.0
    %4722 = vmatprep.subr.mxu0 0.0
    %4723 = vmatpush1.msra.mxu0 0.0
    %4724 = vmatprep.subr.mxu0 0.0
    %4725 = vmatpush1.msra.mxu0 0.0
    %4726 = vmatprep.subr.mxu0 0.0
    %4727 = vmatpush1.msra.mxu0 0.0
    %4728 = vmatprep.subr.mxu0 0.0
    %4729 = vmatpush1.msra.mxu0 0.0
    %4730 = vmatprep.subr.mxu0 0.0
    %4731 = vmatpush1.msra.mxu0 0.0
    %4732 = vmatprep.subr.mxu0 0.0
    %4733 = vmatpush1.msra.mxu0 0.0
    %4734 = vmatprep.subr.mxu0 0.0
    %4735 = vmatpush1.msra.mxu0 0.0
    %4736 = vmatprep.subr.mxu0 0.0
    %4737 = vmatpush1.msra.mxu0 0.0
    %4738 = vmatprep.subr.mxu0 0.0
    %4739 = vmatpush1.msra.mxu0 0.0
    %4740 = vmatprep.subr.mxu0 0.0
    %4741 = vmatpush1.msra.mxu0 0.0
    %4742 = vmatprep.subr.mxu0 0.0
    %4743 = vmatpush1.msra.mxu0 0.0
    %4744 = vmatprep.subr.mxu0 0.0
    %4745 = vmatpush1.msra.mxu0 0.0
    %4746 = vmatprep.subr.mxu0 0.0
    %4747 = vmatpush1.msra.mxu0 0.0
    %4748 = vmatprep.subr.mxu0 0.0
    %4749 = vmatpush1.msra.mxu0 0.0
    %4750 = vmatprep.subr.mxu0 0.0
    %4751 = vmatpush1.msra.mxu0 0.0
    %4752 = vmatprep.subr.mxu0 0.0
    %4753 = vmatpush1.msra.mxu0 0.0
    %4754 = vmatprep.subr.mxu0 0.0
    %4755 = vmatpush1.msra.mxu0 0.0
    %4756 = vmatprep.subr.mxu0 0.0
    %4757 = vmatpush1.msra.mxu0 0.0
    %4758 = vmatprep.subr.mxu0 0.0
    %4759 = vmatpush1.msra.mxu0 0.0
    %4760 = vmatprep.subr.mxu0 0.0
    %4761 = vmatpush1.msra.mxu0 0.0
    %4762 = vmatprep.subr.mxu0 0.0
    %4763 = vmatpush1.msra.mxu0 0.0
    %4764 = vmatprep.mubr.f32.mxu0 0.0
    %4765 = vmatmul.mubr.f32.gmra.mrb[0].mxu0 %v4698
    %v4766 = vpop.f32.mrb[0].mxu0
    %v4767 = vadd.f32 0.0, %v4766
    %v4768 = vpop.f32.mrb[0].mxu0
    %4769 = vdwg.mxu0
    %v4771 = vrot.slane %v4767, 6
    %v4773 = vadd.f32 %v3132, %v4771
    %v4774 = vxor.u32 %v4693, 2147483648
    %v4775 = vmul.f32 %v4774, 1.442695
    %v4776 = vpow.pop %v4775
    %v4777 = vadd.f32 %v4776, 1.0
    %v4778 = vrcp.pop %v4777
    %v4779 = vmul.f32 1.0, %v4778
    %v4780 = vtanh.pop %v4693
    %v4782 = vrot.slane %v4592, 6
    %v4784 = vmul.f32 %v4779, %v4782
    %4786 = vrot.lane.b32.xlu0 %v4780, 64
    %v4787 = vpop.permute.xlu0 %4786
    %v4789 = vmul.f32 %v4779, %v4787
    %4791 = vrot.lane.b32.xlu0 %v4789, 32
    %v4792 = vpop.permute.xlu0 %4791
    %v4794 = vadd.f32 %v4784, %v4792
    %v4795 = vtanh.pop %v4794
    %4797 = vrot.lane.b32.xlu0 %v4795, 64
    %v4798 = vpop.permute.xlu0 %4797
    %v4800 = vmul.f32 %v4779, %v4798
    %v4801 = vxor.u32 %v4773, 2147483648
    %v4802 = vmul.f32 %v4801, 1.442695
    %v4803 = vpow.pop %v4802
    %v4804 = vadd.f32 %v4803, 1.0
    %v4805 = vrcp.pop %v4804
    %v4806 = vmul.f32 1.0, %v4805
    %v4807 = vtanh.pop %v4773
    %v4809 = vrot.slane %v4613, 2
    %v4811 = vmul.f32 %v4806, %v4809
    %4813 = vrot.lane.b32.xlu0 %v4807, 64
    %v4814 = vpop.permute.xlu0 %4813
    %v4816 = vmul.f32 %v4806, %v4814
    %4818 = vrot.lane.b32.xlu0 %v4816, 32
    %v4819 = vpop.permute.xlu0 %4818
    %v4821 = vadd.f32 %v4811, %v4819
    %v4822 = vtanh.pop %v4821
    %4824 = vrot.lane.b32.xlu0 %v4822, 64
    %v4825 = vpop.permute.xlu0 %4824
    %v4827 = vmul.f32 %v4806, %v4825
    %v4828 = vmul.f32 %v595, %v4800
    %v4829 = vrot.slane %v4582, 6
    %4830 = vrot.lane.b32.xlu0 %v4829, 32
    %v4831 = vpop.permute.xlu0 %4830
    %v4833 = vmul.f32 %v602, %v4831
    %4835 = vrot.lane.b32.xlu0 %v4833, 96
    %v4836 = vpop.permute.xlu0 %4835
    %v4838 = vadd.f32 %v4828, %v4836
    %v4839 = vmul.f32 %v595, %v4794
    %4840 = vrot.lane.b32.xlu0 %v4782, 96
    %v4841 = vpop.permute.xlu0 %4840
    %v4843 = vmul.f32 %v602, %v4841
    %4845 = vrot.lane.b32.xlu0 %v4843, 32
    %v4846 = vpop.permute.xlu0 %4845
    %v4848 = vadd.f32 %v4839, %v4846
    %v4849 = vmul.f32 %v579, %v4827
    %v4850 = vrot.slane %v4603, 2
    %4851 = vrot.lane.b32.xlu0 %v4850, 32
    %v4852 = vpop.permute.xlu0 %4851
    %v4854 = vmul.f32 %v586, %v4852
    %4856 = vrot.lane.b32.xlu0 %v4854, 96
    %v4857 = vpop.permute.xlu0 %4856
    %v4859 = vadd.f32 %v4849, %v4857
    %v4860 = vmul.f32 %v579, %v4821
    %4861 = vrot.lane.b32.xlu0 %v4809, 96
    %v4862 = vpop.permute.xlu0 %4861
    %v4864 = vmul.f32 %v586, %v4862
    %4866 = vrot.lane.b32.xlu0 %v4864, 32
    %v4867 = vpop.permute.xlu0 %4866
    %v4869 = vadd.f32 %v4860, %v4867
    %v4871 = vrot.slane %v4838, 4
    %4872 = vrot.lane.b32.xlu0 %v4871, 32
    %v4873 = vpop.permute.xlu0 %4872
    %v4874 = vsel %vm379, %v4873, 0
    %4876 = vmatprep.subr.mxu0 0.0
    %4877 = vmatpush1.msra.mxu0 %v3140
    %4878 = vmatprep.subr.mxu0 0.0
    %4879 = vmatpush1.msra.mxu0 %v3141
    %4880 = vmatprep.subr.mxu0 0.0
    %4881 = vmatpush1.msra.mxu0 %v3142
    %4882 = vmatprep.subr.mxu0 0.0
    %4883 = vmatpush1.msra.mxu0 %v3143
    %4884 = vmatprep.subr.mxu0 0.0
    %4885 = vmatpush1.msra.mxu0 0.0
    %4886 = vmatprep.subr.mxu0 0.0
    %4887 = vmatpush1.msra.mxu0 0.0
    %4888 = vmatprep.subr.mxu0 0.0
    %4889 = vmatpush1.msra.mxu0 0.0
    %4890 = vmatprep.subr.mxu0 0.0
    %4891 = vmatpush1.msra.mxu0 0.0
    %4892 = vmatprep.subr.mxu0 0.0
    %4893 = vmatpush1.msra.mxu0 0.0
    %4894 = vmatprep.subr.mxu0 0.0
    %4895 = vmatpush1.msra.mxu0 0.0
    %4896 = vmatprep.subr.mxu0 0.0
    %4897 = vmatpush1.msra.mxu0 0.0
    %4898 = vmatprep.subr.mxu0 0.0
    %4899 = vmatpush1.msra.mxu0 0.0
    %4900 = vmatprep.subr.mxu0 0.0
    %4901 = vmatpush1.msra.mxu0 0.0
    %4902 = vmatprep.subr.mxu0 0.0
    %4903 = vmatpush1.msra.mxu0 0.0
    %4904 = vmatprep.subr.mxu0 0.0
    %4905 = vmatpush1.msra.mxu0 0.0
    %4906 = vmatprep.subr.mxu0 0.0
    %4907 = vmatpush1.msra.mxu0 0.0
    %4908 = vmatprep.subr.mxu0 0.0
    %4909 = vmatpush1.msra.mxu0 0.0
    %4910 = vmatprep.subr.mxu0 0.0
    %4911 = vmatpush1.msra.mxu0 0.0
    %4912 = vmatprep.subr.mxu0 0.0
    %4913 = vmatpush1.msra.mxu0 0.0
    %4914 = vmatprep.subr.mxu0 0.0
    %4915 = vmatpush1.msra.mxu0 0.0
    %4916 = vmatprep.subr.mxu0 0.0
    %4917 = vmatpush1.msra.mxu0 0.0
    %4918 = vmatprep.subr.mxu0 0.0
    %4919 = vmatpush1.msra.mxu0 0.0
    %4920 = vmatprep.subr.mxu0 0.0
    %4921 = vmatpush1.msra.mxu0 0.0
    %4922 = vmatprep.subr.mxu0 0.0
    %4923 = vmatpush1.msra.mxu0 0.0
    %4924 = vmatprep.subr.mxu0 0.0
    %4925 = vmatpush1.msra.mxu0 0.0
    %4926 = vmatprep.subr.mxu0 0.0
    %4927 = vmatpush1.msra.mxu0 0.0
    %4928 = vmatprep.subr.mxu0 0.0
    %4929 = vmatpush1.msra.mxu0 0.0
    %4930 = vmatprep.subr.mxu0 0.0
    %4931 = vmatpush1.msra.mxu0 0.0
    %4932 = vmatprep.subr.mxu0 0.0
    %4933 = vmatpush1.msra.mxu0 0.0
    %4934 = vmatprep.subr.mxu0 0.0
    %4935 = vmatpush1.msra.mxu0 0.0
    %4936 = vmatprep.subr.mxu0 0.0
    %4937 = vmatpush1.msra.mxu0 0.0
    %4938 = vmatprep.subr.mxu0 0.0
    %4939 = vmatpush1.msra.mxu0 0.0
    %4940 = vmatprep.mubr.f32.mxu0 0.0
    %4941 = vmatmul.mubr.f32.gmra.mrb[0].mxu0 %v4874
    %v4942 = vpop.f32.mrb[0].mxu0
    %v4943 = vadd.f32 0.0, %v4942
    %v4944 = vpop.f32.mrb[0].mxu0
    %4945 = vdwg.mxu0
    %v4947 = vrot.slane %v4943, 2
    %v4949 = vadd.f32 %v3136, %v4947
    %v4951 = vrot.slane %v4859, 2
    %4952 = vrot.lane.b32.xlu0 %v4951, 32
    %v4953 = vpop.permute.xlu0 %4952
    %v4954 = vsel %vm379, %v4953, 0
    %4956 = vmatprep.subr.mxu0 0.0
    %4957 = vmatpush1.msra.mxu0 %v3144
    %4958 = vmatprep.subr.mxu0 0.0
    %4959 = vmatpush1.msra.mxu0 %v3145
    %4960 = vmatprep.subr.mxu0 0.0
    %4961 = vmatpush1.msra.mxu0 %v3146
    %4962 = vmatprep.subr.mxu0 0.0
    %4963 = vmatpush1.msra.mxu0 %v3147
    %4964 = vmatprep.subr.mxu0 0.0
    %4965 = vmatpush1.msra.mxu0 0.0
    %4966 = vmatprep.subr.mxu0 0.0
    %4967 = vmatpush1.msra.mxu0 0.0
    %4968 = vmatprep.subr.mxu0 0.0
    %4969 = vmatpush1.msra.mxu0 0.0
    %4970 = vmatprep.subr.mxu0 0.0
    %4971 = vmatpush1.msra.mxu0 0.0
    %4972 = vmatprep.subr.mxu0 0.0
    %4973 = vmatpush1.msra.mxu0 0.0
    %4974 = vmatprep.subr.mxu0 0.0
    %4975 = vmatpush1.msra.mxu0 0.0
    %4976 = vmatprep.subr.mxu0 0.0
    %4977 = vmatpush1.msra.mxu0 0.0
    %4978 = vmatprep.subr.mxu0 0.0
    %4979 = vmatpush1.msra.mxu0 0.0
    %4980 = vmatprep.subr.mxu0 0.0
    %4981 = vmatpush1.msra.mxu0 0.0
    %4982 = vmatprep.subr.mxu0 0.0
    %4983 = vmatpush1.msra.mxu0 0.0
    %4984 = vmatprep.subr.mxu0 0.0
    %4985 = vmatpush1.msra.mxu0 0.0
    %4986 = vmatprep.subr.mxu0 0.0
    %4987 = vmatpush1.msra.mxu0 0.0
    %4988 = vmatprep.subr.mxu0 0.0
    %4989 = vmatpush1.msra.mxu0 0.0
    %4990 = vmatprep.subr.mxu0 0.0
    %4991 = vmatpush1.msra.mxu0 0.0
    %4992 = vmatprep.subr.mxu0 0.0
    %4993 = vmatpush1.msra.mxu0 0.0
    %4994 = vmatprep.subr.mxu0 0.0
    %4995 = vmatpush1.msra.mxu0 0.0
    %4996 = vmatprep.subr.mxu0 0.0
    %4997 = vmatpush1.msra.mxu0 0.0
    %4998 = vmatprep.subr.mxu0 0.0
    %4999 = vmatpush1.msra.mxu0 0.0
    %5000 = vmatprep.subr.mxu0 0.0
    %5001 = vmatpush1.msra.mxu0 0.0
    %5002 = vmatprep.subr.mxu0 0.0
    %5003 = vmatpush1.msra.mxu0 0.0
    %5004 = vmatprep.subr.mxu0 0.0
    %5005 = vmatpush1.msra.mxu0 0.0
    %5006 = vmatprep.subr.mxu0 0.0
    %5007 = vmatpush1.msra.mxu0 0.0
    %5008 = vmatprep.subr.mxu0 0.0
    %5009 = vmatpush1.msra.mxu0 0.0
    %5010 = vmatprep.subr.mxu0 0.0
    %5011 = vmatpush1.msra.mxu0 0.0
    %5012 = vmatprep.subr.mxu0 0.0
    %5013 = vmatpush1.msra.mxu0 0.0
    %5014 = vmatprep.subr.mxu0 0.0
    %5015 = vmatpush1.msra.mxu0 0.0
    %5016 = vmatprep.subr.mxu0 0.0
    %5017 = vmatpush1.msra.mxu0 0.0
    %5018 = vmatprep.subr.mxu0 0.0
    %5019 = vmatpush1.msra.mxu0 0.0
    %5020 = vmatprep.mubr.f32.mxu0 0.0
    %5021 = vmatmul.mubr.f32.gmra.mrb[0].mxu0 %v4954
    %v5022 = vpop.f32.mrb[0].mxu0
    %v5023 = vadd.f32 0.0, %v5022
    %v5024 = vpop.f32.mrb[0].mxu0
    %5025 = vdwg.mxu0
    %v5026 = vadd.f32 %v3132, %v5023
    %v5027 = vxor.u32 %v4949, 2147483648
    %v5028 = vmul.f32 %v5027, 1.442695
    %v5029 = vpow.pop %v5028
    %v5030 = vadd.f32 %v5029, 1.0
    %v5031 = vrcp.pop %v5030
    %v5032 = vmul.f32 1.0, %v5031
    %v5033 = vtanh.pop %v4949
    %v5035 = vrot.slane %v4848, 6
    %v5037 = vmul.f32 %v5032, %v5035
    %5039 = vrot.lane.b32.xlu0 %v5033, 64
    %v5040 = vpop.permute.xlu0 %5039
    %v5042 = vmul.f32 %v5032, %v5040
    %5044 = vrot.lane.b32.xlu0 %v5042, 32
    %v5045 = vpop.permute.xlu0 %5044
    %v5047 = vadd.f32 %v5037, %v5045
    %v5048 = vtanh.pop %v5047
    %5050 = vrot.lane.b32.xlu0 %v5048, 64
    %v5051 = vpop.permute.xlu0 %5050
    %v5053 = vmul.f32 %v5032, %v5051
    %v5054 = vxor.u32 %v5026, 2147483648
    %v5055 = vmul.f32 %v5054, 1.442695
    %v5056 = vpow.pop %v5055
    %v5057 = vadd.f32 %v5056, 1.0
    %v5058 = vrcp.pop %v5057
    %v5059 = vmul.f32 1.0, %v5058
    %v5060 = vtanh.pop %v5026
    %v5062 = vrot.slane %v4869, 2
    %v5064 = vmul.f32 %v5059, %v5062
    %5066 = vrot.lane.b32.xlu0 %v5060, 64
    %v5067 = vpop.permute.xlu0 %5066
    %v5069 = vmul.f32 %v5059, %v5067
    %5071 = vrot.lane.b32.xlu0 %v5069, 32
    %v5072 = vpop.permute.xlu0 %5071
    %v5074 = vadd.f32 %v5064, %v5072
    %v5075 = vtanh.pop %v5074
    %5077 = vrot.lane.b32.xlu0 %v5075, 64
    %v5078 = vpop.permute.xlu0 %5077
    %v5080 = vmul.f32 %v5059, %v5078
    %v5081 = vmul.f32 %v595, %v5053
    %v5082 = vrot.slane %v4838, 6
    %5083 = vrot.lane.b32.xlu0 %v5082, 32
    %v5084 = vpop.permute.xlu0 %5083
    %v5086 = vmul.f32 %v602, %v5084
    %5088 = vrot.lane.b32.xlu0 %v5086, 96
    %v5089 = vpop.permute.xlu0 %5088
    %v5091 = vadd.f32 %v5081, %v5089
    %v5092 = vmul.f32 %v579, %v5080
    %v5094 = vmul.f32 %v586, %v4953
    %5096 = vrot.lane.b32.xlu0 %v5094, 96
    %v5097 = vpop.permute.xlu0 %5096
    %v5099 = vadd.f32 %v5092, %v5097
    %v5100 = vld [vmem:[%s12] sm:$0xff]
    %v5101 = vld [vmem:[%s12 + $0x8] sm:$0xff]
    %v5102 = vld [vmem:[%s12 + $0x10] sm:$0xff]
    %v5103 = vld [vmem:[%s12 + $0x18] sm:$0xff]
    %v5104 = vld [vmem:[%s12 + $0x20] sm:$0xff]
    %v5105 = vld [vmem:[%s12 + $0x28] sm:$0xff]
    %v5106 = vld [vmem:[%s12 + $0x30] sm:$0xff]
    %v5107 = vld [vmem:[%s12 + $0x38] sm:$0xff]
    %5109 = vrot.lane.b32.xlu0 %v5099, 32
    %v5110 = vpop.permute.xlu0 %5109
    %v5111 = vsel %vm379, %v5110, 0
    %5113 = vmatprep.subr.mxu0 0.0
    %5114 = vmatpush1.msra.mxu0 %v5104
    %5115 = vmatprep.subr.mxu0 0.0
    %5116 = vmatpush1.msra.mxu0 %v5105
    %5117 = vmatprep.subr.mxu0 0.0
    %5118 = vmatpush1.msra.mxu0 %v5106
    %5119 = vmatprep.subr.mxu0 0.0
    %5120 = vmatpush1.msra.mxu0 %v5107
    %5121 = vmatprep.subr.mxu0 0.0
    %5122 = vmatpush1.msra.mxu0 0.0
    %5123 = vmatprep.subr.mxu0 0.0
    %5124 = vmatpush1.msra.mxu0 0.0
    %5125 = vmatprep.subr.mxu0 0.0
    %5126 = vmatpush1.msra.mxu0 0.0
    %5127 = vmatprep.subr.mxu0 0.0
    %5128 = vmatpush1.msra.mxu0 0.0
    %5129 = vmatprep.subr.mxu0 0.0
    %5130 = vmatpush1.msra.mxu0 0.0
    %5131 = vmatprep.subr.mxu0 0.0
    %5132 = vmatpush1.msra.mxu0 0.0
    %5133 = vmatprep.subr.mxu0 0.0
    %5134 = vmatpush1.msra.mxu0 0.0
    %5135 = vmatprep.subr.mxu0 0.0
    %5136 = vmatpush1.msra.mxu0 0.0
    %5137 = vmatprep.subr.mxu0 0.0
    %5138 = vmatpush1.msra.mxu0 0.0
    %5139 = vmatprep.subr.mxu0 0.0
    %5140 = vmatpush1.msra.mxu0 0.0
    %5141 = vmatprep.subr.mxu0 0.0
    %5142 = vmatpush1.msra.mxu0 0.0
    %5143 = vmatprep.subr.mxu0 0.0
    %5144 = vmatpush1.msra.mxu0 0.0
    %5145 = vmatprep.subr.mxu0 0.0
    %5146 = vmatpush1.msra.mxu0 0.0
    %5147 = vmatprep.subr.mxu0 0.0
    %5148 = vmatpush1.msra.mxu0 0.0
    %5149 = vmatprep.subr.mxu0 0.0
    %5150 = vmatpush1.msra.mxu0 0.0
    %5151 = vmatprep.subr.mxu0 0.0
    %5152 = vmatpush1.msra.mxu0 0.0
    %5153 = vmatprep.subr.mxu0 0.0
    %5154 = vmatpush1.msra.mxu0 0.0
    %5155 = vmatprep.subr.mxu0 0.0
    %5156 = vmatpush1.msra.mxu0 0.0
    %5157 = vmatprep.subr.mxu0 0.0
    %5158 = vmatpush1.msra.mxu0 0.0
    %5159 = vmatprep.subr.mxu0 0.0
    %5160 = vmatpush1.msra.mxu0 0.0
    %5161 = vmatprep.subr.mxu0 0.0
    %5162 = vmatpush1.msra.mxu0 0.0
    %5163 = vmatprep.subr.mxu0 0.0
    %5164 = vmatpush1.msra.mxu0 0.0
    %5165 = vmatprep.subr.mxu0 0.0
    %5166 = vmatpush1.msra.mxu0 0.0
    %5167 = vmatprep.subr.mxu0 0.0
    %5168 = vmatpush1.msra.mxu0 0.0
    %5169 = vmatprep.subr.mxu0 0.0
    %5170 = vmatpush1.msra.mxu0 0.0
    %5171 = vmatprep.subr.mxu0 0.0
    %5172 = vmatpush1.msra.mxu0 0.0
    %5173 = vmatprep.subr.mxu0 0.0
    %5174 = vmatpush1.msra.mxu0 0.0
    %5175 = vmatprep.subr.mxu0 0.0
    %5176 = vmatpush1.msra.mxu0 0.0
    %5177 = vmatprep.mubr.f32.mxu0 0.0
    %5178 = vmatmul.mubr.f32.gmra.mrb[0].mxu0 %v5111
    %v5179 = vpop.f32.mrb[0].mxu0
    %v5180 = vadd.f32 0.0, %v5179
    %v5181 = vpop.f32.mrb[0].mxu0
    %5182 = vdwg.mxu0
    %v5184 = vrot.slane %v5091, 6
    %5185 = vrot.lane.b32.xlu0 %v5184, 32
    %v5186 = vpop.permute.xlu0 %5185
    %v5187 = vsel %vm379, %v5186, 0
    %5189 = vmatprep.subr.mxu0 0.0
    %5190 = vmatpush1.msra.mxu0 %v5100
    %5191 = vmatprep.subr.mxu0 0.0
    %5192 = vmatpush1.msra.mxu0 %v5101
    %5193 = vmatprep.subr.mxu0 0.0
    %5194 = vmatpush1.msra.mxu0 %v5102
    %5195 = vmatprep.subr.mxu0 0.0
    %5196 = vmatpush1.msra.mxu0 %v5103
    %5197 = vmatprep.subr.mxu0 0.0
    %5198 = vmatpush1.msra.mxu0 0.0
    %5199 = vmatprep.subr.mxu0 0.0
    %5200 = vmatpush1.msra.mxu0 0.0
    %5201 = vmatprep.subr.mxu0 0.0
    %5202 = vmatpush1.msra.mxu0 0.0
    %5203 = vmatprep.subr.mxu0 0.0
    %5204 = vmatpush1.msra.mxu0 0.0
    %5205 = vmatprep.subr.mxu0 0.0
    %5206 = vmatpush1.msra.mxu0 0.0
    %5207 = vmatprep.subr.mxu0 0.0
    %5208 = vmatpush1.msra.mxu0 0.0
    %5209 = vmatprep.subr.mxu0 0.0
    %5210 = vmatpush1.msra.mxu0 0.0
    %5211 = vmatprep.subr.mxu0 0.0
    %5212 = vmatpush1.msra.mxu0 0.0
    %5213 = vmatprep.subr.mxu0 0.0
    %5214 = vmatpush1.msra.mxu0 0.0
    %5215 = vmatprep.subr.mxu0 0.0
    %5216 = vmatpush1.msra.mxu0 0.0
    %5217 = vmatprep.subr.mxu0 0.0
    %5218 = vmatpush1.msra.mxu0 0.0
    %5219 = vmatprep.subr.mxu0 0.0
    %5220 = vmatpush1.msra.mxu0 0.0
    %5221 = vmatprep.subr.mxu0 0.0
    %5222 = vmatpush1.msra.mxu0 0.0
    %5223 = vmatprep.subr.mxu0 0.0
    %5224 = vmatpush1.msra.mxu0 0.0
    %5225 = vmatprep.subr.mxu0 0.0
    %5226 = vmatpush1.msra.mxu0 0.0
    %5227 = vmatprep.subr.mxu0 0.0
    %5228 = vmatpush1.msra.mxu0 0.0
    %5229 = vmatprep.subr.mxu0 0.0
    %5230 = vmatpush1.msra.mxu0 0.0
    %5231 = vmatprep.subr.mxu0 0.0
    %5232 = vmatpush1.msra.mxu0 0.0
    %5233 = vmatprep.subr.mxu0 0.0
    %5234 = vmatpush1.msra.mxu0 0.0
    %5235 = vmatprep.subr.mxu0 0.0
    %5236 = vmatpush1.msra.mxu0 0.0
    %5237 = vmatprep.subr.mxu0 0.0
    %5238 = vmatpush1.msra.mxu0 0.0
    %5239 = vmatprep.subr.mxu0 0.0
    %5240 = vmatpush1.msra.mxu0 0.0
    %5241 = vmatprep.subr.mxu0 0.0
    %5242 = vmatpush1.msra.mxu0 0.0
    %5243 = vmatprep.subr.mxu0 0.0
    %5244 = vmatpush1.msra.mxu0 0.0
    %5245 = vmatprep.subr.mxu0 0.0
    %5246 = vmatpush1.msra.mxu0 0.0
    %5247 = vmatprep.subr.mxu0 0.0
    %5248 = vmatpush1.msra.mxu0 0.0
    %5249 = vmatprep.subr.mxu0 0.0
    %5250 = vmatpush1.msra.mxu0 0.0
    %5251 = vmatprep.subr.mxu0 0.0
    %5252 = vmatpush1.msra.mxu0 0.0
    %5253 = vmatprep.mubr.f32.mxu0 0.0
    %5254 = vmatmul.mubr.f32.gmra.mrb[0].mxu0 %v5187
    %v5255 = vpop.f32.mrb[0].mxu0
    %v5256 = vadd.f32 %v5180, %v5255
    %v5257 = vpop.f32.mrb[0].mxu0
    %5258 = vdwg.mxu0
    %v5259 = vld [vmem:[%s13] sm:$0x1]
    %v5261 = vlaneseq
    %v5262 = vshrl.u32 %v5261, 7
    %v5263 = vsub.s32 0, %v5262
    %v5264 = vrot.slane %v5259, %v5263
    %v5266 = vadd.f32 %v5256, %v5264
    %vm5267 = vcmask 33792
    %v5268 = vsel %vm5267, %v5266, -inf
    %5269 = vmax.xlane.f32.xlu0 %v5268
    %v5270 = vpop.xlane.xlu0 %5269
    %v5271 = vsub.f32 %v5266, %v5270
    %v5272 = vmul.f32 %v5271, 1.442695
    %v5273 = vpow.pop %v5272
    %v5274 = vsel %vm5267, %v5273, 0.0
    %5275 = vadd.xlane.f32.xlu0 %v5274
    %v5276 = vpop.xlane.xlu0 %5275
    %v5277 = vlog2.pop %v5276
    %v5278 = vmul.f32 %v5277, 0.6931472
    %v5279 = vadd.f32 %v5278, %v5270
    %v5280 = vsub.f32 %v5266, %v5279
    %5281 = vst.msk [vmem:[#allocation18] sm:$0x3] %vm5267, %v5280
    // Predicated region
    $region90: #{_lambda_.1} parent=1 // pred_check
      _
    $region91: #{_lambda_.1} parent=1 // pred_check_branch
      %5283 = sbr.rel (0) target = $region93
    $region92: #{_lambda_.1} parent=1 // pred_region
      %s5285 = ssub.s32 32, 32
      %5286 = vsyncadd [#allocation6], %s5285
      %s5288 = sshll.u32 [#allocation18], 4
      %s5289 = int_to_ptr.vmem [resolvable:$true] %s5288
      %5291 = dma.vmem_to_hbm [thread:$0]  %s5289, 32, %s14, [#allocation6]
    $region93: #{_lambda_.1} parent=1 // pred_fallthru
      _
    // Predicated region
    $region94: #{_lambda_.1} parent=1 // pred_check
      _
    $region95: #{_lambda_.1} parent=1 // pred_check_branch
      %5293 = sbr.rel (0) target = $region97
    $region96: #{_lambda_.1} parent=1 // pred_region
      _
    $region97: #{_lambda_.1} parent=1 // pred_fallthru
      _
    // Predicated region
    $region98: #{_lambda_.1} parent=1 // pred_check
      _
    $region99: #{_lambda_.1} parent=1 // pred_check_branch
      %5295 = sbr.rel (0) target = $region101
    $region100: #{_lambda_.1} parent=1 // pred_region
      %5296 = dma.done [#allocation6], 32
    $region101: #{_lambda_.1} parent=1 // pred_fallthru
      _
    // Predicated region
    $region102: #{_lambda_.1} parent=1 // pred_check
      _
    $region103: #{_lambda_.1} parent=1 // pred_check_branch
      %5298 = sbr.rel (0) target = $region105
    $region104: #{_lambda_.1} parent=1 // pred_region
      _
    $region105: #{_lambda_.1} parent=1 // pred_fallthru
      _
    %5299 = vsyncpa [#allocation5], 1
    %5300 = vsyncpa [#allocation8], 1
    %5301 = vsyncpa [#allocation11], 1
    %5302 = vsyncpa [#allocation14], 1
    %5303 = vsyncpa [#allocation17], 1
    %5304 = vsyncpa [#allocation6], 1

</llo_original>
